<compile_context>
chip_gen: v6e
topology: v6e:2x2x1
jax: 0.10.0
libtpu: 0.0.40
codegen_flags: <defaults>
</compile_context>

<pallas_src>
import functools
import math

import jax
import jax.numpy as jnp
from jax import lax
from jax.experimental import pallas as pl
from jax.experimental.pallas import tpu as pltpu

NEG_SLOPE = 0.01                       # torch.nn.LeakyReLU() default


def _detect_vmem_limit():
    """Generation-aware scoped-VMEM limit: 0.75 * physical, capped at 96 MiB.
    Falls back to 48 MiB (safe on every generation, incl. v7x's 64 MiB)."""
    try:
        info = pltpu.get_tpu_info()
        for name in ("vmem_capacity_bytes", "vmem_bytes", "vmem_size_bytes"):
            cap = getattr(info, name, None)
            if cap:
                return int(min(0.75 * int(cap), 96 * 1024 * 1024))
    except Exception:
        pass
    return 48 * 1024 * 1024


VMEM_LIMIT = _detect_vmem_limit()
BLOCK_BUDGET = int(VMEM_LIMIT * 0.6)   # soft budget for pipelined blocks


def _round_up(x, m):
    return (x + m - 1) // m * m


def _leaky(y):
    return jnp.where(y > 0, y, NEG_SLOPE * y)


# ----------------------------------------------------------------------------
# Fused tiled matmul + bias + LeakyReLU  (FC layers and stride-2 convs)
# ----------------------------------------------------------------------------
def _mm_kernel(x_ref, w_ref, b_ref, o_ref, acc_ref, *, nk, relu):
    @pl.when(pl.program_id(2) == 0)
    def _():
        acc_ref[...] = jnp.zeros_like(acc_ref)

    acc_ref[...] += jnp.dot(x_ref[...], w_ref[...],
                            preferred_element_type=jnp.float32)

    @pl.when(pl.program_id(2) == nk - 1)
    def _():
        y = acc_ref[...] + b_ref[...]
        if relu:
            y = _leaky(y)
        o_ref[...] = y.astype(o_ref.dtype)


def _pick_tiles(M, K, N, budget):
    """VMEM-budget-driven tiles. Big tk/tn for the tiny-M, huge-K FC matmuls
    (fewer grid steps => less per-step overhead on the HBM-bound FC layers);
    tk always divides K (or equals it) so the reduction dim never pads."""
    tm = M if M <= 512 else 256
    tn = N if N <= 1024 else 1024

    def blk_bytes(tk_, tn_):
        return (2 * tm * tk_ * 2 + 2 * tk_ * tn_ * 2      # x / w double-buffered
                + 2 * tm * tn_ * 2 + tm * tn_ * 4          # out + f32 acc
                + 2 * tn_ * 4)                              # bias

    cands = set()
    if K <= 8192:
        cands.add(K)
    if K % 128 == 0:
        cands.update(d for d in range(128, min(K, 8192) + 1, 128) if K % d == 0)
    if not cands:
        cands.add(min(K, 2048))                             # will pad K
    fitting = [c for c in cands if blk_bytes(c, tn) <= budget]
    tk = max(fitting) if fitting else min(cands)
    while blk_bytes(tk, tn) > budget and tn >= 256 and tn % 256 == 0:
        tn //= 2
    return tm, tk, tn


def matmul_bias_act(x, w, b, relu=True, out_dtype=jnp.bfloat16):
    """y = act(x @ w + b). x:(M,K) w:(K,N) b:(N,). bf16 MXU, f32 accumulate."""
    M, K = x.shape
    K2, N = w.shape
    assert K == K2
    x = x.astype(jnp.bfloat16)
    w = w.astype(jnp.bfloat16)
    b2 = b.astype(jnp.float32).reshape(1, N)

    tm, tk, tn = _pick_tiles(M, K, N, BLOCK_BUDGET)
    if K % tk:                                    # rare: zero-pad reduction dim
        Kp = _round_up(K, tk)
        x = jnp.pad(x, ((0, 0), (0, Kp - K)))
        w = jnp.pad(w, ((0, Kp - K), (0, 0)))
        K = Kp
    nk = K // tk
    grid = (pl.cdiv(M, tm), pl.cdiv(N, tn), nk)

    cost = pl.CostEstimate(
        flops=2 * M * K * N, transcendentals=0,
        bytes_accessed=(M * K + K * N + M * N) * 2 + N * 4)

    return pl.pallas_call(
        functools.partial(_mm_kernel, nk=nk, relu=relu),
        out_shape=jax.ShapeDtypeStruct((M, N), out_dtype),
        grid=grid,
        in_specs=[
            pl.BlockSpec((tm, tk), lambda i, j, k: (i, k)),
            pl.BlockSpec((tk, tn), lambda i, j, k: (k, j)),
            pl.BlockSpec((1, tn), lambda i, j, k: (0, j)),
        ],
        out_specs=pl.BlockSpec((tm, tn), lambda i, j, k: (i, j)),
        scratch_shapes=[pltpu.VMEM((tm, tn), jnp.float32)],
        compiler_params=pltpu.CompilerParams(
            dimension_semantics=("parallel", "parallel", "arbitrary"),
            vmem_limit_bytes=VMEM_LIMIT),
        cost_estimate=cost,
    )(x, w, b2)


# ----------------------------------------------------------------------------
# Fused stride-1 conv: im2col folded into the kernel via shifted row windows,
# row-tiled, with in-kernel wide->dense compaction.
# ----------------------------------------------------------------------------
def _conv_kernel(x_ref, w_ref, b_ref, o_ref, acc_ref, *,
                 Wp, Wo, tr, Lw, shifts, relu, pair):
    # x_ref: (1, Hp*Wp, Cin)  w_ref: (ntaps, Cin, tco)  b_ref: (1, tco)
    # o_ref: (1, tr, Wo, tco) acc_ref: (Lw, tco) f32;  Lw = (tr-1)*Wp + Wo
    base = pl.program_id(2) * (tr * Wp)            # row-tile offset in flat img

    def win(t):
        return x_ref[0, pl.ds(base + shifts[t], Lw), :]

    ntaps = len(shifts)
    t = 0
    first = True
    while t < ntaps:
        if pair and t + 1 < ntaps:
            # Pair two taps along channels so the MXU contracts 2*Cin per pass
            # (Cin<=64 layers otherwise fill <=25% of a 256-wide MXU).
            a = jnp.concatenate([win(t), win(t + 1)], axis=-1)
            wk = jnp.concatenate([w_ref[t], w_ref[t + 1]], axis=0)
            t += 2
        else:
            a = win(t)
            wk = w_ref[t]
            t += 1
        p = jnp.dot(a, wk, preferred_element_type=jnp.float32)
        if first:
            acc_ref[...] = p
            first = False
        else:
            acc_ref[...] += p

    y = acc_ref[...] + b_ref[...]
    if relu:
        y = _leaky(y)
    y = y.astype(o_ref.dtype)
    # In-kernel compaction: row r of the block lives at wide offset r*Wp and
    # only its first Wo columns are valid.  (VMEM-local; no HBM round trip.)
    for row in range(tr):
        o_ref[0, row] = y[row * Wp:row * Wp + Wo, :]


def _pick_row_tile(Ho, Wp, Wo, tco):
    """Largest divisor of Ho whose f32 accumulator + pipelined output blocks
    fit a small per-call budget (keeps v7x happy, gives the grid row-tiles)."""
    lanes = max(tco, 128)
    budget = min(BLOCK_BUDGET // 2, 6 * 1024 * 1024)
    best = 1
    for tr in range(1, Ho + 1):
        if Ho % tr:
            continue
        Lw = (tr - 1) * Wp + Wo
        need = 2 * Lw * lanes * 4 + 2 * tr * Wo * tco * 2
        if need <= budget:
            best = tr
    return best


def conv2d_fused_s1(x, w, b, pad, relu=True, row_tile=None):
    """Stride-1 Conv2d + LeakyReLU on NHWC x with HWIO w, im2col-free.

    The padded image is flattened to (Hp*Wp, Cin); tap (di, dj) for row-tile r
    is the row window starting at r*tr*Wp + di*Wp + dj.  Output is written
    dense (N, Ho, Wo, Cout) directly by the kernel."""
    N, H, W, Cin = x.shape
    kh, kw, Cin2, Cout = w.shape
    assert Cin == Cin2
    Hp, Wp = H + 2 * pad, W + 2 * pad
    Ho, Wo = Hp - kh + 1, Wp - kw + 1
    if pad:
        x = jnp.pad(x, ((0, 0), (pad, pad), (pad, pad), (0, 0)))
    xf = x.reshape(N, Hp * Wp, Cin).astype(jnp.bfloat16)       # free reshape
    wt = w.reshape(kh * kw, Cin, Cout).astype(jnp.bfloat16)
    b2 = b.astype(jnp.float32).reshape(1, Cout)
    shifts = tuple(di * Wp + dj for di in range(kh) for dj in range(kw))

    tco = Cout if Cout <= 256 else 256
    n_co = pl.cdiv(Cout, tco)
    tr = row_tile if row_tile is not None else _pick_row_tile(Ho, Wp, Wo, tco)
    assert Ho % tr == 0
    n_rows = Ho // tr
    Lw = (tr - 1) * Wp + Wo
    pair = (kh * kw > 1) and (Cin % 8 == 0) and (Cin <= 64)

    # Grid order: keep the (far larger) operand resident across the inner axes.
    img_bytes = Hp * Wp * Cin * 2
    w_bytes = kh * kw * Cin * Cout * 2
    weight_resident = (N > 1) and ((n_co - 1) * N * img_bytes < (N - 1) * w_bytes)

    if weight_resident:                     # tail layers: weights stream once
        grid = (n_co, N, n_rows)
        x_map = lambda co, n, r: (n, 0, 0)
        w_map = lambda co, n, r: (0, 0, co)
        b_map = lambda co, n, r: (0, co)
        o_map = lambda co, n, r: (n, r, 0, co)
    else:                                   # early layers: image streams once
        grid = (N, n_co, n_rows)
        x_map = lambda n, co, r: (n, 0, 0)
        w_map = lambda n, co, r: (0, 0, co)
        b_map = lambda n, co, r: (0, co)
        o_map = lambda n, co, r: (n, r, 0, co)

    cost = pl.CostEstimate(
        flops=2 * N * Ho * Wo * Cin * Cout * kh * kw, transcendentals=0,
        bytes_accessed=(N * Hp * Wp * Cin + kh * kw * Cin * Cout
                        + N * Ho * Wo * Cout) * 2)

    return pl.pallas_call(
        functools.partial(_conv_kernel, Wp=Wp, Wo=Wo, tr=tr, Lw=Lw,
                          shifts=shifts, relu=relu, pair=pair),
        out_shape=jax.ShapeDtypeStruct((N, Ho, Wo, Cout), jnp.bfloat16),
        grid=grid,
        in_specs=[
            pl.BlockSpec((1, Hp * Wp, Cin), x_map),
            pl.BlockSpec((kh * kw, Cin, tco), w_map),
            pl.BlockSpec((1, tco), b_map),
        ],
        out_specs=pl.BlockSpec((1, tr, Wo, tco), o_map),
        scratch_shapes=[pltpu.VMEM((Lw, tco), jnp.float32)],
        compiler_params=pltpu.CompilerParams(
            dimension_semantics=("parallel", "parallel", "parallel"),
            vmem_limit_bytes=VMEM_LIMIT),
        cost_estimate=cost,
    )(xf, wt, b2)


# ----------------------------------------------------------------------------
# Fallback conv (also used for the two stride-2 layers): im2col + fused matmul
# ----------------------------------------------------------------------------
def conv2d_im2col(x, w, b, stride, pad, relu=True):
    # TODO(synk): the patch extraction is plain XLA (materializes kh*kw*C cols
    # in HBM); a space-to-depth stem kernel would avoid it for c1_0 on v5e.
    N, H, W, C = x.shape
    kh, kw, Cin, Cout = w.shape
    assert C == Cin
    xp = jnp.pad(x, ((0, 0), (pad, pad), (pad, pad), (0, 0))) if pad else x
    Ho = (H + 2 * pad - kh) // stride + 1
    Wo = (W + 2 * pad - kw) // stride + 1
    cols = []
    for i in range(kh):
        for j in range(kw):
            cols.append(lax.slice(
                xp, (0, i, j, 0),
                (N, i + (Ho - 1) * stride + 1, j + (Wo - 1) * stride + 1, C),
                (1, stride, stride, 1)))
    patches = jnp.concatenate(cols, axis=-1).reshape(N * Ho * Wo, kh * kw * C)
    wmat = w.reshape(kh * kw * Cin, Cout)
    out = matmul_bias_act(patches, wmat, b, relu=relu)
    return out.reshape(N, Ho, Wo, Cout)


def conv2d(x, w, b, stride, pad, relu=True, use_fused=True):
    if stride == 1 and use_fused:
        return conv2d_fused_s1(x, w, b, pad, relu=relu)
    return conv2d_im2col(x, w, b, stride, pad, relu=relu)


def _probe_fused_conv():
    """Validate the fused conv (dynamic row-tile offsets, tap pairing, and both
    grid orders) against lax.conv; fall back to im2col if anything fails."""
    try:
        ok = True
        for n in (1, 2):                                    # order A and order B
            k1, k2 = jax.random.split(jax.random.PRNGKey(n), 2)
            x = jax.random.normal(k1, (n, 10, 10, 8), jnp.float32)
            w = 0.1 * jax.random.normal(k2, (3, 3, 8, 16), jnp.float32)
            b = jnp.linspace(-0.1, 0.1, 16, dtype=jnp.float32)
            got = conv2d_fused_s1(x, w, b, pad=1, relu=False, row_tile=5)
            got = jax.block_until_ready(got).astype(jnp.float32)
            ref = lax.conv_general_dilated(
                x, w, window_strides=(1, 1), padding=((1, 1), (1, 1)),
                dimension_numbers=("NHWC", "HWIO", "NHWC")) + b
            ok = ok and bool(jnp.max(jnp.abs(got - ref)) < 0.1)
        return ok
    except Exception:
        return False


# ----------------------------------------------------------------------------
# MaxPool2d(2, 2): one contiguous block per grid step, reduced in-kernel
# ----------------------------------------------------------------------------
def _maxpool_kernel(x_ref, o_ref):
    v = x_ref[...]                                   # (bm, 2, Wo, 2, C)
    m = jnp.maximum(v[:, 0], v[:, 1])                # row parity
    o_ref[...] = jnp.maximum(m[:, :, 0, :], m[:, :, 1, :])   # col parity


def _maxpool_ref(x, pad):
    """Pure-XLA reference / fallback for MaxPool2d(2, 2, padding=pad)."""
    N, H, W, C = x.shape
    if pad:
        x = jnp.pad(x, ((0, 0), (pad, pad), (pad, pad), (0, 0)),
                    constant_values=-jnp.inf)
    Hp, Wp2 = x.shape[1], x.shape[2]
    Ho, Wo = (Hp - 2) // 2 + 1, (Wp2 - 2) // 2 + 1
    x = x[:, :2 * Ho, :2 * Wo, :]
    return jnp.max(x.reshape(N, Ho, 2, Wo, 2, C), axis=(2, 4))


def maxpool2x2_pallas(x, pad):
    """nn.MaxPool2d(kernel_size=2, stride=2, padding=pad) on NHWC input."""
    N, H, W, C = x.shape
    if pad:
        x = jnp.pad(x, ((0, 0), (pad, pad), (pad, pad), (0, 0)),
                    constant_values=-jnp.inf)
    Hp, Wp2 = x.shape[1], x.shape[2]
    Ho = (Hp - 2) // 2 + 1
    Wo = (Wp2 - 2) // 2 + 1
    x = x[:, :2 * Ho, :2 * Wo, :]                     # floor mode
    rows = N * Ho
    x5 = x.reshape(rows, 2, Wo, 2, C)                 # free row-major reshape

    row_bytes = 4 * Wo * C * x.dtype.itemsize
    bm = max(1, min(rows, (2 * 1024 * 1024) // max(1, row_bytes)))
    if bm > 8:
        bm = (bm // 8) * 8
    grid = (pl.cdiv(rows, bm),)

    out = pl.pallas_call(
        _maxpool_kernel,
        out_shape=jax.ShapeDtypeStruct((rows, Wo, C), x.dtype),
        grid=grid,
        in_specs=[pl.BlockSpec((bm, 2, Wo, 2, C), lambda i: (i, 0, 0, 0, 0))],
        out_specs=pl.BlockSpec((bm, Wo, C), lambda i: (i, 0, 0)),
        compiler_params=pltpu.CompilerParams(
            dimension_semantics=("parallel",),
            vmem_limit_bytes=VMEM_LIMIT),
    )(x5)
    return out.reshape(N, Ho, Wo, C)


def maxpool2x2(x, pad, use_pallas=True):
    if use_pallas:
        return maxpool2x2_pallas(x, pad)
    return _maxpool_ref(x, pad)


def _probe_maxpool():
    try:
        x = jax.random.normal(jax.random.PRNGKey(3),
                              (2, 6, 6, 8), jnp.float32).astype(jnp.bfloat16)
        for pad in (0, 1):
            got = jax.block_until_ready(maxpool2x2_pallas(x, pad))
            ref = _maxpool_ref(x, pad)
            if not bool(jnp.all(got.astype(jnp.float32)
                                == ref.astype(jnp.float32))):
                return False
        return True
    except Exception:
        return False


# ----------------------------------------------------------------------------
# Architecture (matches the PyTorch YOLOv1 __init__)
# ----------------------------------------------------------------------------
BASE_CONV_SPECS = (
    [("c1_0", 3, 64, 7, 2, 1),
     ("c1_1", 64, 192, 3, 1, 0),
     ("c2_0", 192, 128, 1, 1, 0),
     ("c2_1", 128, 256, 3, 1, 1),
     ("c2_2", 256, 256, 1, 1, 0),
     ("c2_3", 256, 512, 3, 1, 1)]
    + [t for i in range(4) for t in
       [(f"c3_{i}_0", 512, 256, 1, 1, 0), (f"c3_{i}_1", 256, 512, 3, 1, 1)]]
    + [("c4_0", 512, 512, 1, 1, 0),
       ("c4_1", 512, 1024, 3, 1, 1)]
    + [t for i in range(2) for t in
       [(f"c5_{i}_0", 1024, 512, 1, 1, 0), (f"c5_{i}_1", 512, 1024, 3, 1, 1)]]
    + [("c6_0", 1024, 1024, 3, 2, 1),
       ("c6_1", 1024, 1024, 3, 1, 1),
       ("c6_2", 1024, 1024, 3, 1, 1),
       ("c6_3", 1024, 1024, 3, 1, 1)]
)

POOL_AFTER = {"c1_0": 1, "c1_1": 1, "c2_3": 0, "c4_1": 0}  # layer -> pool pad


def scaled_conv_specs(width_div=1):
    def sc(c):
        return c if c == 3 else max(4, c // width_div)
    return [(name, sc(ci), sc(co), k, s, p)
            for name, ci, co, k, s, p in BASE_CONV_SPECS]


def conv_stack_out(specs, hw):
    h = w = hw
    cout = 3
    for name, _ci, co, k, stride, pad in specs:
        h = (h + 2 * pad - k) // stride + 1
        w = (w + 2 * pad - k) // stride + 1
        cout = co
        if name in POOL_AFTER:
            pp = POOL_AFTER[name]
            h = (h + 2 * pp - 2) // 2 + 1
            w = (w + 2 * pp - 2) // 2 + 1
    return h, w, cout


def init_params(key, specs, fc_hidden, feat_in, head_out):
    params = {}
    for name, cin, cout, k, _s, _p in specs:
        key, k1, k2 = jax.random.split(key, 3)
        fan_in = cin * k * k
        params[name] = (
            (jax.random.normal(k1, (k, k, cin, cout), jnp.float32)
             / math.sqrt(fan_in)).astype(jnp.bfloat16),
            0.01 * jax.random.normal(k2, (cout,), jnp.float32),
        )
    key, k1, k2, k3, k4 = jax.random.split(key, 5)
    # TODO(synk): on v7x the FC / tail-conv weights could be stored fp8 (int8
    # on v6e) to halve HBM streaming; kept bf16 here for exact-width semantics.
    params["fc1"] = (
        (jax.random.normal(k1, (feat_in, fc_hidden), jnp.float32)
         / math.sqrt(feat_in)).astype(jnp.bfloat16),
        0.01 * jax.random.normal(k2, (fc_hidden,), jnp.float32))
    params["fc2"] = (
        (jax.random.normal(k3, (fc_hidden, head_out), jnp.float32)
         / math.sqrt(fc_hidden)).astype(jnp.bfloat16),
        0.01 * jax.random.normal(k4, (head_out,), jnp.float32))
    return params


def yolo_forward(x_nchw, params, *, specs, s, depth, use_fused, use_pallas_pool):
    x = jnp.transpose(x_nchw, (0, 2, 3, 1)).astype(jnp.bfloat16)  # NCHW->NHWC
    for name, _ci, _co, _k, stride, pad in specs:
        w, b = params[name]
        x = conv2d(x, w, b, stride=stride, pad=pad, relu=True,
                   use_fused=use_fused)
        if name in POOL_AFTER:
            x = maxpool2x2(x, pad=POOL_AFTER[name], use_pallas=use_pallas_pool)
    n = x.shape[0]
    # Flatten in NCHW order so FC semantics match torch.nn.Flatten.
    x = jnp.transpose(x, (0, 3, 1, 2)).reshape(n, -1)
    w1, b1 = params["fc1"]
    x = matmul_bias_act(x, w1, b1, relu=True)
    # TODO(synk): nn.Dropout(0.5) is identity in eval mode; not applied here.
    w2, b2 = params["fc2"]
    x = matmul_bias_act(x, w2, b2, relu=False)
    return x.reshape(n, s, s, depth).astype(jnp.float32)


if __name__ == "__main__":
    # Demo config: same layer structure as YOLOv1(c=4, b=2, s=7) but with
    # channel widths /16 and a 64x64 input so the smoke test stays fast.
    # Full-size model: WIDTH_DIV=1, IMG=448, FC_HIDDEN=4096 -> flatten 50176.
    C_CLASSES, B_BOXES, S = 4, 2, 7
    WIDTH_DIV, IMG = 16, 64
    FC_HIDDEN = 4096 // WIDTH_DIV
    depth = B_BOXES * 5 + C_CLASSES

    specs = scaled_conv_specs(WIDTH_DIV)
    hf, wf, cf = conv_stack_out(specs, IMG)
    feat_in = hf * wf * cf

    key = jax.random.PRNGKey(0)
    key, pkey, xkey = jax.random.split(key, 3)
    params = init_params(pkey, specs, FC_HIDDEN, feat_in, S * S * depth)
    x = jax.random.normal(xkey, (2, 3, IMG, IMG), jnp.float32)  # NCHW, as torch

    use_fused = _probe_fused_conv()
    use_pallas_pool = _probe_maxpool()

    fwd = jax.jit(functools.partial(yolo_forward, specs=specs, s=S, depth=depth,
                                    use_fused=use_fused,
                                    use_pallas_pool=use_pallas_pool))
    out = jax.block_until_ready(fwd(x, params))
    assert out.shape == (2, S, S, depth), out.shape
    assert bool(jnp.all(jnp.isfinite(out)))
    print("KERNEL_OK")
</pallas_src>

<mosaic_0001>
module attributes {stable_mosaic.version = 11 : i64} {
  func.func @_conv_kernel(%arg0: i32, %arg1: i32, %arg2: i32, %arg3: memref<1x144x8xbf16, #tpu.memory_space<vmem>>, %arg4: memref<9x8x16xbf16, #tpu.memory_space<vmem>>, %arg5: memref<1x16xf32, #tpu.memory_space<vmem>>, %arg6: memref<1x5x10x16xbf16, #tpu.memory_space<vmem>>, %arg7: memref<58x16xf32, #tpu.memory_space<vmem>>) attributes {dimension_semantics = [#tpu.dimension_semantics<parallel>, #tpu.dimension_semantics<parallel>, #tpu.dimension_semantics<parallel>], iteration_bounds = array<i64: 1, 1, 2>, scalar_prefetch = 0 : i64, scratch_operands = 1 : i64, tpu.core_type = #tpu.core_type<tc>, window_params = [{transform_indices = @transform_0, window_bounds = array<i64: 1, 144, 8>}, {transform_indices = @transform_1, window_bounds = array<i64: 9, 8, 16>}, {transform_indices = @transform_2, window_bounds = array<i64: 1, 16>}, {transform_indices = @transform_3, window_bounds = array<i64: 1, 5, 10, 16>}]} {
    %c60_i32 = arith.constant 60 : i32
    %0 = arith.muli %arg2, %c60_i32 : i32
    %c0_i32 = arith.constant 0 : i32
    %1 = arith.addi %0, %c0_i32 : i32
    %c0 = arith.constant 0 : index
    %2 = arith.index_cast %1 : i32 to index
    %c0_0 = arith.constant 0 : index
    %3 = vector.load %arg3[%c0, %2, %c0_0] : memref<1x144x8xbf16, #tpu.memory_space<vmem>>, vector<1x58x8xbf16>
    %4 = vector.shape_cast %3 : vector<1x58x8xbf16> to vector<58x8xbf16>
    %c1_i32 = arith.constant 1 : i32
    %5 = arith.addi %0, %c1_i32 : i32
    %c0_1 = arith.constant 0 : index
    %6 = arith.index_cast %5 : i32 to index
    %c0_2 = arith.constant 0 : index
    %7 = vector.load %arg3[%c0_1, %6, %c0_2] : memref<1x144x8xbf16, #tpu.memory_space<vmem>>, vector<1x58x8xbf16>
    %8 = vector.shape_cast %7 : vector<1x58x8xbf16> to vector<58x8xbf16>
    %9 = tpu.concatenate %4, %8 in 1 : vector<58x8xbf16>, vector<58x8xbf16> -> vector<58x16xbf16>
    %c0_3 = arith.constant 0 : index
    %c0_4 = arith.constant 0 : index
    %c0_5 = arith.constant 0 : index
    %10 = vector.load %arg4[%c0_3, %c0_4, %c0_5] : memref<9x8x16xbf16, #tpu.memory_space<vmem>>, vector<1x8x16xbf16>
    %11 = vector.shape_cast %10 : vector<1x8x16xbf16> to vector<8x16xbf16>
    %c1 = arith.constant 1 : index
    %c0_6 = arith.constant 0 : index
    %c0_7 = arith.constant 0 : index
    %12 = vector.load %arg4[%c1, %c0_6, %c0_7] : memref<9x8x16xbf16, #tpu.memory_space<vmem>>, vector<1x8x16xbf16>
    %13 = vector.shape_cast %12 : vector<1x8x16xbf16> to vector<8x16xbf16>
    %14 = tpu.concatenate %11, %13 in 0 : vector<8x16xbf16>, vector<8x16xbf16> -> vector<16x16xbf16>
    %cst = arith.constant dense<0.000000e+00> : vector<58x16xf32>
    %15 = tpu.matmul %9, %14, %cst {dimension_numbers = #tpu.dot_dimension_numbers<[1], [0], [0], [1], [0, 0, 1, 1], [], []>} : vector<58x16xbf16>, vector<16x16xbf16>, vector<58x16xf32> -> vector<58x16xf32>
    %c0_8 = arith.constant 0 : index
    %c0_9 = arith.constant 0 : index
    %16 = vector.load %arg7[%c0_8, %c0_9] : memref<58x16xf32, #tpu.memory_space<vmem>>, vector<58x16xf32>
    tpu.vector_store %arg7[%c0_8, %c0_9], %15 {strides = array<i32>} : memref<58x16xf32, #tpu.memory_space<vmem>>, vector<58x16xf32>,
    %c2_i32 = arith.constant 2 : i32
    %17 = arith.addi %0, %c2_i32 : i32
    %c0_10 = arith.constant 0 : index
    %18 = arith.index_cast %17 : i32 to index
    %c0_11 = arith.constant 0 : index
    %19 = vector.load %arg3[%c0_10, %18, %c0_11] : memref<1x144x8xbf16, #tpu.memory_space<vmem>>, vector<1x58x8xbf16>
    %20 = vector.shape_cast %19 : vector<1x58x8xbf16> to vector<58x8xbf16>
    %c12_i32 = arith.constant 12 : i32
    %21 = arith.addi %0, %c12_i32 : i32
    %c0_12 = arith.constant 0 : index
    %22 = arith.index_cast %21 : i32 to index
    %c0_13 = arith.constant 0 : index
    %23 = vector.load %arg3[%c0_12, %22, %c0_13] : memref<1x144x8xbf16, #tpu.memory_space<vmem>>, vector<1x58x8xbf16>
    %24 = vector.shape_cast %23 : vector<1x58x8xbf16> to vector<58x8xbf16>
    %25 = tpu.concatenate %20, %24 in 1 : vector<58x8xbf16>, vector<58x8xbf16> -> vector<58x16xbf16>
    %c2 = arith.constant 2 : index
    %c0_14 = arith.constant 0 : index
    %c0_15 = arith.constant 0 : index
    %26 = vector.load %arg4[%c2, %c0_14, %c0_15] : memref<9x8x16xbf16, #tpu.memory_space<vmem>>, vector<1x8x16xbf16>
    %27 = vector.shape_cast %26 : vector<1x8x16xbf16> to vector<8x16xbf16>
    %c3 = arith.constant 3 : index
    %c0_16 = arith.constant 0 : index
    %c0_17 = arith.constant 0 : index
    %28 = vector.load %arg4[%c3, %c0_16, %c0_17] : memref<9x8x16xbf16, #tpu.memory_space<vmem>>, vector<1x8x16xbf16>
    %29 = vector.shape_cast %28 : vector<1x8x16xbf16> to vector<8x16xbf16>
    %30 = tpu.concatenate %27, %29 in 0 : vector<8x16xbf16>, vector<8x16xbf16> -> vector<16x16xbf16>
    %cst_18 = arith.constant dense<0.000000e+00> : vector<58x16xf32>
    %31 = tpu.matmul %25, %30, %cst_18 {dimension_numbers = #tpu.dot_dimension_numbers<[1], [0], [0], [1], [0, 0, 1, 1], [], []>} : vector<58x16xbf16>, vector<16x16xbf16>, vector<58x16xf32> -> vector<58x16xf32>
    %c0_19 = arith.constant 0 : index
    %c0_20 = arith.constant 0 : index
    %32 = vector.load %arg7[%c0_19, %c0_20] : memref<58x16xf32, #tpu.memory_space<vmem>>, vector<58x16xf32>
    %33 = arith.addf %32, %31 : vector<58x16xf32>
    %c0_21 = arith.constant 0 : index
    %c0_22 = arith.constant 0 : index
    %34 = vector.load %arg7[%c0_21, %c0_22] : memref<58x16xf32, #tpu.memory_space<vmem>>, vector<58x16xf32>
    tpu.vector_store %arg7[%c0_21, %c0_22], %33 {strides = array<i32>} : memref<58x16xf32, #tpu.memory_space<vmem>>, vector<58x16xf32>,
    %c13_i32 = arith.constant 13 : i32
    %35 = arith.addi %0, %c13_i32 : i32
    %c0_23 = arith.constant 0 : index
    %36 = arith.index_cast %35 : i32 to index
    %c0_24 = arith.constant 0 : index
    %37 = vector.load %arg3[%c0_23, %36, %c0_24] : memref<1x144x8xbf16, #tpu.memory_space<vmem>>, vector<1x58x8xbf16>
    %38 = vector.shape_cast %37 : vector<1x58x8xbf16> to vector<58x8xbf16>
    %c14_i32 = arith.constant 14 : i32
    %39 = arith.addi %0, %c14_i32 : i32
    %c0_25 = arith.constant 0 : index
    %40 = arith.index_cast %39 : i32 to index
    %c0_26 = arith.constant 0 : index
    %41 = vector.load %arg3[%c0_25, %40, %c0_26] : memref<1x144x8xbf16, #tpu.memory_space<vmem>>, vector<1x58x8xbf16>
    %42 = vector.shape_cast %41 : vector<1x58x8xbf16> to vector<58x8xbf16>
    %43 = tpu.concatenate %38, %42 in 1 : vector<58x8xbf16>, vector<58x8xbf16> -> vector<58x16xbf16>
    %c4 = arith.constant 4 : index
    %c0_27 = arith.constant 0 : index
    %c0_28 = arith.constant 0 : index
    %44 = vector.load %arg4[%c4, %c0_27, %c0_28] : memref<9x8x16xbf16, #tpu.memory_space<vmem>>, vector<1x8x16xbf16>
    %45 = vector.shape_cast %44 : vector<1x8x16xbf16> to vector<8x16xbf16>
    %c5 = arith.constant 5 : index
    %c0_29 = arith.constant 0 : index
    %c0_30 = arith.constant 0 : index
    %46 = vector.load %arg4[%c5, %c0_29, %c0_30] : memref<9x8x16xbf16, #tpu.memory_space<vmem>>, vector<1x8x16xbf16>
    %47 = vector.shape_cast %46 : vector<1x8x16xbf16> to vector<8x16xbf16>
    %48 = tpu.concatenate %45, %47 in 0 : vector<8x16xbf16>, vector<8x16xbf16> -> vector<16x16xbf16>
    %cst_31 = arith.constant dense<0.000000e+00> : vector<58x16xf32>
    %49 = tpu.matmul %43, %48, %cst_31 {dimension_numbers = #tpu.dot_dimension_numbers<[1], [0], [0], [1], [0, 0, 1, 1], [], []>} : vector<58x16xbf16>, vector<16x16xbf16>, vector<58x16xf32> -> vector<58x16xf32>
    %c0_32 = arith.constant 0 : index
    %c0_33 = arith.constant 0 : index
    %50 = vector.load %arg7[%c0_32, %c0_33] : memref<58x16xf32, #tpu.memory_space<vmem>>, vector<58x16xf32>
    %51 = arith.addf %50, %49 : vector<58x16xf32>
    %c0_34 = arith.constant 0 : index
    %c0_35 = arith.constant 0 : index
    %52 = vector.load %arg7[%c0_34, %c0_35] : memref<58x16xf32, #tpu.memory_space<vmem>>, vector<58x16xf32>
    tpu.vector_store %arg7[%c0_34, %c0_35], %51 {strides = array<i32>} : memref<58x16xf32, #tpu.memory_space<vmem>>, vector<58x16xf32>,
    %c24_i32 = arith.constant 24 : i32
    %53 = arith.addi %0, %c24_i32 : i32
    %c0_36 = arith.constant 0 : index
    %54 = arith.index_cast %53 : i32 to index
    %c0_37 = arith.constant 0 : index
    %55 = vector.load %arg3[%c0_36, %54, %c0_37] : memref<1x144x8xbf16, #tpu.memory_space<vmem>>, vector<1x58x8xbf16>
    %56 = vector.shape_cast %55 : vector<1x58x8xbf16> to vector<58x8xbf16>
    %c25_i32 = arith.constant 25 : i32
    %57 = arith.addi %0, %c25_i32 : i32
    %c0_38 = arith.constant 0 : index
    %58 = arith.index_cast %57 : i32 to index
    %c0_39 = arith.constant 0 : index
    %59 = vector.load %arg3[%c0_38, %58, %c0_39] : memref<1x144x8xbf16, #tpu.memory_space<vmem>>, vector<1x58x8xbf16>
    %60 = vector.shape_cast %59 : vector<1x58x8xbf16> to vector<58x8xbf16>
    %61 = tpu.concatenate %56, %60 in 1 : vector<58x8xbf16>, vector<58x8xbf16> -> vector<58x16xbf16>
    %c6 = arith.constant 6 : index
    %c0_40 = arith.constant 0 : index
    %c0_41 = arith.constant 0 : index
    %62 = vector.load %arg4[%c6, %c0_40, %c0_41] : memref<9x8x16xbf16, #tpu.memory_space<vmem>>, vector<1x8x16xbf16>
    %63 = vector.shape_cast %62 : vector<1x8x16xbf16> to vector<8x16xbf16>
    %c7 = arith.constant 7 : index
    %c0_42 = arith.constant 0 : index
    %c0_43 = arith.constant 0 : index
    %64 = vector.load %arg4[%c7, %c0_42, %c0_43] : memref<9x8x16xbf16, #tpu.memory_space<vmem>>, vector<1x8x16xbf16>
    %65 = vector.shape_cast %64 : vector<1x8x16xbf16> to vector<8x16xbf16>
    %66 = tpu.concatenate %63, %65 in 0 : vector<8x16xbf16>, vector<8x16xbf16> -> vector<16x16xbf16>
    %cst_44 = arith.constant dense<0.000000e+00> : vector<58x16xf32>
    %67 = tpu.matmul %61, %66, %cst_44 {dimension_numbers = #tpu.dot_dimension_numbers<[1], [0], [0], [1], [0, 0, 1, 1], [], []>} : vector<58x16xbf16>, vector<16x16xbf16>, vector<58x16xf32> -> vector<58x16xf32>
    %c0_45 = arith.constant 0 : index
    %c0_46 = arith.constant 0 : index
    %68 = vector.load %arg7[%c0_45, %c0_46] : memref<58x16xf32, #tpu.memory_space<vmem>>, vector<58x16xf32>
    %69 = arith.addf %68, %67 : vector<58x16xf32>
    %c0_47 = arith.constant 0 : index
    %c0_48 = arith.constant 0 : index
    %70 = vector.load %arg7[%c0_47, %c0_48] : memref<58x16xf32, #tpu.memory_space<vmem>>, vector<58x16xf32>
    tpu.vector_store %arg7[%c0_47, %c0_48], %69 {strides = array<i32>} : memref<58x16xf32, #tpu.memory_space<vmem>>, vector<58x16xf32>,
    %c26_i32 = arith.constant 26 : i32
    %71 = arith.addi %0, %c26_i32 : i32
    %c0_49 = arith.constant 0 : index
    %72 = arith.index_cast %71 : i32 to index
    %c0_50 = arith.constant 0 : index
    %73 = vector.load %arg3[%c0_49, %72, %c0_50] : memref<1x144x8xbf16, #tpu.memory_space<vmem>>, vector<1x58x8xbf16>
    %74 = vector.shape_cast %73 : vector<1x58x8xbf16> to vector<58x8xbf16>
    %c8 = arith.constant 8 : index
    %c0_51 = arith.constant 0 : index
    %c0_52 = arith.constant 0 : index
    %75 = vector.load %arg4[%c8, %c0_51, %c0_52] : memref<9x8x16xbf16, #tpu.memory_space<vmem>>, vector<1x8x16xbf16>
    %76 = vector.shape_cast %75 : vector<1x8x16xbf16> to vector<8x16xbf16>
    %cst_53 = arith.constant dense<0.000000e+00> : vector<58x16xf32>
    %77 = tpu.matmul %74, %76, %cst_53 {dimension_numbers = #tpu.dot_dimension_numbers<[1], [0], [0], [1], [0, 0, 1, 1], [], []>} : vector<58x8xbf16>, vector<8x16xbf16>, vector<58x16xf32> -> vector<58x16xf32>
    %c0_54 = arith.constant 0 : index
    %c0_55 = arith.constant 0 : index
    %78 = vector.load %arg7[%c0_54, %c0_55] : memref<58x16xf32, #tpu.memory_space<vmem>>, vector<58x16xf32>
    %79 = arith.addf %78, %77 : vector<58x16xf32>
    %c0_56 = arith.constant 0 : index
    %c0_57 = arith.constant 0 : index
    %80 = vector.load %arg7[%c0_56, %c0_57] : memref<58x16xf32, #tpu.memory_space<vmem>>, vector<58x16xf32>
    tpu.vector_store %arg7[%c0_56, %c0_57], %79 {strides = array<i32>} : memref<58x16xf32, #tpu.memory_space<vmem>>, vector<58x16xf32>,
    %c0_58 = arith.constant 0 : index
    %c0_59 = arith.constant 0 : index
    %81 = vector.load %arg7[%c0_58, %c0_59] : memref<58x16xf32, #tpu.memory_space<vmem>>, vector<58x16xf32>
    %c0_60 = arith.constant 0 : index
    %c0_61 = arith.constant 0 : index
    %82 = vector.load %arg5[%c0_60, %c0_61] : memref<1x16xf32, #tpu.memory_space<vmem>>, vector<1x16xf32>
    %83 = vector.broadcast %82 : vector<1x16xf32> to vector<58x16xf32>
    %84 = arith.addf %81, %83 : vector<58x16xf32>
    %85 = arith.truncf %84 : vector<58x16xf32> to vector<58x16xbf16>
    %86 = vector.extract_strided_slice %85 {offsets = [0, 0], sizes = [10, 16], strides = [1, 1]} : vector<58x16xbf16> to vector<10x16xbf16>
    %c0_62 = arith.constant 0 : index
    %c0_63 = arith.constant 0 : index
    %c0_64 = arith.constant 0 : index
    %c0_65 = arith.constant 0 : index
    %87 = vector.load %arg6[%c0_62, %c0_63, %c0_64, %c0_65] : memref<1x5x10x16xbf16, #tpu.memory_space<vmem>>, vector<1x1x10x16xbf16>
    %88 = vector.shape_cast %87 : vector<1x1x10x16xbf16> to vector<10x16xbf16>
    %89 = vector.shape_cast %86 : vector<10x16xbf16> to vector<1x1x10x16xbf16>
    tpu.vector_store %arg6[%c0_62, %c0_63, %c0_64, %c0_65], %89 {strides = array<i32>} : memref<1x5x10x16xbf16, #tpu.memory_space<vmem>>, vector<1x1x10x16xbf16>,
    %90 = vector.extract_strided_slice %85 {offsets = [12, 0], sizes = [10, 16], strides = [1, 1]} : vector<58x16xbf16> to vector<10x16xbf16>
    %c0_66 = arith.constant 0 : index
    %c1_67 = arith.constant 1 : index
    %c0_68 = arith.constant 0 : index
    %c0_69 = arith.constant 0 : index
    %91 = vector.load %arg6[%c0_66, %c1_67, %c0_68, %c0_69] : memref<1x5x10x16xbf16, #tpu.memory_space<vmem>>, vector<1x1x10x16xbf16>
    %92 = vector.shape_cast %91 : vector<1x1x10x16xbf16> to vector<10x16xbf16>
    %93 = vector.shape_cast %90 : vector<10x16xbf16> to vector<1x1x10x16xbf16>
    tpu.vector_store %arg6[%c0_66, %c1_67, %c0_68, %c0_69], %93 {strides = array<i32>} : memref<1x5x10x16xbf16, #tpu.memory_space<vmem>>, vector<1x1x10x16xbf16>,
    %94 = vector.extract_strided_slice %85 {offsets = [24, 0], sizes = [10, 16], strides = [1, 1]} : vector<58x16xbf16> to vector<10x16xbf16>
    %c0_70 = arith.constant 0 : index
    %c2_71 = arith.constant 2 : index
    %c0_72 = arith.constant 0 : index
    %c0_73 = arith.constant 0 : index
    %95 = vector.load %arg6[%c0_70, %c2_71, %c0_72, %c0_73] : memref<1x5x10x16xbf16, #tpu.memory_space<vmem>>, vector<1x1x10x16xbf16>
    %96 = vector.shape_cast %95 : vector<1x1x10x16xbf16> to vector<10x16xbf16>
    %97 = vector.shape_cast %94 : vector<10x16xbf16> to vector<1x1x10x16xbf16>
    tpu.vector_store %arg6[%c0_70, %c2_71, %c0_72, %c0_73], %97 {strides = array<i32>} : memref<1x5x10x16xbf16, #tpu.memory_space<vmem>>, vector<1x1x10x16xbf16>,
    %98 = vector.extract_strided_slice %85 {offsets = [36, 0], sizes = [10, 16], strides = [1, 1]} : vector<58x16xbf16> to vector<10x16xbf16>
    %c0_74 = arith.constant 0 : index
    %c3_75 = arith.constant 3 : index
    %c0_76 = arith.constant 0 : index
    %c0_77 = arith.constant 0 : index
    %99 = vector.load %arg6[%c0_74, %c3_75, %c0_76, %c0_77] : memref<1x5x10x16xbf16, #tpu.memory_space<vmem>>, vector<1x1x10x16xbf16>
    %100 = vector.shape_cast %99 : vector<1x1x10x16xbf16> to vector<10x16xbf16>
    %101 = vector.shape_cast %98 : vector<10x16xbf16> to vector<1x1x10x16xbf16>
    tpu.vector_store %arg6[%c0_74, %c3_75, %c0_76, %c0_77], %101 {strides = array<i32>} : memref<1x5x10x16xbf16, #tpu.memory_space<vmem>>, vector<1x1x10x16xbf16>,
    %102 = vector.extract_strided_slice %85 {offsets = [48, 0], sizes = [10, 16], strides = [1, 1]} : vector<58x16xbf16> to vector<10x16xbf16>
    %c0_78 = arith.constant 0 : index
    %c4_79 = arith.constant 4 : index
    %c0_80 = arith.constant 0 : index
    %c0_81 = arith.constant 0 : index
    %103 = vector.load %arg6[%c0_78, %c4_79, %c0_80, %c0_81] : memref<1x5x10x16xbf16, #tpu.memory_space<vmem>>, vector<1x1x10x16xbf16>
    %104 = vector.shape_cast %103 : vector<1x1x10x16xbf16> to vector<10x16xbf16>
    %105 = vector.shape_cast %102 : vector<10x16xbf16> to vector<1x1x10x16xbf16>
    tpu.vector_store %arg6[%c0_78, %c4_79, %c0_80, %c0_81], %105 {strides = array<i32>} : memref<1x5x10x16xbf16, #tpu.memory_space<vmem>>, vector<1x1x10x16xbf16>,
    return
  }
  func.func @transform_0(%arg0: i32, %arg1: i32, %arg2: i32) -> (i32, i32, i32) {
    %c0_i32 = arith.constant 0 : i32
    %c0_i32_0 = arith.constant 0 : i32
    %c0_i32_1 = arith.constant 0 : i32
    return %arg0, %c0_i32, %c0_i32_0 : i32, i32, i32
  }
  func.func @transform_1(%arg0: i32, %arg1: i32, %arg2: i32) -> (i32, i32, i32) {
    %c0_i32 = arith.constant 0 : i32
    %c0_i32_0 = arith.constant 0 : i32
    %c0_i32_1 = arith.constant 0 : i32
    return %c0_i32, %c0_i32_0, %arg1 : i32, i32, i32
  }
  func.func @transform_2(%arg0: i32, %arg1: i32, %arg2: i32) -> (i32, i32) {
    %c0_i32 = arith.constant 0 : i32
    %c0_i32_0 = arith.constant 0 : i32
    return %c0_i32, %arg1 : i32, i32
  }
  func.func @transform_3(%arg0: i32, %arg1: i32, %arg2: i32) -> (i32, i32, i32, i32) {
    %c0_i32 = arith.constant 0 : i32
    %c0_i32_0 = arith.constant 0 : i32
    return %arg0, %arg2, %c0_i32, %arg1 : i32, i32, i32, i32
  }
}

module attributes {stable_mosaic.version = 11 : i64} {
  func.func @_maxpool_kernel(%arg0: i32, %arg1: memref<6x2x3x2x8xbf16, #tpu.memory_space<vmem>>, %arg2: memref<6x3x8xbf16, #tpu.memory_space<vmem>>) attributes {dimension_semantics = [#tpu.dimension_semantics<parallel>], iteration_bounds = array<i64: 1>, scalar_prefetch = 0 : i64, scratch_operands = 0 : i64, tpu.core_type = #tpu.core_type<tc>, window_params = [{transform_indices = @transform_0, window_bounds = array<i64: 6, 2, 3, 2, 8>}, {transform_indices = @transform_1, window_bounds = array<i64: 6, 3, 8>}]} {
    %c0 = arith.constant 0 : index
    %c0_0 = arith.constant 0 : index
    %c0_1 = arith.constant 0 : index
    %c0_2 = arith.constant 0 : index
    %c0_3 = arith.constant 0 : index
    %0 = vector.load %arg1[%c0, %c0_0, %c0_1, %c0_2, %c0_3] : memref<6x2x3x2x8xbf16, #tpu.memory_space<vmem>>, vector<6x2x3x2x8xbf16>
    %1 = vector.extract_strided_slice %0 {offsets = [0, 0, 0, 0, 0], sizes = [6, 1, 3, 2, 8], strides = [1, 1, 1, 1, 1]} : vector<6x2x3x2x8xbf16> to vector<6x1x3x2x8xbf16>
    %2 = vector.shape_cast %1 : vector<6x1x3x2x8xbf16> to vector<6x3x2x8xbf16>
    %3 = vector.extract_strided_slice %0 {offsets = [0, 1, 0, 0, 0], sizes = [6, 1, 3, 2, 8], strides = [1, 1, 1, 1, 1]} : vector<6x2x3x2x8xbf16> to vector<6x1x3x2x8xbf16>
    %4 = vector.shape_cast %3 : vector<6x1x3x2x8xbf16> to vector<6x3x2x8xbf16>
    %5 = arith.maximumf %2, %4 : vector<6x3x2x8xbf16>
    %6 = vector.extract_strided_slice %5 {offsets = [0, 0, 0, 0], sizes = [6, 3, 1, 8], strides = [1, 1, 1, 1]} : vector<6x3x2x8xbf16> to vector<6x3x1x8xbf16>
    %7 = vector.shape_cast %6 : vector<6x3x1x8xbf16> to vector<6x3x8xbf16>
    %8 = vector.extract_strided_slice %5 {offsets = [0, 0, 1, 0], sizes = [6, 3, 1, 8], strides = [1, 1, 1, 1]} : vector<6x3x2x8xbf16> to vector<6x3x1x8xbf16>
    %9 = vector.shape_cast %8 : vector<6x3x1x8xbf16> to vector<6x3x8xbf16>
    %10 = arith.maximumf %7, %9 : vector<6x3x8xbf16>
    %c0_4 = arith.constant 0 : index
    %c0_5 = arith.constant 0 : index
    %c0_6 = arith.constant 0 : index
    %11 = vector.load %arg2[%c0_4, %c0_5, %c0_6] : memref<6x3x8xbf16, #tpu.memory_space<vmem>>, vector<6x3x8xbf16>
    tpu.vector_store %arg2[%c0_4, %c0_5, %c0_6], %10 {strides = array<i32>} : memref<6x3x8xbf16, #tpu.memory_space<vmem>>, vector<6x3x8xbf16>,
    return
  }
  func.func @transform_0(%arg0: i32) -> (i32, i32, i32, i32, i32) {
    %c0_i32 = arith.constant 0 : i32
    %c0_i32_0 = arith.constant 0 : i32
    %c0_i32_1 = arith.constant 0 : i32
    %c0_i32_2 = arith.constant 0 : i32
    %c0_i32_3 = arith.constant 0 : i32
    return %arg0, %c0_i32, %c0_i32_0, %c0_i32_1, %c0_i32_2 : i32, i32, i32, i32, i32
  }
  func.func @transform_1(%arg0: i32) -> (i32, i32, i32) {
    %c0_i32 = arith.constant 0 : i32
    %c0_i32_0 = arith.constant 0 : i32
    %c0_i32_1 = arith.constant 0 : i32
    return %arg0, %c0_i32, %c0_i32_0 : i32, i32, i32
  }
}

module attributes {stable_mosaic.version = 11 : i64} {
  func.func @_mm_kernel(%arg0: i32, %arg1: i32, %arg2: i32, %arg3: memref<256x147xbf16, #tpu.memory_space<vmem>>, %arg4: memref<147x4xbf16, #tpu.memory_space<vmem>>, %arg5: memref<1x4xf32, #tpu.memory_space<vmem>>, %arg6: memref<256x4xbf16, #tpu.memory_space<vmem>>, %arg7: memref<256x4xf32, #tpu.memory_space<vmem>>) attributes {dimension_semantics = [#tpu.dimension_semantics<parallel>, #tpu.dimension_semantics<parallel>, #tpu.dimension_semantics<arbitrary>], iteration_bounds = array<i64: 8, 1, 1>, scalar_prefetch = 0 : i64, scratch_operands = 1 : i64, tpu.core_type = #tpu.core_type<tc>, window_params = [{transform_indices = @transform_0, window_bounds = array<i64: 256, 147>}, {transform_indices = @transform_1, window_bounds = array<i64: 147, 4>}, {transform_indices = @transform_2, window_bounds = array<i64: 1, 4>}, {transform_indices = @transform_3, window_bounds = array<i64: 256, 4>}]} {
    %c0_i32 = arith.constant 0 : i32
    %0 = arith.cmpi eq, %arg2, %c0_i32 : i32
    %1 = arith.extui %0 : i1 to i32
    %c0_i32_0 = arith.constant 0 : i32
    %2 = arith.cmpi ne, %1, %c0_i32_0 : i32
    scf.if %2 {
      %cst_10 = arith.constant 0.000000e+00 : f32
      %12 = vector.broadcast %cst_10 : f32 to vector<256x4xf32>
      %c0_11 = arith.constant 0 : index
      %c0_12 = arith.constant 0 : index
      %13 = vector.load %arg7[%c0_11, %c0_12] : memref<256x4xf32, #tpu.memory_space<vmem>>, vector<256x4xf32>
      tpu.vector_store %arg7[%c0_11, %c0_12], %12 {strides = array<i32>} : memref<256x4xf32, #tpu.memory_space<vmem>>, vector<256x4xf32>,
    } else {
    }
    %c0 = arith.constant 0 : index
    %c0_1 = arith.constant 0 : index
    %3 = vector.load %arg7[%c0, %c0_1] : memref<256x4xf32, #tpu.memory_space<vmem>>, vector<256x4xf32>
    %c0_2 = arith.constant 0 : index
    %c0_3 = arith.constant 0 : index
    %4 = vector.load %arg3[%c0_2, %c0_3] : memref<256x147xbf16, #tpu.memory_space<vmem>>, vector<256x147xbf16>
    %c0_4 = arith.constant 0 : index
    %c0_5 = arith.constant 0 : index
    %5 = vector.load %arg4[%c0_4, %c0_5] : memref<147x4xbf16, #tpu.memory_space<vmem>>, vector<147x4xbf16>
    %cst = arith.constant dense<0.000000e+00> : vector<256x4xf32>
    %6 = tpu.matmul %4, %5, %cst {dimension_numbers = #tpu.dot_dimension_numbers<[1], [0], [0], [1], [0, 0, 1, 1], [], []>} : vector<256x147xbf16>, vector<147x4xbf16>, vector<256x4xf32> -> vector<256x4xf32>
    %7 = arith.addf %3, %6 : vector<256x4xf32>
    %c0_6 = arith.constant 0 : index
    %c0_7 = arith.constant 0 : index
    %8 = vector.load %arg7[%c0_6, %c0_7] : memref<256x4xf32, #tpu.memory_space<vmem>>, vector<256x4xf32>
    tpu.vector_store %arg7[%c0_6, %c0_7], %7 {strides = array<i32>} : memref<256x4xf32, #tpu.memory_space<vmem>>, vector<256x4xf32>,
    %c0_i32_8 = arith.constant 0 : i32
    %9 = arith.cmpi eq, %arg2, %c0_i32_8 : i32
    %10 = arith.extui %9 : i1 to i32
    %c0_i32_9 = arith.constant 0 : i32
    %11 = arith.cmpi ne, %10, %c0_i32_9 : i32
    scf.if %11 {
      %c0_10 = arith.constant 0 : index
      %c0_11 = arith.constant 0 : index
      %12 = vector.load %arg7[%c0_10, %c0_11] : memref<256x4xf32, #tpu.memory_space<vmem>>, vector<256x4xf32>
      %c0_12 = arith.constant 0 : index
      %c0_13 = arith.constant 0 : index
      %13 = vector.load %arg5[%c0_12, %c0_13] : memref<1x4xf32, #tpu.memory_space<vmem>>, vector<1x4xf32>
      %14 = vector.broadcast %13 : vector<1x4xf32> to vector<256x4xf32>
      %15 = arith.addf %12, %14 : vector<256x4xf32>
      %cst_14 = arith.constant 0.000000e+00 : f32
      %16 = vector.broadcast %cst_14 : f32 to vector<256x4xf32>
      %17 = arith.cmpf ogt, %15, %16 : vector<256x4xf32>
      %cst_15 = arith.constant 0.00999999977 : f32
      %18 = vector.broadcast %cst_15 : f32 to vector<256x4xf32>
      %19 = arith.mulf %18, %15 : vector<256x4xf32>
      %20 = arith.select %17, %15, %19 : vector<256x4xi1>, vector<256x4xf32>
      %21 = arith.truncf %20 : vector<256x4xf32> to vector<256x4xbf16>
      %c0_16 = arith.constant 0 : index
      %c0_17 = arith.constant 0 : index
      %22 = vector.load %arg6[%c0_16, %c0_17] : memref<256x4xbf16, #tpu.memory_space<vmem>>, vector<256x4xbf16>
      tpu.vector_store %arg6[%c0_16, %c0_17], %21 {strides = array<i32>} : memref<256x4xbf16, #tpu.memory_space<vmem>>, vector<256x4xbf16>,
    } else {
    }
    return
  }
  func.func @transform_0(%arg0: i32, %arg1: i32, %arg2: i32) -> (i32, i32) {
    %c0_i32 = arith.constant 0 : i32
    return %arg0, %arg2 : i32, i32
  }
  func.func @transform_1(%arg0: i32, %arg1: i32, %arg2: i32) -> (i32, i32) {
    %c0_i32 = arith.constant 0 : i32
    return %arg2, %arg1 : i32, i32
  }
  func.func @transform_2(%arg0: i32, %arg1: i32, %arg2: i32) -> (i32, i32) {
    %c0_i32 = arith.constant 0 : i32
    %c0_i32_0 = arith.constant 0 : i32
    return %c0_i32, %arg1 : i32, i32
  }
  func.func @transform_3(%arg0: i32, %arg1: i32, %arg2: i32) -> (i32, i32) {
    %c0_i32 = arith.constant 0 : i32
    return %arg0, %arg1 : i32, i32
  }
}

module attributes {stable_mosaic.version = 11 : i64} {
  func.func @_mm_kernel(%arg0: i32, %arg1: i32, %arg2: i32, %arg3: memref<392x36xbf16, #tpu.memory_space<vmem>>, %arg4: memref<36x12xbf16, #tpu.memory_space<vmem>>, %arg5: memref<1x12xf32, #tpu.memory_space<vmem>>, %arg6: memref<392x12xbf16, #tpu.memory_space<vmem>>, %arg7: memref<392x12xf32, #tpu.memory_space<vmem>>) attributes {dimension_semantics = [#tpu.dimension_semantics<parallel>, #tpu.dimension_semantics<parallel>, #tpu.dimension_semantics<arbitrary>], iteration_bounds = array<i64: 1, 1, 1>, scalar_prefetch = 0 : i64, scratch_operands = 1 : i64, tpu.core_type = #tpu.core_type<tc>, window_params = [{transform_indices = @transform_0, window_bounds = array<i64: 392, 36>}, {transform_indices = @transform_1, window_bounds = array<i64: 36, 12>}, {transform_indices = @transform_2, window_bounds = array<i64: 1, 12>}, {transform_indices = @transform_3, window_bounds = array<i64: 392, 12>}]} {
    %c0_i32 = arith.constant 0 : i32
    %0 = arith.cmpi eq, %arg2, %c0_i32 : i32
    %1 = arith.extui %0 : i1 to i32
    %c0_i32_0 = arith.constant 0 : i32
    %2 = arith.cmpi ne, %1, %c0_i32_0 : i32
    scf.if %2 {
      %cst_10 = arith.constant 0.000000e+00 : f32
      %12 = vector.broadcast %cst_10 : f32 to vector<392x12xf32>
      %c0_11 = arith.constant 0 : index
      %c0_12 = arith.constant 0 : index
      %13 = vector.load %arg7[%c0_11, %c0_12] : memref<392x12xf32, #tpu.memory_space<vmem>>, vector<392x12xf32>
      tpu.vector_store %arg7[%c0_11, %c0_12], %12 {strides = array<i32>} : memref<392x12xf32, #tpu.memory_space<vmem>>, vector<392x12xf32>,
    } else {
    }
    %c0 = arith.constant 0 : index
    %c0_1 = arith.constant 0 : index
    %3 = vector.load %arg7[%c0, %c0_1] : memref<392x12xf32, #tpu.memory_space<vmem>>, vector<392x12xf32>
    %c0_2 = arith.constant 0 : index
    %c0_3 = arith.constant 0 : index
    %4 = vector.load %arg3[%c0_2, %c0_3] : memref<392x36xbf16, #tpu.memory_space<vmem>>, vector<392x36xbf16>
    %c0_4 = arith.constant 0 : index
    %c0_5 = arith.constant 0 : index
    %5 = vector.load %arg4[%c0_4, %c0_5] : memref<36x12xbf16, #tpu.memory_space<vmem>>, vector<36x12xbf16>
    %cst = arith.constant dense<0.000000e+00> : vector<392x12xf32>
    %6 = tpu.matmul %4, %5, %cst {dimension_numbers = #tpu.dot_dimension_numbers<[1], [0], [0], [1], [0, 0, 1, 1], [], []>} : vector<392x36xbf16>, vector<36x12xbf16>, vector<392x12xf32> -> vector<392x12xf32>
    %7 = arith.addf %3, %6 : vector<392x12xf32>
    %c0_6 = arith.constant 0 : index
    %c0_7 = arith.constant 0 : index
    %8 = vector.load %arg7[%c0_6, %c0_7] : memref<392x12xf32, #tpu.memory_space<vmem>>, vector<392x12xf32>
    tpu.vector_store %arg7[%c0_6, %c0_7], %7 {strides = array<i32>} : memref<392x12xf32, #tpu.memory_space<vmem>>, vector<392x12xf32>,
    %c0_i32_8 = arith.constant 0 : i32
    %9 = arith.cmpi eq, %arg2, %c0_i32_8 : i32
    %10 = arith.extui %9 : i1 to i32
    %c0_i32_9 = arith.constant 0 : i32
    %11 = arith.cmpi ne, %10, %c0_i32_9 : i32
    scf.if %11 {
      %c0_10 = arith.constant 0 : index
      %c0_11 = arith.constant 0 : index
      %12 = vector.load %arg7[%c0_10, %c0_11] : memref<392x12xf32, #tpu.memory_space<vmem>>, vector<392x12xf32>
      %c0_12 = arith.constant 0 : index
      %c0_13 = arith.constant 0 : index
      %13 = vector.load %arg5[%c0_12, %c0_13] : memref<1x12xf32, #tpu.memory_space<vmem>>, vector<1x12xf32>
      %14 = vector.broadcast %13 : vector<1x12xf32> to vector<392x12xf32>
      %15 = arith.addf %12, %14 : vector<392x12xf32>
      %cst_14 = arith.constant 0.000000e+00 : f32
      %16 = vector.broadcast %cst_14 : f32 to vector<392x12xf32>
      %17 = arith.cmpf ogt, %15, %16 : vector<392x12xf32>
      %cst_15 = arith.constant 0.00999999977 : f32
      %18 = vector.broadcast %cst_15 : f32 to vector<392x12xf32>
      %19 = arith.mulf %18, %15 : vector<392x12xf32>
      %20 = arith.select %17, %15, %19 : vector<392x12xi1>, vector<392x12xf32>
      %21 = arith.truncf %20 : vector<392x12xf32> to vector<392x12xbf16>
      %c0_16 = arith.constant 0 : index
      %c0_17 = arith.constant 0 : index
      %22 = vector.load %arg6[%c0_16, %c0_17] : memref<392x12xbf16, #tpu.memory_space<vmem>>, vector<392x12xbf16>
      tpu.vector_store %arg6[%c0_16, %c0_17], %21 {strides = array<i32>} : memref<392x12xbf16, #tpu.memory_space<vmem>>, vector<392x12xbf16>,
    } else {
    }
    return
  }
  func.func @transform_0(%arg0: i32, %arg1: i32, %arg2: i32) -> (i32, i32) {
    %c0_i32 = arith.constant 0 : i32
    return %arg0, %arg2 : i32, i32
  }
  func.func @transform_1(%arg0: i32, %arg1: i32, %arg2: i32) -> (i32, i32) {
    %c0_i32 = arith.constant 0 : i32
    return %arg2, %arg1 : i32, i32
  }
  func.func @transform_2(%arg0: i32, %arg1: i32, %arg2: i32) -> (i32, i32) {
    %c0_i32 = arith.constant 0 : i32
    %c0_i32_0 = arith.constant 0 : i32
    return %c0_i32, %arg1 : i32, i32
  }
  func.func @transform_3(%arg0: i32, %arg1: i32, %arg2: i32) -> (i32, i32) {
    %c0_i32 = arith.constant 0 : i32
    return %arg0, %arg1 : i32, i32
  }
}

module attributes {stable_mosaic.version = 11 : i64} {
  func.func @_mm_kernel(%arg0: i32, %arg1: i32, %arg2: i32, %arg3: memref<128x12xbf16, #tpu.memory_space<vmem>>, %arg4: memref<12x8xbf16, #tpu.memory_space<vmem>>, %arg5: memref<1x8xf32, #tpu.memory_space<vmem>>, %arg6: memref<128x8xbf16, #tpu.memory_space<vmem>>, %arg7: memref<128x8xf32, #tpu.memory_space<vmem>>) attributes {dimension_semantics = [#tpu.dimension_semantics<parallel>, #tpu.dimension_semantics<parallel>, #tpu.dimension_semantics<arbitrary>], iteration_bounds = array<i64: 1, 1, 1>, scalar_prefetch = 0 : i64, scratch_operands = 1 : i64, tpu.core_type = #tpu.core_type<tc>, window_params = [{transform_indices = @transform_0, window_bounds = array<i64: 128, 12>}, {transform_indices = @transform_1, window_bounds = array<i64: 12, 8>}, {transform_indices = @transform_2, window_bounds = array<i64: 1, 8>}, {transform_indices = @transform_3, window_bounds = array<i64: 128, 8>}]} {
    %c0_i32 = arith.constant 0 : i32
    %0 = arith.cmpi eq, %arg2, %c0_i32 : i32
    %1 = arith.extui %0 : i1 to i32
    %c0_i32_0 = arith.constant 0 : i32
    %2 = arith.cmpi ne, %1, %c0_i32_0 : i32
    scf.if %2 {
      %cst_10 = arith.constant 0.000000e+00 : f32
      %12 = vector.broadcast %cst_10 : f32 to vector<128x8xf32>
      %c0_11 = arith.constant 0 : index
      %c0_12 = arith.constant 0 : index
      %13 = vector.load %arg7[%c0_11, %c0_12] : memref<128x8xf32, #tpu.memory_space<vmem>>, vector<128x8xf32>
      tpu.vector_store %arg7[%c0_11, %c0_12], %12 {strides = array<i32>} : memref<128x8xf32, #tpu.memory_space<vmem>>, vector<128x8xf32>,
    } else {
    }
    %c0 = arith.constant 0 : index
    %c0_1 = arith.constant 0 : index
    %3 = vector.load %arg7[%c0, %c0_1] : memref<128x8xf32, #tpu.memory_space<vmem>>, vector<128x8xf32>
    %c0_2 = arith.constant 0 : index
    %c0_3 = arith.constant 0 : index
    %4 = vector.load %arg3[%c0_2, %c0_3] : memref<128x12xbf16, #tpu.memory_space<vmem>>, vector<128x12xbf16>
    %c0_4 = arith.constant 0 : index
    %c0_5 = arith.constant 0 : index
    %5 = vector.load %arg4[%c0_4, %c0_5] : memref<12x8xbf16, #tpu.memory_space<vmem>>, vector<12x8xbf16>
    %cst = arith.constant dense<0.000000e+00> : vector<128x8xf32>
    %6 = tpu.matmul %4, %5, %cst {dimension_numbers = #tpu.dot_dimension_numbers<[1], [0], [0], [1], [0, 0, 1, 1], [], []>} : vector<128x12xbf16>, vector<12x8xbf16>, vector<128x8xf32> -> vector<128x8xf32>
    %7 = arith.addf %3, %6 : vector<128x8xf32>
    %c0_6 = arith.constant 0 : index
    %c0_7 = arith.constant 0 : index
    %8 = vector.load %arg7[%c0_6, %c0_7] : memref<128x8xf32, #tpu.memory_space<vmem>>, vector<128x8xf32>
    tpu.vector_store %arg7[%c0_6, %c0_7], %7 {strides = array<i32>} : memref<128x8xf32, #tpu.memory_space<vmem>>, vector<128x8xf32>,
    %c0_i32_8 = arith.constant 0 : i32
    %9 = arith.cmpi eq, %arg2, %c0_i32_8 : i32
    %10 = arith.extui %9 : i1 to i32
    %c0_i32_9 = arith.constant 0 : i32
    %11 = arith.cmpi ne, %10, %c0_i32_9 : i32
    scf.if %11 {
      %c0_10 = arith.constant 0 : index
      %c0_11 = arith.constant 0 : index
      %12 = vector.load %arg7[%c0_10, %c0_11] : memref<128x8xf32, #tpu.memory_space<vmem>>, vector<128x8xf32>
      %c0_12 = arith.constant 0 : index
      %c0_13 = arith.constant 0 : index
      %13 = vector.load %arg5[%c0_12, %c0_13] : memref<1x8xf32, #tpu.memory_space<vmem>>, vector<1x8xf32>
      %14 = vector.broadcast %13 : vector<1x8xf32> to vector<128x8xf32>
      %15 = arith.addf %12, %14 : vector<128x8xf32>
      %cst_14 = arith.constant 0.000000e+00 : f32
      %16 = vector.broadcast %cst_14 : f32 to vector<128x8xf32>
      %17 = arith.cmpf ogt, %15, %16 : vector<128x8xf32>
      %cst_15 = arith.constant 0.00999999977 : f32
      %18 = vector.broadcast %cst_15 : f32 to vector<128x8xf32>
      %19 = arith.mulf %18, %15 : vector<128x8xf32>
      %20 = arith.select %17, %15, %19 : vector<128x8xi1>, vector<128x8xf32>
      %21 = arith.truncf %20 : vector<128x8xf32> to vector<128x8xbf16>
      %c0_16 = arith.constant 0 : index
      %c0_17 = arith.constant 0 : index
      %22 = vector.load %arg6[%c0_16, %c0_17] : memref<128x8xbf16, #tpu.memory_space<vmem>>, vector<128x8xbf16>
      tpu.vector_store %arg6[%c0_16, %c0_17], %21 {strides = array<i32>} : memref<128x8xbf16, #tpu.memory_space<vmem>>, vector<128x8xbf16>,
    } else {
    }
    return
  }
  func.func @transform_0(%arg0: i32, %arg1: i32, %arg2: i32) -> (i32, i32) {
    %c0_i32 = arith.constant 0 : i32
    return %arg0, %arg2 : i32, i32
  }
  func.func @transform_1(%arg0: i32, %arg1: i32, %arg2: i32) -> (i32, i32) {
    %c0_i32 = arith.constant 0 : i32
    return %arg2, %arg1 : i32, i32
  }
  func.func @transform_2(%arg0: i32, %arg1: i32, %arg2: i32) -> (i32, i32) {
    %c0_i32 = arith.constant 0 : i32
    %c0_i32_0 = arith.constant 0 : i32
    return %c0_i32, %arg1 : i32, i32
  }
  func.func @transform_3(%arg0: i32, %arg1: i32, %arg2: i32) -> (i32, i32) {
    %c0_i32 = arith.constant 0 : i32
    return %arg0, %arg1 : i32, i32
  }
}

module attributes {stable_mosaic.version = 11 : i64} {
  func.func @_mm_kernel(%arg0: i32, %arg1: i32, %arg2: i32, %arg3: memref<128x16xbf16, #tpu.memory_space<vmem>>, %arg4: memref<16x16xbf16, #tpu.memory_space<vmem>>, %arg5: memref<1x16xf32, #tpu.memory_space<vmem>>, %arg6: memref<128x16xbf16, #tpu.memory_space<vmem>>, %arg7: memref<128x16xf32, #tpu.memory_space<vmem>>) attributes {dimension_semantics = [#tpu.dimension_semantics<parallel>, #tpu.dimension_semantics<parallel>, #tpu.dimension_semantics<arbitrary>], iteration_bounds = array<i64: 1, 1, 1>, scalar_prefetch = 0 : i64, scratch_operands = 1 : i64, tpu.core_type = #tpu.core_type<tc>, window_params = [{transform_indices = @transform_0, window_bounds = array<i64: 128, 16>}, {transform_indices = @transform_1, window_bounds = array<i64: 16, 16>}, {transform_indices = @transform_2, window_bounds = array<i64: 1, 16>}, {transform_indices = @transform_3, window_bounds = array<i64: 128, 16>}]} {
    %c0_i32 = arith.constant 0 : i32
    %0 = arith.cmpi eq, %arg2, %c0_i32 : i32
    %1 = arith.extui %0 : i1 to i32
    %c0_i32_0 = arith.constant 0 : i32
    %2 = arith.cmpi ne, %1, %c0_i32_0 : i32
    scf.if %2 {
      %cst_10 = arith.constant 0.000000e+00 : f32
      %12 = vector.broadcast %cst_10 : f32 to vector<128x16xf32>
      %c0_11 = arith.constant 0 : index
      %c0_12 = arith.constant 0 : index
      %13 = vector.load %arg7[%c0_11, %c0_12] : memref<128x16xf32, #tpu.memory_space<vmem>>, vector<128x16xf32>
      tpu.vector_store %arg7[%c0_11, %c0_12], %12 {strides = array<i32>} : memref<128x16xf32, #tpu.memory_space<vmem>>, vector<128x16xf32>,
    } else {
    }
    %c0 = arith.constant 0 : index
    %c0_1 = arith.constant 0 : index
    %3 = vector.load %arg7[%c0, %c0_1] : memref<128x16xf32, #tpu.memory_space<vmem>>, vector<128x16xf32>
    %c0_2 = arith.constant 0 : index
    %c0_3 = arith.constant 0 : index
    %4 = vector.load %arg3[%c0_2, %c0_3] : memref<128x16xbf16, #tpu.memory_space<vmem>>, vector<128x16xbf16>
    %c0_4 = arith.constant 0 : index
    %c0_5 = arith.constant 0 : index
    %5 = vector.load %arg4[%c0_4, %c0_5] : memref<16x16xbf16, #tpu.memory_space<vmem>>, vector<16x16xbf16>
    %cst = arith.constant dense<0.000000e+00> : vector<128x16xf32>
    %6 = tpu.matmul %4, %5, %cst {dimension_numbers = #tpu.dot_dimension_numbers<[1], [0], [0], [1], [0, 0, 1, 1], [], []>} : vector<128x16xbf16>, vector<16x16xbf16>, vector<128x16xf32> -> vector<128x16xf32>
    %7 = arith.addf %3, %6 : vector<128x16xf32>
    %c0_6 = arith.constant 0 : index
    %c0_7 = arith.constant 0 : index
    %8 = vector.load %arg7[%c0_6, %c0_7] : memref<128x16xf32, #tpu.memory_space<vmem>>, vector<128x16xf32>
    tpu.vector_store %arg7[%c0_6, %c0_7], %7 {strides = array<i32>} : memref<128x16xf32, #tpu.memory_space<vmem>>, vector<128x16xf32>,
    %c0_i32_8 = arith.constant 0 : i32
    %9 = arith.cmpi eq, %arg2, %c0_i32_8 : i32
    %10 = arith.extui %9 : i1 to i32
    %c0_i32_9 = arith.constant 0 : i32
    %11 = arith.cmpi ne, %10, %c0_i32_9 : i32
    scf.if %11 {
      %c0_10 = arith.constant 0 : index
      %c0_11 = arith.constant 0 : index
      %12 = vector.load %arg7[%c0_10, %c0_11] : memref<128x16xf32, #tpu.memory_space<vmem>>, vector<128x16xf32>
      %c0_12 = arith.constant 0 : index
      %c0_13 = arith.constant 0 : index
      %13 = vector.load %arg5[%c0_12, %c0_13] : memref<1x16xf32, #tpu.memory_space<vmem>>, vector<1x16xf32>
      %14 = vector.broadcast %13 : vector<1x16xf32> to vector<128x16xf32>
      %15 = arith.addf %12, %14 : vector<128x16xf32>
      %cst_14 = arith.constant 0.000000e+00 : f32
      %16 = vector.broadcast %cst_14 : f32 to vector<128x16xf32>
      %17 = arith.cmpf ogt, %15, %16 : vector<128x16xf32>
      %cst_15 = arith.constant 0.00999999977 : f32
      %18 = vector.broadcast %cst_15 : f32 to vector<128x16xf32>
      %19 = arith.mulf %18, %15 : vector<128x16xf32>
      %20 = arith.select %17, %15, %19 : vector<128x16xi1>, vector<128x16xf32>
      %21 = arith.truncf %20 : vector<128x16xf32> to vector<128x16xbf16>
      %c0_16 = arith.constant 0 : index
      %c0_17 = arith.constant 0 : index
      %22 = vector.load %arg6[%c0_16, %c0_17] : memref<128x16xbf16, #tpu.memory_space<vmem>>, vector<128x16xbf16>
      tpu.vector_store %arg6[%c0_16, %c0_17], %21 {strides = array<i32>} : memref<128x16xbf16, #tpu.memory_space<vmem>>, vector<128x16xbf16>,
    } else {
    }
    return
  }
  func.func @transform_0(%arg0: i32, %arg1: i32, %arg2: i32) -> (i32, i32) {
    %c0_i32 = arith.constant 0 : i32
    return %arg0, %arg2 : i32, i32
  }
  func.func @transform_1(%arg0: i32, %arg1: i32, %arg2: i32) -> (i32, i32) {
    %c0_i32 = arith.constant 0 : i32
    return %arg2, %arg1 : i32, i32
  }
  func.func @transform_2(%arg0: i32, %arg1: i32, %arg2: i32) -> (i32, i32) {
    %c0_i32 = arith.constant 0 : i32
    %c0_i32_0 = arith.constant 0 : i32
    return %c0_i32, %arg1 : i32, i32
  }
  func.func @transform_3(%arg0: i32, %arg1: i32, %arg2: i32) -> (i32, i32) {
    %c0_i32 = arith.constant 0 : i32
    return %arg0, %arg1 : i32, i32
  }
}

module attributes {stable_mosaic.version = 11 : i64} {
  func.func @_mm_kernel(%arg0: i32, %arg1: i32, %arg2: i32, %arg3: memref<128x72xbf16, #tpu.memory_space<vmem>>, %arg4: memref<72x16xbf16, #tpu.memory_space<vmem>>, %arg5: memref<1x16xf32, #tpu.memory_space<vmem>>, %arg6: memref<128x16xbf16, #tpu.memory_space<vmem>>, %arg7: memref<128x16xf32, #tpu.memory_space<vmem>>) attributes {dimension_semantics = [#tpu.dimension_semantics<parallel>, #tpu.dimension_semantics<parallel>, #tpu.dimension_semantics<arbitrary>], iteration_bounds = array<i64: 1, 1, 1>, scalar_prefetch = 0 : i64, scratch_operands = 1 : i64, tpu.core_type = #tpu.core_type<tc>, window_params = [{transform_indices = @transform_0, window_bounds = array<i64: 128, 72>}, {transform_indices = @transform_1, window_bounds = array<i64: 72, 16>}, {transform_indices = @transform_2, window_bounds = array<i64: 1, 16>}, {transform_indices = @transform_3, window_bounds = array<i64: 128, 16>}]} {
    %c0_i32 = arith.constant 0 : i32
    %0 = arith.cmpi eq, %arg2, %c0_i32 : i32
    %1 = arith.extui %0 : i1 to i32
    %c0_i32_0 = arith.constant 0 : i32
    %2 = arith.cmpi ne, %1, %c0_i32_0 : i32
    scf.if %2 {
      %cst_10 = arith.constant 0.000000e+00 : f32
      %12 = vector.broadcast %cst_10 : f32 to vector<128x16xf32>
      %c0_11 = arith.constant 0 : index
      %c0_12 = arith.constant 0 : index
      %13 = vector.load %arg7[%c0_11, %c0_12] : memref<128x16xf32, #tpu.memory_space<vmem>>, vector<128x16xf32>
      tpu.vector_store %arg7[%c0_11, %c0_12], %12 {strides = array<i32>} : memref<128x16xf32, #tpu.memory_space<vmem>>, vector<128x16xf32>,
    } else {
    }
    %c0 = arith.constant 0 : index
    %c0_1 = arith.constant 0 : index
    %3 = vector.load %arg7[%c0, %c0_1] : memref<128x16xf32, #tpu.memory_space<vmem>>, vector<128x16xf32>
    %c0_2 = arith.constant 0 : index
    %c0_3 = arith.constant 0 : index
    %4 = vector.load %arg3[%c0_2, %c0_3] : memref<128x72xbf16, #tpu.memory_space<vmem>>, vector<128x72xbf16>
    %c0_4 = arith.constant 0 : index
    %c0_5 = arith.constant 0 : index
    %5 = vector.load %arg4[%c0_4, %c0_5] : memref<72x16xbf16, #tpu.memory_space<vmem>>, vector<72x16xbf16>
    %cst = arith.constant dense<0.000000e+00> : vector<128x16xf32>
    %6 = tpu.matmul %4, %5, %cst {dimension_numbers = #tpu.dot_dimension_numbers<[1], [0], [0], [1], [0, 0, 1, 1], [], []>} : vector<128x72xbf16>, vector<72x16xbf16>, vector<128x16xf32> -> vector<128x16xf32>
    %7 = arith.addf %3, %6 : vector<128x16xf32>
    %c0_6 = arith.constant 0 : index
    %c0_7 = arith.constant 0 : index
    %8 = vector.load %arg7[%c0_6, %c0_7] : memref<128x16xf32, #tpu.memory_space<vmem>>, vector<128x16xf32>
    tpu.vector_store %arg7[%c0_6, %c0_7], %7 {strides = array<i32>} : memref<128x16xf32, #tpu.memory_space<vmem>>, vector<128x16xf32>,
    %c0_i32_8 = arith.constant 0 : i32
    %9 = arith.cmpi eq, %arg2, %c0_i32_8 : i32
    %10 = arith.extui %9 : i1 to i32
    %c0_i32_9 = arith.constant 0 : i32
    %11 = arith.cmpi ne, %10, %c0_i32_9 : i32
    scf.if %11 {
      %c0_10 = arith.constant 0 : index
      %c0_11 = arith.constant 0 : index
      %12 = vector.load %arg7[%c0_10, %c0_11] : memref<128x16xf32, #tpu.memory_space<vmem>>, vector<128x16xf32>
      %c0_12 = arith.constant 0 : index
      %c0_13 = arith.constant 0 : index
      %13 = vector.load %arg5[%c0_12, %c0_13] : memref<1x16xf32, #tpu.memory_space<vmem>>, vector<1x16xf32>
      %14 = vector.broadcast %13 : vector<1x16xf32> to vector<128x16xf32>
      %15 = arith.addf %12, %14 : vector<128x16xf32>
      %cst_14 = arith.constant 0.000000e+00 : f32
      %16 = vector.broadcast %cst_14 : f32 to vector<128x16xf32>
      %17 = arith.cmpf ogt, %15, %16 : vector<128x16xf32>
      %cst_15 = arith.constant 0.00999999977 : f32
      %18 = vector.broadcast %cst_15 : f32 to vector<128x16xf32>
      %19 = arith.mulf %18, %15 : vector<128x16xf32>
      %20 = arith.select %17, %15, %19 : vector<128x16xi1>, vector<128x16xf32>
      %21 = arith.truncf %20 : vector<128x16xf32> to vector<128x16xbf16>
      %c0_16 = arith.constant 0 : index
      %c0_17 = arith.constant 0 : index
      %22 = vector.load %arg6[%c0_16, %c0_17] : memref<128x16xbf16, #tpu.memory_space<vmem>>, vector<128x16xbf16>
      tpu.vector_store %arg6[%c0_16, %c0_17], %21 {strides = array<i32>} : memref<128x16xbf16, #tpu.memory_space<vmem>>, vector<128x16xbf16>,
    } else {
    }
    return
  }
  func.func @transform_0(%arg0: i32, %arg1: i32, %arg2: i32) -> (i32, i32) {
    %c0_i32 = arith.constant 0 : i32
    return %arg0, %arg2 : i32, i32
  }
  func.func @transform_1(%arg0: i32, %arg1: i32, %arg2: i32) -> (i32, i32) {
    %c0_i32 = arith.constant 0 : i32
    return %arg2, %arg1 : i32, i32
  }
  func.func @transform_2(%arg0: i32, %arg1: i32, %arg2: i32) -> (i32, i32) {
    %c0_i32 = arith.constant 0 : i32
    %c0_i32_0 = arith.constant 0 : i32
    return %c0_i32, %arg1 : i32, i32
  }
  func.func @transform_3(%arg0: i32, %arg1: i32, %arg2: i32) -> (i32, i32) {
    %c0_i32 = arith.constant 0 : i32
    return %arg0, %arg1 : i32, i32
  }
}

module attributes {stable_mosaic.version = 11 : i64} {
  func.func @_mm_kernel(%arg0: i32, %arg1: i32, %arg2: i32, %arg3: memref<128x144xbf16, #tpu.memory_space<vmem>>, %arg4: memref<144x32xbf16, #tpu.memory_space<vmem>>, %arg5: memref<1x32xf32, #tpu.memory_space<vmem>>, %arg6: memref<128x32xbf16, #tpu.memory_space<vmem>>, %arg7: memref<128x32xf32, #tpu.memory_space<vmem>>) attributes {dimension_semantics = [#tpu.dimension_semantics<parallel>, #tpu.dimension_semantics<parallel>, #tpu.dimension_semantics<arbitrary>], iteration_bounds = array<i64: 1, 1, 1>, scalar_prefetch = 0 : i64, scratch_operands = 1 : i64, tpu.core_type = #tpu.core_type<tc>, window_params = [{transform_indices = @transform_0, window_bounds = array<i64: 128, 144>}, {transform_indices = @transform_1, window_bounds = array<i64: 144, 32>}, {transform_indices = @transform_2, window_bounds = array<i64: 1, 32>}, {transform_indices = @transform_3, window_bounds = array<i64: 128, 32>}]} {
    %c0_i32 = arith.constant 0 : i32
    %0 = arith.cmpi eq, %arg2, %c0_i32 : i32
    %1 = arith.extui %0 : i1 to i32
    %c0_i32_0 = arith.constant 0 : i32
    %2 = arith.cmpi ne, %1, %c0_i32_0 : i32
    scf.if %2 {
      %cst_10 = arith.constant 0.000000e+00 : f32
      %12 = vector.broadcast %cst_10 : f32 to vector<128x32xf32>
      %c0_11 = arith.constant 0 : index
      %c0_12 = arith.constant 0 : index
      %13 = vector.load %arg7[%c0_11, %c0_12] : memref<128x32xf32, #tpu.memory_space<vmem>>, vector<128x32xf32>
      tpu.vector_store %arg7[%c0_11, %c0_12], %12 {strides = array<i32>} : memref<128x32xf32, #tpu.memory_space<vmem>>, vector<128x32xf32>,
    } else {
    }
    %c0 = arith.constant 0 : index
    %c0_1 = arith.constant 0 : index
    %3 = vector.load %arg7[%c0, %c0_1] : memref<128x32xf32, #tpu.memory_space<vmem>>, vector<128x32xf32>
    %c0_2 = arith.constant 0 : index
    %c0_3 = arith.constant 0 : index
    %4 = vector.load %arg3[%c0_2, %c0_3] : memref<128x144xbf16, #tpu.memory_space<vmem>>, vector<128x144xbf16>
    %c0_4 = arith.constant 0 : index
    %c0_5 = arith.constant 0 : index
    %5 = vector.load %arg4[%c0_4, %c0_5] : memref<144x32xbf16, #tpu.memory_space<vmem>>, vector<144x32xbf16>
    %cst = arith.constant dense<0.000000e+00> : vector<128x32xf32>
    %6 = tpu.matmul %4, %5, %cst {dimension_numbers = #tpu.dot_dimension_numbers<[1], [0], [0], [1], [0, 0, 1, 1], [], []>} : vector<128x144xbf16>, vector<144x32xbf16>, vector<128x32xf32> -> vector<128x32xf32>
    %7 = arith.addf %3, %6 : vector<128x32xf32>
    %c0_6 = arith.constant 0 : index
    %c0_7 = arith.constant 0 : index
    %8 = vector.load %arg7[%c0_6, %c0_7] : memref<128x32xf32, #tpu.memory_space<vmem>>, vector<128x32xf32>
    tpu.vector_store %arg7[%c0_6, %c0_7], %7 {strides = array<i32>} : memref<128x32xf32, #tpu.memory_space<vmem>>, vector<128x32xf32>,
    %c0_i32_8 = arith.constant 0 : i32
    %9 = arith.cmpi eq, %arg2, %c0_i32_8 : i32
    %10 = arith.extui %9 : i1 to i32
    %c0_i32_9 = arith.constant 0 : i32
    %11 = arith.cmpi ne, %10, %c0_i32_9 : i32
    scf.if %11 {
      %c0_10 = arith.constant 0 : index
      %c0_11 = arith.constant 0 : index
      %12 = vector.load %arg7[%c0_10, %c0_11] : memref<128x32xf32, #tpu.memory_space<vmem>>, vector<128x32xf32>
      %c0_12 = arith.constant 0 : index
      %c0_13 = arith.constant 0 : index
      %13 = vector.load %arg5[%c0_12, %c0_13] : memref<1x32xf32, #tpu.memory_space<vmem>>, vector<1x32xf32>
      %14 = vector.broadcast %13 : vector<1x32xf32> to vector<128x32xf32>
      %15 = arith.addf %12, %14 : vector<128x32xf32>
      %cst_14 = arith.constant 0.000000e+00 : f32
      %16 = vector.broadcast %cst_14 : f32 to vector<128x32xf32>
      %17 = arith.cmpf ogt, %15, %16 : vector<128x32xf32>
      %cst_15 = arith.constant 0.00999999977 : f32
      %18 = vector.broadcast %cst_15 : f32 to vector<128x32xf32>
      %19 = arith.mulf %18, %15 : vector<128x32xf32>
      %20 = arith.select %17, %15, %19 : vector<128x32xi1>, vector<128x32xf32>
      %21 = arith.truncf %20 : vector<128x32xf32> to vector<128x32xbf16>
      %c0_16 = arith.constant 0 : index
      %c0_17 = arith.constant 0 : index
      %22 = vector.load %arg6[%c0_16, %c0_17] : memref<128x32xbf16, #tpu.memory_space<vmem>>, vector<128x32xbf16>
      tpu.vector_store %arg6[%c0_16, %c0_17], %21 {strides = array<i32>} : memref<128x32xbf16, #tpu.memory_space<vmem>>, vector<128x32xbf16>,
    } else {
    }
    return
  }
  func.func @transform_0(%arg0: i32, %arg1: i32, %arg2: i32) -> (i32, i32) {
    %c0_i32 = arith.constant 0 : i32
    return %arg0, %arg2 : i32, i32
  }
  func.func @transform_1(%arg0: i32, %arg1: i32, %arg2: i32) -> (i32, i32) {
    %c0_i32 = arith.constant 0 : i32
    return %arg2, %arg1 : i32, i32
  }
  func.func @transform_2(%arg0: i32, %arg1: i32, %arg2: i32) -> (i32, i32) {
    %c0_i32 = arith.constant 0 : i32
    %c0_i32_0 = arith.constant 0 : i32
    return %c0_i32, %arg1 : i32, i32
  }
  func.func @transform_3(%arg0: i32, %arg1: i32, %arg2: i32) -> (i32, i32) {
    %c0_i32 = arith.constant 0 : i32
    return %arg0, %arg1 : i32, i32
  }
}

module attributes {stable_mosaic.version = 11 : i64} {
  func.func @_mm_kernel(%arg0: i32, %arg1: i32, %arg2: i32, %arg3: memref<32x32xbf16, #tpu.memory_space<vmem>>, %arg4: memref<32x16xbf16, #tpu.memory_space<vmem>>, %arg5: memref<1x16xf32, #tpu.memory_space<vmem>>, %arg6: memref<32x16xbf16, #tpu.memory_space<vmem>>, %arg7: memref<32x16xf32, #tpu.memory_space<vmem>>) attributes {dimension_semantics = [#tpu.dimension_semantics<parallel>, #tpu.dimension_semantics<parallel>, #tpu.dimension_semantics<arbitrary>], iteration_bounds = array<i64: 1, 1, 1>, scalar_prefetch = 0 : i64, scratch_operands = 1 : i64, tpu.core_type = #tpu.core_type<tc>, window_params = [{transform_indices = @transform_0, window_bounds = array<i64: 32, 32>}, {transform_indices = @transform_1, window_bounds = array<i64: 32, 16>}, {transform_indices = @transform_2, window_bounds = array<i64: 1, 16>}, {transform_indices = @transform_3, window_bounds = array<i64: 32, 16>}]} {
    %c0_i32 = arith.constant 0 : i32
    %0 = arith.cmpi eq, %arg2, %c0_i32 : i32
    %1 = arith.extui %0 : i1 to i32
    %c0_i32_0 = arith.constant 0 : i32
    %2 = arith.cmpi ne, %1, %c0_i32_0 : i32
    scf.if %2 {
      %cst_10 = arith.constant 0.000000e+00 : f32
      %12 = vector.broadcast %cst_10 : f32 to vector<32x16xf32>
      %c0_11 = arith.constant 0 : index
      %c0_12 = arith.constant 0 : index
      %13 = vector.load %arg7[%c0_11, %c0_12] : memref<32x16xf32, #tpu.memory_space<vmem>>, vector<32x16xf32>
      tpu.vector_store %arg7[%c0_11, %c0_12], %12 {strides = array<i32>} : memref<32x16xf32, #tpu.memory_space<vmem>>, vector<32x16xf32>,
    } else {
    }
    %c0 = arith.constant 0 : index
    %c0_1 = arith.constant 0 : index
    %3 = vector.load %arg7[%c0, %c0_1] : memref<32x16xf32, #tpu.memory_space<vmem>>, vector<32x16xf32>
    %c0_2 = arith.constant 0 : index
    %c0_3 = arith.constant 0 : index
    %4 = vector.load %arg3[%c0_2, %c0_3] : memref<32x32xbf16, #tpu.memory_space<vmem>>, vector<32x32xbf16>
    %c0_4 = arith.constant 0 : index
    %c0_5 = arith.constant 0 : index
    %5 = vector.load %arg4[%c0_4, %c0_5] : memref<32x16xbf16, #tpu.memory_space<vmem>>, vector<32x16xbf16>
    %cst = arith.constant dense<0.000000e+00> : vector<32x16xf32>
    %6 = tpu.matmul %4, %5, %cst {dimension_numbers = #tpu.dot_dimension_numbers<[1], [0], [0], [1], [0, 0, 1, 1], [], []>} : vector<32x32xbf16>, vector<32x16xbf16>, vector<32x16xf32> -> vector<32x16xf32>
    %7 = arith.addf %3, %6 : vector<32x16xf32>
    %c0_6 = arith.constant 0 : index
    %c0_7 = arith.constant 0 : index
    %8 = vector.load %arg7[%c0_6, %c0_7] : memref<32x16xf32, #tpu.memory_space<vmem>>, vector<32x16xf32>
    tpu.vector_store %arg7[%c0_6, %c0_7], %7 {strides = array<i32>} : memref<32x16xf32, #tpu.memory_space<vmem>>, vector<32x16xf32>,
    %c0_i32_8 = arith.constant 0 : i32
    %9 = arith.cmpi eq, %arg2, %c0_i32_8 : i32
    %10 = arith.extui %9 : i1 to i32
    %c0_i32_9 = arith.constant 0 : i32
    %11 = arith.cmpi ne, %10, %c0_i32_9 : i32
    scf.if %11 {
      %c0_10 = arith.constant 0 : index
      %c0_11 = arith.constant 0 : index
      %12 = vector.load %arg7[%c0_10, %c0_11] : memref<32x16xf32, #tpu.memory_space<vmem>>, vector<32x16xf32>
      %c0_12 = arith.constant 0 : index
      %c0_13 = arith.constant 0 : index
      %13 = vector.load %arg5[%c0_12, %c0_13] : memref<1x16xf32, #tpu.memory_space<vmem>>, vector<1x16xf32>
      %14 = vector.broadcast %13 : vector<1x16xf32> to vector<32x16xf32>
      %15 = arith.addf %12, %14 : vector<32x16xf32>
      %cst_14 = arith.constant 0.000000e+00 : f32
      %16 = vector.broadcast %cst_14 : f32 to vector<32x16xf32>
      %17 = arith.cmpf ogt, %15, %16 : vector<32x16xf32>
      %cst_15 = arith.constant 0.00999999977 : f32
      %18 = vector.broadcast %cst_15 : f32 to vector<32x16xf32>
      %19 = arith.mulf %18, %15 : vector<32x16xf32>
      %20 = arith.select %17, %15, %19 : vector<32x16xi1>, vector<32x16xf32>
      %21 = arith.truncf %20 : vector<32x16xf32> to vector<32x16xbf16>
      %c0_16 = arith.constant 0 : index
      %c0_17 = arith.constant 0 : index
      %22 = vector.load %arg6[%c0_16, %c0_17] : memref<32x16xbf16, #tpu.memory_space<vmem>>, vector<32x16xbf16>
      tpu.vector_store %arg6[%c0_16, %c0_17], %21 {strides = array<i32>} : memref<32x16xbf16, #tpu.memory_space<vmem>>, vector<32x16xbf16>,
    } else {
    }
    return
  }
  func.func @transform_0(%arg0: i32, %arg1: i32, %arg2: i32) -> (i32, i32) {
    %c0_i32 = arith.constant 0 : i32
    return %arg0, %arg2 : i32, i32
  }
  func.func @transform_1(%arg0: i32, %arg1: i32, %arg2: i32) -> (i32, i32) {
    %c0_i32 = arith.constant 0 : i32
    return %arg2, %arg1 : i32, i32
  }
  func.func @transform_2(%arg0: i32, %arg1: i32, %arg2: i32) -> (i32, i32) {
    %c0_i32 = arith.constant 0 : i32
    %c0_i32_0 = arith.constant 0 : i32
    return %c0_i32, %arg1 : i32, i32
  }
  func.func @transform_3(%arg0: i32, %arg1: i32, %arg2: i32) -> (i32, i32) {
    %c0_i32 = arith.constant 0 : i32
    return %arg0, %arg1 : i32, i32
  }
}

module attributes {stable_mosaic.version = 11 : i64} {
  func.func @_mm_kernel(%arg0: i32, %arg1: i32, %arg2: i32, %arg3: memref<32x144xbf16, #tpu.memory_space<vmem>>, %arg4: memref<144x32xbf16, #tpu.memory_space<vmem>>, %arg5: memref<1x32xf32, #tpu.memory_space<vmem>>, %arg6: memref<32x32xbf16, #tpu.memory_space<vmem>>, %arg7: memref<32x32xf32, #tpu.memory_space<vmem>>) attributes {dimension_semantics = [#tpu.dimension_semantics<parallel>, #tpu.dimension_semantics<parallel>, #tpu.dimension_semantics<arbitrary>], iteration_bounds = array<i64: 1, 1, 1>, scalar_prefetch = 0 : i64, scratch_operands = 1 : i64, tpu.core_type = #tpu.core_type<tc>, window_params = [{transform_indices = @transform_0, window_bounds = array<i64: 32, 144>}, {transform_indices = @transform_1, window_bounds = array<i64: 144, 32>}, {transform_indices = @transform_2, window_bounds = array<i64: 1, 32>}, {transform_indices = @transform_3, window_bounds = array<i64: 32, 32>}]} {
    %c0_i32 = arith.constant 0 : i32
    %0 = arith.cmpi eq, %arg2, %c0_i32 : i32
    %1 = arith.extui %0 : i1 to i32
    %c0_i32_0 = arith.constant 0 : i32
    %2 = arith.cmpi ne, %1, %c0_i32_0 : i32
    scf.if %2 {
      %cst_10 = arith.constant 0.000000e+00 : f32
      %12 = vector.broadcast %cst_10 : f32 to vector<32x32xf32>
      %c0_11 = arith.constant 0 : index
      %c0_12 = arith.constant 0 : index
      %13 = vector.load %arg7[%c0_11, %c0_12] : memref<32x32xf32, #tpu.memory_space<vmem>>, vector<32x32xf32>
      tpu.vector_store %arg7[%c0_11, %c0_12], %12 {strides = array<i32>} : memref<32x32xf32, #tpu.memory_space<vmem>>, vector<32x32xf32>,
    } else {
    }
    %c0 = arith.constant 0 : index
    %c0_1 = arith.constant 0 : index
    %3 = vector.load %arg7[%c0, %c0_1] : memref<32x32xf32, #tpu.memory_space<vmem>>, vector<32x32xf32>
    %c0_2 = arith.constant 0 : index
    %c0_3 = arith.constant 0 : index
    %4 = vector.load %arg3[%c0_2, %c0_3] : memref<32x144xbf16, #tpu.memory_space<vmem>>, vector<32x144xbf16>
    %c0_4 = arith.constant 0 : index
    %c0_5 = arith.constant 0 : index
    %5 = vector.load %arg4[%c0_4, %c0_5] : memref<144x32xbf16, #tpu.memory_space<vmem>>, vector<144x32xbf16>
    %cst = arith.constant dense<0.000000e+00> : vector<32x32xf32>
    %6 = tpu.matmul %4, %5, %cst {dimension_numbers = #tpu.dot_dimension_numbers<[1], [0], [0], [1], [0, 0, 1, 1], [], []>} : vector<32x144xbf16>, vector<144x32xbf16>, vector<32x32xf32> -> vector<32x32xf32>
    %7 = arith.addf %3, %6 : vector<32x32xf32>
    %c0_6 = arith.constant 0 : index
    %c0_7 = arith.constant 0 : index
    %8 = vector.load %arg7[%c0_6, %c0_7] : memref<32x32xf32, #tpu.memory_space<vmem>>, vector<32x32xf32>
    tpu.vector_store %arg7[%c0_6, %c0_7], %7 {strides = array<i32>} : memref<32x32xf32, #tpu.memory_space<vmem>>, vector<32x32xf32>,
    %c0_i32_8 = arith.constant 0 : i32
    %9 = arith.cmpi eq, %arg2, %c0_i32_8 : i32
    %10 = arith.extui %9 : i1 to i32
    %c0_i32_9 = arith.constant 0 : i32
    %11 = arith.cmpi ne, %10, %c0_i32_9 : i32
    scf.if %11 {
      %c0_10 = arith.constant 0 : index
      %c0_11 = arith.constant 0 : index
      %12 = vector.load %arg7[%c0_10, %c0_11] : memref<32x32xf32, #tpu.memory_space<vmem>>, vector<32x32xf32>
      %c0_12 = arith.constant 0 : index
      %c0_13 = arith.constant 0 : index
      %13 = vector.load %arg5[%c0_12, %c0_13] : memref<1x32xf32, #tpu.memory_space<vmem>>, vector<1x32xf32>
      %14 = vector.broadcast %13 : vector<1x32xf32> to vector<32x32xf32>
      %15 = arith.addf %12, %14 : vector<32x32xf32>
      %cst_14 = arith.constant 0.000000e+00 : f32
      %16 = vector.broadcast %cst_14 : f32 to vector<32x32xf32>
      %17 = arith.cmpf ogt, %15, %16 : vector<32x32xf32>
      %cst_15 = arith.constant 0.00999999977 : f32
      %18 = vector.broadcast %cst_15 : f32 to vector<32x32xf32>
      %19 = arith.mulf %18, %15 : vector<32x32xf32>
      %20 = arith.select %17, %15, %19 : vector<32x32xi1>, vector<32x32xf32>
      %21 = arith.truncf %20 : vector<32x32xf32> to vector<32x32xbf16>
      %c0_16 = arith.constant 0 : index
      %c0_17 = arith.constant 0 : index
      %22 = vector.load %arg6[%c0_16, %c0_17] : memref<32x32xbf16, #tpu.memory_space<vmem>>, vector<32x32xbf16>
      tpu.vector_store %arg6[%c0_16, %c0_17], %21 {strides = array<i32>} : memref<32x32xbf16, #tpu.memory_space<vmem>>, vector<32x32xbf16>,
    } else {
    }
    return
  }
  func.func @transform_0(%arg0: i32, %arg1: i32, %arg2: i32) -> (i32, i32) {
    %c0_i32 = arith.constant 0 : i32
    return %arg0, %arg2 : i32, i32
  }
  func.func @transform_1(%arg0: i32, %arg1: i32, %arg2: i32) -> (i32, i32) {
    %c0_i32 = arith.constant 0 : i32
    return %arg2, %arg1 : i32, i32
  }
  func.func @transform_2(%arg0: i32, %arg1: i32, %arg2: i32) -> (i32, i32) {
    %c0_i32 = arith.constant 0 : i32
    %c0_i32_0 = arith.constant 0 : i32
    return %c0_i32, %arg1 : i32, i32
  }
  func.func @transform_3(%arg0: i32, %arg1: i32, %arg2: i32) -> (i32, i32) {
    %c0_i32 = arith.constant 0 : i32
    return %arg0, %arg1 : i32, i32
  }
}

module attributes {stable_mosaic.version = 11 : i64} {
  func.func @_mm_kernel(%arg0: i32, %arg1: i32, %arg2: i32, %arg3: memref<32x32xbf16, #tpu.memory_space<vmem>>, %arg4: memref<32x32xbf16, #tpu.memory_space<vmem>>, %arg5: memref<1x32xf32, #tpu.memory_space<vmem>>, %arg6: memref<32x32xbf16, #tpu.memory_space<vmem>>, %arg7: memref<32x32xf32, #tpu.memory_space<vmem>>) attributes {dimension_semantics = [#tpu.dimension_semantics<parallel>, #tpu.dimension_semantics<parallel>, #tpu.dimension_semantics<arbitrary>], iteration_bounds = array<i64: 1, 1, 1>, scalar_prefetch = 0 : i64, scratch_operands = 1 : i64, tpu.core_type = #tpu.core_type<tc>, window_params = [{transform_indices = @transform_0, window_bounds = array<i64: 32, 32>}, {transform_indices = @transform_1, window_bounds = array<i64: 32, 32>}, {transform_indices = @transform_2, window_bounds = array<i64: 1, 32>}, {transform_indices = @transform_3, window_bounds = array<i64: 32, 32>}]} {
    %c0_i32 = arith.constant 0 : i32
    %0 = arith.cmpi eq, %arg2, %c0_i32 : i32
    %1 = arith.extui %0 : i1 to i32
    %c0_i32_0 = arith.constant 0 : i32
    %2 = arith.cmpi ne, %1, %c0_i32_0 : i32
    scf.if %2 {
      %cst_10 = arith.constant 0.000000e+00 : f32
      %12 = vector.broadcast %cst_10 : f32 to vector<32x32xf32>
      %c0_11 = arith.constant 0 : index
      %c0_12 = arith.constant 0 : index
      %13 = vector.load %arg7[%c0_11, %c0_12] : memref<32x32xf32, #tpu.memory_space<vmem>>, vector<32x32xf32>
      tpu.vector_store %arg7[%c0_11, %c0_12], %12 {strides = array<i32>} : memref<32x32xf32, #tpu.memory_space<vmem>>, vector<32x32xf32>,
    } else {
    }
    %c0 = arith.constant 0 : index
    %c0_1 = arith.constant 0 : index
    %3 = vector.load %arg7[%c0, %c0_1] : memref<32x32xf32, #tpu.memory_space<vmem>>, vector<32x32xf32>
    %c0_2 = arith.constant 0 : index
    %c0_3 = arith.constant 0 : index
    %4 = vector.load %arg3[%c0_2, %c0_3] : memref<32x32xbf16, #tpu.memory_space<vmem>>, vector<32x32xbf16>
    %c0_4 = arith.constant 0 : index
    %c0_5 = arith.constant 0 : index
    %5 = vector.load %arg4[%c0_4, %c0_5] : memref<32x32xbf16, #tpu.memory_space<vmem>>, vector<32x32xbf16>
    %cst = arith.constant dense<0.000000e+00> : vector<32x32xf32>
    %6 = tpu.matmul %4, %5, %cst {dimension_numbers = #tpu.dot_dimension_numbers<[1], [0], [0], [1], [0, 0, 1, 1], [], []>} : vector<32x32xbf16>, vector<32x32xbf16>, vector<32x32xf32> -> vector<32x32xf32>
    %7 = arith.addf %3, %6 : vector<32x32xf32>
    %c0_6 = arith.constant 0 : index
    %c0_7 = arith.constant 0 : index
    %8 = vector.load %arg7[%c0_6, %c0_7] : memref<32x32xf32, #tpu.memory_space<vmem>>, vector<32x32xf32>
    tpu.vector_store %arg7[%c0_6, %c0_7], %7 {strides = array<i32>} : memref<32x32xf32, #tpu.memory_space<vmem>>, vector<32x32xf32>,
    %c0_i32_8 = arith.constant 0 : i32
    %9 = arith.cmpi eq, %arg2, %c0_i32_8 : i32
    %10 = arith.extui %9 : i1 to i32
    %c0_i32_9 = arith.constant 0 : i32
    %11 = arith.cmpi ne, %10, %c0_i32_9 : i32
    scf.if %11 {
      %c0_10 = arith.constant 0 : index
      %c0_11 = arith.constant 0 : index
      %12 = vector.load %arg7[%c0_10, %c0_11] : memref<32x32xf32, #tpu.memory_space<vmem>>, vector<32x32xf32>
      %c0_12 = arith.constant 0 : index
      %c0_13 = arith.constant 0 : index
      %13 = vector.load %arg5[%c0_12, %c0_13] : memref<1x32xf32, #tpu.memory_space<vmem>>, vector<1x32xf32>
      %14 = vector.broadcast %13 : vector<1x32xf32> to vector<32x32xf32>
      %15 = arith.addf %12, %14 : vector<32x32xf32>
      %cst_14 = arith.constant 0.000000e+00 : f32
      %16 = vector.broadcast %cst_14 : f32 to vector<32x32xf32>
      %17 = arith.cmpf ogt, %15, %16 : vector<32x32xf32>
      %cst_15 = arith.constant 0.00999999977 : f32
      %18 = vector.broadcast %cst_15 : f32 to vector<32x32xf32>
      %19 = arith.mulf %18, %15 : vector<32x32xf32>
      %20 = arith.select %17, %15, %19 : vector<32x32xi1>, vector<32x32xf32>
      %21 = arith.truncf %20 : vector<32x32xf32> to vector<32x32xbf16>
      %c0_16 = arith.constant 0 : index
      %c0_17 = arith.constant 0 : index
      %22 = vector.load %arg6[%c0_16, %c0_17] : memref<32x32xbf16, #tpu.memory_space<vmem>>, vector<32x32xbf16>
      tpu.vector_store %arg6[%c0_16, %c0_17], %21 {strides = array<i32>} : memref<32x32xbf16, #tpu.memory_space<vmem>>, vector<32x32xbf16>,
    } else {
    }
    return
  }
  func.func @transform_0(%arg0: i32, %arg1: i32, %arg2: i32) -> (i32, i32) {
    %c0_i32 = arith.constant 0 : i32
    return %arg0, %arg2 : i32, i32
  }
  func.func @transform_1(%arg0: i32, %arg1: i32, %arg2: i32) -> (i32, i32) {
    %c0_i32 = arith.constant 0 : i32
    return %arg2, %arg1 : i32, i32
  }
  func.func @transform_2(%arg0: i32, %arg1: i32, %arg2: i32) -> (i32, i32) {
    %c0_i32 = arith.constant 0 : i32
    %c0_i32_0 = arith.constant 0 : i32
    return %c0_i32, %arg1 : i32, i32
  }
  func.func @transform_3(%arg0: i32, %arg1: i32, %arg2: i32) -> (i32, i32) {
    %c0_i32 = arith.constant 0 : i32
    return %arg0, %arg1 : i32, i32
  }
}

module attributes {stable_mosaic.version = 11 : i64} {
  func.func @_mm_kernel(%arg0: i32, %arg1: i32, %arg2: i32, %arg3: memref<32x288xbf16, #tpu.memory_space<vmem>>, %arg4: memref<288x64xbf16, #tpu.memory_space<vmem>>, %arg5: memref<1x64xf32, #tpu.memory_space<vmem>>, %arg6: memref<32x64xbf16, #tpu.memory_space<vmem>>, %arg7: memref<32x64xf32, #tpu.memory_space<vmem>>) attributes {dimension_semantics = [#tpu.dimension_semantics<parallel>, #tpu.dimension_semantics<parallel>, #tpu.dimension_semantics<arbitrary>], iteration_bounds = array<i64: 1, 1, 1>, scalar_prefetch = 0 : i64, scratch_operands = 1 : i64, tpu.core_type = #tpu.core_type<tc>, window_params = [{transform_indices = @transform_0, window_bounds = array<i64: 32, 288>}, {transform_indices = @transform_1, window_bounds = array<i64: 288, 64>}, {transform_indices = @transform_2, window_bounds = array<i64: 1, 64>}, {transform_indices = @transform_3, window_bounds = array<i64: 32, 64>}]} {
    %c0_i32 = arith.constant 0 : i32
    %0 = arith.cmpi eq, %arg2, %c0_i32 : i32
    %1 = arith.extui %0 : i1 to i32
    %c0_i32_0 = arith.constant 0 : i32
    %2 = arith.cmpi ne, %1, %c0_i32_0 : i32
    scf.if %2 {
      %cst_10 = arith.constant 0.000000e+00 : f32
      %12 = vector.broadcast %cst_10 : f32 to vector<32x64xf32>
      %c0_11 = arith.constant 0 : index
      %c0_12 = arith.constant 0 : index
      %13 = vector.load %arg7[%c0_11, %c0_12] : memref<32x64xf32, #tpu.memory_space<vmem>>, vector<32x64xf32>
      tpu.vector_store %arg7[%c0_11, %c0_12], %12 {strides = array<i32>} : memref<32x64xf32, #tpu.memory_space<vmem>>, vector<32x64xf32>,
    } else {
    }
    %c0 = arith.constant 0 : index
    %c0_1 = arith.constant 0 : index
    %3 = vector.load %arg7[%c0, %c0_1] : memref<32x64xf32, #tpu.memory_space<vmem>>, vector<32x64xf32>
    %c0_2 = arith.constant 0 : index
    %c0_3 = arith.constant 0 : index
    %4 = vector.load %arg3[%c0_2, %c0_3] : memref<32x288xbf16, #tpu.memory_space<vmem>>, vector<32x288xbf16>
    %c0_4 = arith.constant 0 : index
    %c0_5 = arith.constant 0 : index
    %5 = vector.load %arg4[%c0_4, %c0_5] : memref<288x64xbf16, #tpu.memory_space<vmem>>, vector<288x64xbf16>
    %cst = arith.constant dense<0.000000e+00> : vector<32x64xf32>
    %6 = tpu.matmul %4, %5, %cst {dimension_numbers = #tpu.dot_dimension_numbers<[1], [0], [0], [1], [0, 0, 1, 1], [], []>} : vector<32x288xbf16>, vector<288x64xbf16>, vector<32x64xf32> -> vector<32x64xf32>
    %7 = arith.addf %3, %6 : vector<32x64xf32>
    %c0_6 = arith.constant 0 : index
    %c0_7 = arith.constant 0 : index
    %8 = vector.load %arg7[%c0_6, %c0_7] : memref<32x64xf32, #tpu.memory_space<vmem>>, vector<32x64xf32>
    tpu.vector_store %arg7[%c0_6, %c0_7], %7 {strides = array<i32>} : memref<32x64xf32, #tpu.memory_space<vmem>>, vector<32x64xf32>,
    %c0_i32_8 = arith.constant 0 : i32
    %9 = arith.cmpi eq, %arg2, %c0_i32_8 : i32
    %10 = arith.extui %9 : i1 to i32
    %c0_i32_9 = arith.constant 0 : i32
    %11 = arith.cmpi ne, %10, %c0_i32_9 : i32
    scf.if %11 {
      %c0_10 = arith.constant 0 : index
      %c0_11 = arith.constant 0 : index
      %12 = vector.load %arg7[%c0_10, %c0_11] : memref<32x64xf32, #tpu.memory_space<vmem>>, vector<32x64xf32>
      %c0_12 = arith.constant 0 : index
      %c0_13 = arith.constant 0 : index
      %13 = vector.load %arg5[%c0_12, %c0_13] : memref<1x64xf32, #tpu.memory_space<vmem>>, vector<1x64xf32>
      %14 = vector.broadcast %13 : vector<1x64xf32> to vector<32x64xf32>
      %15 = arith.addf %12, %14 : vector<32x64xf32>
      %cst_14 = arith.constant 0.000000e+00 : f32
      %16 = vector.broadcast %cst_14 : f32 to vector<32x64xf32>
      %17 = arith.cmpf ogt, %15, %16 : vector<32x64xf32>
      %cst_15 = arith.constant 0.00999999977 : f32
      %18 = vector.broadcast %cst_15 : f32 to vector<32x64xf32>
      %19 = arith.mulf %18, %15 : vector<32x64xf32>
      %20 = arith.select %17, %15, %19 : vector<32x64xi1>, vector<32x64xf32>
      %21 = arith.truncf %20 : vector<32x64xf32> to vector<32x64xbf16>
      %c0_16 = arith.constant 0 : index
      %c0_17 = arith.constant 0 : index
      %22 = vector.load %arg6[%c0_16, %c0_17] : memref<32x64xbf16, #tpu.memory_space<vmem>>, vector<32x64xbf16>
      tpu.vector_store %arg6[%c0_16, %c0_17], %21 {strides = array<i32>} : memref<32x64xbf16, #tpu.memory_space<vmem>>, vector<32x64xbf16>,
    } else {
    }
    return
  }
  func.func @transform_0(%arg0: i32, %arg1: i32, %arg2: i32) -> (i32, i32) {
    %c0_i32 = arith.constant 0 : i32
    return %arg0, %arg2 : i32, i32
  }
  func.func @transform_1(%arg0: i32, %arg1: i32, %arg2: i32) -> (i32, i32) {
    %c0_i32 = arith.constant 0 : i32
    return %arg2, %arg1 : i32, i32
  }
  func.func @transform_2(%arg0: i32, %arg1: i32, %arg2: i32) -> (i32, i32) {
    %c0_i32 = arith.constant 0 : i32
    %c0_i32_0 = arith.constant 0 : i32
    return %c0_i32, %arg1 : i32, i32
  }
  func.func @transform_3(%arg0: i32, %arg1: i32, %arg2: i32) -> (i32, i32) {
    %c0_i32 = arith.constant 0 : i32
    return %arg0, %arg1 : i32, i32
  }
}

module attributes {stable_mosaic.version = 11 : i64} {
  func.func @_mm_kernel(%arg0: i32, %arg1: i32, %arg2: i32, %arg3: memref<8x64xbf16, #tpu.memory_space<vmem>>, %arg4: memref<64x32xbf16, #tpu.memory_space<vmem>>, %arg5: memref<1x32xf32, #tpu.memory_space<vmem>>, %arg6: memref<8x32xbf16, #tpu.memory_space<vmem>>, %arg7: memref<8x32xf32, #tpu.memory_space<vmem>>) attributes {dimension_semantics = [#tpu.dimension_semantics<parallel>, #tpu.dimension_semantics<parallel>, #tpu.dimension_semantics<arbitrary>], iteration_bounds = array<i64: 1, 1, 1>, scalar_prefetch = 0 : i64, scratch_operands = 1 : i64, tpu.core_type = #tpu.core_type<tc>, window_params = [{transform_indices = @transform_0, window_bounds = array<i64: 8, 64>}, {transform_indices = @transform_1, window_bounds = array<i64: 64, 32>}, {transform_indices = @transform_2, window_bounds = array<i64: 1, 32>}, {transform_indices = @transform_3, window_bounds = array<i64: 8, 32>}]} {
    %c0_i32 = arith.constant 0 : i32
    %0 = arith.cmpi eq, %arg2, %c0_i32 : i32
    %1 = arith.extui %0 : i1 to i32
    %c0_i32_0 = arith.constant 0 : i32
    %2 = arith.cmpi ne, %1, %c0_i32_0 : i32
    scf.if %2 {
      %cst_10 = arith.constant 0.000000e+00 : f32
      %12 = vector.broadcast %cst_10 : f32 to vector<8x32xf32>
      %c0_11 = arith.constant 0 : index
      %c0_12 = arith.constant 0 : index
      %13 = vector.load %arg7[%c0_11, %c0_12] : memref<8x32xf32, #tpu.memory_space<vmem>>, vector<8x32xf32>
      tpu.vector_store %arg7[%c0_11, %c0_12], %12 {strides = array<i32>} : memref<8x32xf32, #tpu.memory_space<vmem>>, vector<8x32xf32>,
    } else {
    }
    %c0 = arith.constant 0 : index
    %c0_1 = arith.constant 0 : index
    %3 = vector.load %arg7[%c0, %c0_1] : memref<8x32xf32, #tpu.memory_space<vmem>>, vector<8x32xf32>
    %c0_2 = arith.constant 0 : index
    %c0_3 = arith.constant 0 : index
    %4 = vector.load %arg3[%c0_2, %c0_3] : memref<8x64xbf16, #tpu.memory_space<vmem>>, vector<8x64xbf16>
    %c0_4 = arith.constant 0 : index
    %c0_5 = arith.constant 0 : index
    %5 = vector.load %arg4[%c0_4, %c0_5] : memref<64x32xbf16, #tpu.memory_space<vmem>>, vector<64x32xbf16>
    %cst = arith.constant dense<0.000000e+00> : vector<8x32xf32>
    %6 = tpu.matmul %4, %5, %cst {dimension_numbers = #tpu.dot_dimension_numbers<[1], [0], [0], [1], [0, 0, 1, 1], [], []>} : vector<8x64xbf16>, vector<64x32xbf16>, vector<8x32xf32> -> vector<8x32xf32>
    %7 = arith.addf %3, %6 : vector<8x32xf32>
    %c0_6 = arith.constant 0 : index
    %c0_7 = arith.constant 0 : index
    %8 = vector.load %arg7[%c0_6, %c0_7] : memref<8x32xf32, #tpu.memory_space<vmem>>, vector<8x32xf32>
    tpu.vector_store %arg7[%c0_6, %c0_7], %7 {strides = array<i32>} : memref<8x32xf32, #tpu.memory_space<vmem>>, vector<8x32xf32>,
    %c0_i32_8 = arith.constant 0 : i32
    %9 = arith.cmpi eq, %arg2, %c0_i32_8 : i32
    %10 = arith.extui %9 : i1 to i32
    %c0_i32_9 = arith.constant 0 : i32
    %11 = arith.cmpi ne, %10, %c0_i32_9 : i32
    scf.if %11 {
      %c0_10 = arith.constant 0 : index
      %c0_11 = arith.constant 0 : index
      %12 = vector.load %arg7[%c0_10, %c0_11] : memref<8x32xf32, #tpu.memory_space<vmem>>, vector<8x32xf32>
      %c0_12 = arith.constant 0 : index
      %c0_13 = arith.constant 0 : index
      %13 = vector.load %arg5[%c0_12, %c0_13] : memref<1x32xf32, #tpu.memory_space<vmem>>, vector<1x32xf32>
      %14 = vector.broadcast %13 : vector<1x32xf32> to vector<8x32xf32>
      %15 = arith.addf %12, %14 : vector<8x32xf32>
      %cst_14 = arith.constant 0.000000e+00 : f32
      %16 = vector.broadcast %cst_14 : f32 to vector<8x32xf32>
      %17 = arith.cmpf ogt, %15, %16 : vector<8x32xf32>
      %cst_15 = arith.constant 0.00999999977 : f32
      %18 = vector.broadcast %cst_15 : f32 to vector<8x32xf32>
      %19 = arith.mulf %18, %15 : vector<8x32xf32>
      %20 = arith.select %17, %15, %19 : vector<8x32xi1>, vector<8x32xf32>
      %21 = arith.truncf %20 : vector<8x32xf32> to vector<8x32xbf16>
      %c0_16 = arith.constant 0 : index
      %c0_17 = arith.constant 0 : index
      %22 = vector.load %arg6[%c0_16, %c0_17] : memref<8x32xbf16, #tpu.memory_space<vmem>>, vector<8x32xbf16>
      tpu.vector_store %arg6[%c0_16, %c0_17], %21 {strides = array<i32>} : memref<8x32xbf16, #tpu.memory_space<vmem>>, vector<8x32xbf16>,
    } else {
    }
    return
  }
  func.func @transform_0(%arg0: i32, %arg1: i32, %arg2: i32) -> (i32, i32) {
    %c0_i32 = arith.constant 0 : i32
    return %arg0, %arg2 : i32, i32
  }
  func.func @transform_1(%arg0: i32, %arg1: i32, %arg2: i32) -> (i32, i32) {
    %c0_i32 = arith.constant 0 : i32
    return %arg2, %arg1 : i32, i32
  }
  func.func @transform_2(%arg0: i32, %arg1: i32, %arg2: i32) -> (i32, i32) {
    %c0_i32 = arith.constant 0 : i32
    %c0_i32_0 = arith.constant 0 : i32
    return %c0_i32, %arg1 : i32, i32
  }
  func.func @transform_3(%arg0: i32, %arg1: i32, %arg2: i32) -> (i32, i32) {
    %c0_i32 = arith.constant 0 : i32
    return %arg0, %arg1 : i32, i32
  }
}

module attributes {stable_mosaic.version = 11 : i64} {
  func.func @_mm_kernel(%arg0: i32, %arg1: i32, %arg2: i32, %arg3: memref<8x288xbf16, #tpu.memory_space<vmem>>, %arg4: memref<288x64xbf16, #tpu.memory_space<vmem>>, %arg5: memref<1x64xf32, #tpu.memory_space<vmem>>, %arg6: memref<8x64xbf16, #tpu.memory_space<vmem>>, %arg7: memref<8x64xf32, #tpu.memory_space<vmem>>) attributes {dimension_semantics = [#tpu.dimension_semantics<parallel>, #tpu.dimension_semantics<parallel>, #tpu.dimension_semantics<arbitrary>], iteration_bounds = array<i64: 1, 1, 1>, scalar_prefetch = 0 : i64, scratch_operands = 1 : i64, tpu.core_type = #tpu.core_type<tc>, window_params = [{transform_indices = @transform_0, window_bounds = array<i64: 8, 288>}, {transform_indices = @transform_1, window_bounds = array<i64: 288, 64>}, {transform_indices = @transform_2, window_bounds = array<i64: 1, 64>}, {transform_indices = @transform_3, window_bounds = array<i64: 8, 64>}]} {
    %c0_i32 = arith.constant 0 : i32
    %0 = arith.cmpi eq, %arg2, %c0_i32 : i32
    %1 = arith.extui %0 : i1 to i32
    %c0_i32_0 = arith.constant 0 : i32
    %2 = arith.cmpi ne, %1, %c0_i32_0 : i32
    scf.if %2 {
      %cst_10 = arith.constant 0.000000e+00 : f32
      %12 = vector.broadcast %cst_10 : f32 to vector<8x64xf32>
      %c0_11 = arith.constant 0 : index
      %c0_12 = arith.constant 0 : index
      %13 = vector.load %arg7[%c0_11, %c0_12] : memref<8x64xf32, #tpu.memory_space<vmem>>, vector<8x64xf32>
      tpu.vector_store %arg7[%c0_11, %c0_12], %12 {strides = array<i32>} : memref<8x64xf32, #tpu.memory_space<vmem>>, vector<8x64xf32>,
    } else {
    }
    %c0 = arith.constant 0 : index
    %c0_1 = arith.constant 0 : index
    %3 = vector.load %arg7[%c0, %c0_1] : memref<8x64xf32, #tpu.memory_space<vmem>>, vector<8x64xf32>
    %c0_2 = arith.constant 0 : index
    %c0_3 = arith.constant 0 : index
    %4 = vector.load %arg3[%c0_2, %c0_3] : memref<8x288xbf16, #tpu.memory_space<vmem>>, vector<8x288xbf16>
    %c0_4 = arith.constant 0 : index
    %c0_5 = arith.constant 0 : index
    %5 = vector.load %arg4[%c0_4, %c0_5] : memref<288x64xbf16, #tpu.memory_space<vmem>>, vector<288x64xbf16>
    %cst = arith.constant dense<0.000000e+00> : vector<8x64xf32>
    %6 = tpu.matmul %4, %5, %cst {dimension_numbers = #tpu.dot_dimension_numbers<[1], [0], [0], [1], [0, 0, 1, 1], [], []>} : vector<8x288xbf16>, vector<288x64xbf16>, vector<8x64xf32> -> vector<8x64xf32>
    %7 = arith.addf %3, %6 : vector<8x64xf32>
    %c0_6 = arith.constant 0 : index
    %c0_7 = arith.constant 0 : index
    %8 = vector.load %arg7[%c0_6, %c0_7] : memref<8x64xf32, #tpu.memory_space<vmem>>, vector<8x64xf32>
    tpu.vector_store %arg7[%c0_6, %c0_7], %7 {strides = array<i32>} : memref<8x64xf32, #tpu.memory_space<vmem>>, vector<8x64xf32>,
    %c0_i32_8 = arith.constant 0 : i32
    %9 = arith.cmpi eq, %arg2, %c0_i32_8 : i32
    %10 = arith.extui %9 : i1 to i32
    %c0_i32_9 = arith.constant 0 : i32
    %11 = arith.cmpi ne, %10, %c0_i32_9 : i32
    scf.if %11 {
      %c0_10 = arith.constant 0 : index
      %c0_11 = arith.constant 0 : index
      %12 = vector.load %arg7[%c0_10, %c0_11] : memref<8x64xf32, #tpu.memory_space<vmem>>, vector<8x64xf32>
      %c0_12 = arith.constant 0 : index
      %c0_13 = arith.constant 0 : index
      %13 = vector.load %arg5[%c0_12, %c0_13] : memref<1x64xf32, #tpu.memory_space<vmem>>, vector<1x64xf32>
      %14 = vector.broadcast %13 : vector<1x64xf32> to vector<8x64xf32>
      %15 = arith.addf %12, %14 : vector<8x64xf32>
      %cst_14 = arith.constant 0.000000e+00 : f32
      %16 = vector.broadcast %cst_14 : f32 to vector<8x64xf32>
      %17 = arith.cmpf ogt, %15, %16 : vector<8x64xf32>
      %cst_15 = arith.constant 0.00999999977 : f32
      %18 = vector.broadcast %cst_15 : f32 to vector<8x64xf32>
      %19 = arith.mulf %18, %15 : vector<8x64xf32>
      %20 = arith.select %17, %15, %19 : vector<8x64xi1>, vector<8x64xf32>
      %21 = arith.truncf %20 : vector<8x64xf32> to vector<8x64xbf16>
      %c0_16 = arith.constant 0 : index
      %c0_17 = arith.constant 0 : index
      %22 = vector.load %arg6[%c0_16, %c0_17] : memref<8x64xbf16, #tpu.memory_space<vmem>>, vector<8x64xbf16>
      tpu.vector_store %arg6[%c0_16, %c0_17], %21 {strides = array<i32>} : memref<8x64xbf16, #tpu.memory_space<vmem>>, vector<8x64xbf16>,
    } else {
    }
    return
  }
  func.func @transform_0(%arg0: i32, %arg1: i32, %arg2: i32) -> (i32, i32) {
    %c0_i32 = arith.constant 0 : i32
    return %arg0, %arg2 : i32, i32
  }
  func.func @transform_1(%arg0: i32, %arg1: i32, %arg2: i32) -> (i32, i32) {
    %c0_i32 = arith.constant 0 : i32
    return %arg2, %arg1 : i32, i32
  }
  func.func @transform_2(%arg0: i32, %arg1: i32, %arg2: i32) -> (i32, i32) {
    %c0_i32 = arith.constant 0 : i32
    %c0_i32_0 = arith.constant 0 : i32
    return %c0_i32, %arg1 : i32, i32
  }
  func.func @transform_3(%arg0: i32, %arg1: i32, %arg2: i32) -> (i32, i32) {
    %c0_i32 = arith.constant 0 : i32
    return %arg0, %arg1 : i32, i32
  }
}

module attributes {stable_mosaic.version = 11 : i64} {
  func.func @_mm_kernel(%arg0: i32, %arg1: i32, %arg2: i32, %arg3: memref<8x288xbf16, #tpu.memory_space<vmem>>, %arg4: memref<288x64xbf16, #tpu.memory_space<vmem>>, %arg5: memref<1x64xf32, #tpu.memory_space<vmem>>, %arg6: memref<8x64xbf16, #tpu.memory_space<vmem>>, %arg7: memref<8x64xf32, #tpu.memory_space<vmem>>) attributes {dimension_semantics = [#tpu.dimension_semantics<parallel>, #tpu.dimension_semantics<parallel>, #tpu.dimension_semantics<arbitrary>], iteration_bounds = array<i64: 1, 1, 1>, scalar_prefetch = 0 : i64, scratch_operands = 1 : i64, tpu.core_type = #tpu.core_type<tc>, window_params = [{transform_indices = @transform_0, window_bounds = array<i64: 8, 288>}, {transform_indices = @transform_1, window_bounds = array<i64: 288, 64>}, {transform_indices = @transform_2, window_bounds = array<i64: 1, 64>}, {transform_indices = @transform_3, window_bounds = array<i64: 8, 64>}]} {
    %c0_i32 = arith.constant 0 : i32
    %0 = arith.cmpi eq, %arg2, %c0_i32 : i32
    %1 = arith.extui %0 : i1 to i32
    %c0_i32_0 = arith.constant 0 : i32
    %2 = arith.cmpi ne, %1, %c0_i32_0 : i32
    scf.if %2 {
      %cst_10 = arith.constant 0.000000e+00 : f32
      %12 = vector.broadcast %cst_10 : f32 to vector<8x64xf32>
      %c0_11 = arith.constant 0 : index
      %c0_12 = arith.constant 0 : index
      %13 = vector.load %arg7[%c0_11, %c0_12] : memref<8x64xf32, #tpu.memory_space<vmem>>, vector<8x64xf32>
      tpu.vector_store %arg7[%c0_11, %c0_12], %12 {strides = array<i32>} : memref<8x64xf32, #tpu.memory_space<vmem>>, vector<8x64xf32>,
    } else {
    }
    %c0 = arith.constant 0 : index
    %c0_1 = arith.constant 0 : index
    %3 = vector.load %arg7[%c0, %c0_1] : memref<8x64xf32, #tpu.memory_space<vmem>>, vector<8x64xf32>
    %c0_2 = arith.constant 0 : index
    %c0_3 = arith.constant 0 : index
    %4 = vector.load %arg3[%c0_2, %c0_3] : memref<8x288xbf16, #tpu.memory_space<vmem>>, vector<8x288xbf16>
    %c0_4 = arith.constant 0 : index
    %c0_5 = arith.constant 0 : index
    %5 = vector.load %arg4[%c0_4, %c0_5] : memref<288x64xbf16, #tpu.memory_space<vmem>>, vector<288x64xbf16>
    %cst = arith.constant dense<0.000000e+00> : vector<8x64xf32>
    %6 = tpu.matmul %4, %5, %cst {dimension_numbers = #tpu.dot_dimension_numbers<[1], [0], [0], [1], [0, 0, 1, 1], [], []>} : vector<8x288xbf16>, vector<288x64xbf16>, vector<8x64xf32> -> vector<8x64xf32>
    %7 = arith.addf %3, %6 : vector<8x64xf32>
    %c0_6 = arith.constant 0 : index
    %c0_7 = arith.constant 0 : index
    %8 = vector.load %arg7[%c0_6, %c0_7] : memref<8x64xf32, #tpu.memory_space<vmem>>, vector<8x64xf32>
    tpu.vector_store %arg7[%c0_6, %c0_7], %7 {strides = array<i32>} : memref<8x64xf32, #tpu.memory_space<vmem>>, vector<8x64xf32>,
    %c0_i32_8 = arith.constant 0 : i32
    %9 = arith.cmpi eq, %arg2, %c0_i32_8 : i32
    %10 = arith.extui %9 : i1 to i32
    %c0_i32_9 = arith.constant 0 : i32
    %11 = arith.cmpi ne, %10, %c0_i32_9 : i32
    scf.if %11 {
      %c0_10 = arith.constant 0 : index
      %c0_11 = arith.constant 0 : index
      %12 = vector.load %arg7[%c0_10, %c0_11] : memref<8x64xf32, #tpu.memory_space<vmem>>, vector<8x64xf32>
      %c0_12 = arith.constant 0 : index
      %c0_13 = arith.constant 0 : index
      %13 = vector.load %arg5[%c0_12, %c0_13] : memref<1x64xf32, #tpu.memory_space<vmem>>, vector<1x64xf32>
      %14 = vector.broadcast %13 : vector<1x64xf32> to vector<8x64xf32>
      %15 = arith.addf %12, %14 : vector<8x64xf32>
      %cst_14 = arith.constant 0.000000e+00 : f32
      %16 = vector.broadcast %cst_14 : f32 to vector<8x64xf32>
      %17 = arith.cmpf ogt, %15, %16 : vector<8x64xf32>
      %cst_15 = arith.constant 0.00999999977 : f32
      %18 = vector.broadcast %cst_15 : f32 to vector<8x64xf32>
      %19 = arith.mulf %18, %15 : vector<8x64xf32>
      %20 = arith.select %17, %15, %19 : vector<8x64xi1>, vector<8x64xf32>
      %21 = arith.truncf %20 : vector<8x64xf32> to vector<8x64xbf16>
      %c0_16 = arith.constant 0 : index
      %c0_17 = arith.constant 0 : index
      %22 = vector.load %arg6[%c0_16, %c0_17] : memref<8x64xbf16, #tpu.memory_space<vmem>>, vector<8x64xbf16>
      tpu.vector_store %arg6[%c0_16, %c0_17], %21 {strides = array<i32>} : memref<8x64xbf16, #tpu.memory_space<vmem>>, vector<8x64xbf16>,
    } else {
    }
    return
  }
  func.func @transform_0(%arg0: i32, %arg1: i32, %arg2: i32) -> (i32, i32) {
    %c0_i32 = arith.constant 0 : i32
    return %arg0, %arg2 : i32, i32
  }
  func.func @transform_1(%arg0: i32, %arg1: i32, %arg2: i32) -> (i32, i32) {
    %c0_i32 = arith.constant 0 : i32
    return %arg2, %arg1 : i32, i32
  }
  func.func @transform_2(%arg0: i32, %arg1: i32, %arg2: i32) -> (i32, i32) {
    %c0_i32 = arith.constant 0 : i32
    %c0_i32_0 = arith.constant 0 : i32
    return %c0_i32, %arg1 : i32, i32
  }
  func.func @transform_3(%arg0: i32, %arg1: i32, %arg2: i32) -> (i32, i32) {
    %c0_i32 = arith.constant 0 : i32
    return %arg0, %arg1 : i32, i32
  }
}

module attributes {stable_mosaic.version = 11 : i64} {
  func.func @_mm_kernel(%arg0: i32, %arg1: i32, %arg2: i32, %arg3: memref<2x576xbf16, #tpu.memory_space<vmem>>, %arg4: memref<576x64xbf16, #tpu.memory_space<vmem>>, %arg5: memref<1x64xf32, #tpu.memory_space<vmem>>, %arg6: memref<2x64xbf16, #tpu.memory_space<vmem>>, %arg7: memref<2x64xf32, #tpu.memory_space<vmem>>) attributes {dimension_semantics = [#tpu.dimension_semantics<parallel>, #tpu.dimension_semantics<parallel>, #tpu.dimension_semantics<arbitrary>], iteration_bounds = array<i64: 1, 1, 1>, scalar_prefetch = 0 : i64, scratch_operands = 1 : i64, tpu.core_type = #tpu.core_type<tc>, window_params = [{transform_indices = @transform_0, window_bounds = array<i64: 2, 576>}, {transform_indices = @transform_1, window_bounds = array<i64: 576, 64>}, {transform_indices = @transform_2, window_bounds = array<i64: 1, 64>}, {transform_indices = @transform_3, window_bounds = array<i64: 2, 64>}]} {
    %c0_i32 = arith.constant 0 : i32
    %0 = arith.cmpi eq, %arg2, %c0_i32 : i32
    %1 = arith.extui %0 : i1 to i32
    %c0_i32_0 = arith.constant 0 : i32
    %2 = arith.cmpi ne, %1, %c0_i32_0 : i32
    scf.if %2 {
      %cst_10 = arith.constant 0.000000e+00 : f32
      %12 = vector.broadcast %cst_10 : f32 to vector<2x64xf32>
      %c0_11 = arith.constant 0 : index
      %c0_12 = arith.constant 0 : index
      %13 = vector.load %arg7[%c0_11, %c0_12] : memref<2x64xf32, #tpu.memory_space<vmem>>, vector<2x64xf32>
      tpu.vector_store %arg7[%c0_11, %c0_12], %12 {strides = array<i32>} : memref<2x64xf32, #tpu.memory_space<vmem>>, vector<2x64xf32>,
    } else {
    }
    %c0 = arith.constant 0 : index
    %c0_1 = arith.constant 0 : index
    %3 = vector.load %arg7[%c0, %c0_1] : memref<2x64xf32, #tpu.memory_space<vmem>>, vector<2x64xf32>
    %c0_2 = arith.constant 0 : index
    %c0_3 = arith.constant 0 : index
    %4 = vector.load %arg3[%c0_2, %c0_3] : memref<2x576xbf16, #tpu.memory_space<vmem>>, vector<2x576xbf16>
    %c0_4 = arith.constant 0 : index
    %c0_5 = arith.constant 0 : index
    %5 = vector.load %arg4[%c0_4, %c0_5] : memref<576x64xbf16, #tpu.memory_space<vmem>>, vector<576x64xbf16>
    %cst = arith.constant dense<0.000000e+00> : vector<2x64xf32>
    %6 = tpu.matmul %4, %5, %cst {dimension_numbers = #tpu.dot_dimension_numbers<[1], [0], [0], [1], [0, 0, 1, 1], [], []>} : vector<2x576xbf16>, vector<576x64xbf16>, vector<2x64xf32> -> vector<2x64xf32>
    %7 = arith.addf %3, %6 : vector<2x64xf32>
    %c0_6 = arith.constant 0 : index
    %c0_7 = arith.constant 0 : index
    %8 = vector.load %arg7[%c0_6, %c0_7] : memref<2x64xf32, #tpu.memory_space<vmem>>, vector<2x64xf32>
    tpu.vector_store %arg7[%c0_6, %c0_7], %7 {strides = array<i32>} : memref<2x64xf32, #tpu.memory_space<vmem>>, vector<2x64xf32>,
    %c0_i32_8 = arith.constant 0 : i32
    %9 = arith.cmpi eq, %arg2, %c0_i32_8 : i32
    %10 = arith.extui %9 : i1 to i32
    %c0_i32_9 = arith.constant 0 : i32
    %11 = arith.cmpi ne, %10, %c0_i32_9 : i32
    scf.if %11 {
      %c0_10 = arith.constant 0 : index
      %c0_11 = arith.constant 0 : index
      %12 = vector.load %arg7[%c0_10, %c0_11] : memref<2x64xf32, #tpu.memory_space<vmem>>, vector<2x64xf32>
      %c0_12 = arith.constant 0 : index
      %c0_13 = arith.constant 0 : index
      %13 = vector.load %arg5[%c0_12, %c0_13] : memref<1x64xf32, #tpu.memory_space<vmem>>, vector<1x64xf32>
      %14 = vector.broadcast %13 : vector<1x64xf32> to vector<2x64xf32>
      %15 = arith.addf %12, %14 : vector<2x64xf32>
      %cst_14 = arith.constant 0.000000e+00 : f32
      %16 = vector.broadcast %cst_14 : f32 to vector<2x64xf32>
      %17 = arith.cmpf ogt, %15, %16 : vector<2x64xf32>
      %cst_15 = arith.constant 0.00999999977 : f32
      %18 = vector.broadcast %cst_15 : f32 to vector<2x64xf32>
      %19 = arith.mulf %18, %15 : vector<2x64xf32>
      %20 = arith.select %17, %15, %19 : vector<2x64xi1>, vector<2x64xf32>
      %21 = arith.truncf %20 : vector<2x64xf32> to vector<2x64xbf16>
      %c0_16 = arith.constant 0 : index
      %c0_17 = arith.constant 0 : index
      %22 = vector.load %arg6[%c0_16, %c0_17] : memref<2x64xbf16, #tpu.memory_space<vmem>>, vector<2x64xbf16>
      tpu.vector_store %arg6[%c0_16, %c0_17], %21 {strides = array<i32>} : memref<2x64xbf16, #tpu.memory_space<vmem>>, vector<2x64xbf16>,
    } else {
    }
    return
  }
  func.func @transform_0(%arg0: i32, %arg1: i32, %arg2: i32) -> (i32, i32) {
    %c0_i32 = arith.constant 0 : i32
    return %arg0, %arg2 : i32, i32
  }
  func.func @transform_1(%arg0: i32, %arg1: i32, %arg2: i32) -> (i32, i32) {
    %c0_i32 = arith.constant 0 : i32
    return %arg2, %arg1 : i32, i32
  }
  func.func @transform_2(%arg0: i32, %arg1: i32, %arg2: i32) -> (i32, i32) {
    %c0_i32 = arith.constant 0 : i32
    %c0_i32_0 = arith.constant 0 : i32
    return %c0_i32, %arg1 : i32, i32
  }
  func.func @transform_3(%arg0: i32, %arg1: i32, %arg2: i32) -> (i32, i32) {
    %c0_i32 = arith.constant 0 : i32
    return %arg0, %arg1 : i32, i32
  }
}

module attributes {stable_mosaic.version = 11 : i64} {
  func.func @_mm_kernel(%arg0: i32, %arg1: i32, %arg2: i32, %arg3: memref<2x64xbf16, #tpu.memory_space<vmem>>, %arg4: memref<64x256xbf16, #tpu.memory_space<vmem>>, %arg5: memref<1x256xf32, #tpu.memory_space<vmem>>, %arg6: memref<2x256xbf16, #tpu.memory_space<vmem>>, %arg7: memref<2x256xf32, #tpu.memory_space<vmem>>) attributes {dimension_semantics = [#tpu.dimension_semantics<parallel>, #tpu.dimension_semantics<parallel>, #tpu.dimension_semantics<arbitrary>], iteration_bounds = array<i64: 1, 1, 1>, scalar_prefetch = 0 : i64, scratch_operands = 1 : i64, tpu.core_type = #tpu.core_type<tc>, window_params = [{transform_indices = @transform_0, window_bounds = array<i64: 2, 64>}, {transform_indices = @transform_1, window_bounds = array<i64: 64, 256>}, {transform_indices = @transform_2, window_bounds = array<i64: 1, 256>}, {transform_indices = @transform_3, window_bounds = array<i64: 2, 256>}]} {
    %c0_i32 = arith.constant 0 : i32
    %0 = arith.cmpi eq, %arg2, %c0_i32 : i32
    %1 = arith.extui %0 : i1 to i32
    %c0_i32_0 = arith.constant 0 : i32
    %2 = arith.cmpi ne, %1, %c0_i32_0 : i32
    scf.if %2 {
      %cst_10 = arith.constant 0.000000e+00 : f32
      %12 = vector.broadcast %cst_10 : f32 to vector<2x256xf32>
      %c0_11 = arith.constant 0 : index
      %c0_12 = arith.constant 0 : index
      %13 = vector.load %arg7[%c0_11, %c0_12] : memref<2x256xf32, #tpu.memory_space<vmem>>, vector<2x256xf32>
      tpu.vector_store %arg7[%c0_11, %c0_12], %12 {strides = array<i32>} : memref<2x256xf32, #tpu.memory_space<vmem>>, vector<2x256xf32>,
    } else {
    }
    %c0 = arith.constant 0 : index
    %c0_1 = arith.constant 0 : index
    %3 = vector.load %arg7[%c0, %c0_1] : memref<2x256xf32, #tpu.memory_space<vmem>>, vector<2x256xf32>
    %c0_2 = arith.constant 0 : index
    %c0_3 = arith.constant 0 : index
    %4 = vector.load %arg3[%c0_2, %c0_3] : memref<2x64xbf16, #tpu.memory_space<vmem>>, vector<2x64xbf16>
    %c0_4 = arith.constant 0 : index
    %c0_5 = arith.constant 0 : index
    %5 = vector.load %arg4[%c0_4, %c0_5] : memref<64x256xbf16, #tpu.memory_space<vmem>>, vector<64x256xbf16>
    %cst = arith.constant dense<0.000000e+00> : vector<2x256xf32>
    %6 = tpu.matmul %4, %5, %cst {dimension_numbers = #tpu.dot_dimension_numbers<[1], [0], [0], [1], [0, 0, 1, 1], [], []>} : vector<2x64xbf16>, vector<64x256xbf16>, vector<2x256xf32> -> vector<2x256xf32>
    %7 = arith.addf %3, %6 : vector<2x256xf32>
    %c0_6 = arith.constant 0 : index
    %c0_7 = arith.constant 0 : index
    %8 = vector.load %arg7[%c0_6, %c0_7] : memref<2x256xf32, #tpu.memory_space<vmem>>, vector<2x256xf32>
    tpu.vector_store %arg7[%c0_6, %c0_7], %7 {strides = array<i32>} : memref<2x256xf32, #tpu.memory_space<vmem>>, vector<2x256xf32>,
    %c0_i32_8 = arith.constant 0 : i32
    %9 = arith.cmpi eq, %arg2, %c0_i32_8 : i32
    %10 = arith.extui %9 : i1 to i32
    %c0_i32_9 = arith.constant 0 : i32
    %11 = arith.cmpi ne, %10, %c0_i32_9 : i32
    scf.if %11 {
      %c0_10 = arith.constant 0 : index
      %c0_11 = arith.constant 0 : index
      %12 = vector.load %arg7[%c0_10, %c0_11] : memref<2x256xf32, #tpu.memory_space<vmem>>, vector<2x256xf32>
      %c0_12 = arith.constant 0 : index
      %c0_13 = arith.constant 0 : index
      %13 = vector.load %arg5[%c0_12, %c0_13] : memref<1x256xf32, #tpu.memory_space<vmem>>, vector<1x256xf32>
      %14 = vector.broadcast %13 : vector<1x256xf32> to vector<2x256xf32>
      %15 = arith.addf %12, %14 : vector<2x256xf32>
      %cst_14 = arith.constant 0.000000e+00 : f32
      %16 = vector.broadcast %cst_14 : f32 to vector<2x256xf32>
      %17 = arith.cmpf ogt, %15, %16 : vector<2x256xf32>
      %cst_15 = arith.constant 0.00999999977 : f32
      %18 = vector.broadcast %cst_15 : f32 to vector<2x256xf32>
      %19 = arith.mulf %18, %15 : vector<2x256xf32>
      %20 = arith.select %17, %15, %19 : vector<2x256xi1>, vector<2x256xf32>
      %21 = arith.truncf %20 : vector<2x256xf32> to vector<2x256xbf16>
      %c0_16 = arith.constant 0 : index
      %c0_17 = arith.constant 0 : index
      %22 = vector.load %arg6[%c0_16, %c0_17] : memref<2x256xbf16, #tpu.memory_space<vmem>>, vector<2x256xbf16>
      tpu.vector_store %arg6[%c0_16, %c0_17], %21 {strides = array<i32>} : memref<2x256xbf16, #tpu.memory_space<vmem>>, vector<2x256xbf16>,
    } else {
    }
    return
  }
  func.func @transform_0(%arg0: i32, %arg1: i32, %arg2: i32) -> (i32, i32) {
    %c0_i32 = arith.constant 0 : i32
    return %arg0, %arg2 : i32, i32
  }
  func.func @transform_1(%arg0: i32, %arg1: i32, %arg2: i32) -> (i32, i32) {
    %c0_i32 = arith.constant 0 : i32
    return %arg2, %arg1 : i32, i32
  }
  func.func @transform_2(%arg0: i32, %arg1: i32, %arg2: i32) -> (i32, i32) {
    %c0_i32 = arith.constant 0 : i32
    %c0_i32_0 = arith.constant 0 : i32
    return %c0_i32, %arg1 : i32, i32
  }
  func.func @transform_3(%arg0: i32, %arg1: i32, %arg2: i32) -> (i32, i32) {
    %c0_i32 = arith.constant 0 : i32
    return %arg0, %arg1 : i32, i32
  }
}

module attributes {stable_mosaic.version = 11 : i64} {
  func.func @_mm_kernel(%arg0: i32, %arg1: i32, %arg2: i32, %arg3: memref<2x256xbf16, #tpu.memory_space<vmem>>, %arg4: memref<256x686xbf16, #tpu.memory_space<vmem>>, %arg5: memref<1x686xf32, #tpu.memory_space<vmem>>, %arg6: memref<2x686xbf16, #tpu.memory_space<vmem>>, %arg7: memref<2x686xf32, #tpu.memory_space<vmem>>) attributes {dimension_semantics = [#tpu.dimension_semantics<parallel>, #tpu.dimension_semantics<parallel>, #tpu.dimension_semantics<arbitrary>], iteration_bounds = array<i64: 1, 1, 1>, scalar_prefetch = 0 : i64, scratch_operands = 1 : i64, tpu.core_type = #tpu.core_type<tc>, window_params = [{transform_indices = @transform_0, window_bounds = array<i64: 2, 256>}, {transform_indices = @transform_1, window_bounds = array<i64: 256, 686>}, {transform_indices = @transform_2, window_bounds = array<i64: 1, 686>}, {transform_indices = @transform_3, window_bounds = array<i64: 2, 686>}]} {
    %c0_i32 = arith.constant 0 : i32
    %0 = arith.cmpi eq, %arg2, %c0_i32 : i32
    %1 = arith.extui %0 : i1 to i32
    %c0_i32_0 = arith.constant 0 : i32
    %2 = arith.cmpi ne, %1, %c0_i32_0 : i32
    scf.if %2 {
      %cst_10 = arith.constant 0.000000e+00 : f32
      %12 = vector.broadcast %cst_10 : f32 to vector<2x686xf32>
      %c0_11 = arith.constant 0 : index
      %c0_12 = arith.constant 0 : index
      %13 = vector.load %arg7[%c0_11, %c0_12] : memref<2x686xf32, #tpu.memory_space<vmem>>, vector<2x686xf32>
      tpu.vector_store %arg7[%c0_11, %c0_12], %12 {strides = array<i32>} : memref<2x686xf32, #tpu.memory_space<vmem>>, vector<2x686xf32>,
    } else {
    }
    %c0 = arith.constant 0 : index
    %c0_1 = arith.constant 0 : index
    %3 = vector.load %arg7[%c0, %c0_1] : memref<2x686xf32, #tpu.memory_space<vmem>>, vector<2x686xf32>
    %c0_2 = arith.constant 0 : index
    %c0_3 = arith.constant 0 : index
    %4 = vector.load %arg3[%c0_2, %c0_3] : memref<2x256xbf16, #tpu.memory_space<vmem>>, vector<2x256xbf16>
    %c0_4 = arith.constant 0 : index
    %c0_5 = arith.constant 0 : index
    %5 = vector.load %arg4[%c0_4, %c0_5] : memref<256x686xbf16, #tpu.memory_space<vmem>>, vector<256x686xbf16>
    %cst = arith.constant dense<0.000000e+00> : vector<2x686xf32>
    %6 = tpu.matmul %4, %5, %cst {dimension_numbers = #tpu.dot_dimension_numbers<[1], [0], [0], [1], [0, 0, 1, 1], [], []>} : vector<2x256xbf16>, vector<256x686xbf16>, vector<2x686xf32> -> vector<2x686xf32>
    %7 = arith.addf %3, %6 : vector<2x686xf32>
    %c0_6 = arith.constant 0 : index
    %c0_7 = arith.constant 0 : index
    %8 = vector.load %arg7[%c0_6, %c0_7] : memref<2x686xf32, #tpu.memory_space<vmem>>, vector<2x686xf32>
    tpu.vector_store %arg7[%c0_6, %c0_7], %7 {strides = array<i32>} : memref<2x686xf32, #tpu.memory_space<vmem>>, vector<2x686xf32>,
    %c0_i32_8 = arith.constant 0 : i32
    %9 = arith.cmpi eq, %arg2, %c0_i32_8 : i32
    %10 = arith.extui %9 : i1 to i32
    %c0_i32_9 = arith.constant 0 : i32
    %11 = arith.cmpi ne, %10, %c0_i32_9 : i32
    scf.if %11 {
      %c0_10 = arith.constant 0 : index
      %c0_11 = arith.constant 0 : index
      %12 = vector.load %arg7[%c0_10, %c0_11] : memref<2x686xf32, #tpu.memory_space<vmem>>, vector<2x686xf32>
      %c0_12 = arith.constant 0 : index
      %c0_13 = arith.constant 0 : index
      %13 = vector.load %arg5[%c0_12, %c0_13] : memref<1x686xf32, #tpu.memory_space<vmem>>, vector<1x686xf32>
      %14 = vector.broadcast %13 : vector<1x686xf32> to vector<2x686xf32>
      %15 = arith.addf %12, %14 : vector<2x686xf32>
      %16 = arith.truncf %15 : vector<2x686xf32> to vector<2x686xbf16>
      %c0_14 = arith.constant 0 : index
      %c0_15 = arith.constant 0 : index
      %17 = vector.load %arg6[%c0_14, %c0_15] : memref<2x686xbf16, #tpu.memory_space<vmem>>, vector<2x686xbf16>
      tpu.vector_store %arg6[%c0_14, %c0_15], %16 {strides = array<i32>} : memref<2x686xbf16, #tpu.memory_space<vmem>>, vector<2x686xbf16>,
    } else {
    }
    return
  }
  func.func @transform_0(%arg0: i32, %arg1: i32, %arg2: i32) -> (i32, i32) {
    %c0_i32 = arith.constant 0 : i32
    return %arg0, %arg2 : i32, i32
  }
  func.func @transform_1(%arg0: i32, %arg1: i32, %arg2: i32) -> (i32, i32) {
    %c0_i32 = arith.constant 0 : i32
    return %arg2, %arg1 : i32, i32
  }
  func.func @transform_2(%arg0: i32, %arg1: i32, %arg2: i32) -> (i32, i32) {
    %c0_i32 = arith.constant 0 : i32
    %c0_i32_0 = arith.constant 0 : i32
    return %c0_i32, %arg1 : i32, i32
  }
  func.func @transform_3(%arg0: i32, %arg1: i32, %arg2: i32) -> (i32, i32) {
    %c0_i32 = arith.constant 0 : i32
    return %arg0, %arg1 : i32, i32
  }
}

</mosaic_0001>

<llo_original>
// kernel: tpu_custom_call.1
$region0: #{tpu_custom_call.1}
  #allocation0 [shape = 'u32[]', space=smem, size = 0x4, offset = 0x4, fixed_abs, tag = 'smem constant byte address 0x4 - core index']
  #allocation1 [shape = 'u32[144,128]{1,0:T(1,128)}', space=vmem, size = 0x12000, scoped, tag = 'internal scratch']
  %s0 = inlined_call_operand.hbm [shape: bf16[6,2,3,2,8], index: 0, kind: input, shape index: {}]
  %s1 = inlined_call_operand.hbm [shape: bf16[6,3,8], index: 1, kind: output, shape index: {}]
  %s2 = sld [smem:[#allocation0]]
  $region18: #{tpu_custom_call.1} parent=0
    _
  %s4 = ssub.s32 1, %s2
  %s5 = scalar_select 0, %s4, %s2
  $region1: #{tpu_custom_call.1} parent=0
    #allocation2 [shape = 'u8[18432]{0}', space=vmem, size = 0x4800, scoped, tag = 'input window, operand 0, single buffered']
    #allocation3 [shape = 's32[1]{0}', space=sflag, size = 0x4, scoped, tag = 'scoped memory for tpu_custom_call.1']
    #allocation4 [shape = 's32[1]{0}', space=sflag, size = 0x4, scoped, tag = 'scoped memory for tpu_custom_call.1']
    #allocation5 [shape = 'u8[6144]{0}', space=vmem, size = 0x1800, scoped, tag = 'output window, operand 0, single buffered']
    %6 = vsyncpa [#allocation3], 0
    %7 = vsyncpa [#allocation4], 0
    // Predicated region
    $region2: #{tpu_custom_call.1} parent=1 // pred_check
      _
    $region3: #{tpu_custom_call.1} parent=1 // pred_check_branch
      %9 = sbr.rel (0) target = $region5
    $region4: #{tpu_custom_call.1} parent=1 // pred_region
      %s11 = ssub.s32 576, 576
      %12 = vsyncadd [#allocation3], %s11
      %s13 = sshll.u32 [#allocation2], 4
      %s14 = int_to_ptr.vmem [resolvable:$true] %s13
      %19 = dma.hbm_to_vmem [thread:$0]  %s0, 576, %s14, [#allocation3], 16, 16, 1
    $region5: #{tpu_custom_call.1} parent=1 // pred_fallthru
      _
    // Predicated region
    $region6: #{tpu_custom_call.1} parent=1 // pred_check
      _
    $region7: #{tpu_custom_call.1} parent=1 // pred_check_branch
      %21 = sbr.rel (0) target = $region9
    $region8: #{tpu_custom_call.1} parent=1 // pred_region
      %22 = dma.done [#allocation3], 576
    $region9: #{tpu_custom_call.1} parent=1 // pred_fallthru
      _
    %v23 = vld [vmem:[#allocation2] sm:$0x1]
    %v24 = vld [vmem:[#allocation2 + $0x1] sm:$0x1]
    %v25 = vld [vmem:[#allocation2 + $0x2] sm:$0x1]
    %v26 = vld [vmem:[#allocation2 + $0x3] sm:$0x1]
    %v27 = vld [vmem:[#allocation2 + $0x4] sm:$0x1]
    %v28 = vld [vmem:[#allocation2 + $0x5] sm:$0x1]
    %v29 = vld [vmem:[#allocation2 + $0x6] sm:$0x1]
    %v30 = vld [vmem:[#allocation2 + $0x7] sm:$0x1]
    %v31 = vld [vmem:[#allocation2 + $0x8] sm:$0x1]
    %v32 = vld [vmem:[#allocation2 + $0x9] sm:$0x1]
    %v33 = vld [vmem:[#allocation2 + $0xa] sm:$0x1]
    %v34 = vld [vmem:[#allocation2 + $0xb] sm:$0x1]
    %v35 = vld [vmem:[#allocation2 + $0xc] sm:$0x1]
    %v36 = vld [vmem:[#allocation2 + $0xd] sm:$0x1]
    %v37 = vld [vmem:[#allocation2 + $0xe] sm:$0x1]
    %v38 = vld [vmem:[#allocation2 + $0xf] sm:$0x1]
    %v39 = vld [vmem:[#allocation2 + $0x10] sm:$0x1]
    %v40 = vld [vmem:[#allocation2 + $0x11] sm:$0x1]
    %v41 = vld [vmem:[#allocation2 + $0x12] sm:$0x1]
    %v42 = vld [vmem:[#allocation2 + $0x13] sm:$0x1]
    %v43 = vld [vmem:[#allocation2 + $0x14] sm:$0x1]
    %v44 = vld [vmem:[#allocation2 + $0x15] sm:$0x1]
    %v45 = vld [vmem:[#allocation2 + $0x16] sm:$0x1]
    %v46 = vld [vmem:[#allocation2 + $0x17] sm:$0x1]
    %v47 = vld [vmem:[#allocation2 + $0x18] sm:$0x1]
    %v48 = vld [vmem:[#allocation2 + $0x19] sm:$0x1]
    %v49 = vld [vmem:[#allocation2 + $0x1a] sm:$0x1]
    %v50 = vld [vmem:[#allocation2 + $0x1b] sm:$0x1]
    %v51 = vld [vmem:[#allocation2 + $0x1c] sm:$0x1]
    %v52 = vld [vmem:[#allocation2 + $0x1d] sm:$0x1]
    %v53 = vld [vmem:[#allocation2 + $0x1e] sm:$0x1]
    %v54 = vld [vmem:[#allocation2 + $0x1f] sm:$0x1]
    %v55 = vld [vmem:[#allocation2 + $0x20] sm:$0x1]
    %v56 = vld [vmem:[#allocation2 + $0x21] sm:$0x1]
    %v57 = vld [vmem:[#allocation2 + $0x22] sm:$0x1]
    %v58 = vld [vmem:[#allocation2 + $0x23] sm:$0x1]
    %v59 = vmax.bf16 %v23, %v26
    %v60 = vmax.bf16 %v24, %v27
    %v61 = vmax.bf16 %v25, %v28
    %v62 = vmax.bf16 %v29, %v32
    %v63 = vmax.bf16 %v30, %v33
    %v64 = vmax.bf16 %v31, %v34
    %v65 = vmax.bf16 %v35, %v38
    %v66 = vmax.bf16 %v36, %v39
    %v67 = vmax.bf16 %v37, %v40
    %v68 = vmax.bf16 %v41, %v44
    %v69 = vmax.bf16 %v42, %v45
    %v70 = vmax.bf16 %v43, %v46
    %v71 = vmax.bf16 %v47, %v50
    %v72 = vmax.bf16 %v48, %v51
    %v73 = vmax.bf16 %v49, %v52
    %v74 = vmax.bf16 %v53, %v56
    %v75 = vmax.bf16 %v54, %v57
    %v76 = vmax.bf16 %v55, %v58
    %v78 = vshrl.u32 %v59, 16
    %v80 = vrot.slane %v78, 7
    %v81 = vrot.slane %v80, 1
    %v83 = vshrl.u32 %v60, 16
    %v85 = vrot.slane %v83, 7
    %v86 = vrot.slane %v85, 1
    %v88 = vshrl.u32 %v61, 16
    %v90 = vrot.slane %v88, 7
    %v91 = vrot.slane %v90, 1
    %v93 = vshrl.u32 %v62, 16
    %v95 = vrot.slane %v93, 7
    %v96 = vrot.slane %v95, 1
    %v98 = vshrl.u32 %v63, 16
    %v100 = vrot.slane %v98, 7
    %v101 = vrot.slane %v100, 1
    %v103 = vshrl.u32 %v64, 16
    %v105 = vrot.slane %v103, 7
    %v106 = vrot.slane %v105, 1
    %v108 = vshrl.u32 %v65, 16
    %v110 = vrot.slane %v108, 7
    %v111 = vrot.slane %v110, 1
    %v113 = vshrl.u32 %v66, 16
    %v115 = vrot.slane %v113, 7
    %v116 = vrot.slane %v115, 1
    %v118 = vshrl.u32 %v67, 16
    %v120 = vrot.slane %v118, 7
    %v121 = vrot.slane %v120, 1
    %v123 = vshrl.u32 %v68, 16
    %v125 = vrot.slane %v123, 7
    %v126 = vrot.slane %v125, 1
    %v128 = vshrl.u32 %v69, 16
    %v130 = vrot.slane %v128, 7
    %v131 = vrot.slane %v130, 1
    %v133 = vshrl.u32 %v70, 16
    %v135 = vrot.slane %v133, 7
    %v136 = vrot.slane %v135, 1
    %v138 = vshrl.u32 %v71, 16
    %v140 = vrot.slane %v138, 7
    %v141 = vrot.slane %v140, 1
    %v143 = vshrl.u32 %v72, 16
    %v145 = vrot.slane %v143, 7
    %v146 = vrot.slane %v145, 1
    %v148 = vshrl.u32 %v73, 16
    %v150 = vrot.slane %v148, 7
    %v151 = vrot.slane %v150, 1
    %v153 = vshrl.u32 %v74, 16
    %v155 = vrot.slane %v153, 7
    %v156 = vrot.slane %v155, 1
    %v158 = vshrl.u32 %v75, 16
    %v160 = vrot.slane %v158, 7
    %v161 = vrot.slane %v160, 1
    %v163 = vshrl.u32 %v76, 16
    %v165 = vrot.slane %v163, 7
    %v166 = vrot.slane %v165, 1
    %v185 = vmax.bf16 %v59, %v81
    %v186 = vmax.bf16 %v60, %v86
    %v187 = vmax.bf16 %v61, %v91
    %v188 = vmax.bf16 %v62, %v96
    %v189 = vmax.bf16 %v63, %v101
    %v190 = vmax.bf16 %v64, %v106
    %v191 = vmax.bf16 %v65, %v111
    %v192 = vmax.bf16 %v66, %v116
    %v193 = vmax.bf16 %v67, %v121
    %v194 = vmax.bf16 %v68, %v126
    %v195 = vmax.bf16 %v69, %v131
    %v196 = vmax.bf16 %v70, %v136
    %v197 = vmax.bf16 %v71, %v141
    %v198 = vmax.bf16 %v72, %v146
    %v199 = vmax.bf16 %v73, %v151
    %v200 = vmax.bf16 %v74, %v156
    %v201 = vmax.bf16 %v75, %v161
    %v202 = vmax.bf16 %v76, %v166
    %v222 = vunpack.c.l.s4 1935823168
    %v223 = vunpack.c.0.s8 %v222
    %v224 = vlaneseq
    %v225 = vshrl.u32 %v224, 7
    %v226 = vsub.s32 %v223, %v225
    %v227 = vrot.slane %v185, %v226
    %v229 = vunpack.c.l.s4 1935823168
    %v230 = vunpack.c.0.s8 %v229
    %v231 = vlaneseq
    %v232 = vshrl.u32 %v231, 7
    %v233 = vsub.s32 %v230, %v232
    %v234 = vrot.slane %v186, %v233
    %v236 = vunpack.c.l.s4 1935823168
    %v237 = vunpack.c.0.s8 %v236
    %v238 = vlaneseq
    %v239 = vshrl.u32 %v238, 7
    %v240 = vsub.s32 %v237, %v239
    %v241 = vrot.slane %v187, %v240
    %v243 = vunpack.c.l.s4 1935823168
    %v244 = vunpack.c.0.s8 %v243
    %v245 = vlaneseq
    %v246 = vshrl.u32 %v245, 7
    %v247 = vsub.s32 %v244, %v246
    %v248 = vrot.slane %v188, %v247
    %v250 = vunpack.c.l.s4 1935823168
    %v251 = vunpack.c.0.s8 %v250
    %v252 = vlaneseq
    %v253 = vshrl.u32 %v252, 7
    %v254 = vsub.s32 %v251, %v253
    %v255 = vrot.slane %v189, %v254
    %v257 = vunpack.c.l.s4 1935823168
    %v258 = vunpack.c.0.s8 %v257
    %v259 = vlaneseq
    %v260 = vshrl.u32 %v259, 7
    %v261 = vsub.s32 %v258, %v260
    %v262 = vrot.slane %v190, %v261
    %v264 = vunpack.c.l.s4 1935823168
    %v265 = vunpack.c.0.s8 %v264
    %v266 = vlaneseq
    %v267 = vshrl.u32 %v266, 7
    %v268 = vsub.s32 %v265, %v267
    %v269 = vrot.slane %v191, %v268
    %v271 = vunpack.c.l.s4 1935823168
    %v272 = vunpack.c.0.s8 %v271
    %v273 = vlaneseq
    %v274 = vshrl.u32 %v273, 7
    %v275 = vsub.s32 %v272, %v274
    %v276 = vrot.slane %v192, %v275
    %v278 = vunpack.c.l.s4 1935823168
    %v279 = vunpack.c.0.s8 %v278
    %v280 = vlaneseq
    %v281 = vshrl.u32 %v280, 7
    %v282 = vsub.s32 %v279, %v281
    %v283 = vrot.slane %v193, %v282
    %v285 = vunpack.c.l.s4 1935823168
    %v286 = vunpack.c.0.s8 %v285
    %v287 = vlaneseq
    %v288 = vshrl.u32 %v287, 7
    %v289 = vsub.s32 %v286, %v288
    %v290 = vrot.slane %v194, %v289
    %v292 = vunpack.c.l.s4 1935823168
    %v293 = vunpack.c.0.s8 %v292
    %v294 = vlaneseq
    %v295 = vshrl.u32 %v294, 7
    %v296 = vsub.s32 %v293, %v295
    %v297 = vrot.slane %v195, %v296
    %v299 = vunpack.c.l.s4 1935823168
    %v300 = vunpack.c.0.s8 %v299
    %v301 = vlaneseq
    %v302 = vshrl.u32 %v301, 7
    %v303 = vsub.s32 %v300, %v302
    %v304 = vrot.slane %v196, %v303
    %v306 = vunpack.c.l.s4 1935823168
    %v307 = vunpack.c.0.s8 %v306
    %v308 = vlaneseq
    %v309 = vshrl.u32 %v308, 7
    %v310 = vsub.s32 %v307, %v309
    %v311 = vrot.slane %v197, %v310
    %v313 = vunpack.c.l.s4 1935823168
    %v314 = vunpack.c.0.s8 %v313
    %v315 = vlaneseq
    %v316 = vshrl.u32 %v315, 7
    %v317 = vsub.s32 %v314, %v316
    %v318 = vrot.slane %v198, %v317
    %v320 = vunpack.c.l.s4 1935823168
    %v321 = vunpack.c.0.s8 %v320
    %v322 = vlaneseq
    %v323 = vshrl.u32 %v322, 7
    %v324 = vsub.s32 %v321, %v323
    %v325 = vrot.slane %v199, %v324
    %v327 = vunpack.c.l.s4 1935823168
    %v328 = vunpack.c.0.s8 %v327
    %v329 = vlaneseq
    %v330 = vshrl.u32 %v329, 7
    %v331 = vsub.s32 %v328, %v330
    %v332 = vrot.slane %v200, %v331
    %v334 = vunpack.c.l.s4 1935823168
    %v335 = vunpack.c.0.s8 %v334
    %v336 = vlaneseq
    %v337 = vshrl.u32 %v336, 7
    %v338 = vsub.s32 %v335, %v337
    %v339 = vrot.slane %v201, %v338
    %v341 = vunpack.c.l.s4 1935823168
    %v342 = vunpack.c.0.s8 %v341
    %v343 = vlaneseq
    %v344 = vshrl.u32 %v343, 7
    %v345 = vsub.s32 %v342, %v344
    %v346 = vrot.slane %v202, %v345
    %v348 = vunpack.c.l.s4 1983009808
    %v349 = vunpack.c.0.s8 %v348
    %v350 = vlaneseq
    %v351 = vshrl.u32 %v350, 7
    %v352 = vsub.s32 %v349, %v351
    %v353 = vrot.slane %v227, %v352
    %v355 = vunpack.c.l.s4 1983009808
    %v356 = vunpack.c.0.s8 %v355
    %v357 = vlaneseq
    %v358 = vshrl.u32 %v357, 7
    %v359 = vsub.s32 %v356, %v358
    %v360 = vrot.slane %v234, %v359
    %v362 = vunpack.c.l.s4 1983009808
    %v363 = vunpack.c.0.s8 %v362
    %v364 = vlaneseq
    %v365 = vshrl.u32 %v364, 7
    %v366 = vsub.s32 %v363, %v365
    %v367 = vrot.slane %v241, %v366
    %v369 = vunpack.c.l.s4 1983009808
    %v370 = vunpack.c.0.s8 %v369
    %v371 = vlaneseq
    %v372 = vshrl.u32 %v371, 7
    %v373 = vsub.s32 %v370, %v372
    %v374 = vrot.slane %v248, %v373
    %v376 = vunpack.c.l.s4 1983009808
    %v377 = vunpack.c.0.s8 %v376
    %v378 = vlaneseq
    %v379 = vshrl.u32 %v378, 7
    %v380 = vsub.s32 %v377, %v379
    %v381 = vrot.slane %v255, %v380
    %v383 = vunpack.c.l.s4 1983009808
    %v384 = vunpack.c.0.s8 %v383
    %v385 = vlaneseq
    %v386 = vshrl.u32 %v385, 7
    %v387 = vsub.s32 %v384, %v386
    %v388 = vrot.slane %v262, %v387
    %v390 = vunpack.c.l.s4 1983009808
    %v391 = vunpack.c.0.s8 %v390
    %v392 = vlaneseq
    %v393 = vshrl.u32 %v392, 7
    %v394 = vsub.s32 %v391, %v393
    %v395 = vrot.slane %v269, %v394
    %v397 = vunpack.c.l.s4 1983009808
    %v398 = vunpack.c.0.s8 %v397
    %v399 = vlaneseq
    %v400 = vshrl.u32 %v399, 7
    %v401 = vsub.s32 %v398, %v400
    %v402 = vrot.slane %v276, %v401
    %v404 = vunpack.c.l.s4 1983009808
    %v405 = vunpack.c.0.s8 %v404
    %v406 = vlaneseq
    %v407 = vshrl.u32 %v406, 7
    %v408 = vsub.s32 %v405, %v407
    %v409 = vrot.slane %v283, %v408
    %v411 = vunpack.c.l.s4 1983009808
    %v412 = vunpack.c.0.s8 %v411
    %v413 = vlaneseq
    %v414 = vshrl.u32 %v413, 7
    %v415 = vsub.s32 %v412, %v414
    %v416 = vrot.slane %v290, %v415
    %v418 = vunpack.c.l.s4 1983009808
    %v419 = vunpack.c.0.s8 %v418
    %v420 = vlaneseq
    %v421 = vshrl.u32 %v420, 7
    %v422 = vsub.s32 %v419, %v421
    %v423 = vrot.slane %v297, %v422
    %v425 = vunpack.c.l.s4 1983009808
    %v426 = vunpack.c.0.s8 %v425
    %v427 = vlaneseq
    %v428 = vshrl.u32 %v427, 7
    %v429 = vsub.s32 %v426, %v428
    %v430 = vrot.slane %v304, %v429
    %v432 = vunpack.c.l.s4 1983009808
    %v433 = vunpack.c.0.s8 %v432
    %v434 = vlaneseq
    %v435 = vshrl.u32 %v434, 7
    %v436 = vsub.s32 %v433, %v435
    %v437 = vrot.slane %v311, %v436
    %v439 = vunpack.c.l.s4 1983009808
    %v440 = vunpack.c.0.s8 %v439
    %v441 = vlaneseq
    %v442 = vshrl.u32 %v441, 7
    %v443 = vsub.s32 %v440, %v442
    %v444 = vrot.slane %v318, %v443
    %v446 = vunpack.c.l.s4 1983009808
    %v447 = vunpack.c.0.s8 %v446
    %v448 = vlaneseq
    %v449 = vshrl.u32 %v448, 7
    %v450 = vsub.s32 %v447, %v449
    %v451 = vrot.slane %v325, %v450
    %v453 = vunpack.c.l.s4 1983009808
    %v454 = vunpack.c.0.s8 %v453
    %v455 = vlaneseq
    %v456 = vshrl.u32 %v455, 7
    %v457 = vsub.s32 %v454, %v456
    %v458 = vrot.slane %v332, %v457
    %v460 = vunpack.c.l.s4 1983009808
    %v461 = vunpack.c.0.s8 %v460
    %v462 = vlaneseq
    %v463 = vshrl.u32 %v462, 7
    %v464 = vsub.s32 %v461, %v463
    %v465 = vrot.slane %v339, %v464
    %v467 = vunpack.c.l.s4 1983009808
    %v468 = vunpack.c.0.s8 %v467
    %v469 = vlaneseq
    %v470 = vshrl.u32 %v469, 7
    %v471 = vsub.s32 %v468, %v470
    %v472 = vrot.slane %v346, %v471
    %v473 = vunpack.c.l.b16 %v353
    %v474 = vunpack.c.l.b16 %v360
    %v475 = vunpack.c.l.b16 %v367
    %v476 = vunpack.c.l.b16 %v374
    %v477 = vunpack.c.l.b16 %v381
    %v478 = vunpack.c.l.b16 %v388
    %v479 = vunpack.c.l.b16 %v395
    %v480 = vunpack.c.l.b16 %v402
    %v481 = vunpack.c.l.b16 %v409
    %v482 = vunpack.c.l.b16 %v416
    %v483 = vunpack.c.l.b16 %v423
    %v484 = vunpack.c.l.b16 %v430
    %v485 = vunpack.c.l.b16 %v437
    %v486 = vunpack.c.l.b16 %v444
    %v487 = vunpack.c.l.b16 %v451
    %v488 = vunpack.c.l.b16 %v458
    %v489 = vunpack.c.l.b16 %v465
    %v490 = vunpack.c.l.b16 %v472
    %v491 = vrot.slane %v474, 7
    %vm492 = vcmask 1041409
    %v493 = vsel %vm492, %v491, %v473
    %v494 = vrot.slane %v475, 6
    %vm495 = vcmask 1042434
    %v496 = vsel %vm495, %v494, %v493
    %v497 = vrot.slane %v477, 7
    %v498 = vsel %vm492, %v497, %v476
    %v499 = vrot.slane %v478, 6
    %v500 = vsel %vm495, %v499, %v498
    %v501 = vrot.slane %v480, 7
    %v502 = vsel %vm492, %v501, %v479
    %v503 = vrot.slane %v481, 6
    %v504 = vsel %vm495, %v503, %v502
    %v505 = vrot.slane %v483, 7
    %v506 = vsel %vm492, %v505, %v482
    %v507 = vrot.slane %v484, 6
    %v508 = vsel %vm495, %v507, %v506
    %v509 = vrot.slane %v486, 7
    %v510 = vsel %vm492, %v509, %v485
    %v511 = vrot.slane %v487, 6
    %v512 = vsel %vm495, %v511, %v510
    %v513 = vrot.slane %v489, 7
    %v514 = vsel %vm492, %v513, %v488
    %v515 = vrot.slane %v490, 6
    %v516 = vsel %vm495, %v515, %v514
    %v517 = vpack.c.b16 %v496, %v496
    %v518 = vpack.c.b16 %v500, %v500
    %v519 = vpack.c.b16 %v504, %v504
    %v520 = vpack.c.b16 %v508, %v508
    %v521 = vpack.c.b16 %v512, %v512
    %v522 = vpack.c.b16 %v516, %v516
    %v524 = vunpack.c.l.s4 1983009808
    %v525 = vunpack.c.0.s8 %v524
    %v526 = vlaneseq
    %v527 = vshrl.u32 %v526, 7
    %v528 = vsub.s32 %v525, %v527
    %v529 = vrot.slane %v517, %v528
    %v531 = vunpack.c.l.s4 1983009808
    %v532 = vunpack.c.0.s8 %v531
    %v533 = vlaneseq
    %v534 = vshrl.u32 %v533, 7
    %v535 = vsub.s32 %v532, %v534
    %v536 = vrot.slane %v518, %v535
    %v538 = vunpack.c.l.s4 1983009808
    %v539 = vunpack.c.0.s8 %v538
    %v540 = vlaneseq
    %v541 = vshrl.u32 %v540, 7
    %v542 = vsub.s32 %v539, %v541
    %v543 = vrot.slane %v519, %v542
    %v545 = vunpack.c.l.s4 1983009808
    %v546 = vunpack.c.0.s8 %v545
    %v547 = vlaneseq
    %v548 = vshrl.u32 %v547, 7
    %v549 = vsub.s32 %v546, %v548
    %v550 = vrot.slane %v520, %v549
    %v552 = vunpack.c.l.s4 1983009808
    %v553 = vunpack.c.0.s8 %v552
    %v554 = vlaneseq
    %v555 = vshrl.u32 %v554, 7
    %v556 = vsub.s32 %v553, %v555
    %v557 = vrot.slane %v521, %v556
    %v559 = vunpack.c.l.s4 1983009808
    %v560 = vunpack.c.0.s8 %v559
    %v561 = vlaneseq
    %v562 = vshrl.u32 %v561, 7
    %v563 = vsub.s32 %v560, %v562
    %v564 = vrot.slane %v522, %v563
    %vm571 = vcmask 58368
    %vm572 = vsmask.f32 1280
    %vm573 = vmand %vm571, %vm572
    %v574 = vld [vmem:[#allocation5] sm:$0x3]
    %v575 = vsel %vm573, %v529, %v574
    %576 = vst [vmem:[#allocation5] sm:$0x3] %v575
    %v577 = vld [vmem:[#allocation5 + $0x2] sm:$0x3]
    %v578 = vsel %vm573, %v536, %v577
    %579 = vst [vmem:[#allocation5 + $0x2] sm:$0x3] %v578
    %v580 = vld [vmem:[#allocation5 + $0x4] sm:$0x3]
    %v581 = vsel %vm573, %v543, %v580
    %582 = vst [vmem:[#allocation5 + $0x4] sm:$0x3] %v581
    %v583 = vld [vmem:[#allocation5 + $0x6] sm:$0x3]
    %v584 = vsel %vm573, %v550, %v583
    %585 = vst [vmem:[#allocation5 + $0x6] sm:$0x3] %v584
    %v586 = vld [vmem:[#allocation5 + $0x8] sm:$0x3]
    %v587 = vsel %vm573, %v557, %v586
    %588 = vst [vmem:[#allocation5 + $0x8] sm:$0x3] %v587
    %v589 = vld [vmem:[#allocation5 + $0xa] sm:$0x3]
    %v590 = vsel %vm573, %v564, %v589
    %591 = vst [vmem:[#allocation5 + $0xa] sm:$0x3] %v590
    // Predicated region
    $region10: #{tpu_custom_call.1} parent=1 // pred_check
      _
    $region11: #{tpu_custom_call.1} parent=1 // pred_check_branch
      %593 = sbr.rel (0) target = $region13
    $region12: #{tpu_custom_call.1} parent=1 // pred_region
      %s595 = ssub.s32 192, 192
      %596 = vsyncadd [#allocation4], %s595
      %s597 = sshll.u32 [#allocation5], 4
      %s598 = int_to_ptr.vmem [resolvable:$true] %s597
      %603 = dma.vmem_to_hbm [thread:$0]  %s598, 192, %s1, [#allocation4], 32, 32, 2
    $region13: #{tpu_custom_call.1} parent=1 // pred_fallthru
      _
    // Predicated region
    $region14: #{tpu_custom_call.1} parent=1 // pred_check
      _
    $region15: #{tpu_custom_call.1} parent=1 // pred_check_branch
      %605 = sbr.rel (0) target = $region17
    $region16: #{tpu_custom_call.1} parent=1 // pred_region
      %606 = dma.done [#allocation4], 192
    $region17: #{tpu_custom_call.1} parent=1 // pred_fallthru
      _
    %607 = vsyncpa [#allocation3], 1
    %608 = vsyncpa [#allocation4], 1

// kernel: yolo_forward.26
$region0: #{yolo_forward.26}
  #allocation0 [shape = 'u32[]', space=smem, size = 0x4, offset = 0x4, fixed_abs, tag = 'smem constant byte address 0x4 - core index']
  #allocation1 [shape = 'u32[144,128]{1,0:T(1,128)}', space=vmem, size = 0x12000, scoped, tag = 'internal scratch']
  #allocation2 [shape = 'f32[256,4]{1,0:T(8,128)}', space=vmem, size = 0x20000, scoped, tag = 'scratch operand']
  %s0 = inlined_call_operand.vmem [shape: bf16[1800,147], index: 0, kind: input, shape index: {}]
  %s1 = inlined_call_operand.vmem [shape: bf16[147,4], index: 1, kind: input, shape index: {}]
  %s2 = inlined_call_operand.vmem [shape: f32[1,4], index: 2, kind: input, shape index: {}]
  %s3 = inlined_call_operand.vmem [shape: bf16[1800,4], index: 3, kind: output, shape index: {}]
  %s4 = sld [smem:[#allocation0]]
  $region97: #{yolo_forward.26} parent=0
    _
  %s6 = ssub.s32 1, %s4
  %s7 = scalar_select 0, %s6, %s4
  $region1: #{yolo_forward.26} parent=0
    #allocation3 [shape = 'u8[131072]{0}', space=vmem, size = 0x20000, scoped, tag = 'output window, operand 0']
    loop: start=0, step=1, limit=10
    $region2: #{yolo_forward.26} parent=1 // loop_pre_header
      _
    $region3: #{yolo_forward.26} parent=1 // loop_header
      %s9 = sphi 0, %s13
      %p10 = scmp.ge.s32.totalorder %s9, 10
      %s16 = sphi 0, %s35
      %s17 = sphi 0, %s31
      %s18 = sphi 0, %s27
      %s19 = sphi 0, %s16
      %s20 = sphi 0, %s17
      %s21 = sphi 0, %s18
      %s22 = sphi 0, %s19
      %s23 = sphi 0, %s20
      %s24 = sphi 0, %s21
      %s40 = sphi 0, %s42
      %s43 = sphi 0, %s40
      %s44 = sphi 0, %s43
      %s60 = sphi 0, %s44
      %s68 = sphi 0, %s70
      %s71 = sphi 0, %s68
      %s72 = sphi 0, %s71
      %s88 = sphi 0, %s72
      %s94 = sphi 0, %s96
      %s97 = sphi 0, %s94
      %s98 = sphi 0, %s97
      %s114 = sphi 0, %s98
      %s122 = sphi 0, %s124
      %s125 = sphi 0, %s122
      %s126 = sphi 0, %s125
      %s142 = sphi 0, %s126
    $region4: #{yolo_forward.26} parent=1 // loop_header_branch
      %12 = sbr.rel (%p10) target = $region8
    $region5: #{yolo_forward.26} parent=1 // loop_body
      %s14 = ssub.s32 %s9, 1
      %s15 = ssub.s32 %s9, 2
      %s25 = sadd.s32 1, %s18
      %p26 = scmp.ge.s32.totalorder %s25, 1
      %s27 = scalar_select %p26, 0, %s25
      %s28 = sadd.s32 1, %s17
      %s29 = scalar_select %p26, %s28, %s17
      %p30 = scmp.ge.s32.totalorder %s29, 1
      %s31 = scalar_select %p30, 0, %s29
      %s32 = sadd.s32 1, %s16
      %s33 = scalar_select %p30, %s32, %s16
      %p34 = scmp.ge.s32.totalorder %s33, 8
      %s35 = scalar_select %p34, 0, %s33
      %s36 = ssub.s32 %s16, %s35
      %s37 = ssub.s32 %s18, %s27
      %s38 = sor.u32 %s36, %s37
      %p39 = scmp.eq.s32.totalorder %s38, 0
      %s41 = sadd.s32 %s40, 1
      %s42 = scalar_select %p39, %s40, %s41
      %p45 = pneg %p39
      %p46 = scmp.eq.s32.totalorder %s9, 7
      %p47 = por %p45, %p46
      %p48 = scmp.ne.s32.totalorder %s40, %s43
      %p49 = scmp.eq.s32.totalorder %s9, 0
      %p50 = por %p48, %p49
      %p51 = scmp.ne.s32.totalorder %s40, %s43
      %p52 = scmp.eq.s32.totalorder %s14, 7
      %p53 = por %p51, %p52
      %p54 = scmp.ne.s32.totalorder %s43, %s44
      %p55 = scmp.eq.s32.totalorder %s14, 0
      %p56 = por %p54, %p55
      %p57 = scmp.ne.s32.totalorder %s43, %s44
      %p58 = scmp.eq.s32.totalorder %s15, 7
      %p59 = por %p57, %p58
      %p61 = scmp.ne.s32.totalorder %s44, %s60
      %p62 = scmp.eq.s32.totalorder %s15, 0
      %p63 = por %p61, %p62
      %s64 = ssub.s32 %s18, %s27
      %s65 = ssub.s32 %s17, %s31
      %s66 = sor.u32 %s64, %s65
      %p67 = scmp.eq.s32.totalorder %s66, 0
      %s69 = sadd.s32 %s68, 1
      %s70 = scalar_select %p67, %s68, %s69
      %p73 = pneg %p67
      %p74 = scmp.eq.s32.totalorder %s9, 7
      %p75 = por %p73, %p74
      %p76 = scmp.ne.s32.totalorder %s68, %s71
      %p77 = scmp.eq.s32.totalorder %s9, 0
      %p78 = por %p76, %p77
      %p79 = scmp.ne.s32.totalorder %s68, %s71
      %p80 = scmp.eq.s32.totalorder %s14, 7
      %p81 = por %p79, %p80
      %p82 = scmp.ne.s32.totalorder %s71, %s72
      %p83 = scmp.eq.s32.totalorder %s14, 0
      %p84 = por %p82, %p83
      %p85 = scmp.ne.s32.totalorder %s71, %s72
      %p86 = scmp.eq.s32.totalorder %s15, 7
      %p87 = por %p85, %p86
      %p89 = scmp.ne.s32.totalorder %s72, %s88
      %p90 = scmp.eq.s32.totalorder %s15, 0
      %p91 = por %p89, %p90
      %s92 = ssub.s32 %s17, %s31
      %p93 = scmp.eq.s32.totalorder %s92, 0
      %s95 = sadd.s32 %s94, 1
      %s96 = scalar_select %p93, %s94, %s95
      %p99 = pneg %p93
      %p100 = scmp.eq.s32.totalorder %s9, 7
      %p101 = por %p99, %p100
      %p102 = scmp.ne.s32.totalorder %s94, %s97
      %p103 = scmp.eq.s32.totalorder %s9, 0
      %p104 = por %p102, %p103
      %p105 = scmp.ne.s32.totalorder %s94, %s97
      %p106 = scmp.eq.s32.totalorder %s14, 7
      %p107 = por %p105, %p106
      %p108 = scmp.ne.s32.totalorder %s97, %s98
      %p109 = scmp.eq.s32.totalorder %s14, 0
      %p110 = por %p108, %p109
      %p111 = scmp.ne.s32.totalorder %s97, %s98
      %p112 = scmp.eq.s32.totalorder %s15, 7
      %p113 = por %p111, %p112
      %p115 = scmp.ne.s32.totalorder %s98, %s114
      %p116 = scmp.eq.s32.totalorder %s15, 0
      %p117 = por %p115, %p116
      %s118 = ssub.s32 %s16, %s35
      %s119 = ssub.s32 %s17, %s31
      %s120 = sor.u32 %s118, %s119
      %p121 = scmp.eq.s32.totalorder %s120, 0
      %s123 = sadd.s32 %s122, 1
      %s124 = scalar_select %p121, %s122, %s123
      %p127 = pneg %p121
      %p128 = scmp.eq.s32.totalorder %s9, 7
      %p129 = por %p127, %p128
      %p130 = scmp.ne.s32.totalorder %s122, %s125
      %p131 = scmp.eq.s32.totalorder %s9, 0
      %p132 = por %p130, %p131
      %p133 = scmp.ne.s32.totalorder %s122, %s125
      %p134 = scmp.eq.s32.totalorder %s14, 7
      %p135 = por %p133, %p134
      %p136 = scmp.ne.s32.totalorder %s125, %s126
      %p137 = scmp.eq.s32.totalorder %s14, 0
      %p138 = por %p136, %p137
      %p139 = scmp.ne.s32.totalorder %s125, %s126
      %p140 = scmp.eq.s32.totalorder %s15, 7
      %p141 = por %p139, %p140
      %p143 = scmp.ne.s32.totalorder %s126, %s142
      %p144 = scmp.eq.s32.totalorder %s15, 0
      %p145 = por %p143, %p144
      %p146 = scmp.le.s32.totalorder 1, %s9
      %p147 = scmp.lt.s32.totalorder %s9, 9
      %p148 = pnand %p146, %p147
      %p149 = pneg %p148
      // Predicated region
      $region9: #{yolo_forward.26} parent=5 // pred_check
        _
      $region10: #{yolo_forward.26} parent=5 // pred_check_branch
        %151 = sbr.rel (%p148) target = $region12
      $region11: #{yolo_forward.26} parent=5 // pred_region
        %s152 = ssub.s32 %s9, 1
        // Predicated region
        $region13: #{yolo_forward.26} parent=11 // pred_check
          %p153 = pneg %p84
        $region14: #{yolo_forward.26} parent=11 // pred_check_branch
          %155 = sbr.rel (%p153) target = $region16
        $region15: #{yolo_forward.26} parent=11 // pred_region
          %s156 = smul.u32 19, %s21
          %p157 = scmp.lt.s32.totalorder %s156, 18
          %s158 = scalar_select %p157, %s156, 18
          %p159 = scmp.lt.s32.totalorder %s20, 0
          %s160 = scalar_select %p159, %s20, 0
          %s161 = sadd.s32 %s160, %s158
          %s162 = smul.addr %s161, 4
          %s163 = scalar_lea.vmem %s1, %s162
          %s164 = smul.u32 19, %s21
        $region16: #{yolo_forward.26} parent=11 // pred_fallthru
          _
        // Predicated region
        $region17: #{yolo_forward.26} parent=11 // pred_check
          %p165 = pneg %p110
        $region18: #{yolo_forward.26} parent=11 // pred_check_branch
          %167 = sbr.rel (%p165) target = $region20
        $region19: #{yolo_forward.26} parent=11 // pred_region
          %p168 = scmp.lt.s32.totalorder %s20, 0
          %s169 = scalar_select %p168, %s20, 0
          %s170 = scalar_lea.vmem %s2, %s169
        $region20: #{yolo_forward.26} parent=11 // pred_fallthru
          _
      $region12: #{yolo_forward.26} parent=5 // pred_fallthru
        _
      %p171 = scmp.lt.s32.totalorder %s9, 8
      // Predicated region
      $region21: #{yolo_forward.26} parent=5 // pred_check
        %p172 = pneg %p171
      $region22: #{yolo_forward.26} parent=5 // pred_check_branch
        %174 = sbr.rel (%p172) target = $region24
      $region23: #{yolo_forward.26} parent=5 // pred_region
        // Predicated region
        $region25: #{yolo_forward.26} parent=23 // pred_check
          %p175 = pneg %p50
        $region26: #{yolo_forward.26} parent=23 // pred_check_branch
          %177 = sbr.rel (%p175) target = $region28
        $region27: #{yolo_forward.26} parent=23 // pred_region
          %s178 = smul.u32 32, %s16
          %s179 = smul.u32 2, %s18
          %s180 = ssub.s32 225, %s178
          %p181 = scmp.lt.s32.totalorder %s180, 32
          %s182 = scalar_select %p181, %s180, 32
          %s183 = smul.u32 64, %s182
          %s184 = smul.u32 %s183, 2
          %p185 = scmp.lt.s32.totalorder %s178, 224
          %s186 = scalar_select %p185, %s178, 224
          %p187 = scmp.lt.s32.totalorder %s179, 1
          %s188 = scalar_select %p187, %s179, 1
          %s189 = smul.addr %s186, 2
          %s190 = sadd.s32 %s188, %s189
          %s191 = smul.addr %s190, 4
          %s192 = scalar_lea.vmem %s0, %s191
          %s193 = smul.u32 32, %s16
          %s194 = smul.u32 2, %s18
          %s195 = ssub.s32 225, %s193
          %p196 = scmp.lt.s32.totalorder %s195, 32
          %s197 = scalar_select %p196, %s195, 32
          %s198 = smul.u32 64, %s197
          %s199 = smul.u32 %s198, 2
        $region28: #{yolo_forward.26} parent=23 // pred_fallthru
          _
      $region24: #{yolo_forward.26} parent=5 // pred_fallthru
        _
      %p200 = scmp.le.s32.totalorder 1, %s9
      %p201 = scmp.lt.s32.totalorder %s9, 9
      %p202 = pnand %p200, %p201
      %p203 = pneg %p202
      // Predicated region
      $region29: #{yolo_forward.26} parent=5 // pred_check
        _
      $region30: #{yolo_forward.26} parent=5 // pred_check_branch
        %205 = sbr.rel (%p202) target = $region32
      $region31: #{yolo_forward.26} parent=5 // pred_region
        %s206 = ssub.s32 %s9, 1
        %s207 = smul.u32 32, %s19
        %s208 = smul.u32 2, %s21
        %s209 = ssub.s32 225, %s207
        %p210 = scmp.lt.s32.totalorder %s209, 32
        %s211 = scalar_select %p210, %s209, 32
        %s212 = smul.u32 64, %s211
        %s213 = smul.u32 %s212, 2
        %p214 = scmp.lt.s32.totalorder %s207, 224
        %s215 = scalar_select %p214, %s207, 224
        %p216 = scmp.lt.s32.totalorder %s208, 1
        %s217 = scalar_select %p216, %s208, 1
        %s218 = smul.addr %s215, 2
        %s219 = sadd.s32 %s217, %s218
        %s220 = smul.addr %s219, 4
        %s221 = scalar_lea.vmem %s0, %s220
        %p222 = pneg %p56
        %p223 = pneg %p53
        %s224 = smul.u32 19, %s21
        %p225 = scmp.lt.s32.totalorder %s224, 18
        %s226 = scalar_select %p225, %s224, 18
        %p227 = scmp.lt.s32.totalorder %s20, 0
        %s228 = scalar_select %p227, %s20, 0
        %s229 = sadd.s32 %s228, %s226
        %s230 = smul.addr %s229, 4
        %s231 = scalar_lea.vmem %s1, %s230
        %p232 = pneg %p84
        %p233 = pneg %p81
        %p234 = scmp.lt.s32.totalorder %s20, 0
        %s235 = scalar_select %p234, %s20, 0
        %s236 = scalar_lea.vmem %s2, %s235
        %p237 = pneg %p110
        %p238 = pneg %p107
        %p239 = pneg %p138
        %p240 = pneg %p135
        %s241 = sand.u32 %s125, 1
        %s242 = sand.u32 %s125, 1
        %s243 = smul.addr %s242, 128
        %s244 = scalar_lea.vmem [#allocation3], %s243
        %s245 = smul.u32 32, %s19
        %s246 = smul.u32 2, %s21
        %s247 = ssub.s32 225, %s245
        %p248 = scmp.lt.s32.totalorder %s247, 32
        %s249 = scalar_select %p248, %s247, 32
        %s250 = smul.u32 64, %s249
        %s251 = smul.u32 %s250, 2
        %p252 = scmp.lt.s32.totalorder %s245, 224
        %s253 = scalar_select %p252, %s245, 224
        %p254 = scmp.lt.s32.totalorder %s246, 1
        %s255 = scalar_select %p254, %s246, 1
        %s256 = smul.addr %s253, 2
        %s257 = sadd.s32 %s255, %s256
        %s258 = smul.addr %s257, 4
        %s259 = scalar_lea.vmem %s0, %s258
        %s260 = smul.u32 32, %s19
        %s261 = smul.u32 2, %s21
        %s262 = ssub.s32 225, %s260
        %p263 = scmp.lt.s32.totalorder %s262, 32
        %s264 = scalar_select %p263, %s262, 32
        %s265 = smul.u32 64, %s264
        %s266 = smul.u32 %s265, 2
        %s267 = smul.u32 19, %s21
        %p268 = scmp.lt.s32.totalorder %s267, 18
        %s269 = scalar_select %p268, %s267, 18
        %p270 = scmp.lt.s32.totalorder %s20, 0
        %s271 = scalar_select %p270, %s20, 0
        %s272 = sadd.s32 %s271, %s269
        %s273 = smul.addr %s272, 4
        %s274 = scalar_lea.vmem %s1, %s273
        %s275 = smul.u32 19, %s21
        %p276 = scmp.lt.s32.totalorder %s20, 0
        %s277 = scalar_select %p276, %s20, 0
        %s278 = scalar_lea.vmem %s2, %s277
        %s279 = smul.u32 32, %s19
        %s280 = ssub.s32 225, %s279
        %p281 = scmp.lt.s32.totalorder %s280, 32
        %s282 = scalar_select %p281, %s280, 32
        %s283 = smul.u32 64, %s282
        %p285 = scmp.eq.s32.totalorder %s21, 0
        // Predicated region
        $region33: #{yolo_forward.26} parent=31 // pred_check
          %p286 = pneg %p285
        $region34: #{yolo_forward.26} parent=31 // pred_check_branch
          %288 = sbr.rel (%p286) target = $region36
        $region35: #{yolo_forward.26} parent=31 // pred_region
          %vm289 = vcmask 31744
          %290 = vst.msk [vmem:[#allocation2] sm:$0xff] %vm289, 0.0
          %291 = vst.msk [vmem:[#allocation2 + $0x8] sm:$0xff] %vm289, 0.0
          %292 = vst.msk [vmem:[#allocation2 + $0x10] sm:$0xff] %vm289, 0.0
          %293 = vst.msk [vmem:[#allocation2 + $0x18] sm:$0xff] %vm289, 0.0
          %294 = vst.msk [vmem:[#allocation2 + $0x20] sm:$0xff] %vm289, 0.0
          %295 = vst.msk [vmem:[#allocation2 + $0x28] sm:$0xff] %vm289, 0.0
          %296 = vst.msk [vmem:[#allocation2 + $0x30] sm:$0xff] %vm289, 0.0
          %297 = vst.msk [vmem:[#allocation2 + $0x38] sm:$0xff] %vm289, 0.0
          %298 = vst.msk [vmem:[#allocation2 + $0x40] sm:$0xff] %vm289, 0.0
          %299 = vst.msk [vmem:[#allocation2 + $0x48] sm:$0xff] %vm289, 0.0
          %300 = vst.msk [vmem:[#allocation2 + $0x50] sm:$0xff] %vm289, 0.0
          %301 = vst.msk [vmem:[#allocation2 + $0x58] sm:$0xff] %vm289, 0.0
          %302 = vst.msk [vmem:[#allocation2 + $0x60] sm:$0xff] %vm289, 0.0
          %303 = vst.msk [vmem:[#allocation2 + $0x68] sm:$0xff] %vm289, 0.0
          %304 = vst.msk [vmem:[#allocation2 + $0x70] sm:$0xff] %vm289, 0.0
          %305 = vst.msk [vmem:[#allocation2 + $0x78] sm:$0xff] %vm289, 0.0
          %306 = vst.msk [vmem:[#allocation2 + $0x80] sm:$0xff] %vm289, 0.0
          %307 = vst.msk [vmem:[#allocation2 + $0x88] sm:$0xff] %vm289, 0.0
          %308 = vst.msk [vmem:[#allocation2 + $0x90] sm:$0xff] %vm289, 0.0
          %309 = vst.msk [vmem:[#allocation2 + $0x98] sm:$0xff] %vm289, 0.0
          %310 = vst.msk [vmem:[#allocation2 + $0xa0] sm:$0xff] %vm289, 0.0
          %311 = vst.msk [vmem:[#allocation2 + $0xa8] sm:$0xff] %vm289, 0.0
          %312 = vst.msk [vmem:[#allocation2 + $0xb0] sm:$0xff] %vm289, 0.0
          %313 = vst.msk [vmem:[#allocation2 + $0xb8] sm:$0xff] %vm289, 0.0
          %314 = vst.msk [vmem:[#allocation2 + $0xc0] sm:$0xff] %vm289, 0.0
          %315 = vst.msk [vmem:[#allocation2 + $0xc8] sm:$0xff] %vm289, 0.0
          %316 = vst.msk [vmem:[#allocation2 + $0xd0] sm:$0xff] %vm289, 0.0
          %317 = vst.msk [vmem:[#allocation2 + $0xd8] sm:$0xff] %vm289, 0.0
          %318 = vst.msk [vmem:[#allocation2 + $0xe0] sm:$0xff] %vm289, 0.0
          %319 = vst.msk [vmem:[#allocation2 + $0xe8] sm:$0xff] %vm289, 0.0
          %320 = vst.msk [vmem:[#allocation2 + $0xf0] sm:$0xff] %vm289, 0.0
          %321 = vst.msk [vmem:[#allocation2 + $0xf8] sm:$0xff] %vm289, 0.0
        $region36: #{yolo_forward.26} parent=31 // pred_fallthru
          _
        %v322 = vld [vmem:[#allocation2] sm:$0xff]
        %v323 = vld [vmem:[#allocation2 + $0x8] sm:$0xff]
        %v324 = vld [vmem:[#allocation2 + $0x10] sm:$0xff]
        %v325 = vld [vmem:[#allocation2 + $0x18] sm:$0xff]
        %v326 = vld [vmem:[#allocation2 + $0x20] sm:$0xff]
        %v327 = vld [vmem:[#allocation2 + $0x28] sm:$0xff]
        %v328 = vld [vmem:[#allocation2 + $0x30] sm:$0xff]
        %v329 = vld [vmem:[#allocation2 + $0x38] sm:$0xff]
        %v330 = vld [vmem:[#allocation2 + $0x40] sm:$0xff]
        %v331 = vld [vmem:[#allocation2 + $0x48] sm:$0xff]
        %v332 = vld [vmem:[#allocation2 + $0x50] sm:$0xff]
        %v333 = vld [vmem:[#allocation2 + $0x58] sm:$0xff]
        %v334 = vld [vmem:[#allocation2 + $0x60] sm:$0xff]
        %v335 = vld [vmem:[#allocation2 + $0x68] sm:$0xff]
        %v336 = vld [vmem:[#allocation2 + $0x70] sm:$0xff]
        %v337 = vld [vmem:[#allocation2 + $0x78] sm:$0xff]
        %v338 = vld [vmem:[#allocation2 + $0x80] sm:$0xff]
        %v339 = vld [vmem:[#allocation2 + $0x88] sm:$0xff]
        %v340 = vld [vmem:[#allocation2 + $0x90] sm:$0xff]
        %v341 = vld [vmem:[#allocation2 + $0x98] sm:$0xff]
        %v342 = vld [vmem:[#allocation2 + $0xa0] sm:$0xff]
        %v343 = vld [vmem:[#allocation2 + $0xa8] sm:$0xff]
        %v344 = vld [vmem:[#allocation2 + $0xb0] sm:$0xff]
        %v345 = vld [vmem:[#allocation2 + $0xb8] sm:$0xff]
        %v346 = vld [vmem:[#allocation2 + $0xc0] sm:$0xff]
        %v347 = vld [vmem:[#allocation2 + $0xc8] sm:$0xff]
        %v348 = vld [vmem:[#allocation2 + $0xd0] sm:$0xff]
        %v349 = vld [vmem:[#allocation2 + $0xd8] sm:$0xff]
        %v350 = vld [vmem:[#allocation2 + $0xe0] sm:$0xff]
        %v351 = vld [vmem:[#allocation2 + $0xe8] sm:$0xff]
        %v352 = vld [vmem:[#allocation2 + $0xf0] sm:$0xff]
        %v353 = vld [vmem:[#allocation2 + $0xf8] sm:$0xff]
        %v354 = vld [vmem:[%s259] sm:$0xff]
        %v355 = vld [vmem:[%s259 + $0x8] sm:$0xff]
        %v356 = vld [vmem:[%s259 + $0x10] sm:$0xff]
        %v357 = vld [vmem:[%s259 + $0x18] sm:$0xff]
        %v358 = vld [vmem:[%s259 + $0x20] sm:$0xff]
        %v359 = vld [vmem:[%s259 + $0x28] sm:$0xff]
        %v360 = vld [vmem:[%s259 + $0x30] sm:$0xff]
        %v361 = vld [vmem:[%s259 + $0x38] sm:$0xff]
        %v362 = vld [vmem:[%s259 + $0x40] sm:$0xff]
        %v363 = vld [vmem:[%s259 + $0x48] sm:$0xff]
        %v364 = vld [vmem:[%s259 + $0x50] sm:$0xff]
        %v365 = vld [vmem:[%s259 + $0x58] sm:$0xff]
        %v366 = vld [vmem:[%s259 + $0x60] sm:$0xff]
        %v367 = vld [vmem:[%s259 + $0x68] sm:$0xff]
        %v368 = vld [vmem:[%s259 + $0x70] sm:$0xff]
        %v369 = vld [vmem:[%s259 + $0x78] sm:$0xff]
        %v370 = vld [vmem:[%s259 + $0x80] sm:$0xff]
        %v371 = vld [vmem:[%s259 + $0x88] sm:$0xff]
        %v372 = vld [vmem:[%s259 + $0x90] sm:$0xff]
        %v373 = vld [vmem:[%s259 + $0x98] sm:$0xff]
        %v374 = vld [vmem:[%s259 + $0xa0] sm:$0xff]
        %v375 = vld [vmem:[%s259 + $0xa8] sm:$0xff]
        %v376 = vld [vmem:[%s259 + $0xb0] sm:$0xff]
        %v377 = vld [vmem:[%s259 + $0xb8] sm:$0xff]
        %v378 = vld [vmem:[%s259 + $0xc0] sm:$0xff]
        %v379 = vld [vmem:[%s259 + $0xc8] sm:$0xff]
        %v380 = vld [vmem:[%s259 + $0xd0] sm:$0xff]
        %v381 = vld [vmem:[%s259 + $0xd8] sm:$0xff]
        %v382 = vld [vmem:[%s259 + $0xe0] sm:$0xff]
        %v383 = vld [vmem:[%s259 + $0xe8] sm:$0xff]
        %v384 = vld [vmem:[%s259 + $0xf0] sm:$0xff]
        %v385 = vld [vmem:[%s259 + $0xf8] sm:$0xff]
        %v386 = vld [vmem:[%s274] sm:$0xf]
        %v387 = vld [vmem:[%s274 + $0x4] sm:$0xf]
        %v388 = vld [vmem:[%s274 + $0x8] sm:$0xf]
        %v389 = vld [vmem:[%s274 + $0xc] sm:$0xf]
        %v390 = vld [vmem:[%s274 + $0x10] sm:$0xf]
        %v391 = vld [vmem:[%s274 + $0x14] sm:$0xf]
        %v392 = vld [vmem:[%s274 + $0x18] sm:$0xf]
        %v393 = vld [vmem:[%s274 + $0x1c] sm:$0xf]
        %v394 = vld [vmem:[%s274 + $0x20] sm:$0xf]
        %v395 = vld [vmem:[%s274 + $0x24] sm:$0xf]
        %v396 = vld [vmem:[%s274 + $0x28] sm:$0xf]
        %v397 = vld [vmem:[%s274 + $0x2c] sm:$0xf]
        %v398 = vld [vmem:[%s274 + $0x30] sm:$0xf]
        %v399 = vld [vmem:[%s274 + $0x34] sm:$0xf]
        %v400 = vld [vmem:[%s274 + $0x38] sm:$0xf]
        %v401 = vld [vmem:[%s274 + $0x3c] sm:$0xf]
        %v402 = vld [vmem:[%s274 + $0x40] sm:$0xf]
        %v403 = vld [vmem:[%s274 + $0x44] sm:$0xf]
        %v404 = vld [vmem:[%s274 + $0x48] sm:$0x3]
        %v437 = vunpack.c.l.b16 %v354
        %v438 = vunpack.c.h.b16 %v354
        %v439 = vunpack.c.l.b16 %v355
        %v440 = vunpack.c.h.b16 %v355
        %v441 = vunpack.c.l.b16 %v356
        %v442 = vunpack.c.h.b16 %v356
        %v443 = vunpack.c.l.b16 %v357
        %v444 = vunpack.c.h.b16 %v357
        %v445 = vunpack.c.l.b16 %v358
        %v446 = vunpack.c.h.b16 %v358
        %v447 = vunpack.c.l.b16 %v359
        %v448 = vunpack.c.h.b16 %v359
        %v449 = vunpack.c.l.b16 %v360
        %v450 = vunpack.c.h.b16 %v360
        %v451 = vunpack.c.l.b16 %v361
        %v452 = vunpack.c.h.b16 %v361
        %v453 = vunpack.c.l.b16 %v362
        %v454 = vunpack.c.h.b16 %v362
        %v455 = vunpack.c.l.b16 %v363
        %v456 = vunpack.c.h.b16 %v363
        %v457 = vunpack.c.l.b16 %v364
        %v458 = vunpack.c.h.b16 %v364
        %v459 = vunpack.c.l.b16 %v365
        %v460 = vunpack.c.h.b16 %v365
        %v461 = vunpack.c.l.b16 %v366
        %v462 = vunpack.c.h.b16 %v366
        %v463 = vunpack.c.l.b16 %v367
        %v464 = vunpack.c.h.b16 %v367
        %v465 = vunpack.c.l.b16 %v368
        %v466 = vunpack.c.h.b16 %v368
        %v467 = vunpack.c.l.b16 %v369
        %v468 = vunpack.c.h.b16 %v369
        %v469 = vunpack.c.l.b16 %v370
        %v470 = vunpack.c.h.b16 %v370
        %v471 = vunpack.c.l.b16 %v371
        %v472 = vunpack.c.h.b16 %v371
        %v473 = vunpack.c.l.b16 %v372
        %v474 = vunpack.c.h.b16 %v372
        %v475 = vunpack.c.l.b16 %v373
        %v476 = vunpack.c.h.b16 %v373
        %v477 = vunpack.c.l.b16 %v374
        %v478 = vunpack.c.h.b16 %v374
        %v479 = vunpack.c.l.b16 %v375
        %v480 = vunpack.c.h.b16 %v375
        %v481 = vunpack.c.l.b16 %v376
        %v482 = vunpack.c.h.b16 %v376
        %v483 = vunpack.c.l.b16 %v377
        %v484 = vunpack.c.h.b16 %v377
        %v485 = vunpack.c.l.b16 %v378
        %v486 = vunpack.c.h.b16 %v378
        %v487 = vunpack.c.l.b16 %v379
        %v488 = vunpack.c.h.b16 %v379
        %v489 = vunpack.c.l.b16 %v380
        %v490 = vunpack.c.h.b16 %v380
        %v491 = vunpack.c.l.b16 %v381
        %v492 = vunpack.c.h.b16 %v381
        %v493 = vunpack.c.l.b16 %v382
        %v494 = vunpack.c.h.b16 %v382
        %v495 = vunpack.c.l.b16 %v383
        %v496 = vunpack.c.h.b16 %v383
        %v497 = vunpack.c.l.b16 %v384
        %v498 = vunpack.c.h.b16 %v384
        %v499 = vunpack.c.l.b16 %v385
        %v500 = vunpack.c.h.b16 %v385
        %v501 = vpack.c.b16 %v439, %v437
        %v502 = vpack.c.b16 %v440, %v438
        %v503 = vpack.c.b16 %v443, %v441
        %v504 = vpack.c.b16 %v444, %v442
        %v505 = vpack.c.b16 %v447, %v445
        %v506 = vpack.c.b16 %v448, %v446
        %v507 = vpack.c.b16 %v451, %v449
        %v508 = vpack.c.b16 %v452, %v450
        %v509 = vpack.c.b16 %v455, %v453
        %v510 = vpack.c.b16 %v456, %v454
        %v511 = vpack.c.b16 %v459, %v457
        %v512 = vpack.c.b16 %v460, %v458
        %v513 = vpack.c.b16 %v463, %v461
        %v514 = vpack.c.b16 %v464, %v462
        %v515 = vpack.c.b16 %v467, %v465
        %v516 = vpack.c.b16 %v468, %v466
        %v517 = vpack.c.b16 %v471, %v469
        %v518 = vpack.c.b16 %v472, %v470
        %v519 = vpack.c.b16 %v475, %v473
        %v520 = vpack.c.b16 %v476, %v474
        %v521 = vpack.c.b16 %v479, %v477
        %v522 = vpack.c.b16 %v480, %v478
        %v523 = vpack.c.b16 %v483, %v481
        %v524 = vpack.c.b16 %v484, %v482
        %v525 = vpack.c.b16 %v487, %v485
        %v526 = vpack.c.b16 %v488, %v486
        %v527 = vpack.c.b16 %v491, %v489
        %v528 = vpack.c.b16 %v492, %v490
        %v529 = vpack.c.b16 %v495, %v493
        %v530 = vpack.c.b16 %v496, %v494
        %v531 = vpack.c.b16 %v499, %v497
        %v532 = vpack.c.b16 %v500, %v498
        %v568 = vunpack.c.l.b16 %v386
        %v569 = vunpack.c.l.b16 %v387
        %v570 = vunpack.c.l.b16 %v388
        %v571 = vunpack.c.l.b16 %v389
        %v572 = vunpack.c.l.b16 %v390
        %v573 = vunpack.c.l.b16 %v391
        %v574 = vunpack.c.l.b16 %v392
        %v575 = vunpack.c.l.b16 %v393
        %v576 = vunpack.c.l.b16 %v394
        %v577 = vunpack.c.l.b16 %v395
        %v578 = vunpack.c.l.b16 %v396
        %v579 = vunpack.c.l.b16 %v397
        %v580 = vunpack.c.l.b16 %v398
        %v581 = vunpack.c.l.b16 %v399
        %v582 = vunpack.c.l.b16 %v400
        %v583 = vunpack.c.l.b16 %v401
        %v584 = vunpack.c.l.b16 %v402
        %v585 = vunpack.c.l.b16 %v403
        %v586 = vunpack.c.l.b16 %v404
        %v587 = vpack.c.b16 %v569, %v568
        %v588 = vpack.c.b16 %v571, %v570
        %v589 = vpack.c.b16 %v573, %v572
        %v590 = vpack.c.b16 %v575, %v574
        %v591 = vpack.c.b16 %v577, %v576
        %v592 = vpack.c.b16 %v579, %v578
        %v593 = vpack.c.b16 %v581, %v580
        %v594 = vpack.c.b16 %v583, %v582
        %v595 = vpack.c.b16 %v585, %v584
        %v596 = vpack.c.b16 %v586, %v586
        %vm606 = vcmask 154624
        %v608 = vsel %vm606, %v502, 0
        %v611 = vsel %vm606, %v504, 0
        %v614 = vsel %vm606, %v506, 0
        %v617 = vsel %vm606, %v508, 0
        %v620 = vsel %vm606, %v510, 0
        %v623 = vsel %vm606, %v512, 0
        %v626 = vsel %vm606, %v514, 0
        %v629 = vsel %vm606, %v516, 0
        %v632 = vsel %vm606, %v518, 0
        %v635 = vsel %vm606, %v520, 0
        %v638 = vsel %vm606, %v522, 0
        %v641 = vsel %vm606, %v524, 0
        %v644 = vsel %vm606, %v526, 0
        %v647 = vsel %vm606, %v528, 0
        %v650 = vsel %vm606, %v530, 0
        %v653 = vsel %vm606, %v532, 0
        %vm655 = vcmask 1040384
        %vm656 = vcmask 1041408
        %v657 = vsel %vm655, 4294967295, 65535
        %v658 = vsel %vm656, %v657, 0
        %v660 = vand.u32 %v596, %v658
        %662 = vmatprep.subr.bf16.mxu0 0
        %663 = vmatpush1.bf16.msra.mxu0 %v594
        %664 = vmatprep.subr.bf16.mxu0 0
        %665 = vmatpush1.bf16.msra.mxu0 %v593
        %666 = vmatprep.subr.bf16.mxu0 0
        %667 = vmatpush1.bf16.msra.mxu0 %v592
        %668 = vmatprep.subr.bf16.mxu0 0
        %669 = vmatpush1.bf16.msra.mxu0 %v591
        %670 = vmatprep.subr.bf16.mxu0 0
        %671 = vmatpush1.bf16.msra.mxu0 %v590
        %672 = vmatprep.subr.bf16.mxu0 0
        %673 = vmatpush1.bf16.msra.mxu0 %v589
        %674 = vmatprep.subr.bf16.mxu0 0
        %675 = vmatpush1.bf16.msra.mxu0 %v588
        %676 = vmatprep.subr.bf16.mxu0 0
        %677 = vmatpush1.bf16.msra.mxu0 %v587
        %678 = vmatprep.subr.bf16.mxu0 0
        %679 = vmatpush2.bf16.msra.mxu0 0
        %680 = vmatprep.subr.bf16.mxu0 0
        %681 = vmatpush2.bf16.msra.mxu0 0
        %682 = vmatprep.subr.bf16.mxu0 0
        %683 = vmatpush2.bf16.msra.mxu0 0
        %684 = vmatprep.subr.bf16.mxu0 0
        %685 = vmatpush2.bf16.msra.mxu0 0
        %686 = vmatprep.subr.bf16.mxu0 0
        %687 = vmatpush2.bf16.msra.mxu0 0
        %688 = vmatprep.subr.bf16.mxu0 0
        %689 = vmatpush2.bf16.msra.mxu0 0
        %690 = vmatprep.subr.bf16.mxu0 0
        %691 = vmatpush2.bf16.msra.mxu0 %v660
        %692 = vmatprep.subr.bf16.mxu0 0
        %693 = vmatpush2.bf16.msra.mxu0 %v595
        %694 = vmatprep.mubr.bf16.mxu0 %v608
        %695 = vmatmul.mubr.bf16.gmra.mxu0 %v501
        %v696 = vpop.f32.mrf.mxu0
        %v697 = vadd.f32 0.0, %v696
        %v698 = vpop.f32.mrf.mxu0
        %v699 = vpop.f32.mrf.mxu0
        %v700 = vadd.f32 0.0, %v699
        %v701 = vpop.f32.mrf.mxu0
        %702 = vmatprep.mubr.bf16.mxu0 %v611
        %703 = vmatmul.mubr.bf16.gmra.mxu0 %v503
        %v704 = vpop.f32.mrf.mxu0
        %v705 = vadd.f32 0.0, %v704
        %v706 = vpop.f32.mrf.mxu0
        %v707 = vpop.f32.mrf.mxu0
        %v708 = vadd.f32 0.0, %v707
        %v709 = vpop.f32.mrf.mxu0
        %710 = vmatprep.mubr.bf16.mxu0 %v614
        %711 = vmatmul.mubr.bf16.gmra.mxu0 %v505
        %v712 = vpop.f32.mrf.mxu0
        %v713 = vadd.f32 0.0, %v712
        %v714 = vpop.f32.mrf.mxu0
        %v715 = vpop.f32.mrf.mxu0
        %v716 = vadd.f32 0.0, %v715
        %v717 = vpop.f32.mrf.mxu0
        %718 = vmatprep.mubr.bf16.mxu0 %v617
        %719 = vmatmul.mubr.bf16.gmra.mxu0 %v507
        %v720 = vpop.f32.mrf.mxu0
        %v721 = vadd.f32 0.0, %v720
        %v722 = vpop.f32.mrf.mxu0
        %v723 = vpop.f32.mrf.mxu0
        %v724 = vadd.f32 0.0, %v723
        %v725 = vpop.f32.mrf.mxu0
        %726 = vmatprep.mubr.bf16.mxu0 %v620
        %727 = vmatmul.mubr.bf16.gmra.mxu0 %v509
        %v728 = vpop.f32.mrf.mxu0
        %v729 = vadd.f32 0.0, %v728
        %v730 = vpop.f32.mrf.mxu0
        %v731 = vpop.f32.mrf.mxu0
        %v732 = vadd.f32 0.0, %v731
        %v733 = vpop.f32.mrf.mxu0
        %734 = vmatprep.mubr.bf16.mxu0 %v623
        %735 = vmatmul.mubr.bf16.gmra.mxu0 %v511
        %v736 = vpop.f32.mrf.mxu0
        %v737 = vadd.f32 0.0, %v736
        %v738 = vpop.f32.mrf.mxu0
        %v739 = vpop.f32.mrf.mxu0
        %v740 = vadd.f32 0.0, %v739
        %v741 = vpop.f32.mrf.mxu0
        %742 = vmatprep.mubr.bf16.mxu0 %v626
        %743 = vmatmul.mubr.bf16.gmra.mxu0 %v513
        %v744 = vpop.f32.mrf.mxu0
        %v745 = vadd.f32 0.0, %v744
        %v746 = vpop.f32.mrf.mxu0
        %v747 = vpop.f32.mrf.mxu0
        %v748 = vadd.f32 0.0, %v747
        %v749 = vpop.f32.mrf.mxu0
        %750 = vmatprep.mubr.bf16.mxu0 %v629
        %751 = vmatmul.mubr.bf16.gmra.mxu0 %v515
        %v752 = vpop.f32.mrf.mxu0
        %v753 = vadd.f32 0.0, %v752
        %v754 = vpop.f32.mrf.mxu0
        %v755 = vpop.f32.mrf.mxu0
        %v756 = vadd.f32 0.0, %v755
        %v757 = vpop.f32.mrf.mxu0
        %758 = vmatprep.mubr.bf16.mxu0 %v632
        %759 = vmatmul.mubr.bf16.gmra.mxu0 %v517
        %v760 = vpop.f32.mrf.mxu0
        %v761 = vadd.f32 0.0, %v760
        %v762 = vpop.f32.mrf.mxu0
        %v763 = vpop.f32.mrf.mxu0
        %v764 = vadd.f32 0.0, %v763
        %v765 = vpop.f32.mrf.mxu0
        %766 = vmatprep.mubr.bf16.mxu0 %v635
        %767 = vmatmul.mubr.bf16.gmra.mxu0 %v519
        %v768 = vpop.f32.mrf.mxu0
        %v769 = vadd.f32 0.0, %v768
        %v770 = vpop.f32.mrf.mxu0
        %v771 = vpop.f32.mrf.mxu0
        %v772 = vadd.f32 0.0, %v771
        %v773 = vpop.f32.mrf.mxu0
        %774 = vmatprep.mubr.bf16.mxu0 %v638
        %775 = vmatmul.mubr.bf16.gmra.mxu0 %v521
        %v776 = vpop.f32.mrf.mxu0
        %v777 = vadd.f32 0.0, %v776
        %v778 = vpop.f32.mrf.mxu0
        %v779 = vpop.f32.mrf.mxu0
        %v780 = vadd.f32 0.0, %v779
        %v781 = vpop.f32.mrf.mxu0
        %782 = vmatprep.mubr.bf16.mxu0 %v641
        %783 = vmatmul.mubr.bf16.gmra.mxu0 %v523
        %v784 = vpop.f32.mrf.mxu0
        %v785 = vadd.f32 0.0, %v784
        %v786 = vpop.f32.mrf.mxu0
        %v787 = vpop.f32.mrf.mxu0
        %v788 = vadd.f32 0.0, %v787
        %v789 = vpop.f32.mrf.mxu0
        %790 = vmatprep.mubr.bf16.mxu0 %v644
        %791 = vmatmul.mubr.bf16.gmra.mxu0 %v525
        %v792 = vpop.f32.mrf.mxu0
        %v793 = vadd.f32 0.0, %v792
        %v794 = vpop.f32.mrf.mxu0
        %v795 = vpop.f32.mrf.mxu0
        %v796 = vadd.f32 0.0, %v795
        %v797 = vpop.f32.mrf.mxu0
        %798 = vmatprep.mubr.bf16.mxu0 %v647
        %799 = vmatmul.mubr.bf16.gmra.mxu0 %v527
        %v800 = vpop.f32.mrf.mxu0
        %v801 = vadd.f32 0.0, %v800
        %v802 = vpop.f32.mrf.mxu0
        %v803 = vpop.f32.mrf.mxu0
        %v804 = vadd.f32 0.0, %v803
        %v805 = vpop.f32.mrf.mxu0
        %806 = vmatprep.mubr.bf16.mxu0 %v650
        %807 = vmatmul.mubr.bf16.gmra.mxu0 %v529
        %v808 = vpop.f32.mrf.mxu0
        %v809 = vadd.f32 0.0, %v808
        %v810 = vpop.f32.mrf.mxu0
        %v811 = vpop.f32.mrf.mxu0
        %v812 = vadd.f32 0.0, %v811
        %v813 = vpop.f32.mrf.mxu0
        %814 = vmatprep.mubr.bf16.mxu0 %v653
        %815 = vmatmul.mubr.bf16.gmra.mxu0 %v531
        %v816 = vpop.f32.mrf.mxu0
        %v817 = vadd.f32 0.0, %v816
        %v818 = vpop.f32.mrf.mxu0
        %v819 = vpop.f32.mrf.mxu0
        %v820 = vadd.f32 0.0, %v819
        %v821 = vpop.f32.mrf.mxu0
        %822 = vdwg.mxu0
        %v823 = vadd.f32 %v322, %v697
        %v824 = vadd.f32 %v323, %v700
        %v825 = vadd.f32 %v324, %v705
        %v826 = vadd.f32 %v325, %v708
        %v827 = vadd.f32 %v326, %v713
        %v828 = vadd.f32 %v327, %v716
        %v829 = vadd.f32 %v328, %v721
        %v830 = vadd.f32 %v329, %v724
        %v831 = vadd.f32 %v330, %v729
        %v832 = vadd.f32 %v331, %v732
        %v833 = vadd.f32 %v332, %v737
        %v834 = vadd.f32 %v333, %v740
        %v835 = vadd.f32 %v334, %v745
        %v836 = vadd.f32 %v335, %v748
        %v837 = vadd.f32 %v336, %v753
        %v838 = vadd.f32 %v337, %v756
        %v839 = vadd.f32 %v338, %v761
        %v840 = vadd.f32 %v339, %v764
        %v841 = vadd.f32 %v340, %v769
        %v842 = vadd.f32 %v341, %v772
        %v843 = vadd.f32 %v342, %v777
        %v844 = vadd.f32 %v343, %v780
        %v845 = vadd.f32 %v344, %v785
        %v846 = vadd.f32 %v345, %v788
        %v847 = vadd.f32 %v346, %v793
        %v848 = vadd.f32 %v347, %v796
        %v849 = vadd.f32 %v348, %v801
        %v850 = vadd.f32 %v349, %v804
        %v851 = vadd.f32 %v350, %v809
        %v852 = vadd.f32 %v351, %v812
        %v853 = vadd.f32 %v352, %v817
        %v854 = vadd.f32 %v353, %v820
        %vm855 = vcmask 31744
        %856 = vst.msk [vmem:[#allocation2] sm:$0xff] %vm855, %v823
        %857 = vst.msk [vmem:[#allocation2 + $0x8] sm:$0xff] %vm855, %v824
        %858 = vst.msk [vmem:[#allocation2 + $0x10] sm:$0xff] %vm855, %v825
        %859 = vst.msk [vmem:[#allocation2 + $0x18] sm:$0xff] %vm855, %v826
        %860 = vst.msk [vmem:[#allocation2 + $0x20] sm:$0xff] %vm855, %v827
        %861 = vst.msk [vmem:[#allocation2 + $0x28] sm:$0xff] %vm855, %v828
        %862 = vst.msk [vmem:[#allocation2 + $0x30] sm:$0xff] %vm855, %v829
        %863 = vst.msk [vmem:[#allocation2 + $0x38] sm:$0xff] %vm855, %v830
        %864 = vst.msk [vmem:[#allocation2 + $0x40] sm:$0xff] %vm855, %v831
        %865 = vst.msk [vmem:[#allocation2 + $0x48] sm:$0xff] %vm855, %v832
        %866 = vst.msk [vmem:[#allocation2 + $0x50] sm:$0xff] %vm855, %v833
        %867 = vst.msk [vmem:[#allocation2 + $0x58] sm:$0xff] %vm855, %v834
        %868 = vst.msk [vmem:[#allocation2 + $0x60] sm:$0xff] %vm855, %v835
        %869 = vst.msk [vmem:[#allocation2 + $0x68] sm:$0xff] %vm855, %v836
        %870 = vst.msk [vmem:[#allocation2 + $0x70] sm:$0xff] %vm855, %v837
        %871 = vst.msk [vmem:[#allocation2 + $0x78] sm:$0xff] %vm855, %v838
        %872 = vst.msk [vmem:[#allocation2 + $0x80] sm:$0xff] %vm855, %v839
        %873 = vst.msk [vmem:[#allocation2 + $0x88] sm:$0xff] %vm855, %v840
        %874 = vst.msk [vmem:[#allocation2 + $0x90] sm:$0xff] %vm855, %v841
        %875 = vst.msk [vmem:[#allocation2 + $0x98] sm:$0xff] %vm855, %v842
        %876 = vst.msk [vmem:[#allocation2 + $0xa0] sm:$0xff] %vm855, %v843
        %877 = vst.msk [vmem:[#allocation2 + $0xa8] sm:$0xff] %vm855, %v844
        %878 = vst.msk [vmem:[#allocation2 + $0xb0] sm:$0xff] %vm855, %v845
        %879 = vst.msk [vmem:[#allocation2 + $0xb8] sm:$0xff] %vm855, %v846
        %880 = vst.msk [vmem:[#allocation2 + $0xc0] sm:$0xff] %vm855, %v847
        %881 = vst.msk [vmem:[#allocation2 + $0xc8] sm:$0xff] %vm855, %v848
        %882 = vst.msk [vmem:[#allocation2 + $0xd0] sm:$0xff] %vm855, %v849
        %883 = vst.msk [vmem:[#allocation2 + $0xd8] sm:$0xff] %vm855, %v850
        %884 = vst.msk [vmem:[#allocation2 + $0xe0] sm:$0xff] %vm855, %v851
        %885 = vst.msk [vmem:[#allocation2 + $0xe8] sm:$0xff] %vm855, %v852
        %886 = vst.msk [vmem:[#allocation2 + $0xf0] sm:$0xff] %vm855, %v853
        %887 = vst.msk [vmem:[#allocation2 + $0xf8] sm:$0xff] %vm855, %v854
        // Predicated region
        $region37: #{yolo_forward.26} parent=31 // pred_check
          %p888 = pneg %p285
        $region38: #{yolo_forward.26} parent=31 // pred_check_branch
          %890 = sbr.rel (%p888) target = $region40
        $region39: #{yolo_forward.26} parent=31 // pred_region
          %v891 = vld [vmem:[#allocation2] sm:$0xff]
          %v892 = vld [vmem:[#allocation2 + $0x8] sm:$0xff]
          %v893 = vld [vmem:[#allocation2 + $0x10] sm:$0xff]
          %v894 = vld [vmem:[#allocation2 + $0x18] sm:$0xff]
          %v895 = vld [vmem:[#allocation2 + $0x20] sm:$0xff]
          %v896 = vld [vmem:[#allocation2 + $0x28] sm:$0xff]
          %v897 = vld [vmem:[#allocation2 + $0x30] sm:$0xff]
          %v898 = vld [vmem:[#allocation2 + $0x38] sm:$0xff]
          %v899 = vld [vmem:[#allocation2 + $0x40] sm:$0xff]
          %v900 = vld [vmem:[#allocation2 + $0x48] sm:$0xff]
          %v901 = vld [vmem:[#allocation2 + $0x50] sm:$0xff]
          %v902 = vld [vmem:[#allocation2 + $0x58] sm:$0xff]
          %v903 = vld [vmem:[#allocation2 + $0x60] sm:$0xff]
          %v904 = vld [vmem:[#allocation2 + $0x68] sm:$0xff]
          %v905 = vld [vmem:[#allocation2 + $0x70] sm:$0xff]
          %v906 = vld [vmem:[#allocation2 + $0x78] sm:$0xff]
          %v907 = vld [vmem:[#allocation2 + $0x80] sm:$0xff]
          %v908 = vld [vmem:[#allocation2 + $0x88] sm:$0xff]
          %v909 = vld [vmem:[#allocation2 + $0x90] sm:$0xff]
          %v910 = vld [vmem:[#allocation2 + $0x98] sm:$0xff]
          %v911 = vld [vmem:[#allocation2 + $0xa0] sm:$0xff]
          %v912 = vld [vmem:[#allocation2 + $0xa8] sm:$0xff]
          %v913 = vld [vmem:[#allocation2 + $0xb0] sm:$0xff]
          %v914 = vld [vmem:[#allocation2 + $0xb8] sm:$0xff]
          %v915 = vld [vmem:[#allocation2 + $0xc0] sm:$0xff]
          %v916 = vld [vmem:[#allocation2 + $0xc8] sm:$0xff]
          %v917 = vld [vmem:[#allocation2 + $0xd0] sm:$0xff]
          %v918 = vld [vmem:[#allocation2 + $0xd8] sm:$0xff]
          %v919 = vld [vmem:[#allocation2 + $0xe0] sm:$0xff]
          %v920 = vld [vmem:[#allocation2 + $0xe8] sm:$0xff]
          %v921 = vld [vmem:[#allocation2 + $0xf0] sm:$0xff]
          %v922 = vld [vmem:[#allocation2 + $0xf8] sm:$0xff]
          %v923 = vld [vmem:[%s278] sm:$0x1]
          %v925 = vlaneseq
          %v926 = vshrl.u32 %v925, 7
          %v927 = vsub.s32 0, %v926
          %v928 = vrot.slane %v923, %v927
          %v930 = vadd.f32 %v891, %v928
          %v931 = vadd.f32 %v892, %v928
          %v932 = vadd.f32 %v893, %v928
          %v933 = vadd.f32 %v894, %v928
          %v934 = vadd.f32 %v895, %v928
          %v935 = vadd.f32 %v896, %v928
          %v936 = vadd.f32 %v897, %v928
          %v937 = vadd.f32 %v898, %v928
          %v938 = vadd.f32 %v899, %v928
          %v939 = vadd.f32 %v900, %v928
          %v940 = vadd.f32 %v901, %v928
          %v941 = vadd.f32 %v902, %v928
          %v942 = vadd.f32 %v903, %v928
          %v943 = vadd.f32 %v904, %v928
          %v944 = vadd.f32 %v905, %v928
          %v945 = vadd.f32 %v906, %v928
          %v946 = vadd.f32 %v907, %v928
          %v947 = vadd.f32 %v908, %v928
          %v948 = vadd.f32 %v909, %v928
          %v949 = vadd.f32 %v910, %v928
          %v950 = vadd.f32 %v911, %v928
          %v951 = vadd.f32 %v912, %v928
          %v952 = vadd.f32 %v913, %v928
          %v953 = vadd.f32 %v914, %v928
          %v954 = vadd.f32 %v915, %v928
          %v955 = vadd.f32 %v916, %v928
          %v956 = vadd.f32 %v917, %v928
          %v957 = vadd.f32 %v918, %v928
          %v958 = vadd.f32 %v919, %v928
          %v959 = vadd.f32 %v920, %v928
          %v960 = vadd.f32 %v921, %v928
          %v961 = vadd.f32 %v922, %v928
          %vm962 = vcmp.gt.f32.partialorder %v930, 0.0
          %vm963 = vcmp.gt.f32.partialorder %v931, 0.0
          %vm964 = vcmp.gt.f32.partialorder %v932, 0.0
          %vm965 = vcmp.gt.f32.partialorder %v933, 0.0
          %vm966 = vcmp.gt.f32.partialorder %v934, 0.0
          %vm967 = vcmp.gt.f32.partialorder %v935, 0.0
          %vm968 = vcmp.gt.f32.partialorder %v936, 0.0
          %vm969 = vcmp.gt.f32.partialorder %v937, 0.0
          %vm970 = vcmp.gt.f32.partialorder %v938, 0.0
          %vm971 = vcmp.gt.f32.partialorder %v939, 0.0
          %vm972 = vcmp.gt.f32.partialorder %v940, 0.0
          %vm973 = vcmp.gt.f32.partialorder %v941, 0.0
          %vm974 = vcmp.gt.f32.partialorder %v942, 0.0
          %vm975 = vcmp.gt.f32.partialorder %v943, 0.0
          %vm976 = vcmp.gt.f32.partialorder %v944, 0.0
          %vm977 = vcmp.gt.f32.partialorder %v945, 0.0
          %vm978 = vcmp.gt.f32.partialorder %v946, 0.0
          %vm979 = vcmp.gt.f32.partialorder %v947, 0.0
          %vm980 = vcmp.gt.f32.partialorder %v948, 0.0
          %vm981 = vcmp.gt.f32.partialorder %v949, 0.0
          %vm982 = vcmp.gt.f32.partialorder %v950, 0.0
          %vm983 = vcmp.gt.f32.partialorder %v951, 0.0
          %vm984 = vcmp.gt.f32.partialorder %v952, 0.0
          %vm985 = vcmp.gt.f32.partialorder %v953, 0.0
          %vm986 = vcmp.gt.f32.partialorder %v954, 0.0
          %vm987 = vcmp.gt.f32.partialorder %v955, 0.0
          %vm988 = vcmp.gt.f32.partialorder %v956, 0.0
          %vm989 = vcmp.gt.f32.partialorder %v957, 0.0
          %vm990 = vcmp.gt.f32.partialorder %v958, 0.0
          %vm991 = vcmp.gt.f32.partialorder %v959, 0.0
          %vm992 = vcmp.gt.f32.partialorder %v960, 0.0
          %vm993 = vcmp.gt.f32.partialorder %v961, 0.0
          %v994 = vmul.f32 %v930, 0.01
          %v995 = vmul.f32 %v931, 0.01
          %v996 = vmul.f32 %v932, 0.01
          %v997 = vmul.f32 %v933, 0.01
          %v998 = vmul.f32 %v934, 0.01
          %v999 = vmul.f32 %v935, 0.01
          %v1000 = vmul.f32 %v936, 0.01
          %v1001 = vmul.f32 %v937, 0.01
          %v1002 = vmul.f32 %v938, 0.01
          %v1003 = vmul.f32 %v939, 0.01
          %v1004 = vmul.f32 %v940, 0.01
          %v1005 = vmul.f32 %v941, 0.01
          %v1006 = vmul.f32 %v942, 0.01
          %v1007 = vmul.f32 %v943, 0.01
          %v1008 = vmul.f32 %v944, 0.01
          %v1009 = vmul.f32 %v945, 0.01
          %v1010 = vmul.f32 %v946, 0.01
          %v1011 = vmul.f32 %v947, 0.01
          %v1012 = vmul.f32 %v948, 0.01
          %v1013 = vmul.f32 %v949, 0.01
          %v1014 = vmul.f32 %v950, 0.01
          %v1015 = vmul.f32 %v951, 0.01
          %v1016 = vmul.f32 %v952, 0.01
          %v1017 = vmul.f32 %v953, 0.01
          %v1018 = vmul.f32 %v954, 0.01
          %v1019 = vmul.f32 %v955, 0.01
          %v1020 = vmul.f32 %v956, 0.01
          %v1021 = vmul.f32 %v957, 0.01
          %v1022 = vmul.f32 %v958, 0.01
          %v1023 = vmul.f32 %v959, 0.01
          %v1024 = vmul.f32 %v960, 0.01
          %v1025 = vmul.f32 %v961, 0.01
          %v1026 = vsel %vm962, %v930, %v994
          %v1027 = vsel %vm963, %v931, %v995
          %v1028 = vsel %vm964, %v932, %v996
          %v1029 = vsel %vm965, %v933, %v997
          %v1030 = vsel %vm966, %v934, %v998
          %v1031 = vsel %vm967, %v935, %v999
          %v1032 = vsel %vm968, %v936, %v1000
          %v1033 = vsel %vm969, %v937, %v1001
          %v1034 = vsel %vm970, %v938, %v1002
          %v1035 = vsel %vm971, %v939, %v1003
          %v1036 = vsel %vm972, %v940, %v1004
          %v1037 = vsel %vm973, %v941, %v1005
          %v1038 = vsel %vm974, %v942, %v1006
          %v1039 = vsel %vm975, %v943, %v1007
          %v1040 = vsel %vm976, %v944, %v1008
          %v1041 = vsel %vm977, %v945, %v1009
          %v1042 = vsel %vm978, %v946, %v1010
          %v1043 = vsel %vm979, %v947, %v1011
          %v1044 = vsel %vm980, %v948, %v1012
          %v1045 = vsel %vm981, %v949, %v1013
          %v1046 = vsel %vm982, %v950, %v1014
          %v1047 = vsel %vm983, %v951, %v1015
          %v1048 = vsel %vm984, %v952, %v1016
          %v1049 = vsel %vm985, %v953, %v1017
          %v1050 = vsel %vm986, %v954, %v1018
          %v1051 = vsel %vm987, %v955, %v1019
          %v1052 = vsel %vm988, %v956, %v1020
          %v1053 = vsel %vm989, %v957, %v1021
          %v1054 = vsel %vm990, %v958, %v1022
          %v1055 = vsel %vm991, %v959, %v1023
          %v1056 = vsel %vm992, %v960, %v1024
          %v1057 = vsel %vm993, %v961, %v1025
          %v1058 = vpack.c.bf16 %v1027, %v1026
          %v1059 = vpack.c.bf16 %v1029, %v1028
          %v1060 = vpack.c.bf16 %v1031, %v1030
          %v1061 = vpack.c.bf16 %v1033, %v1032
          %v1062 = vpack.c.bf16 %v1035, %v1034
          %v1063 = vpack.c.bf16 %v1037, %v1036
          %v1064 = vpack.c.bf16 %v1039, %v1038
          %v1065 = vpack.c.bf16 %v1041, %v1040
          %v1066 = vpack.c.bf16 %v1043, %v1042
          %v1067 = vpack.c.bf16 %v1045, %v1044
          %v1068 = vpack.c.bf16 %v1047, %v1046
          %v1069 = vpack.c.bf16 %v1049, %v1048
          %v1070 = vpack.c.bf16 %v1051, %v1050
          %v1071 = vpack.c.bf16 %v1053, %v1052
          %v1072 = vpack.c.bf16 %v1055, %v1054
          %v1073 = vpack.c.bf16 %v1057, %v1056
          %v1090 = vunpack.c.l.b16 %v1058
          %v1091 = vunpack.c.h.b16 %v1058
          %v1092 = vunpack.c.l.b16 %v1059
          %v1093 = vunpack.c.h.b16 %v1059
          %v1094 = vunpack.c.l.b16 %v1060
          %v1095 = vunpack.c.h.b16 %v1060
          %v1096 = vunpack.c.l.b16 %v1061
          %v1097 = vunpack.c.h.b16 %v1061
          %v1098 = vunpack.c.l.b16 %v1062
          %v1099 = vunpack.c.h.b16 %v1062
          %v1100 = vunpack.c.l.b16 %v1063
          %v1101 = vunpack.c.h.b16 %v1063
          %v1102 = vunpack.c.l.b16 %v1064
          %v1103 = vunpack.c.h.b16 %v1064
          %v1104 = vunpack.c.l.b16 %v1065
          %v1105 = vunpack.c.h.b16 %v1065
          %v1106 = vunpack.c.l.b16 %v1066
          %v1107 = vunpack.c.h.b16 %v1066
          %v1108 = vunpack.c.l.b16 %v1067
          %v1109 = vunpack.c.h.b16 %v1067
          %v1110 = vunpack.c.l.b16 %v1068
          %v1111 = vunpack.c.h.b16 %v1068
          %v1112 = vunpack.c.l.b16 %v1069
          %v1113 = vunpack.c.h.b16 %v1069
          %v1114 = vunpack.c.l.b16 %v1070
          %v1115 = vunpack.c.h.b16 %v1070
          %v1116 = vunpack.c.l.b16 %v1071
          %v1117 = vunpack.c.h.b16 %v1071
          %v1118 = vunpack.c.l.b16 %v1072
          %v1119 = vunpack.c.h.b16 %v1072
          %v1120 = vunpack.c.l.b16 %v1073
          %v1121 = vunpack.c.h.b16 %v1073
          %v1122 = vpack.c.b16 %v1090, %v1090
          %v1123 = vpack.c.b16 %v1091, %v1091
          %v1124 = vpack.c.b16 %v1092, %v1092
          %v1125 = vpack.c.b16 %v1093, %v1093
          %v1126 = vpack.c.b16 %v1094, %v1094
          %v1127 = vpack.c.b16 %v1095, %v1095
          %v1128 = vpack.c.b16 %v1096, %v1096
          %v1129 = vpack.c.b16 %v1097, %v1097
          %v1130 = vpack.c.b16 %v1098, %v1098
          %v1131 = vpack.c.b16 %v1099, %v1099
          %v1132 = vpack.c.b16 %v1100, %v1100
          %v1133 = vpack.c.b16 %v1101, %v1101
          %v1134 = vpack.c.b16 %v1102, %v1102
          %v1135 = vpack.c.b16 %v1103, %v1103
          %v1136 = vpack.c.b16 %v1104, %v1104
          %v1137 = vpack.c.b16 %v1105, %v1105
          %v1138 = vpack.c.b16 %v1106, %v1106
          %v1139 = vpack.c.b16 %v1107, %v1107
          %v1140 = vpack.c.b16 %v1108, %v1108
          %v1141 = vpack.c.b16 %v1109, %v1109
          %v1142 = vpack.c.b16 %v1110, %v1110
          %v1143 = vpack.c.b16 %v1111, %v1111
          %v1144 = vpack.c.b16 %v1112, %v1112
          %v1145 = vpack.c.b16 %v1113, %v1113
          %v1146 = vpack.c.b16 %v1114, %v1114
          %v1147 = vpack.c.b16 %v1115, %v1115
          %v1148 = vpack.c.b16 %v1116, %v1116
          %v1149 = vpack.c.b16 %v1117, %v1117
          %v1150 = vpack.c.b16 %v1118, %v1118
          %v1151 = vpack.c.b16 %v1119, %v1119
          %v1152 = vpack.c.b16 %v1120, %v1120
          %v1153 = vpack.c.b16 %v1121, %v1121
          %vm1186 = vcmask 27648
          %1187 = vst.msk [vmem:[%s244] sm:$0xf] %vm1186, %v1122
          %1188 = vst.msk [vmem:[%s244 + $0x4] sm:$0xf] %vm1186, %v1123
          %1189 = vst.msk [vmem:[%s244 + $0x8] sm:$0xf] %vm1186, %v1124
          %1190 = vst.msk [vmem:[%s244 + $0xc] sm:$0xf] %vm1186, %v1125
          %1191 = vst.msk [vmem:[%s244 + $0x10] sm:$0xf] %vm1186, %v1126
          %1192 = vst.msk [vmem:[%s244 + $0x14] sm:$0xf] %vm1186, %v1127
          %1193 = vst.msk [vmem:[%s244 + $0x18] sm:$0xf] %vm1186, %v1128
          %1194 = vst.msk [vmem:[%s244 + $0x1c] sm:$0xf] %vm1186, %v1129
          %1195 = vst.msk [vmem:[%s244 + $0x20] sm:$0xf] %vm1186, %v1130
          %1196 = vst.msk [vmem:[%s244 + $0x24] sm:$0xf] %vm1186, %v1131
          %1197 = vst.msk [vmem:[%s244 + $0x28] sm:$0xf] %vm1186, %v1132
          %1198 = vst.msk [vmem:[%s244 + $0x2c] sm:$0xf] %vm1186, %v1133
          %1199 = vst.msk [vmem:[%s244 + $0x30] sm:$0xf] %vm1186, %v1134
          %1200 = vst.msk [vmem:[%s244 + $0x34] sm:$0xf] %vm1186, %v1135
          %1201 = vst.msk [vmem:[%s244 + $0x38] sm:$0xf] %vm1186, %v1136
          %1202 = vst.msk [vmem:[%s244 + $0x3c] sm:$0xf] %vm1186, %v1137
          %1203 = vst.msk [vmem:[%s244 + $0x40] sm:$0xf] %vm1186, %v1138
          %1204 = vst.msk [vmem:[%s244 + $0x44] sm:$0xf] %vm1186, %v1139
          %1205 = vst.msk [vmem:[%s244 + $0x48] sm:$0xf] %vm1186, %v1140
          %1206 = vst.msk [vmem:[%s244 + $0x4c] sm:$0xf] %vm1186, %v1141
          %1207 = vst.msk [vmem:[%s244 + $0x50] sm:$0xf] %vm1186, %v1142
          %1208 = vst.msk [vmem:[%s244 + $0x54] sm:$0xf] %vm1186, %v1143
          %1209 = vst.msk [vmem:[%s244 + $0x58] sm:$0xf] %vm1186, %v1144
          %1210 = vst.msk [vmem:[%s244 + $0x5c] sm:$0xf] %vm1186, %v1145
          %1211 = vst.msk [vmem:[%s244 + $0x60] sm:$0xf] %vm1186, %v1146
          %1212 = vst.msk [vmem:[%s244 + $0x64] sm:$0xf] %vm1186, %v1147
          %1213 = vst.msk [vmem:[%s244 + $0x68] sm:$0xf] %vm1186, %v1148
          %1214 = vst.msk [vmem:[%s244 + $0x6c] sm:$0xf] %vm1186, %v1149
          %1215 = vst.msk [vmem:[%s244 + $0x70] sm:$0xf] %vm1186, %v1150
          %1216 = vst.msk [vmem:[%s244 + $0x74] sm:$0xf] %vm1186, %v1151
          %1217 = vst.msk [vmem:[%s244 + $0x78] sm:$0xf] %vm1186, %v1152
          %1218 = vst.msk [vmem:[%s244 + $0x7c] sm:$0xf] %vm1186, %v1153
        $region40: #{yolo_forward.26} parent=31 // pred_fallthru
          _
        %s1219 = sand.u32 %s125, 1
        %s1220 = sand.u32 %s125, 1
        %s1221 = smul.addr %s1220, 128
        %s1222 = scalar_lea.vmem [#allocation3], %s1221
        // Predicated region
        $region41: #{yolo_forward.26} parent=31 // pred_check
          %p1223 = pneg %p135
        $region42: #{yolo_forward.26} parent=31 // pred_check_branch
          %1225 = sbr.rel (%p1223) target = $region44
        $region43: #{yolo_forward.26} parent=31 // pred_region
          %s1226 = smul.u32 32, %s19
          %s1227 = ssub.s32 225, %s1226
          %p1228 = scmp.lt.s32.totalorder %s1227, 32
          %s1229 = scalar_select %p1228, %s1227, 32
          %s1230 = smul.u32 64, %s1229
          %p1231 = scmp.ne.s32.totalorder 0, %s1230
          %s1232 = sadd.s32 %s20, %s1226
          %s1233 = smul.addr %s1232, 4
          %s1234 = scalar_lea.vmem %s3, %s1233
          // Predicated region
          $region45: #{yolo_forward.26} parent=43 // pred_check
            %p1235 = pneg %p1231
          $region46: #{yolo_forward.26} parent=43 // pred_check_branch
            %1237 = sbr.rel (%p1235) target = $region48
          $region47: #{yolo_forward.26} parent=43 // pred_region
            // Predicated region
            $region49: #{yolo_forward.26} parent=47 // pred_check
              _
            $region50: #{yolo_forward.26} parent=47 // pred_check_branch
              %1239 = sbr.rel target = $region52
            $region51: #{yolo_forward.26} parent=47 // pred_region
              // Predicated region
              $region71: #{yolo_forward.26} parent=51 // pred_check
                _
              $region72: #{yolo_forward.26} parent=51 // pred_check_branch
                %1351 = sbr.rel (0) target = $region74
              $region73: #{yolo_forward.26} parent=51 // pred_region
                %s1353 = ssub.s32 16, 1
                %s1354 = sshrl.u32 %s1229, 5
                // While loop
                $region75: #{yolo_forward.26} parent=73 // loop_pre_header
                  _
                $region76: #{yolo_forward.26} parent=73 // loop_header
                  %s1356 = sphi 0, %s1358
                  %p1357 = scmp.ge.s32.totalorder %s1356, %s1354
                  %s1361 = sphi 0, %s1430
                  %s1362 = sphi %s1222, %s1433
                  %s1363 = sphi %s1234, %s1434
                $region77: #{yolo_forward.26} parent=73 // loop_header_branch
                  %1360 = sbr.rel (%p1357) target = $region81
                $region78: #{yolo_forward.26} parent=73 // loop_body
                  %v1364 = vld [vmem:[%s1362] sm:%s1353]
                  %1365 = vst [vmem:[%s1363] sm:%s1353] %v1364
                  %v1366 = vld [vmem:[%s1362 + $0x4] sm:%s1353]
                  %1367 = vst [vmem:[%s1363 + $0x4] sm:%s1353] %v1366
                  %v1368 = vld [vmem:[%s1362 + $0x8] sm:%s1353]
                  %1369 = vst [vmem:[%s1363 + $0x8] sm:%s1353] %v1368
                  %v1370 = vld [vmem:[%s1362 + $0xc] sm:%s1353]
                  %1371 = vst [vmem:[%s1363 + $0xc] sm:%s1353] %v1370
                  %v1372 = vld [vmem:[%s1362 + $0x10] sm:%s1353]
                  %1373 = vst [vmem:[%s1363 + $0x10] sm:%s1353] %v1372
                  %v1374 = vld [vmem:[%s1362 + $0x14] sm:%s1353]
                  %1375 = vst [vmem:[%s1363 + $0x14] sm:%s1353] %v1374
                  %v1376 = vld [vmem:[%s1362 + $0x18] sm:%s1353]
                  %1377 = vst [vmem:[%s1363 + $0x18] sm:%s1353] %v1376
                  %v1378 = vld [vmem:[%s1362 + $0x1c] sm:%s1353]
                  %1379 = vst [vmem:[%s1363 + $0x1c] sm:%s1353] %v1378
                  %v1380 = vld [vmem:[%s1362 + $0x20] sm:%s1353]
                  %1381 = vst [vmem:[%s1363 + $0x20] sm:%s1353] %v1380
                  %v1382 = vld [vmem:[%s1362 + $0x24] sm:%s1353]
                  %1383 = vst [vmem:[%s1363 + $0x24] sm:%s1353] %v1382
                  %v1384 = vld [vmem:[%s1362 + $0x28] sm:%s1353]
                  %1385 = vst [vmem:[%s1363 + $0x28] sm:%s1353] %v1384
                  %v1386 = vld [vmem:[%s1362 + $0x2c] sm:%s1353]
                  %1387 = vst [vmem:[%s1363 + $0x2c] sm:%s1353] %v1386
                  %v1388 = vld [vmem:[%s1362 + $0x30] sm:%s1353]
                  %1389 = vst [vmem:[%s1363 + $0x30] sm:%s1353] %v1388
                  %v1390 = vld [vmem:[%s1362 + $0x34] sm:%s1353]
                  %1391 = vst [vmem:[%s1363 + $0x34] sm:%s1353] %v1390
                  %v1392 = vld [vmem:[%s1362 + $0x38] sm:%s1353]
                  %1393 = vst [vmem:[%s1363 + $0x38] sm:%s1353] %v1392
                  %v1394 = vld [vmem:[%s1362 + $0x3c] sm:%s1353]
                  %1395 = vst [vmem:[%s1363 + $0x3c] sm:%s1353] %v1394
                  %v1396 = vld [vmem:[%s1362 + $0x40] sm:%s1353]
                  %1397 = vst [vmem:[%s1363 + $0x40] sm:%s1353] %v1396
                  %v1398 = vld [vmem:[%s1362 + $0x44] sm:%s1353]
                  %1399 = vst [vmem:[%s1363 + $0x44] sm:%s1353] %v1398
                  %v1400 = vld [vmem:[%s1362 + $0x48] sm:%s1353]
                  %1401 = vst [vmem:[%s1363 + $0x48] sm:%s1353] %v1400
                  %v1402 = vld [vmem:[%s1362 + $0x4c] sm:%s1353]
                  %1403 = vst [vmem:[%s1363 + $0x4c] sm:%s1353] %v1402
                  %v1404 = vld [vmem:[%s1362 + $0x50] sm:%s1353]
                  %1405 = vst [vmem:[%s1363 + $0x50] sm:%s1353] %v1404
                  %v1406 = vld [vmem:[%s1362 + $0x54] sm:%s1353]
                  %1407 = vst [vmem:[%s1363 + $0x54] sm:%s1353] %v1406
                  %v1408 = vld [vmem:[%s1362 + $0x58] sm:%s1353]
                  %1409 = vst [vmem:[%s1363 + $0x58] sm:%s1353] %v1408
                  %v1410 = vld [vmem:[%s1362 + $0x5c] sm:%s1353]
                  %1411 = vst [vmem:[%s1363 + $0x5c] sm:%s1353] %v1410
                  %v1412 = vld [vmem:[%s1362 + $0x60] sm:%s1353]
                  %1413 = vst [vmem:[%s1363 + $0x60] sm:%s1353] %v1412
                  %v1414 = vld [vmem:[%s1362 + $0x64] sm:%s1353]
                  %1415 = vst [vmem:[%s1363 + $0x64] sm:%s1353] %v1414
                  %v1416 = vld [vmem:[%s1362 + $0x68] sm:%s1353]
                  %1417 = vst [vmem:[%s1363 + $0x68] sm:%s1353] %v1416
                  %v1418 = vld [vmem:[%s1362 + $0x6c] sm:%s1353]
                  %1419 = vst [vmem:[%s1363 + $0x6c] sm:%s1353] %v1418
                  %v1420 = vld [vmem:[%s1362 + $0x70] sm:%s1353]
                  %1421 = vst [vmem:[%s1363 + $0x70] sm:%s1353] %v1420
                  %v1422 = vld [vmem:[%s1362 + $0x74] sm:%s1353]
                  %1423 = vst [vmem:[%s1363 + $0x74] sm:%s1353] %v1422
                  %v1424 = vld [vmem:[%s1362 + $0x78] sm:%s1353]
                  %1425 = vst [vmem:[%s1363 + $0x78] sm:%s1353] %v1424
                  %v1426 = vld [vmem:[%s1362 + $0x7c] sm:%s1353]
                  %1427 = vst [vmem:[%s1363 + $0x7c] sm:%s1353] %v1426
                  %s1428 = sadd.s32 1, %s1361
                  %p1429 = scmp.ge.s32.totalorder %s1428, %s1354
                  %s1430 = scalar_select %p1429, 0, %s1428
                  %s1431 = smul.u32 %s1430, 128
                  %s1432 = smul.u32 %s1430, 128
                  %s1433 = scalar_lea.vmem %s1222, %s1431 [#allocation3]
                  %s1434 = scalar_lea.vmem %s1234, %s1432
                $region79: #{yolo_forward.26} parent=73 // loop_footer
                  %s1358 = sadd.s32 %s1356, 1
                $region80: #{yolo_forward.26} parent=73 // loop_footer_branch
                  %1355 = sbr.rel target = $region76
                $region81: #{yolo_forward.26} parent=73 // loop_exit
                  _
                %s1435 = sshrl.u32 %s1229, 5
                %s1436 = sand.u32 %s1229, 31
                %s1437 = smul.u32 %s1435, 32
                %s1438 = smul.u32 4, %s1437
                %s1439 = scalar_lea.vmem %s1222, %s1438 [#allocation3]
                %s1440 = smul.u32 4, %s1437
                %s1441 = scalar_lea.vmem %s1234, %s1440
                // While loop
                $region82: #{yolo_forward.26} parent=73 // loop_pre_header
                  _
                $region83: #{yolo_forward.26} parent=73 // loop_header
                  %s1443 = sphi 0, %s1445
                  %p1444 = scmp.ge.s32.totalorder %s1443, %s1436
                  %s1448 = sphi 0, %s1455
                  %s1449 = sphi %s1439, %s1458
                  %s1450 = sphi %s1441, %s1459
                $region84: #{yolo_forward.26} parent=73 // loop_header_branch
                  %1447 = sbr.rel (%p1444) target = $region88
                $region85: #{yolo_forward.26} parent=73 // loop_body
                  %v1451 = vld [vmem:[%s1449] sm:%s1353]
                  %1452 = vst [vmem:[%s1450] sm:%s1353] %v1451
                  %s1453 = sadd.s32 1, %s1448
                  %p1454 = scmp.ge.s32.totalorder %s1453, %s1436
                  %s1455 = scalar_select %p1454, 0, %s1453
                  %s1456 = smul.u32 %s1455, 4
                  %s1457 = smul.u32 %s1455, 4
                  %s1458 = scalar_lea.vmem %s1439, %s1456 [#allocation3]
                  %s1459 = scalar_lea.vmem %s1441, %s1457
                $region86: #{yolo_forward.26} parent=73 // loop_footer
                  %s1445 = sadd.s32 %s1443, 1
                $region87: #{yolo_forward.26} parent=73 // loop_footer_branch
                  %1442 = sbr.rel target = $region83
                $region88: #{yolo_forward.26} parent=73 // loop_exit
                  _
              $region74: #{yolo_forward.26} parent=51 // pred_fallthru
                _
            $region52: #{yolo_forward.26} parent=47 // pred_fallthru
              _
            // Predicated region
            $region53: #{yolo_forward.26} parent=47 // pred_check
              _
            $region54: #{yolo_forward.26} parent=47 // pred_check_branch
              %1241 = sbr.rel (0) target = $region56
            $region55: #{yolo_forward.26} parent=47 // pred_region
              %s1243 = ssub.s32 16, 1
              %s1244 = sshrl.u32 %s1229, 5
              // While loop
              $region57: #{yolo_forward.26} parent=55 // loop_pre_header
                _
              $region58: #{yolo_forward.26} parent=55 // loop_header
                %s1246 = sphi 0, %s1248
                %p1247 = scmp.ge.s32.totalorder %s1246, %s1244
                %s1251 = sphi 0, %s1320
                %s1252 = sphi %s1222, %s1323
                %s1253 = sphi %s1234, %s1324
              $region59: #{yolo_forward.26} parent=55 // loop_header_branch
                %1250 = sbr.rel (%p1247) target = $region63
              $region60: #{yolo_forward.26} parent=55 // loop_body
                %v1254 = vld [vmem:[%s1252] sm:%s1243]
                %1255 = vst [vmem:[%s1253] sm:%s1243] %v1254
                %v1256 = vld [vmem:[%s1252 + $0x4] sm:%s1243]
                %1257 = vst [vmem:[%s1253 + $0x4] sm:%s1243] %v1256
                %v1258 = vld [vmem:[%s1252 + $0x8] sm:%s1243]
                %1259 = vst [vmem:[%s1253 + $0x8] sm:%s1243] %v1258
                %v1260 = vld [vmem:[%s1252 + $0xc] sm:%s1243]
                %1261 = vst [vmem:[%s1253 + $0xc] sm:%s1243] %v1260
                %v1262 = vld [vmem:[%s1252 + $0x10] sm:%s1243]
                %1263 = vst [vmem:[%s1253 + $0x10] sm:%s1243] %v1262
                %v1264 = vld [vmem:[%s1252 + $0x14] sm:%s1243]
                %1265 = vst [vmem:[%s1253 + $0x14] sm:%s1243] %v1264
                %v1266 = vld [vmem:[%s1252 + $0x18] sm:%s1243]
                %1267 = vst [vmem:[%s1253 + $0x18] sm:%s1243] %v1266
                %v1268 = vld [vmem:[%s1252 + $0x1c] sm:%s1243]
                %1269 = vst [vmem:[%s1253 + $0x1c] sm:%s1243] %v1268
                %v1270 = vld [vmem:[%s1252 + $0x20] sm:%s1243]
                %1271 = vst [vmem:[%s1253 + $0x20] sm:%s1243] %v1270
                %v1272 = vld [vmem:[%s1252 + $0x24] sm:%s1243]
                %1273 = vst [vmem:[%s1253 + $0x24] sm:%s1243] %v1272
                %v1274 = vld [vmem:[%s1252 + $0x28] sm:%s1243]
                %1275 = vst [vmem:[%s1253 + $0x28] sm:%s1243] %v1274
                %v1276 = vld [vmem:[%s1252 + $0x2c] sm:%s1243]
                %1277 = vst [vmem:[%s1253 + $0x2c] sm:%s1243] %v1276
                %v1278 = vld [vmem:[%s1252 + $0x30] sm:%s1243]
                %1279 = vst [vmem:[%s1253 + $0x30] sm:%s1243] %v1278
                %v1280 = vld [vmem:[%s1252 + $0x34] sm:%s1243]
                %1281 = vst [vmem:[%s1253 + $0x34] sm:%s1243] %v1280
                %v1282 = vld [vmem:[%s1252 + $0x38] sm:%s1243]
                %1283 = vst [vmem:[%s1253 + $0x38] sm:%s1243] %v1282
                %v1284 = vld [vmem:[%s1252 + $0x3c] sm:%s1243]
                %1285 = vst [vmem:[%s1253 + $0x3c] sm:%s1243] %v1284
                %v1286 = vld [vmem:[%s1252 + $0x40] sm:%s1243]
                %1287 = vst [vmem:[%s1253 + $0x40] sm:%s1243] %v1286
                %v1288 = vld [vmem:[%s1252 + $0x44] sm:%s1243]
                %1289 = vst [vmem:[%s1253 + $0x44] sm:%s1243] %v1288
                %v1290 = vld [vmem:[%s1252 + $0x48] sm:%s1243]
                %1291 = vst [vmem:[%s1253 + $0x48] sm:%s1243] %v1290
                %v1292 = vld [vmem:[%s1252 + $0x4c] sm:%s1243]
                %1293 = vst [vmem:[%s1253 + $0x4c] sm:%s1243] %v1292
                %v1294 = vld [vmem:[%s1252 + $0x50] sm:%s1243]
                %1295 = vst [vmem:[%s1253 + $0x50] sm:%s1243] %v1294
                %v1296 = vld [vmem:[%s1252 + $0x54] sm:%s1243]
                %1297 = vst [vmem:[%s1253 + $0x54] sm:%s1243] %v1296
                %v1298 = vld [vmem:[%s1252 + $0x58] sm:%s1243]
                %1299 = vst [vmem:[%s1253 + $0x58] sm:%s1243] %v1298
                %v1300 = vld [vmem:[%s1252 + $0x5c] sm:%s1243]
                %1301 = vst [vmem:[%s1253 + $0x5c] sm:%s1243] %v1300
                %v1302 = vld [vmem:[%s1252 + $0x60] sm:%s1243]
                %1303 = vst [vmem:[%s1253 + $0x60] sm:%s1243] %v1302
                %v1304 = vld [vmem:[%s1252 + $0x64] sm:%s1243]
                %1305 = vst [vmem:[%s1253 + $0x64] sm:%s1243] %v1304
                %v1306 = vld [vmem:[%s1252 + $0x68] sm:%s1243]
                %1307 = vst [vmem:[%s1253 + $0x68] sm:%s1243] %v1306
                %v1308 = vld [vmem:[%s1252 + $0x6c] sm:%s1243]
                %1309 = vst [vmem:[%s1253 + $0x6c] sm:%s1243] %v1308
                %v1310 = vld [vmem:[%s1252 + $0x70] sm:%s1243]
                %1311 = vst [vmem:[%s1253 + $0x70] sm:%s1243] %v1310
                %v1312 = vld [vmem:[%s1252 + $0x74] sm:%s1243]
                %1313 = vst [vmem:[%s1253 + $0x74] sm:%s1243] %v1312
                %v1314 = vld [vmem:[%s1252 + $0x78] sm:%s1243]
                %1315 = vst [vmem:[%s1253 + $0x78] sm:%s1243] %v1314
                %v1316 = vld [vmem:[%s1252 + $0x7c] sm:%s1243]
                %1317 = vst [vmem:[%s1253 + $0x7c] sm:%s1243] %v1316
                %s1318 = sadd.s32 1, %s1251
                %p1319 = scmp.ge.s32.totalorder %s1318, %s1244
                %s1320 = scalar_select %p1319, 0, %s1318
                %s1321 = smul.u32 %s1320, 128
                %s1322 = smul.u32 %s1320, 128
                %s1323 = scalar_lea.vmem %s1222, %s1321 [#allocation3]
                %s1324 = scalar_lea.vmem %s1234, %s1322
              $region61: #{yolo_forward.26} parent=55 // loop_footer
                %s1248 = sadd.s32 %s1246, 1
              $region62: #{yolo_forward.26} parent=55 // loop_footer_branch
                %1245 = sbr.rel target = $region58
              $region63: #{yolo_forward.26} parent=55 // loop_exit
                _
              %s1325 = sshrl.u32 %s1229, 5
              %s1326 = sand.u32 %s1229, 31
              %s1327 = smul.u32 %s1325, 32
              %s1328 = smul.u32 4, %s1327
              %s1329 = scalar_lea.vmem %s1222, %s1328 [#allocation3]
              %s1330 = smul.u32 4, %s1327
              %s1331 = scalar_lea.vmem %s1234, %s1330
              // While loop
              $region64: #{yolo_forward.26} parent=55 // loop_pre_header
                _
              $region65: #{yolo_forward.26} parent=55 // loop_header
                %s1333 = sphi 0, %s1335
                %p1334 = scmp.ge.s32.totalorder %s1333, %s1326
                %s1338 = sphi 0, %s1345
                %s1339 = sphi %s1329, %s1348
                %s1340 = sphi %s1331, %s1349
              $region66: #{yolo_forward.26} parent=55 // loop_header_branch
                %1337 = sbr.rel (%p1334) target = $region70
              $region67: #{yolo_forward.26} parent=55 // loop_body
                %v1341 = vld [vmem:[%s1339] sm:%s1243]
                %1342 = vst [vmem:[%s1340] sm:%s1243] %v1341
                %s1343 = sadd.s32 1, %s1338
                %p1344 = scmp.ge.s32.totalorder %s1343, %s1326
                %s1345 = scalar_select %p1344, 0, %s1343
                %s1346 = smul.u32 %s1345, 4
                %s1347 = smul.u32 %s1345, 4
                %s1348 = scalar_lea.vmem %s1329, %s1346 [#allocation3]
                %s1349 = scalar_lea.vmem %s1331, %s1347
              $region68: #{yolo_forward.26} parent=55 // loop_footer
                %s1335 = sadd.s32 %s1333, 1
              $region69: #{yolo_forward.26} parent=55 // loop_footer_branch
                %1332 = sbr.rel target = $region65
              $region70: #{yolo_forward.26} parent=55 // loop_exit
                _
            $region56: #{yolo_forward.26} parent=47 // pred_fallthru
              _
          $region48: #{yolo_forward.26} parent=43 // pred_fallthru
            _
          %1460 = vnop
        $region44: #{yolo_forward.26} parent=31 // pred_fallthru
          _
      $region32: #{yolo_forward.26} parent=5 // pred_fallthru
        _
      %p1461 = scmp.le.s32.totalorder 2, %s9
      // Predicated region
      $region89: #{yolo_forward.26} parent=5 // pred_check
        %p1462 = pneg %p1461
      $region90: #{yolo_forward.26} parent=5 // pred_check_branch
        %1464 = sbr.rel (%p1462) target = $region92
      $region91: #{yolo_forward.26} parent=5 // pred_region
        %s1465 = ssub.s32 %s9, 2
        // Predicated region
        $region93: #{yolo_forward.26} parent=91 // pred_check
          %p1466 = pneg %p141
        $region94: #{yolo_forward.26} parent=91 // pred_check_branch
          %1468 = sbr.rel (%p1466) target = $region96
        $region95: #{yolo_forward.26} parent=91 // pred_region
          %s1469 = sand.u32 %s126, 1
          %s1470 = sand.u32 %s126, 1
          %s1471 = smul.addr %s1470, 128
          %s1472 = scalar_lea.vmem [#allocation3], %s1471
        $region96: #{yolo_forward.26} parent=91 // pred_fallthru
          _
      $region92: #{yolo_forward.26} parent=5 // pred_fallthru
        _
    $region6: #{yolo_forward.26} parent=1 // loop_footer
      %s13 = sadd.s32 1, %s9
    $region7: #{yolo_forward.26} parent=1 // loop_footer_branch
      %8 = sbr.rel target = $region3
    $region8: #{yolo_forward.26} parent=1 // loop_exit
      _

// kernel: yolo_forward.27
$region0: #{yolo_forward.27}
  #allocation0 [shape = 'u32[]', space=smem, size = 0x4, offset = 0x4, fixed_abs, tag = 'smem constant byte address 0x4 - core index']
  #allocation1 [shape = 'u32[144,128]{1,0:T(1,128)}', space=vmem, size = 0x12000, scoped, tag = 'internal scratch']
  #allocation2 [shape = 'f32[392,12]{1,0:T(8,128)}', space=vmem, size = 0x31000, scoped, tag = 'scratch operand']
  %s0 = inlined_call_operand.vmem [shape: bf16[392,36], index: 0, kind: input, shape index: {}]
  %s1 = inlined_call_operand.vmem [shape: bf16[36,12], index: 1, kind: input, shape index: {}]
  %s2 = inlined_call_operand.vmem [shape: f32[1,12], index: 2, kind: input, shape index: {}]
  %s3 = inlined_call_operand.vmem [shape: bf16[392,12], index: 3, kind: output, shape index: {}]
  %s4 = sld [smem:[#allocation0]]
  $region30: #{yolo_forward.27} parent=0
    _
  %s6 = ssub.s32 1, %s4
  %s7 = scalar_select 0, %s6, %s4
  // Predicated region
  $region2: #{yolo_forward.27} parent=0 // pred_check
    _
  $region3: #{yolo_forward.27} parent=0 // pred_check_branch
    %9 = sbr.rel (0) target = $region5
  $region4: #{yolo_forward.27} parent=0 // pred_region
    _
  $region5: #{yolo_forward.27} parent=0 // pred_fallthru
    _
  // Predicated region
  $region6: #{yolo_forward.27} parent=0 // pred_check
    _
  $region7: #{yolo_forward.27} parent=0 // pred_check_branch
    %11 = sbr.rel (0) target = $region9
  $region8: #{yolo_forward.27} parent=0 // pred_region
    _
  $region9: #{yolo_forward.27} parent=0 // pred_fallthru
    _
  // Predicated region
  $region10: #{yolo_forward.27} parent=0 // pred_check
    _
  $region11: #{yolo_forward.27} parent=0 // pred_check_branch
    %13 = sbr.rel (0) target = $region13
  $region12: #{yolo_forward.27} parent=0 // pred_region
    _
  $region13: #{yolo_forward.27} parent=0 // pred_fallthru
    _
  %p15 = scmp.eq.s32.totalorder 0, 0
  // Predicated region
  $region14: #{yolo_forward.27} parent=0 // pred_check
    %p16 = pneg %p15
  $region15: #{yolo_forward.27} parent=0 // pred_check_branch
    %18 = sbr.rel (%p16) target = $region17
  $region16: #{yolo_forward.27} parent=0 // pred_region
    %vm19 = vcmask 97280
    %20 = vst.msk [vmem:[#allocation2] sm:$0xff] %vm19, 0.0
    %21 = vst.msk [vmem:[#allocation2 + $0x8] sm:$0xff] %vm19, 0.0
    %22 = vst.msk [vmem:[#allocation2 + $0x10] sm:$0xff] %vm19, 0.0
    %23 = vst.msk [vmem:[#allocation2 + $0x18] sm:$0xff] %vm19, 0.0
    %24 = vst.msk [vmem:[#allocation2 + $0x20] sm:$0xff] %vm19, 0.0
    %25 = vst.msk [vmem:[#allocation2 + $0x28] sm:$0xff] %vm19, 0.0
    %26 = vst.msk [vmem:[#allocation2 + $0x30] sm:$0xff] %vm19, 0.0
    %27 = vst.msk [vmem:[#allocation2 + $0x38] sm:$0xff] %vm19, 0.0
    %28 = vst.msk [vmem:[#allocation2 + $0x40] sm:$0xff] %vm19, 0.0
    %29 = vst.msk [vmem:[#allocation2 + $0x48] sm:$0xff] %vm19, 0.0
    %30 = vst.msk [vmem:[#allocation2 + $0x50] sm:$0xff] %vm19, 0.0
    %31 = vst.msk [vmem:[#allocation2 + $0x58] sm:$0xff] %vm19, 0.0
    %32 = vst.msk [vmem:[#allocation2 + $0x60] sm:$0xff] %vm19, 0.0
    %33 = vst.msk [vmem:[#allocation2 + $0x68] sm:$0xff] %vm19, 0.0
    %34 = vst.msk [vmem:[#allocation2 + $0x70] sm:$0xff] %vm19, 0.0
    %35 = vst.msk [vmem:[#allocation2 + $0x78] sm:$0xff] %vm19, 0.0
    %36 = vst.msk [vmem:[#allocation2 + $0x80] sm:$0xff] %vm19, 0.0
    %37 = vst.msk [vmem:[#allocation2 + $0x88] sm:$0xff] %vm19, 0.0
    %38 = vst.msk [vmem:[#allocation2 + $0x90] sm:$0xff] %vm19, 0.0
    %39 = vst.msk [vmem:[#allocation2 + $0x98] sm:$0xff] %vm19, 0.0
    %40 = vst.msk [vmem:[#allocation2 + $0xa0] sm:$0xff] %vm19, 0.0
    %41 = vst.msk [vmem:[#allocation2 + $0xa8] sm:$0xff] %vm19, 0.0
    %42 = vst.msk [vmem:[#allocation2 + $0xb0] sm:$0xff] %vm19, 0.0
    %43 = vst.msk [vmem:[#allocation2 + $0xb8] sm:$0xff] %vm19, 0.0
    %44 = vst.msk [vmem:[#allocation2 + $0xc0] sm:$0xff] %vm19, 0.0
    %45 = vst.msk [vmem:[#allocation2 + $0xc8] sm:$0xff] %vm19, 0.0
    %46 = vst.msk [vmem:[#allocation2 + $0xd0] sm:$0xff] %vm19, 0.0
    %47 = vst.msk [vmem:[#allocation2 + $0xd8] sm:$0xff] %vm19, 0.0
    %48 = vst.msk [vmem:[#allocation2 + $0xe0] sm:$0xff] %vm19, 0.0
    %49 = vst.msk [vmem:[#allocation2 + $0xe8] sm:$0xff] %vm19, 0.0
    %50 = vst.msk [vmem:[#allocation2 + $0xf0] sm:$0xff] %vm19, 0.0
    %51 = vst.msk [vmem:[#allocation2 + $0xf8] sm:$0xff] %vm19, 0.0
    %52 = vst.msk [vmem:[#allocation2 + $0x100] sm:$0xff] %vm19, 0.0
    %53 = vst.msk [vmem:[#allocation2 + $0x108] sm:$0xff] %vm19, 0.0
    %54 = vst.msk [vmem:[#allocation2 + $0x110] sm:$0xff] %vm19, 0.0
    %55 = vst.msk [vmem:[#allocation2 + $0x118] sm:$0xff] %vm19, 0.0
    %56 = vst.msk [vmem:[#allocation2 + $0x120] sm:$0xff] %vm19, 0.0
    %57 = vst.msk [vmem:[#allocation2 + $0x128] sm:$0xff] %vm19, 0.0
    %58 = vst.msk [vmem:[#allocation2 + $0x130] sm:$0xff] %vm19, 0.0
    %59 = vst.msk [vmem:[#allocation2 + $0x138] sm:$0xff] %vm19, 0.0
    %60 = vst.msk [vmem:[#allocation2 + $0x140] sm:$0xff] %vm19, 0.0
    %61 = vst.msk [vmem:[#allocation2 + $0x148] sm:$0xff] %vm19, 0.0
    %62 = vst.msk [vmem:[#allocation2 + $0x150] sm:$0xff] %vm19, 0.0
    %63 = vst.msk [vmem:[#allocation2 + $0x158] sm:$0xff] %vm19, 0.0
    %64 = vst.msk [vmem:[#allocation2 + $0x160] sm:$0xff] %vm19, 0.0
    %65 = vst.msk [vmem:[#allocation2 + $0x168] sm:$0xff] %vm19, 0.0
    %66 = vst.msk [vmem:[#allocation2 + $0x170] sm:$0xff] %vm19, 0.0
    %67 = vst.msk [vmem:[#allocation2 + $0x178] sm:$0xff] %vm19, 0.0
    %68 = vst.msk [vmem:[#allocation2 + $0x180] sm:$0xff] %vm19, 0.0
  $region17: #{yolo_forward.27} parent=0 // pred_fallthru
    _
  %v69 = vld [vmem:[#allocation2] sm:$0xff]
  %v70 = vld [vmem:[#allocation2 + $0x8] sm:$0xff]
  %v71 = vld [vmem:[#allocation2 + $0x10] sm:$0xff]
  %v72 = vld [vmem:[#allocation2 + $0x18] sm:$0xff]
  %v73 = vld [vmem:[#allocation2 + $0x20] sm:$0xff]
  %v74 = vld [vmem:[#allocation2 + $0x28] sm:$0xff]
  %v75 = vld [vmem:[#allocation2 + $0x30] sm:$0xff]
  %v76 = vld [vmem:[#allocation2 + $0x38] sm:$0xff]
  %v77 = vld [vmem:[#allocation2 + $0x40] sm:$0xff]
  %v78 = vld [vmem:[#allocation2 + $0x48] sm:$0xff]
  %v79 = vld [vmem:[#allocation2 + $0x50] sm:$0xff]
  %v80 = vld [vmem:[#allocation2 + $0x58] sm:$0xff]
  %v81 = vld [vmem:[#allocation2 + $0x60] sm:$0xff]
  %v82 = vld [vmem:[#allocation2 + $0x68] sm:$0xff]
  %v83 = vld [vmem:[#allocation2 + $0x70] sm:$0xff]
  %v84 = vld [vmem:[#allocation2 + $0x78] sm:$0xff]
  %v85 = vld [vmem:[#allocation2 + $0x80] sm:$0xff]
  %v86 = vld [vmem:[#allocation2 + $0x88] sm:$0xff]
  %v87 = vld [vmem:[#allocation2 + $0x90] sm:$0xff]
  %v88 = vld [vmem:[#allocation2 + $0x98] sm:$0xff]
  %v89 = vld [vmem:[#allocation2 + $0xa0] sm:$0xff]
  %v90 = vld [vmem:[#allocation2 + $0xa8] sm:$0xff]
  %v91 = vld [vmem:[#allocation2 + $0xb0] sm:$0xff]
  %v92 = vld [vmem:[#allocation2 + $0xb8] sm:$0xff]
  %v93 = vld [vmem:[#allocation2 + $0xc0] sm:$0xff]
  %v94 = vld [vmem:[#allocation2 + $0xc8] sm:$0xff]
  %v95 = vld [vmem:[#allocation2 + $0xd0] sm:$0xff]
  %v96 = vld [vmem:[#allocation2 + $0xd8] sm:$0xff]
  %v97 = vld [vmem:[#allocation2 + $0xe0] sm:$0xff]
  %v98 = vld [vmem:[#allocation2 + $0xe8] sm:$0xff]
  %v99 = vld [vmem:[#allocation2 + $0xf0] sm:$0xff]
  %v100 = vld [vmem:[#allocation2 + $0xf8] sm:$0xff]
  %v101 = vld [vmem:[#allocation2 + $0x100] sm:$0xff]
  %v102 = vld [vmem:[#allocation2 + $0x108] sm:$0xff]
  %v103 = vld [vmem:[#allocation2 + $0x110] sm:$0xff]
  %v104 = vld [vmem:[#allocation2 + $0x118] sm:$0xff]
  %v105 = vld [vmem:[#allocation2 + $0x120] sm:$0xff]
  %v106 = vld [vmem:[#allocation2 + $0x128] sm:$0xff]
  %v107 = vld [vmem:[#allocation2 + $0x130] sm:$0xff]
  %v108 = vld [vmem:[#allocation2 + $0x138] sm:$0xff]
  %v109 = vld [vmem:[#allocation2 + $0x140] sm:$0xff]
  %v110 = vld [vmem:[#allocation2 + $0x148] sm:$0xff]
  %v111 = vld [vmem:[#allocation2 + $0x150] sm:$0xff]
  %v112 = vld [vmem:[#allocation2 + $0x158] sm:$0xff]
  %v113 = vld [vmem:[#allocation2 + $0x160] sm:$0xff]
  %v114 = vld [vmem:[#allocation2 + $0x168] sm:$0xff]
  %v115 = vld [vmem:[#allocation2 + $0x170] sm:$0xff]
  %v116 = vld [vmem:[#allocation2 + $0x178] sm:$0xff]
  %v117 = vld [vmem:[#allocation2 + $0x180] sm:$0xff]
  %v118 = vld [vmem:[%s0] sm:$0xf]
  %v119 = vld [vmem:[%s0 + $0x4] sm:$0xf]
  %v120 = vld [vmem:[%s0 + $0x8] sm:$0xf]
  %v121 = vld [vmem:[%s0 + $0xc] sm:$0xf]
  %v122 = vld [vmem:[%s0 + $0x10] sm:$0xf]
  %v123 = vld [vmem:[%s0 + $0x14] sm:$0xf]
  %v124 = vld [vmem:[%s0 + $0x18] sm:$0xf]
  %v125 = vld [vmem:[%s0 + $0x1c] sm:$0xf]
  %v126 = vld [vmem:[%s0 + $0x20] sm:$0xf]
  %v127 = vld [vmem:[%s0 + $0x24] sm:$0xf]
  %v128 = vld [vmem:[%s0 + $0x28] sm:$0xf]
  %v129 = vld [vmem:[%s0 + $0x2c] sm:$0xf]
  %v130 = vld [vmem:[%s0 + $0x30] sm:$0xf]
  %v131 = vld [vmem:[%s0 + $0x34] sm:$0xf]
  %v132 = vld [vmem:[%s0 + $0x38] sm:$0xf]
  %v133 = vld [vmem:[%s0 + $0x3c] sm:$0xf]
  %v134 = vld [vmem:[%s0 + $0x40] sm:$0xf]
  %v135 = vld [vmem:[%s0 + $0x44] sm:$0xf]
  %v136 = vld [vmem:[%s0 + $0x48] sm:$0xf]
  %v137 = vld [vmem:[%s0 + $0x4c] sm:$0xf]
  %v138 = vld [vmem:[%s0 + $0x50] sm:$0xf]
  %v139 = vld [vmem:[%s0 + $0x54] sm:$0xf]
  %v140 = vld [vmem:[%s0 + $0x58] sm:$0xf]
  %v141 = vld [vmem:[%s0 + $0x5c] sm:$0xf]
  %v142 = vld [vmem:[%s0 + $0x60] sm:$0xf]
  %v143 = vld [vmem:[%s0 + $0x64] sm:$0xf]
  %v144 = vld [vmem:[%s0 + $0x68] sm:$0xf]
  %v145 = vld [vmem:[%s0 + $0x6c] sm:$0xf]
  %v146 = vld [vmem:[%s0 + $0x70] sm:$0xf]
  %v147 = vld [vmem:[%s0 + $0x74] sm:$0xf]
  %v148 = vld [vmem:[%s0 + $0x78] sm:$0xf]
  %v149 = vld [vmem:[%s0 + $0x7c] sm:$0xf]
  %v150 = vld [vmem:[%s0 + $0x80] sm:$0xf]
  %v151 = vld [vmem:[%s0 + $0x84] sm:$0xf]
  %v152 = vld [vmem:[%s0 + $0x88] sm:$0xf]
  %v153 = vld [vmem:[%s0 + $0x8c] sm:$0xf]
  %v154 = vld [vmem:[%s0 + $0x90] sm:$0xf]
  %v155 = vld [vmem:[%s0 + $0x94] sm:$0xf]
  %v156 = vld [vmem:[%s0 + $0x98] sm:$0xf]
  %v157 = vld [vmem:[%s0 + $0x9c] sm:$0xf]
  %v158 = vld [vmem:[%s0 + $0xa0] sm:$0xf]
  %v159 = vld [vmem:[%s0 + $0xa4] sm:$0xf]
  %v160 = vld [vmem:[%s0 + $0xa8] sm:$0xf]
  %v161 = vld [vmem:[%s0 + $0xac] sm:$0xf]
  %v162 = vld [vmem:[%s0 + $0xb0] sm:$0xf]
  %v163 = vld [vmem:[%s0 + $0xb4] sm:$0xf]
  %v164 = vld [vmem:[%s0 + $0xb8] sm:$0xf]
  %v165 = vld [vmem:[%s0 + $0xbc] sm:$0xf]
  %v166 = vld [vmem:[%s0 + $0xc0] sm:$0xf]
  %v167 = vld [vmem:[%s1] sm:$0xf]
  %v168 = vld [vmem:[%s1 + $0x4] sm:$0xf]
  %v169 = vld [vmem:[%s1 + $0x8] sm:$0xf]
  %v170 = vld [vmem:[%s1 + $0xc] sm:$0xf]
  %v171 = vld [vmem:[%s1 + $0x10] sm:$0x3]
  %v221 = vunpack.c.l.b16 %v118
  %v222 = vunpack.c.l.b16 %v119
  %v223 = vunpack.c.l.b16 %v120
  %v224 = vunpack.c.l.b16 %v121
  %v225 = vunpack.c.l.b16 %v122
  %v226 = vunpack.c.l.b16 %v123
  %v227 = vunpack.c.l.b16 %v124
  %v228 = vunpack.c.l.b16 %v125
  %v229 = vunpack.c.l.b16 %v126
  %v230 = vunpack.c.l.b16 %v127
  %v231 = vunpack.c.l.b16 %v128
  %v232 = vunpack.c.l.b16 %v129
  %v233 = vunpack.c.l.b16 %v130
  %v234 = vunpack.c.l.b16 %v131
  %v235 = vunpack.c.l.b16 %v132
  %v236 = vunpack.c.l.b16 %v133
  %v237 = vunpack.c.l.b16 %v134
  %v238 = vunpack.c.l.b16 %v135
  %v239 = vunpack.c.l.b16 %v136
  %v240 = vunpack.c.l.b16 %v137
  %v241 = vunpack.c.l.b16 %v138
  %v242 = vunpack.c.l.b16 %v139
  %v243 = vunpack.c.l.b16 %v140
  %v244 = vunpack.c.l.b16 %v141
  %v245 = vunpack.c.l.b16 %v142
  %v246 = vunpack.c.l.b16 %v143
  %v247 = vunpack.c.l.b16 %v144
  %v248 = vunpack.c.l.b16 %v145
  %v249 = vunpack.c.l.b16 %v146
  %v250 = vunpack.c.l.b16 %v147
  %v251 = vunpack.c.l.b16 %v148
  %v252 = vunpack.c.l.b16 %v149
  %v253 = vunpack.c.l.b16 %v150
  %v254 = vunpack.c.l.b16 %v151
  %v255 = vunpack.c.l.b16 %v152
  %v256 = vunpack.c.l.b16 %v153
  %v257 = vunpack.c.l.b16 %v154
  %v258 = vunpack.c.l.b16 %v155
  %v259 = vunpack.c.l.b16 %v156
  %v260 = vunpack.c.l.b16 %v157
  %v261 = vunpack.c.l.b16 %v158
  %v262 = vunpack.c.l.b16 %v159
  %v263 = vunpack.c.l.b16 %v160
  %v264 = vunpack.c.l.b16 %v161
  %v265 = vunpack.c.l.b16 %v162
  %v266 = vunpack.c.l.b16 %v163
  %v267 = vunpack.c.l.b16 %v164
  %v268 = vunpack.c.l.b16 %v165
  %v269 = vunpack.c.l.b16 %v166
  %v270 = vpack.c.b16 %v222, %v221
  %v271 = vpack.c.b16 %v224, %v223
  %v272 = vpack.c.b16 %v226, %v225
  %v273 = vpack.c.b16 %v228, %v227
  %v274 = vpack.c.b16 %v230, %v229
  %v275 = vpack.c.b16 %v232, %v231
  %v276 = vpack.c.b16 %v234, %v233
  %v277 = vpack.c.b16 %v236, %v235
  %v278 = vpack.c.b16 %v238, %v237
  %v279 = vpack.c.b16 %v240, %v239
  %v280 = vpack.c.b16 %v242, %v241
  %v281 = vpack.c.b16 %v244, %v243
  %v282 = vpack.c.b16 %v246, %v245
  %v283 = vpack.c.b16 %v248, %v247
  %v284 = vpack.c.b16 %v250, %v249
  %v285 = vpack.c.b16 %v252, %v251
  %v286 = vpack.c.b16 %v254, %v253
  %v287 = vpack.c.b16 %v256, %v255
  %v288 = vpack.c.b16 %v258, %v257
  %v289 = vpack.c.b16 %v260, %v259
  %v290 = vpack.c.b16 %v262, %v261
  %v291 = vpack.c.b16 %v264, %v263
  %v292 = vpack.c.b16 %v266, %v265
  %v293 = vpack.c.b16 %v268, %v267
  %v294 = vpack.c.b16 %v269, %v269
  %v300 = vunpack.c.l.b16 %v167
  %v301 = vunpack.c.l.b16 %v168
  %v302 = vunpack.c.l.b16 %v169
  %v303 = vunpack.c.l.b16 %v170
  %v304 = vunpack.c.l.b16 %v171
  %v305 = vpack.c.b16 %v301, %v300
  %v306 = vpack.c.b16 %v303, %v302
  %v307 = vpack.c.b16 %v304, %v304
  %vm310 = vcmask 293888
  %v312 = vsel %vm310, %v270, 0
  %v315 = vsel %vm310, %v271, 0
  %v318 = vsel %vm310, %v272, 0
  %v321 = vsel %vm310, %v273, 0
  %v324 = vsel %vm310, %v274, 0
  %v327 = vsel %vm310, %v275, 0
  %v330 = vsel %vm310, %v276, 0
  %v333 = vsel %vm310, %v277, 0
  %v336 = vsel %vm310, %v278, 0
  %v339 = vsel %vm310, %v279, 0
  %v342 = vsel %vm310, %v280, 0
  %v345 = vsel %vm310, %v281, 0
  %v348 = vsel %vm310, %v282, 0
  %v351 = vsel %vm310, %v283, 0
  %v354 = vsel %vm310, %v284, 0
  %v357 = vsel %vm310, %v285, 0
  %v360 = vsel %vm310, %v286, 0
  %v363 = vsel %vm310, %v287, 0
  %v366 = vsel %vm310, %v288, 0
  %v369 = vsel %vm310, %v289, 0
  %v372 = vsel %vm310, %v290, 0
  %v375 = vsel %vm310, %v291, 0
  %v378 = vsel %vm310, %v292, 0
  %v381 = vsel %vm310, %v293, 0
  %v384 = vsel %vm310, %v294, 0
  %vm386 = vcmask 1041408
  %v388 = vsel %vm386, %v307, 0
  %390 = vmatprep.subr.bf16.mxu0 0
  %391 = vmatpush1.bf16.msra.mxu0 0
  %392 = vmatprep.subr.bf16.mxu0 0
  %393 = vmatpush1.bf16.msra.mxu0 0
  %394 = vmatprep.subr.bf16.mxu0 0
  %395 = vmatpush1.bf16.msra.mxu0 0
  %396 = vmatprep.subr.bf16.mxu0 0
  %397 = vmatpush1.bf16.msra.mxu0 0
  %398 = vmatprep.subr.bf16.mxu0 0
  %399 = vmatpush1.bf16.msra.mxu0 0
  %400 = vmatprep.subr.bf16.mxu0 0
  %401 = vmatpush1.bf16.msra.mxu0 %v388
  %402 = vmatprep.subr.bf16.mxu0 0
  %403 = vmatpush1.bf16.msra.mxu0 %v306
  %404 = vmatprep.subr.bf16.mxu0 0
  %405 = vmatpush1.bf16.msra.mxu0 %v305
  %406 = vmatprep.subr.bf16.mxu0 0
  %407 = vmatpush2.bf16.msra.mxu0 0
  %408 = vmatprep.subr.bf16.mxu0 0
  %409 = vmatpush2.bf16.msra.mxu0 0
  %410 = vmatprep.subr.bf16.mxu0 0
  %411 = vmatpush2.bf16.msra.mxu0 0
  %412 = vmatprep.subr.bf16.mxu0 0
  %413 = vmatpush2.bf16.msra.mxu0 0
  %414 = vmatprep.subr.bf16.mxu0 0
  %415 = vmatpush2.bf16.msra.mxu0 0
  %416 = vmatprep.subr.bf16.mxu0 0
  %417 = vmatpush2.bf16.msra.mxu0 0
  %418 = vmatprep.subr.bf16.mxu0 0
  %419 = vmatpush2.bf16.msra.mxu0 0
  %420 = vmatprep.subr.bf16.mxu0 0
  %421 = vmatpush2.bf16.msra.mxu0 0
  %422 = vmatprep.mubr.bf16.mxu0 0
  %423 = vmatmul.mubr.bf16.gmra.mxu0 %v312
  %v424 = vpop.f32.mrf.mxu0
  %v425 = vadd.f32 0.0, %v424
  %v426 = vpop.f32.mrf.mxu0
  %v427 = vpop.f32.mrf.mxu0
  %v428 = vadd.f32 0.0, %v427
  %v429 = vpop.f32.mrf.mxu0
  %430 = vmatprep.mubr.bf16.mxu0 0
  %431 = vmatmul.mubr.bf16.gmra.mxu0 %v315
  %v432 = vpop.f32.mrf.mxu0
  %v433 = vadd.f32 0.0, %v432
  %v434 = vpop.f32.mrf.mxu0
  %v435 = vpop.f32.mrf.mxu0
  %v436 = vadd.f32 0.0, %v435
  %v437 = vpop.f32.mrf.mxu0
  %438 = vmatprep.mubr.bf16.mxu0 0
  %439 = vmatmul.mubr.bf16.gmra.mxu0 %v318
  %v440 = vpop.f32.mrf.mxu0
  %v441 = vadd.f32 0.0, %v440
  %v442 = vpop.f32.mrf.mxu0
  %v443 = vpop.f32.mrf.mxu0
  %v444 = vadd.f32 0.0, %v443
  %v445 = vpop.f32.mrf.mxu0
  %446 = vmatprep.mubr.bf16.mxu0 0
  %447 = vmatmul.mubr.bf16.gmra.mxu0 %v321
  %v448 = vpop.f32.mrf.mxu0
  %v449 = vadd.f32 0.0, %v448
  %v450 = vpop.f32.mrf.mxu0
  %v451 = vpop.f32.mrf.mxu0
  %v452 = vadd.f32 0.0, %v451
  %v453 = vpop.f32.mrf.mxu0
  %454 = vmatprep.mubr.bf16.mxu0 0
  %455 = vmatmul.mubr.bf16.gmra.mxu0 %v324
  %v456 = vpop.f32.mrf.mxu0
  %v457 = vadd.f32 0.0, %v456
  %v458 = vpop.f32.mrf.mxu0
  %v459 = vpop.f32.mrf.mxu0
  %v460 = vadd.f32 0.0, %v459
  %v461 = vpop.f32.mrf.mxu0
  %462 = vmatprep.mubr.bf16.mxu0 0
  %463 = vmatmul.mubr.bf16.gmra.mxu0 %v327
  %v464 = vpop.f32.mrf.mxu0
  %v465 = vadd.f32 0.0, %v464
  %v466 = vpop.f32.mrf.mxu0
  %v467 = vpop.f32.mrf.mxu0
  %v468 = vadd.f32 0.0, %v467
  %v469 = vpop.f32.mrf.mxu0
  %470 = vmatprep.mubr.bf16.mxu0 0
  %471 = vmatmul.mubr.bf16.gmra.mxu0 %v330
  %v472 = vpop.f32.mrf.mxu0
  %v473 = vadd.f32 0.0, %v472
  %v474 = vpop.f32.mrf.mxu0
  %v475 = vpop.f32.mrf.mxu0
  %v476 = vadd.f32 0.0, %v475
  %v477 = vpop.f32.mrf.mxu0
  %478 = vmatprep.mubr.bf16.mxu0 0
  %479 = vmatmul.mubr.bf16.gmra.mxu0 %v333
  %v480 = vpop.f32.mrf.mxu0
  %v481 = vadd.f32 0.0, %v480
  %v482 = vpop.f32.mrf.mxu0
  %v483 = vpop.f32.mrf.mxu0
  %v484 = vadd.f32 0.0, %v483
  %v485 = vpop.f32.mrf.mxu0
  %486 = vmatprep.mubr.bf16.mxu0 0
  %487 = vmatmul.mubr.bf16.gmra.mxu0 %v336
  %v488 = vpop.f32.mrf.mxu0
  %v489 = vadd.f32 0.0, %v488
  %v490 = vpop.f32.mrf.mxu0
  %v491 = vpop.f32.mrf.mxu0
  %v492 = vadd.f32 0.0, %v491
  %v493 = vpop.f32.mrf.mxu0
  %494 = vmatprep.mubr.bf16.mxu0 0
  %495 = vmatmul.mubr.bf16.gmra.mxu0 %v339
  %v496 = vpop.f32.mrf.mxu0
  %v497 = vadd.f32 0.0, %v496
  %v498 = vpop.f32.mrf.mxu0
  %v499 = vpop.f32.mrf.mxu0
  %v500 = vadd.f32 0.0, %v499
  %v501 = vpop.f32.mrf.mxu0
  %502 = vmatprep.mubr.bf16.mxu0 0
  %503 = vmatmul.mubr.bf16.gmra.mxu0 %v342
  %v504 = vpop.f32.mrf.mxu0
  %v505 = vadd.f32 0.0, %v504
  %v506 = vpop.f32.mrf.mxu0
  %v507 = vpop.f32.mrf.mxu0
  %v508 = vadd.f32 0.0, %v507
  %v509 = vpop.f32.mrf.mxu0
  %510 = vmatprep.mubr.bf16.mxu0 0
  %511 = vmatmul.mubr.bf16.gmra.mxu0 %v345
  %v512 = vpop.f32.mrf.mxu0
  %v513 = vadd.f32 0.0, %v512
  %v514 = vpop.f32.mrf.mxu0
  %v515 = vpop.f32.mrf.mxu0
  %v516 = vadd.f32 0.0, %v515
  %v517 = vpop.f32.mrf.mxu0
  %518 = vmatprep.mubr.bf16.mxu0 0
  %519 = vmatmul.mubr.bf16.gmra.mxu0 %v348
  %v520 = vpop.f32.mrf.mxu0
  %v521 = vadd.f32 0.0, %v520
  %v522 = vpop.f32.mrf.mxu0
  %v523 = vpop.f32.mrf.mxu0
  %v524 = vadd.f32 0.0, %v523
  %v525 = vpop.f32.mrf.mxu0
  %526 = vmatprep.mubr.bf16.mxu0 0
  %527 = vmatmul.mubr.bf16.gmra.mxu0 %v351
  %v528 = vpop.f32.mrf.mxu0
  %v529 = vadd.f32 0.0, %v528
  %v530 = vpop.f32.mrf.mxu0
  %v531 = vpop.f32.mrf.mxu0
  %v532 = vadd.f32 0.0, %v531
  %v533 = vpop.f32.mrf.mxu0
  %534 = vmatprep.mubr.bf16.mxu0 0
  %535 = vmatmul.mubr.bf16.gmra.mxu0 %v354
  %v536 = vpop.f32.mrf.mxu0
  %v537 = vadd.f32 0.0, %v536
  %v538 = vpop.f32.mrf.mxu0
  %v539 = vpop.f32.mrf.mxu0
  %v540 = vadd.f32 0.0, %v539
  %v541 = vpop.f32.mrf.mxu0
  %542 = vmatprep.mubr.bf16.mxu0 0
  %543 = vmatmul.mubr.bf16.gmra.mxu0 %v357
  %v544 = vpop.f32.mrf.mxu0
  %v545 = vadd.f32 0.0, %v544
  %v546 = vpop.f32.mrf.mxu0
  %v547 = vpop.f32.mrf.mxu0
  %v548 = vadd.f32 0.0, %v547
  %v549 = vpop.f32.mrf.mxu0
  %550 = vmatprep.mubr.bf16.mxu0 0
  %551 = vmatmul.mubr.bf16.gmra.mxu0 %v360
  %v552 = vpop.f32.mrf.mxu0
  %v553 = vadd.f32 0.0, %v552
  %v554 = vpop.f32.mrf.mxu0
  %v555 = vpop.f32.mrf.mxu0
  %v556 = vadd.f32 0.0, %v555
  %v557 = vpop.f32.mrf.mxu0
  %558 = vmatprep.mubr.bf16.mxu0 0
  %559 = vmatmul.mubr.bf16.gmra.mxu0 %v363
  %v560 = vpop.f32.mrf.mxu0
  %v561 = vadd.f32 0.0, %v560
  %v562 = vpop.f32.mrf.mxu0
  %v563 = vpop.f32.mrf.mxu0
  %v564 = vadd.f32 0.0, %v563
  %v565 = vpop.f32.mrf.mxu0
  %566 = vmatprep.mubr.bf16.mxu0 0
  %567 = vmatmul.mubr.bf16.gmra.mxu0 %v366
  %v568 = vpop.f32.mrf.mxu0
  %v569 = vadd.f32 0.0, %v568
  %v570 = vpop.f32.mrf.mxu0
  %v571 = vpop.f32.mrf.mxu0
  %v572 = vadd.f32 0.0, %v571
  %v573 = vpop.f32.mrf.mxu0
  %574 = vmatprep.mubr.bf16.mxu0 0
  %575 = vmatmul.mubr.bf16.gmra.mxu0 %v369
  %v576 = vpop.f32.mrf.mxu0
  %v577 = vadd.f32 0.0, %v576
  %v578 = vpop.f32.mrf.mxu0
  %v579 = vpop.f32.mrf.mxu0
  %v580 = vadd.f32 0.0, %v579
  %v581 = vpop.f32.mrf.mxu0
  %582 = vmatprep.mubr.bf16.mxu0 0
  %583 = vmatmul.mubr.bf16.gmra.mxu0 %v372
  %v584 = vpop.f32.mrf.mxu0
  %v585 = vadd.f32 0.0, %v584
  %v586 = vpop.f32.mrf.mxu0
  %v587 = vpop.f32.mrf.mxu0
  %v588 = vadd.f32 0.0, %v587
  %v589 = vpop.f32.mrf.mxu0
  %590 = vmatprep.mubr.bf16.mxu0 0
  %591 = vmatmul.mubr.bf16.gmra.mxu0 %v375
  %v592 = vpop.f32.mrf.mxu0
  %v593 = vadd.f32 0.0, %v592
  %v594 = vpop.f32.mrf.mxu0
  %v595 = vpop.f32.mrf.mxu0
  %v596 = vadd.f32 0.0, %v595
  %v597 = vpop.f32.mrf.mxu0
  %598 = vmatprep.mubr.bf16.mxu0 0
  %599 = vmatmul.mubr.bf16.gmra.mxu0 %v378
  %v600 = vpop.f32.mrf.mxu0
  %v601 = vadd.f32 0.0, %v600
  %v602 = vpop.f32.mrf.mxu0
  %v603 = vpop.f32.mrf.mxu0
  %v604 = vadd.f32 0.0, %v603
  %v605 = vpop.f32.mrf.mxu0
  %606 = vmatprep.mubr.bf16.mxu0 0
  %607 = vmatmul.mubr.bf16.gmra.mxu0 %v381
  %v608 = vpop.f32.mrf.mxu0
  %v609 = vadd.f32 0.0, %v608
  %v610 = vpop.f32.mrf.mxu0
  %v611 = vpop.f32.mrf.mxu0
  %v612 = vadd.f32 0.0, %v611
  %v613 = vpop.f32.mrf.mxu0
  %614 = vmatprep.mubr.bf16.mxu0 0
  %615 = vmatmul.mubr.bf16.gmra.mxu0 %v384
  %v616 = vpop.f32.mrf.mxu0
  %v617 = vadd.f32 0.0, %v616
  %v618 = vpop.f32.mrf.mxu0
  %v619 = vpop.f32.mrf.mxu0
  %v620 = vpop.f32.mrf.mxu0
  %621 = vdwg.mxu0
  %v622 = vadd.f32 %v69, %v425
  %v623 = vadd.f32 %v70, %v428
  %v624 = vadd.f32 %v71, %v433
  %v625 = vadd.f32 %v72, %v436
  %v626 = vadd.f32 %v73, %v441
  %v627 = vadd.f32 %v74, %v444
  %v628 = vadd.f32 %v75, %v449
  %v629 = vadd.f32 %v76, %v452
  %v630 = vadd.f32 %v77, %v457
  %v631 = vadd.f32 %v78, %v460
  %v632 = vadd.f32 %v79, %v465
  %v633 = vadd.f32 %v80, %v468
  %v634 = vadd.f32 %v81, %v473
  %v635 = vadd.f32 %v82, %v476
  %v636 = vadd.f32 %v83, %v481
  %v637 = vadd.f32 %v84, %v484
  %v638 = vadd.f32 %v85, %v489
  %v639 = vadd.f32 %v86, %v492
  %v640 = vadd.f32 %v87, %v497
  %v641 = vadd.f32 %v88, %v500
  %v642 = vadd.f32 %v89, %v505
  %v643 = vadd.f32 %v90, %v508
  %v644 = vadd.f32 %v91, %v513
  %v645 = vadd.f32 %v92, %v516
  %v646 = vadd.f32 %v93, %v521
  %v647 = vadd.f32 %v94, %v524
  %v648 = vadd.f32 %v95, %v529
  %v649 = vadd.f32 %v96, %v532
  %v650 = vadd.f32 %v97, %v537
  %v651 = vadd.f32 %v98, %v540
  %v652 = vadd.f32 %v99, %v545
  %v653 = vadd.f32 %v100, %v548
  %v654 = vadd.f32 %v101, %v553
  %v655 = vadd.f32 %v102, %v556
  %v656 = vadd.f32 %v103, %v561
  %v657 = vadd.f32 %v104, %v564
  %v658 = vadd.f32 %v105, %v569
  %v659 = vadd.f32 %v106, %v572
  %v660 = vadd.f32 %v107, %v577
  %v661 = vadd.f32 %v108, %v580
  %v662 = vadd.f32 %v109, %v585
  %v663 = vadd.f32 %v110, %v588
  %v664 = vadd.f32 %v111, %v593
  %v665 = vadd.f32 %v112, %v596
  %v666 = vadd.f32 %v113, %v601
  %v667 = vadd.f32 %v114, %v604
  %v668 = vadd.f32 %v115, %v609
  %v669 = vadd.f32 %v116, %v612
  %v670 = vadd.f32 %v117, %v617
  %vm671 = vcmask 97280
  %672 = vst.msk [vmem:[#allocation2] sm:$0xff] %vm671, %v622
  %673 = vst.msk [vmem:[#allocation2 + $0x8] sm:$0xff] %vm671, %v623
  %674 = vst.msk [vmem:[#allocation2 + $0x10] sm:$0xff] %vm671, %v624
  %675 = vst.msk [vmem:[#allocation2 + $0x18] sm:$0xff] %vm671, %v625
  %676 = vst.msk [vmem:[#allocation2 + $0x20] sm:$0xff] %vm671, %v626
  %677 = vst.msk [vmem:[#allocation2 + $0x28] sm:$0xff] %vm671, %v627
  %678 = vst.msk [vmem:[#allocation2 + $0x30] sm:$0xff] %vm671, %v628
  %679 = vst.msk [vmem:[#allocation2 + $0x38] sm:$0xff] %vm671, %v629
  %680 = vst.msk [vmem:[#allocation2 + $0x40] sm:$0xff] %vm671, %v630
  %681 = vst.msk [vmem:[#allocation2 + $0x48] sm:$0xff] %vm671, %v631
  %682 = vst.msk [vmem:[#allocation2 + $0x50] sm:$0xff] %vm671, %v632
  %683 = vst.msk [vmem:[#allocation2 + $0x58] sm:$0xff] %vm671, %v633
  %684 = vst.msk [vmem:[#allocation2 + $0x60] sm:$0xff] %vm671, %v634
  %685 = vst.msk [vmem:[#allocation2 + $0x68] sm:$0xff] %vm671, %v635
  %686 = vst.msk [vmem:[#allocation2 + $0x70] sm:$0xff] %vm671, %v636
  %687 = vst.msk [vmem:[#allocation2 + $0x78] sm:$0xff] %vm671, %v637
  %688 = vst.msk [vmem:[#allocation2 + $0x80] sm:$0xff] %vm671, %v638
  %689 = vst.msk [vmem:[#allocation2 + $0x88] sm:$0xff] %vm671, %v639
  %690 = vst.msk [vmem:[#allocation2 + $0x90] sm:$0xff] %vm671, %v640
  %691 = vst.msk [vmem:[#allocation2 + $0x98] sm:$0xff] %vm671, %v641
  %692 = vst.msk [vmem:[#allocation2 + $0xa0] sm:$0xff] %vm671, %v642
  %693 = vst.msk [vmem:[#allocation2 + $0xa8] sm:$0xff] %vm671, %v643
  %694 = vst.msk [vmem:[#allocation2 + $0xb0] sm:$0xff] %vm671, %v644
  %695 = vst.msk [vmem:[#allocation2 + $0xb8] sm:$0xff] %vm671, %v645
  %696 = vst.msk [vmem:[#allocation2 + $0xc0] sm:$0xff] %vm671, %v646
  %697 = vst.msk [vmem:[#allocation2 + $0xc8] sm:$0xff] %vm671, %v647
  %698 = vst.msk [vmem:[#allocation2 + $0xd0] sm:$0xff] %vm671, %v648
  %699 = vst.msk [vmem:[#allocation2 + $0xd8] sm:$0xff] %vm671, %v649
  %700 = vst.msk [vmem:[#allocation2 + $0xe0] sm:$0xff] %vm671, %v650
  %701 = vst.msk [vmem:[#allocation2 + $0xe8] sm:$0xff] %vm671, %v651
  %702 = vst.msk [vmem:[#allocation2 + $0xf0] sm:$0xff] %vm671, %v652
  %703 = vst.msk [vmem:[#allocation2 + $0xf8] sm:$0xff] %vm671, %v653
  %704 = vst.msk [vmem:[#allocation2 + $0x100] sm:$0xff] %vm671, %v654
  %705 = vst.msk [vmem:[#allocation2 + $0x108] sm:$0xff] %vm671, %v655
  %706 = vst.msk [vmem:[#allocation2 + $0x110] sm:$0xff] %vm671, %v656
  %707 = vst.msk [vmem:[#allocation2 + $0x118] sm:$0xff] %vm671, %v657
  %708 = vst.msk [vmem:[#allocation2 + $0x120] sm:$0xff] %vm671, %v658
  %709 = vst.msk [vmem:[#allocation2 + $0x128] sm:$0xff] %vm671, %v659
  %710 = vst.msk [vmem:[#allocation2 + $0x130] sm:$0xff] %vm671, %v660
  %711 = vst.msk [vmem:[#allocation2 + $0x138] sm:$0xff] %vm671, %v661
  %712 = vst.msk [vmem:[#allocation2 + $0x140] sm:$0xff] %vm671, %v662
  %713 = vst.msk [vmem:[#allocation2 + $0x148] sm:$0xff] %vm671, %v663
  %714 = vst.msk [vmem:[#allocation2 + $0x150] sm:$0xff] %vm671, %v664
  %715 = vst.msk [vmem:[#allocation2 + $0x158] sm:$0xff] %vm671, %v665
  %716 = vst.msk [vmem:[#allocation2 + $0x160] sm:$0xff] %vm671, %v666
  %717 = vst.msk [vmem:[#allocation2 + $0x168] sm:$0xff] %vm671, %v667
  %718 = vst.msk [vmem:[#allocation2 + $0x170] sm:$0xff] %vm671, %v668
  %719 = vst.msk [vmem:[#allocation2 + $0x178] sm:$0xff] %vm671, %v669
  %720 = vst.msk [vmem:[#allocation2 + $0x180] sm:$0xff] %vm671, %v670
  // Predicated region
  $region18: #{yolo_forward.27} parent=0 // pred_check
    %p721 = pneg %p15
  $region19: #{yolo_forward.27} parent=0 // pred_check_branch
    %723 = sbr.rel (%p721) target = $region21
  $region20: #{yolo_forward.27} parent=0 // pred_region
    %v724 = vld [vmem:[#allocation2] sm:$0xff]
    %v725 = vld [vmem:[#allocation2 + $0x8] sm:$0xff]
    %v726 = vld [vmem:[#allocation2 + $0x10] sm:$0xff]
    %v727 = vld [vmem:[#allocation2 + $0x18] sm:$0xff]
    %v728 = vld [vmem:[#allocation2 + $0x20] sm:$0xff]
    %v729 = vld [vmem:[#allocation2 + $0x28] sm:$0xff]
    %v730 = vld [vmem:[#allocation2 + $0x30] sm:$0xff]
    %v731 = vld [vmem:[#allocation2 + $0x38] sm:$0xff]
    %v732 = vld [vmem:[#allocation2 + $0x40] sm:$0xff]
    %v733 = vld [vmem:[#allocation2 + $0x48] sm:$0xff]
    %v734 = vld [vmem:[#allocation2 + $0x50] sm:$0xff]
    %v735 = vld [vmem:[#allocation2 + $0x58] sm:$0xff]
    %v736 = vld [vmem:[#allocation2 + $0x60] sm:$0xff]
    %v737 = vld [vmem:[#allocation2 + $0x68] sm:$0xff]
    %v738 = vld [vmem:[#allocation2 + $0x70] sm:$0xff]
    %v739 = vld [vmem:[#allocation2 + $0x78] sm:$0xff]
    %v740 = vld [vmem:[#allocation2 + $0x80] sm:$0xff]
    %v741 = vld [vmem:[#allocation2 + $0x88] sm:$0xff]
    %v742 = vld [vmem:[#allocation2 + $0x90] sm:$0xff]
    %v743 = vld [vmem:[#allocation2 + $0x98] sm:$0xff]
    %v744 = vld [vmem:[#allocation2 + $0xa0] sm:$0xff]
    %v745 = vld [vmem:[#allocation2 + $0xa8] sm:$0xff]
    %v746 = vld [vmem:[#allocation2 + $0xb0] sm:$0xff]
    %v747 = vld [vmem:[#allocation2 + $0xb8] sm:$0xff]
    %v748 = vld [vmem:[#allocation2 + $0xc0] sm:$0xff]
    %v749 = vld [vmem:[#allocation2 + $0xc8] sm:$0xff]
    %v750 = vld [vmem:[#allocation2 + $0xd0] sm:$0xff]
    %v751 = vld [vmem:[#allocation2 + $0xd8] sm:$0xff]
    %v752 = vld [vmem:[#allocation2 + $0xe0] sm:$0xff]
    %v753 = vld [vmem:[#allocation2 + $0xe8] sm:$0xff]
    %v754 = vld [vmem:[#allocation2 + $0xf0] sm:$0xff]
    %v755 = vld [vmem:[#allocation2 + $0xf8] sm:$0xff]
    %v756 = vld [vmem:[#allocation2 + $0x100] sm:$0xff]
    %v757 = vld [vmem:[#allocation2 + $0x108] sm:$0xff]
    %v758 = vld [vmem:[#allocation2 + $0x110] sm:$0xff]
    %v759 = vld [vmem:[#allocation2 + $0x118] sm:$0xff]
    %v760 = vld [vmem:[#allocation2 + $0x120] sm:$0xff]
    %v761 = vld [vmem:[#allocation2 + $0x128] sm:$0xff]
    %v762 = vld [vmem:[#allocation2 + $0x130] sm:$0xff]
    %v763 = vld [vmem:[#allocation2 + $0x138] sm:$0xff]
    %v764 = vld [vmem:[#allocation2 + $0x140] sm:$0xff]
    %v765 = vld [vmem:[#allocation2 + $0x148] sm:$0xff]
    %v766 = vld [vmem:[#allocation2 + $0x150] sm:$0xff]
    %v767 = vld [vmem:[#allocation2 + $0x158] sm:$0xff]
    %v768 = vld [vmem:[#allocation2 + $0x160] sm:$0xff]
    %v769 = vld [vmem:[#allocation2 + $0x168] sm:$0xff]
    %v770 = vld [vmem:[#allocation2 + $0x170] sm:$0xff]
    %v771 = vld [vmem:[#allocation2 + $0x178] sm:$0xff]
    %v772 = vld [vmem:[#allocation2 + $0x180] sm:$0xff]
    %v773 = vld [vmem:[%s2] sm:$0x1]
    %v775 = vlaneseq
    %v776 = vshrl.u32 %v775, 7
    %v777 = vsub.s32 0, %v776
    %v778 = vrot.slane %v773, %v777
    %v780 = vadd.f32 %v724, %v778
    %v781 = vadd.f32 %v725, %v778
    %v782 = vadd.f32 %v726, %v778
    %v783 = vadd.f32 %v727, %v778
    %v784 = vadd.f32 %v728, %v778
    %v785 = vadd.f32 %v729, %v778
    %v786 = vadd.f32 %v730, %v778
    %v787 = vadd.f32 %v731, %v778
    %v788 = vadd.f32 %v732, %v778
    %v789 = vadd.f32 %v733, %v778
    %v790 = vadd.f32 %v734, %v778
    %v791 = vadd.f32 %v735, %v778
    %v792 = vadd.f32 %v736, %v778
    %v793 = vadd.f32 %v737, %v778
    %v794 = vadd.f32 %v738, %v778
    %v795 = vadd.f32 %v739, %v778
    %v796 = vadd.f32 %v740, %v778
    %v797 = vadd.f32 %v741, %v778
    %v798 = vadd.f32 %v742, %v778
    %v799 = vadd.f32 %v743, %v778
    %v800 = vadd.f32 %v744, %v778
    %v801 = vadd.f32 %v745, %v778
    %v802 = vadd.f32 %v746, %v778
    %v803 = vadd.f32 %v747, %v778
    %v804 = vadd.f32 %v748, %v778
    %v805 = vadd.f32 %v749, %v778
    %v806 = vadd.f32 %v750, %v778
    %v807 = vadd.f32 %v751, %v778
    %v808 = vadd.f32 %v752, %v778
    %v809 = vadd.f32 %v753, %v778
    %v810 = vadd.f32 %v754, %v778
    %v811 = vadd.f32 %v755, %v778
    %v812 = vadd.f32 %v756, %v778
    %v813 = vadd.f32 %v757, %v778
    %v814 = vadd.f32 %v758, %v778
    %v815 = vadd.f32 %v759, %v778
    %v816 = vadd.f32 %v760, %v778
    %v817 = vadd.f32 %v761, %v778
    %v818 = vadd.f32 %v762, %v778
    %v819 = vadd.f32 %v763, %v778
    %v820 = vadd.f32 %v764, %v778
    %v821 = vadd.f32 %v765, %v778
    %v822 = vadd.f32 %v766, %v778
    %v823 = vadd.f32 %v767, %v778
    %v824 = vadd.f32 %v768, %v778
    %v825 = vadd.f32 %v769, %v778
    %v826 = vadd.f32 %v770, %v778
    %v827 = vadd.f32 %v771, %v778
    %v828 = vadd.f32 %v772, %v778
    %vm829 = vcmp.gt.f32.partialorder %v780, 0.0
    %vm830 = vcmp.gt.f32.partialorder %v781, 0.0
    %vm831 = vcmp.gt.f32.partialorder %v782, 0.0
    %vm832 = vcmp.gt.f32.partialorder %v783, 0.0
    %vm833 = vcmp.gt.f32.partialorder %v784, 0.0
    %vm834 = vcmp.gt.f32.partialorder %v785, 0.0
    %vm835 = vcmp.gt.f32.partialorder %v786, 0.0
    %vm836 = vcmp.gt.f32.partialorder %v787, 0.0
    %vm837 = vcmp.gt.f32.partialorder %v788, 0.0
    %vm838 = vcmp.gt.f32.partialorder %v789, 0.0
    %vm839 = vcmp.gt.f32.partialorder %v790, 0.0
    %vm840 = vcmp.gt.f32.partialorder %v791, 0.0
    %vm841 = vcmp.gt.f32.partialorder %v792, 0.0
    %vm842 = vcmp.gt.f32.partialorder %v793, 0.0
    %vm843 = vcmp.gt.f32.partialorder %v794, 0.0
    %vm844 = vcmp.gt.f32.partialorder %v795, 0.0
    %vm845 = vcmp.gt.f32.partialorder %v796, 0.0
    %vm846 = vcmp.gt.f32.partialorder %v797, 0.0
    %vm847 = vcmp.gt.f32.partialorder %v798, 0.0
    %vm848 = vcmp.gt.f32.partialorder %v799, 0.0
    %vm849 = vcmp.gt.f32.partialorder %v800, 0.0
    %vm850 = vcmp.gt.f32.partialorder %v801, 0.0
    %vm851 = vcmp.gt.f32.partialorder %v802, 0.0
    %vm852 = vcmp.gt.f32.partialorder %v803, 0.0
    %vm853 = vcmp.gt.f32.partialorder %v804, 0.0
    %vm854 = vcmp.gt.f32.partialorder %v805, 0.0
    %vm855 = vcmp.gt.f32.partialorder %v806, 0.0
    %vm856 = vcmp.gt.f32.partialorder %v807, 0.0
    %vm857 = vcmp.gt.f32.partialorder %v808, 0.0
    %vm858 = vcmp.gt.f32.partialorder %v809, 0.0
    %vm859 = vcmp.gt.f32.partialorder %v810, 0.0
    %vm860 = vcmp.gt.f32.partialorder %v811, 0.0
    %vm861 = vcmp.gt.f32.partialorder %v812, 0.0
    %vm862 = vcmp.gt.f32.partialorder %v813, 0.0
    %vm863 = vcmp.gt.f32.partialorder %v814, 0.0
    %vm864 = vcmp.gt.f32.partialorder %v815, 0.0
    %vm865 = vcmp.gt.f32.partialorder %v816, 0.0
    %vm866 = vcmp.gt.f32.partialorder %v817, 0.0
    %vm867 = vcmp.gt.f32.partialorder %v818, 0.0
    %vm868 = vcmp.gt.f32.partialorder %v819, 0.0
    %vm869 = vcmp.gt.f32.partialorder %v820, 0.0
    %vm870 = vcmp.gt.f32.partialorder %v821, 0.0
    %vm871 = vcmp.gt.f32.partialorder %v822, 0.0
    %vm872 = vcmp.gt.f32.partialorder %v823, 0.0
    %vm873 = vcmp.gt.f32.partialorder %v824, 0.0
    %vm874 = vcmp.gt.f32.partialorder %v825, 0.0
    %vm875 = vcmp.gt.f32.partialorder %v826, 0.0
    %vm876 = vcmp.gt.f32.partialorder %v827, 0.0
    %vm877 = vcmp.gt.f32.partialorder %v828, 0.0
    %v878 = vmul.f32 %v780, 0.01
    %v879 = vmul.f32 %v781, 0.01
    %v880 = vmul.f32 %v782, 0.01
    %v881 = vmul.f32 %v783, 0.01
    %v882 = vmul.f32 %v784, 0.01
    %v883 = vmul.f32 %v785, 0.01
    %v884 = vmul.f32 %v786, 0.01
    %v885 = vmul.f32 %v787, 0.01
    %v886 = vmul.f32 %v788, 0.01
    %v887 = vmul.f32 %v789, 0.01
    %v888 = vmul.f32 %v790, 0.01
    %v889 = vmul.f32 %v791, 0.01
    %v890 = vmul.f32 %v792, 0.01
    %v891 = vmul.f32 %v793, 0.01
    %v892 = vmul.f32 %v794, 0.01
    %v893 = vmul.f32 %v795, 0.01
    %v894 = vmul.f32 %v796, 0.01
    %v895 = vmul.f32 %v797, 0.01
    %v896 = vmul.f32 %v798, 0.01
    %v897 = vmul.f32 %v799, 0.01
    %v898 = vmul.f32 %v800, 0.01
    %v899 = vmul.f32 %v801, 0.01
    %v900 = vmul.f32 %v802, 0.01
    %v901 = vmul.f32 %v803, 0.01
    %v902 = vmul.f32 %v804, 0.01
    %v903 = vmul.f32 %v805, 0.01
    %v904 = vmul.f32 %v806, 0.01
    %v905 = vmul.f32 %v807, 0.01
    %v906 = vmul.f32 %v808, 0.01
    %v907 = vmul.f32 %v809, 0.01
    %v908 = vmul.f32 %v810, 0.01
    %v909 = vmul.f32 %v811, 0.01
    %v910 = vmul.f32 %v812, 0.01
    %v911 = vmul.f32 %v813, 0.01
    %v912 = vmul.f32 %v814, 0.01
    %v913 = vmul.f32 %v815, 0.01
    %v914 = vmul.f32 %v816, 0.01
    %v915 = vmul.f32 %v817, 0.01
    %v916 = vmul.f32 %v818, 0.01
    %v917 = vmul.f32 %v819, 0.01
    %v918 = vmul.f32 %v820, 0.01
    %v919 = vmul.f32 %v821, 0.01
    %v920 = vmul.f32 %v822, 0.01
    %v921 = vmul.f32 %v823, 0.01
    %v922 = vmul.f32 %v824, 0.01
    %v923 = vmul.f32 %v825, 0.01
    %v924 = vmul.f32 %v826, 0.01
    %v925 = vmul.f32 %v827, 0.01
    %v926 = vmul.f32 %v828, 0.01
    %v927 = vsel %vm829, %v780, %v878
    %v928 = vsel %vm830, %v781, %v879
    %v929 = vsel %vm831, %v782, %v880
    %v930 = vsel %vm832, %v783, %v881
    %v931 = vsel %vm833, %v784, %v882
    %v932 = vsel %vm834, %v785, %v883
    %v933 = vsel %vm835, %v786, %v884
    %v934 = vsel %vm836, %v787, %v885
    %v935 = vsel %vm837, %v788, %v886
    %v936 = vsel %vm838, %v789, %v887
    %v937 = vsel %vm839, %v790, %v888
    %v938 = vsel %vm840, %v791, %v889
    %v939 = vsel %vm841, %v792, %v890
    %v940 = vsel %vm842, %v793, %v891
    %v941 = vsel %vm843, %v794, %v892
    %v942 = vsel %vm844, %v795, %v893
    %v943 = vsel %vm845, %v796, %v894
    %v944 = vsel %vm846, %v797, %v895
    %v945 = vsel %vm847, %v798, %v896
    %v946 = vsel %vm848, %v799, %v897
    %v947 = vsel %vm849, %v800, %v898
    %v948 = vsel %vm850, %v801, %v899
    %v949 = vsel %vm851, %v802, %v900
    %v950 = vsel %vm852, %v803, %v901
    %v951 = vsel %vm853, %v804, %v902
    %v952 = vsel %vm854, %v805, %v903
    %v953 = vsel %vm855, %v806, %v904
    %v954 = vsel %vm856, %v807, %v905
    %v955 = vsel %vm857, %v808, %v906
    %v956 = vsel %vm858, %v809, %v907
    %v957 = vsel %vm859, %v810, %v908
    %v958 = vsel %vm860, %v811, %v909
    %v959 = vsel %vm861, %v812, %v910
    %v960 = vsel %vm862, %v813, %v911
    %v961 = vsel %vm863, %v814, %v912
    %v962 = vsel %vm864, %v815, %v913
    %v963 = vsel %vm865, %v816, %v914
    %v964 = vsel %vm866, %v817, %v915
    %v965 = vsel %vm867, %v818, %v916
    %v966 = vsel %vm868, %v819, %v917
    %v967 = vsel %vm869, %v820, %v918
    %v968 = vsel %vm870, %v821, %v919
    %v969 = vsel %vm871, %v822, %v920
    %v970 = vsel %vm872, %v823, %v921
    %v971 = vsel %vm873, %v824, %v922
    %v972 = vsel %vm874, %v825, %v923
    %v973 = vsel %vm875, %v826, %v924
    %v974 = vsel %vm876, %v827, %v925
    %v975 = vsel %vm877, %v828, %v926
    %v976 = vpack.c.bf16 %v928, %v927
    %v977 = vpack.c.bf16 %v930, %v929
    %v978 = vpack.c.bf16 %v932, %v931
    %v979 = vpack.c.bf16 %v934, %v933
    %v980 = vpack.c.bf16 %v936, %v935
    %v981 = vpack.c.bf16 %v938, %v937
    %v982 = vpack.c.bf16 %v940, %v939
    %v983 = vpack.c.bf16 %v942, %v941
    %v984 = vpack.c.bf16 %v944, %v943
    %v985 = vpack.c.bf16 %v946, %v945
    %v986 = vpack.c.bf16 %v948, %v947
    %v987 = vpack.c.bf16 %v950, %v949
    %v988 = vpack.c.bf16 %v952, %v951
    %v989 = vpack.c.bf16 %v954, %v953
    %v990 = vpack.c.bf16 %v956, %v955
    %v991 = vpack.c.bf16 %v958, %v957
    %v992 = vpack.c.bf16 %v960, %v959
    %v993 = vpack.c.bf16 %v962, %v961
    %v994 = vpack.c.bf16 %v964, %v963
    %v995 = vpack.c.bf16 %v966, %v965
    %v996 = vpack.c.bf16 %v968, %v967
    %v997 = vpack.c.bf16 %v970, %v969
    %v998 = vpack.c.bf16 %v972, %v971
    %v999 = vpack.c.bf16 %v974, %v973
    %v1000 = vpack.c.bf16 %v975, %v975
    %v1026 = vunpack.c.l.b16 %v976
    %v1027 = vunpack.c.h.b16 %v976
    %v1028 = vunpack.c.l.b16 %v977
    %v1029 = vunpack.c.h.b16 %v977
    %v1030 = vunpack.c.l.b16 %v978
    %v1031 = vunpack.c.h.b16 %v978
    %v1032 = vunpack.c.l.b16 %v979
    %v1033 = vunpack.c.h.b16 %v979
    %v1034 = vunpack.c.l.b16 %v980
    %v1035 = vunpack.c.h.b16 %v980
    %v1036 = vunpack.c.l.b16 %v981
    %v1037 = vunpack.c.h.b16 %v981
    %v1038 = vunpack.c.l.b16 %v982
    %v1039 = vunpack.c.h.b16 %v982
    %v1040 = vunpack.c.l.b16 %v983
    %v1041 = vunpack.c.h.b16 %v983
    %v1042 = vunpack.c.l.b16 %v984
    %v1043 = vunpack.c.h.b16 %v984
    %v1044 = vunpack.c.l.b16 %v985
    %v1045 = vunpack.c.h.b16 %v985
    %v1046 = vunpack.c.l.b16 %v986
    %v1047 = vunpack.c.h.b16 %v986
    %v1048 = vunpack.c.l.b16 %v987
    %v1049 = vunpack.c.h.b16 %v987
    %v1050 = vunpack.c.l.b16 %v988
    %v1051 = vunpack.c.h.b16 %v988
    %v1052 = vunpack.c.l.b16 %v989
    %v1053 = vunpack.c.h.b16 %v989
    %v1054 = vunpack.c.l.b16 %v990
    %v1055 = vunpack.c.h.b16 %v990
    %v1056 = vunpack.c.l.b16 %v991
    %v1057 = vunpack.c.h.b16 %v991
    %v1058 = vunpack.c.l.b16 %v992
    %v1059 = vunpack.c.h.b16 %v992
    %v1060 = vunpack.c.l.b16 %v993
    %v1061 = vunpack.c.h.b16 %v993
    %v1062 = vunpack.c.l.b16 %v994
    %v1063 = vunpack.c.h.b16 %v994
    %v1064 = vunpack.c.l.b16 %v995
    %v1065 = vunpack.c.h.b16 %v995
    %v1066 = vunpack.c.l.b16 %v996
    %v1067 = vunpack.c.h.b16 %v996
    %v1068 = vunpack.c.l.b16 %v997
    %v1069 = vunpack.c.h.b16 %v997
    %v1070 = vunpack.c.l.b16 %v998
    %v1071 = vunpack.c.h.b16 %v998
    %v1072 = vunpack.c.l.b16 %v999
    %v1073 = vunpack.c.h.b16 %v999
    %v1074 = vunpack.c.l.b16 %v1000
    %v1075 = vpack.c.b16 %v1026, %v1026
    %v1076 = vpack.c.b16 %v1027, %v1027
    %v1077 = vpack.c.b16 %v1028, %v1028
    %v1078 = vpack.c.b16 %v1029, %v1029
    %v1079 = vpack.c.b16 %v1030, %v1030
    %v1080 = vpack.c.b16 %v1031, %v1031
    %v1081 = vpack.c.b16 %v1032, %v1032
    %v1082 = vpack.c.b16 %v1033, %v1033
    %v1083 = vpack.c.b16 %v1034, %v1034
    %v1084 = vpack.c.b16 %v1035, %v1035
    %v1085 = vpack.c.b16 %v1036, %v1036
    %v1086 = vpack.c.b16 %v1037, %v1037
    %v1087 = vpack.c.b16 %v1038, %v1038
    %v1088 = vpack.c.b16 %v1039, %v1039
    %v1089 = vpack.c.b16 %v1040, %v1040
    %v1090 = vpack.c.b16 %v1041, %v1041
    %v1091 = vpack.c.b16 %v1042, %v1042
    %v1092 = vpack.c.b16 %v1043, %v1043
    %v1093 = vpack.c.b16 %v1044, %v1044
    %v1094 = vpack.c.b16 %v1045, %v1045
    %v1095 = vpack.c.b16 %v1046, %v1046
    %v1096 = vpack.c.b16 %v1047, %v1047
    %v1097 = vpack.c.b16 %v1048, %v1048
    %v1098 = vpack.c.b16 %v1049, %v1049
    %v1099 = vpack.c.b16 %v1050, %v1050
    %v1100 = vpack.c.b16 %v1051, %v1051
    %v1101 = vpack.c.b16 %v1052, %v1052
    %v1102 = vpack.c.b16 %v1053, %v1053
    %v1103 = vpack.c.b16 %v1054, %v1054
    %v1104 = vpack.c.b16 %v1055, %v1055
    %v1105 = vpack.c.b16 %v1056, %v1056
    %v1106 = vpack.c.b16 %v1057, %v1057
    %v1107 = vpack.c.b16 %v1058, %v1058
    %v1108 = vpack.c.b16 %v1059, %v1059
    %v1109 = vpack.c.b16 %v1060, %v1060
    %v1110 = vpack.c.b16 %v1061, %v1061
    %v1111 = vpack.c.b16 %v1062, %v1062
    %v1112 = vpack.c.b16 %v1063, %v1063
    %v1113 = vpack.c.b16 %v1064, %v1064
    %v1114 = vpack.c.b16 %v1065, %v1065
    %v1115 = vpack.c.b16 %v1066, %v1066
    %v1116 = vpack.c.b16 %v1067, %v1067
    %v1117 = vpack.c.b16 %v1068, %v1068
    %v1118 = vpack.c.b16 %v1069, %v1069
    %v1119 = vpack.c.b16 %v1070, %v1070
    %v1120 = vpack.c.b16 %v1071, %v1071
    %v1121 = vpack.c.b16 %v1072, %v1072
    %v1122 = vpack.c.b16 %v1073, %v1073
    %v1123 = vpack.c.b16 %v1074, %v1074
    %vm1173 = vcmask 93184
    %1174 = vst.msk [vmem:[%s3] sm:$0xf] %vm1173, %v1075
    %1175 = vst.msk [vmem:[%s3 + $0x4] sm:$0xf] %vm1173, %v1076
    %1176 = vst.msk [vmem:[%s3 + $0x8] sm:$0xf] %vm1173, %v1077
    %1177 = vst.msk [vmem:[%s3 + $0xc] sm:$0xf] %vm1173, %v1078
    %1178 = vst.msk [vmem:[%s3 + $0x10] sm:$0xf] %vm1173, %v1079
    %1179 = vst.msk [vmem:[%s3 + $0x14] sm:$0xf] %vm1173, %v1080
    %1180 = vst.msk [vmem:[%s3 + $0x18] sm:$0xf] %vm1173, %v1081
    %1181 = vst.msk [vmem:[%s3 + $0x1c] sm:$0xf] %vm1173, %v1082
    %1182 = vst.msk [vmem:[%s3 + $0x20] sm:$0xf] %vm1173, %v1083
    %1183 = vst.msk [vmem:[%s3 + $0x24] sm:$0xf] %vm1173, %v1084
    %1184 = vst.msk [vmem:[%s3 + $0x28] sm:$0xf] %vm1173, %v1085
    %1185 = vst.msk [vmem:[%s3 + $0x2c] sm:$0xf] %vm1173, %v1086
    %1186 = vst.msk [vmem:[%s3 + $0x30] sm:$0xf] %vm1173, %v1087
    %1187 = vst.msk [vmem:[%s3 + $0x34] sm:$0xf] %vm1173, %v1088
    %1188 = vst.msk [vmem:[%s3 + $0x38] sm:$0xf] %vm1173, %v1089
    %1189 = vst.msk [vmem:[%s3 + $0x3c] sm:$0xf] %vm1173, %v1090
    %1190 = vst.msk [vmem:[%s3 + $0x40] sm:$0xf] %vm1173, %v1091
    %1191 = vst.msk [vmem:[%s3 + $0x44] sm:$0xf] %vm1173, %v1092
    %1192 = vst.msk [vmem:[%s3 + $0x48] sm:$0xf] %vm1173, %v1093
    %1193 = vst.msk [vmem:[%s3 + $0x4c] sm:$0xf] %vm1173, %v1094
    %1194 = vst.msk [vmem:[%s3 + $0x50] sm:$0xf] %vm1173, %v1095
    %1195 = vst.msk [vmem:[%s3 + $0x54] sm:$0xf] %vm1173, %v1096
    %1196 = vst.msk [vmem:[%s3 + $0x58] sm:$0xf] %vm1173, %v1097
    %1197 = vst.msk [vmem:[%s3 + $0x5c] sm:$0xf] %vm1173, %v1098
    %1198 = vst.msk [vmem:[%s3 + $0x60] sm:$0xf] %vm1173, %v1099
    %1199 = vst.msk [vmem:[%s3 + $0x64] sm:$0xf] %vm1173, %v1100
    %1200 = vst.msk [vmem:[%s3 + $0x68] sm:$0xf] %vm1173, %v1101
    %1201 = vst.msk [vmem:[%s3 + $0x6c] sm:$0xf] %vm1173, %v1102
    %1202 = vst.msk [vmem:[%s3 + $0x70] sm:$0xf] %vm1173, %v1103
    %1203 = vst.msk [vmem:[%s3 + $0x74] sm:$0xf] %vm1173, %v1104
    %1204 = vst.msk [vmem:[%s3 + $0x78] sm:$0xf] %vm1173, %v1105
    %1205 = vst.msk [vmem:[%s3 + $0x7c] sm:$0xf] %vm1173, %v1106
    %1206 = vst.msk [vmem:[%s3 + $0x80] sm:$0xf] %vm1173, %v1107
    %1207 = vst.msk [vmem:[%s3 + $0x84] sm:$0xf] %vm1173, %v1108
    %1208 = vst.msk [vmem:[%s3 + $0x88] sm:$0xf] %vm1173, %v1109
    %1209 = vst.msk [vmem:[%s3 + $0x8c] sm:$0xf] %vm1173, %v1110
    %1210 = vst.msk [vmem:[%s3 + $0x90] sm:$0xf] %vm1173, %v1111
    %1211 = vst.msk [vmem:[%s3 + $0x94] sm:$0xf] %vm1173, %v1112
    %1212 = vst.msk [vmem:[%s3 + $0x98] sm:$0xf] %vm1173, %v1113
    %1213 = vst.msk [vmem:[%s3 + $0x9c] sm:$0xf] %vm1173, %v1114
    %1214 = vst.msk [vmem:[%s3 + $0xa0] sm:$0xf] %vm1173, %v1115
    %1215 = vst.msk [vmem:[%s3 + $0xa4] sm:$0xf] %vm1173, %v1116
    %1216 = vst.msk [vmem:[%s3 + $0xa8] sm:$0xf] %vm1173, %v1117
    %1217 = vst.msk [vmem:[%s3 + $0xac] sm:$0xf] %vm1173, %v1118
    %1218 = vst.msk [vmem:[%s3 + $0xb0] sm:$0xf] %vm1173, %v1119
    %1219 = vst.msk [vmem:[%s3 + $0xb4] sm:$0xf] %vm1173, %v1120
    %1220 = vst.msk [vmem:[%s3 + $0xb8] sm:$0xf] %vm1173, %v1121
    %1221 = vst.msk [vmem:[%s3 + $0xbc] sm:$0xf] %vm1173, %v1122
    %1222 = vst.msk [vmem:[%s3 + $0xc0] sm:$0xf] %vm1173, %v1123
  $region21: #{yolo_forward.27} parent=0 // pred_fallthru
    _
  // Predicated region
  $region22: #{yolo_forward.27} parent=0 // pred_check
    _
  $region23: #{yolo_forward.27} parent=0 // pred_check_branch
    %1224 = sbr.rel (0) target = $region25
  $region24: #{yolo_forward.27} parent=0 // pred_region
    _
  $region25: #{yolo_forward.27} parent=0 // pred_fallthru
    _
  // Predicated region
  $region26: #{yolo_forward.27} parent=0 // pred_check
    _
  $region27: #{yolo_forward.27} parent=0 // pred_check_branch
    %1226 = sbr.rel (0) target = $region29
  $region28: #{yolo_forward.27} parent=0 // pred_region
    _
  $region29: #{yolo_forward.27} parent=0 // pred_fallthru
    _

// kernel: yolo_forward.28
$region0: #{yolo_forward.28}
  #allocation0 [shape = 'u32[]', space=smem, size = 0x4, offset = 0x4, fixed_abs, tag = 'smem constant byte address 0x4 - core index']
  #allocation1 [shape = 'u32[144,128]{1,0:T(1,128)}', space=vmem, size = 0x12000, scoped, tag = 'internal scratch']
  #allocation2 [shape = 'f32[128,8]{1,0:T(8,128)}', space=vmem, size = 0x10000, scoped, tag = 'scratch operand']
  %s0 = inlined_call_operand.vmem [shape: bf16[128,12], index: 0, kind: input, shape index: {}]
  %s1 = inlined_call_operand.vmem [shape: bf16[12,8], index: 1, kind: input, shape index: {}]
  %s2 = inlined_call_operand.vmem [shape: f32[1,8], index: 2, kind: input, shape index: {}]
  %s3 = inlined_call_operand.vmem [shape: bf16[128,8], index: 3, kind: output, shape index: {}]
  %s4 = sld [smem:[#allocation0]]
  $region30: #{yolo_forward.28} parent=0
    _
  %s6 = ssub.s32 1, %s4
  %s7 = scalar_select 0, %s6, %s4
  // Predicated region
  $region2: #{yolo_forward.28} parent=0 // pred_check
    _
  $region3: #{yolo_forward.28} parent=0 // pred_check_branch
    %9 = sbr.rel (0) target = $region5
  $region4: #{yolo_forward.28} parent=0 // pred_region
    _
  $region5: #{yolo_forward.28} parent=0 // pred_fallthru
    _
  // Predicated region
  $region6: #{yolo_forward.28} parent=0 // pred_check
    _
  $region7: #{yolo_forward.28} parent=0 // pred_check_branch
    %11 = sbr.rel (0) target = $region9
  $region8: #{yolo_forward.28} parent=0 // pred_region
    _
  $region9: #{yolo_forward.28} parent=0 // pred_fallthru
    _
  // Predicated region
  $region10: #{yolo_forward.28} parent=0 // pred_check
    _
  $region11: #{yolo_forward.28} parent=0 // pred_check_branch
    %13 = sbr.rel (0) target = $region13
  $region12: #{yolo_forward.28} parent=0 // pred_region
    _
  $region13: #{yolo_forward.28} parent=0 // pred_fallthru
    _
  %p15 = scmp.eq.s32.totalorder 0, 0
  // Predicated region
  $region14: #{yolo_forward.28} parent=0 // pred_check
    %p16 = pneg %p15
  $region15: #{yolo_forward.28} parent=0 // pred_check_branch
    %18 = sbr.rel (%p16) target = $region17
  $region16: #{yolo_forward.28} parent=0 // pred_region
    %vm19 = vcmask 64512
    %20 = vst.msk [vmem:[#allocation2] sm:$0xff] %vm19, 0.0
    %21 = vst.msk [vmem:[#allocation2 + $0x8] sm:$0xff] %vm19, 0.0
    %22 = vst.msk [vmem:[#allocation2 + $0x10] sm:$0xff] %vm19, 0.0
    %23 = vst.msk [vmem:[#allocation2 + $0x18] sm:$0xff] %vm19, 0.0
    %24 = vst.msk [vmem:[#allocation2 + $0x20] sm:$0xff] %vm19, 0.0
    %25 = vst.msk [vmem:[#allocation2 + $0x28] sm:$0xff] %vm19, 0.0
    %26 = vst.msk [vmem:[#allocation2 + $0x30] sm:$0xff] %vm19, 0.0
    %27 = vst.msk [vmem:[#allocation2 + $0x38] sm:$0xff] %vm19, 0.0
    %28 = vst.msk [vmem:[#allocation2 + $0x40] sm:$0xff] %vm19, 0.0
    %29 = vst.msk [vmem:[#allocation2 + $0x48] sm:$0xff] %vm19, 0.0
    %30 = vst.msk [vmem:[#allocation2 + $0x50] sm:$0xff] %vm19, 0.0
    %31 = vst.msk [vmem:[#allocation2 + $0x58] sm:$0xff] %vm19, 0.0
    %32 = vst.msk [vmem:[#allocation2 + $0x60] sm:$0xff] %vm19, 0.0
    %33 = vst.msk [vmem:[#allocation2 + $0x68] sm:$0xff] %vm19, 0.0
    %34 = vst.msk [vmem:[#allocation2 + $0x70] sm:$0xff] %vm19, 0.0
    %35 = vst.msk [vmem:[#allocation2 + $0x78] sm:$0xff] %vm19, 0.0
  $region17: #{yolo_forward.28} parent=0 // pred_fallthru
    _
  %v36 = vld [vmem:[#allocation2] sm:$0xff]
  %v37 = vld [vmem:[#allocation2 + $0x8] sm:$0xff]
  %v38 = vld [vmem:[#allocation2 + $0x10] sm:$0xff]
  %v39 = vld [vmem:[#allocation2 + $0x18] sm:$0xff]
  %v40 = vld [vmem:[#allocation2 + $0x20] sm:$0xff]
  %v41 = vld [vmem:[#allocation2 + $0x28] sm:$0xff]
  %v42 = vld [vmem:[#allocation2 + $0x30] sm:$0xff]
  %v43 = vld [vmem:[#allocation2 + $0x38] sm:$0xff]
  %v44 = vld [vmem:[#allocation2 + $0x40] sm:$0xff]
  %v45 = vld [vmem:[#allocation2 + $0x48] sm:$0xff]
  %v46 = vld [vmem:[#allocation2 + $0x50] sm:$0xff]
  %v47 = vld [vmem:[#allocation2 + $0x58] sm:$0xff]
  %v48 = vld [vmem:[#allocation2 + $0x60] sm:$0xff]
  %v49 = vld [vmem:[#allocation2 + $0x68] sm:$0xff]
  %v50 = vld [vmem:[#allocation2 + $0x70] sm:$0xff]
  %v51 = vld [vmem:[#allocation2 + $0x78] sm:$0xff]
  %v52 = vld [vmem:[%s0] sm:$0xf]
  %v53 = vld [vmem:[%s0 + $0x4] sm:$0xf]
  %v54 = vld [vmem:[%s0 + $0x8] sm:$0xf]
  %v55 = vld [vmem:[%s0 + $0xc] sm:$0xf]
  %v56 = vld [vmem:[%s0 + $0x10] sm:$0xf]
  %v57 = vld [vmem:[%s0 + $0x14] sm:$0xf]
  %v58 = vld [vmem:[%s0 + $0x18] sm:$0xf]
  %v59 = vld [vmem:[%s0 + $0x1c] sm:$0xf]
  %v60 = vld [vmem:[%s0 + $0x20] sm:$0xf]
  %v61 = vld [vmem:[%s0 + $0x24] sm:$0xf]
  %v62 = vld [vmem:[%s0 + $0x28] sm:$0xf]
  %v63 = vld [vmem:[%s0 + $0x2c] sm:$0xf]
  %v64 = vld [vmem:[%s0 + $0x30] sm:$0xf]
  %v65 = vld [vmem:[%s0 + $0x34] sm:$0xf]
  %v66 = vld [vmem:[%s0 + $0x38] sm:$0xf]
  %v67 = vld [vmem:[%s0 + $0x3c] sm:$0xf]
  %v68 = vld [vmem:[%s1] sm:$0xf]
  %v69 = vld [vmem:[%s1 + $0x4] sm:$0x3]
  %v86 = vunpack.c.l.b16 %v52
  %v87 = vunpack.c.l.b16 %v53
  %v88 = vunpack.c.l.b16 %v54
  %v89 = vunpack.c.l.b16 %v55
  %v90 = vunpack.c.l.b16 %v56
  %v91 = vunpack.c.l.b16 %v57
  %v92 = vunpack.c.l.b16 %v58
  %v93 = vunpack.c.l.b16 %v59
  %v94 = vunpack.c.l.b16 %v60
  %v95 = vunpack.c.l.b16 %v61
  %v96 = vunpack.c.l.b16 %v62
  %v97 = vunpack.c.l.b16 %v63
  %v98 = vunpack.c.l.b16 %v64
  %v99 = vunpack.c.l.b16 %v65
  %v100 = vunpack.c.l.b16 %v66
  %v101 = vunpack.c.l.b16 %v67
  %v102 = vpack.c.b16 %v87, %v86
  %v103 = vpack.c.b16 %v89, %v88
  %v104 = vpack.c.b16 %v91, %v90
  %v105 = vpack.c.b16 %v93, %v92
  %v106 = vpack.c.b16 %v95, %v94
  %v107 = vpack.c.b16 %v97, %v96
  %v108 = vpack.c.b16 %v99, %v98
  %v109 = vpack.c.b16 %v101, %v100
  %v112 = vunpack.c.l.b16 %v68
  %v113 = vunpack.c.l.b16 %v69
  %v114 = vpack.c.b16 %v113, %v112
  %vm115 = vcmask 97280
  %v117 = vsel %vm115, %v102, 0
  %v120 = vsel %vm115, %v103, 0
  %v123 = vsel %vm115, %v104, 0
  %v126 = vsel %vm115, %v105, 0
  %v129 = vsel %vm115, %v106, 0
  %v132 = vsel %vm115, %v107, 0
  %v135 = vsel %vm115, %v108, 0
  %v138 = vsel %vm115, %v109, 0
  %vm140 = vcmask 1045504
  %v142 = vsel %vm140, %v114, 0
  %144 = vmatprep.subr.bf16.mxu0 0
  %145 = vmatpush1.bf16.msra.mxu0 0
  %146 = vmatprep.subr.bf16.mxu0 0
  %147 = vmatpush1.bf16.msra.mxu0 0
  %148 = vmatprep.subr.bf16.mxu0 0
  %149 = vmatpush1.bf16.msra.mxu0 0
  %150 = vmatprep.subr.bf16.mxu0 0
  %151 = vmatpush1.bf16.msra.mxu0 0
  %152 = vmatprep.subr.bf16.mxu0 0
  %153 = vmatpush1.bf16.msra.mxu0 0
  %154 = vmatprep.subr.bf16.mxu0 0
  %155 = vmatpush1.bf16.msra.mxu0 0
  %156 = vmatprep.subr.bf16.mxu0 0
  %157 = vmatpush1.bf16.msra.mxu0 0
  %158 = vmatprep.subr.bf16.mxu0 0
  %159 = vmatpush1.bf16.msra.mxu0 %v142
  %160 = vmatprep.subr.bf16.mxu0 0
  %161 = vmatpush2.bf16.msra.mxu0 0
  %162 = vmatprep.subr.bf16.mxu0 0
  %163 = vmatpush2.bf16.msra.mxu0 0
  %164 = vmatprep.subr.bf16.mxu0 0
  %165 = vmatpush2.bf16.msra.mxu0 0
  %166 = vmatprep.subr.bf16.mxu0 0
  %167 = vmatpush2.bf16.msra.mxu0 0
  %168 = vmatprep.subr.bf16.mxu0 0
  %169 = vmatpush2.bf16.msra.mxu0 0
  %170 = vmatprep.subr.bf16.mxu0 0
  %171 = vmatpush2.bf16.msra.mxu0 0
  %172 = vmatprep.subr.bf16.mxu0 0
  %173 = vmatpush2.bf16.msra.mxu0 0
  %174 = vmatprep.subr.bf16.mxu0 0
  %175 = vmatpush2.bf16.msra.mxu0 0
  %176 = vmatprep.mubr.bf16.mxu0 0
  %177 = vmatmul.mubr.bf16.gmra.mxu0 %v117
  %v178 = vpop.f32.mrf.mxu0
  %v179 = vadd.f32 0.0, %v178
  %v180 = vpop.f32.mrf.mxu0
  %v181 = vpop.f32.mrf.mxu0
  %v182 = vadd.f32 0.0, %v181
  %v183 = vpop.f32.mrf.mxu0
  %184 = vmatprep.mubr.bf16.mxu0 0
  %185 = vmatmul.mubr.bf16.gmra.mxu0 %v120
  %v186 = vpop.f32.mrf.mxu0
  %v187 = vadd.f32 0.0, %v186
  %v188 = vpop.f32.mrf.mxu0
  %v189 = vpop.f32.mrf.mxu0
  %v190 = vadd.f32 0.0, %v189
  %v191 = vpop.f32.mrf.mxu0
  %192 = vmatprep.mubr.bf16.mxu0 0
  %193 = vmatmul.mubr.bf16.gmra.mxu0 %v123
  %v194 = vpop.f32.mrf.mxu0
  %v195 = vadd.f32 0.0, %v194
  %v196 = vpop.f32.mrf.mxu0
  %v197 = vpop.f32.mrf.mxu0
  %v198 = vadd.f32 0.0, %v197
  %v199 = vpop.f32.mrf.mxu0
  %200 = vmatprep.mubr.bf16.mxu0 0
  %201 = vmatmul.mubr.bf16.gmra.mxu0 %v126
  %v202 = vpop.f32.mrf.mxu0
  %v203 = vadd.f32 0.0, %v202
  %v204 = vpop.f32.mrf.mxu0
  %v205 = vpop.f32.mrf.mxu0
  %v206 = vadd.f32 0.0, %v205
  %v207 = vpop.f32.mrf.mxu0
  %208 = vmatprep.mubr.bf16.mxu0 0
  %209 = vmatmul.mubr.bf16.gmra.mxu0 %v129
  %v210 = vpop.f32.mrf.mxu0
  %v211 = vadd.f32 0.0, %v210
  %v212 = vpop.f32.mrf.mxu0
  %v213 = vpop.f32.mrf.mxu0
  %v214 = vadd.f32 0.0, %v213
  %v215 = vpop.f32.mrf.mxu0
  %216 = vmatprep.mubr.bf16.mxu0 0
  %217 = vmatmul.mubr.bf16.gmra.mxu0 %v132
  %v218 = vpop.f32.mrf.mxu0
  %v219 = vadd.f32 0.0, %v218
  %v220 = vpop.f32.mrf.mxu0
  %v221 = vpop.f32.mrf.mxu0
  %v222 = vadd.f32 0.0, %v221
  %v223 = vpop.f32.mrf.mxu0
  %224 = vmatprep.mubr.bf16.mxu0 0
  %225 = vmatmul.mubr.bf16.gmra.mxu0 %v135
  %v226 = vpop.f32.mrf.mxu0
  %v227 = vadd.f32 0.0, %v226
  %v228 = vpop.f32.mrf.mxu0
  %v229 = vpop.f32.mrf.mxu0
  %v230 = vadd.f32 0.0, %v229
  %v231 = vpop.f32.mrf.mxu0
  %232 = vmatprep.mubr.bf16.mxu0 0
  %233 = vmatmul.mubr.bf16.gmra.mxu0 %v138
  %v234 = vpop.f32.mrf.mxu0
  %v235 = vadd.f32 0.0, %v234
  %v236 = vpop.f32.mrf.mxu0
  %v237 = vpop.f32.mrf.mxu0
  %v238 = vadd.f32 0.0, %v237
  %v239 = vpop.f32.mrf.mxu0
  %240 = vdwg.mxu0
  %v241 = vadd.f32 %v36, %v179
  %v242 = vadd.f32 %v37, %v182
  %v243 = vadd.f32 %v38, %v187
  %v244 = vadd.f32 %v39, %v190
  %v245 = vadd.f32 %v40, %v195
  %v246 = vadd.f32 %v41, %v198
  %v247 = vadd.f32 %v42, %v203
  %v248 = vadd.f32 %v43, %v206
  %v249 = vadd.f32 %v44, %v211
  %v250 = vadd.f32 %v45, %v214
  %v251 = vadd.f32 %v46, %v219
  %v252 = vadd.f32 %v47, %v222
  %v253 = vadd.f32 %v48, %v227
  %v254 = vadd.f32 %v49, %v230
  %v255 = vadd.f32 %v50, %v235
  %v256 = vadd.f32 %v51, %v238
  %vm257 = vcmask 64512
  %258 = vst.msk [vmem:[#allocation2] sm:$0xff] %vm257, %v241
  %259 = vst.msk [vmem:[#allocation2 + $0x8] sm:$0xff] %vm257, %v242
  %260 = vst.msk [vmem:[#allocation2 + $0x10] sm:$0xff] %vm257, %v243
  %261 = vst.msk [vmem:[#allocation2 + $0x18] sm:$0xff] %vm257, %v244
  %262 = vst.msk [vmem:[#allocation2 + $0x20] sm:$0xff] %vm257, %v245
  %263 = vst.msk [vmem:[#allocation2 + $0x28] sm:$0xff] %vm257, %v246
  %264 = vst.msk [vmem:[#allocation2 + $0x30] sm:$0xff] %vm257, %v247
  %265 = vst.msk [vmem:[#allocation2 + $0x38] sm:$0xff] %vm257, %v248
  %266 = vst.msk [vmem:[#allocation2 + $0x40] sm:$0xff] %vm257, %v249
  %267 = vst.msk [vmem:[#allocation2 + $0x48] sm:$0xff] %vm257, %v250
  %268 = vst.msk [vmem:[#allocation2 + $0x50] sm:$0xff] %vm257, %v251
  %269 = vst.msk [vmem:[#allocation2 + $0x58] sm:$0xff] %vm257, %v252
  %270 = vst.msk [vmem:[#allocation2 + $0x60] sm:$0xff] %vm257, %v253
  %271 = vst.msk [vmem:[#allocation2 + $0x68] sm:$0xff] %vm257, %v254
  %272 = vst.msk [vmem:[#allocation2 + $0x70] sm:$0xff] %vm257, %v255
  %273 = vst.msk [vmem:[#allocation2 + $0x78] sm:$0xff] %vm257, %v256
  // Predicated region
  $region18: #{yolo_forward.28} parent=0 // pred_check
    %p274 = pneg %p15
  $region19: #{yolo_forward.28} parent=0 // pred_check_branch
    %276 = sbr.rel (%p274) target = $region21
  $region20: #{yolo_forward.28} parent=0 // pred_region
    %v277 = vld [vmem:[#allocation2] sm:$0xff]
    %v278 = vld [vmem:[#allocation2 + $0x8] sm:$0xff]
    %v279 = vld [vmem:[#allocation2 + $0x10] sm:$0xff]
    %v280 = vld [vmem:[#allocation2 + $0x18] sm:$0xff]
    %v281 = vld [vmem:[#allocation2 + $0x20] sm:$0xff]
    %v282 = vld [vmem:[#allocation2 + $0x28] sm:$0xff]
    %v283 = vld [vmem:[#allocation2 + $0x30] sm:$0xff]
    %v284 = vld [vmem:[#allocation2 + $0x38] sm:$0xff]
    %v285 = vld [vmem:[#allocation2 + $0x40] sm:$0xff]
    %v286 = vld [vmem:[#allocation2 + $0x48] sm:$0xff]
    %v287 = vld [vmem:[#allocation2 + $0x50] sm:$0xff]
    %v288 = vld [vmem:[#allocation2 + $0x58] sm:$0xff]
    %v289 = vld [vmem:[#allocation2 + $0x60] sm:$0xff]
    %v290 = vld [vmem:[#allocation2 + $0x68] sm:$0xff]
    %v291 = vld [vmem:[#allocation2 + $0x70] sm:$0xff]
    %v292 = vld [vmem:[#allocation2 + $0x78] sm:$0xff]
    %v293 = vld [vmem:[%s2] sm:$0x1]
    %v295 = vlaneseq
    %v296 = vshrl.u32 %v295, 7
    %v297 = vsub.s32 0, %v296
    %v298 = vrot.slane %v293, %v297
    %v300 = vadd.f32 %v277, %v298
    %v301 = vadd.f32 %v278, %v298
    %v302 = vadd.f32 %v279, %v298
    %v303 = vadd.f32 %v280, %v298
    %v304 = vadd.f32 %v281, %v298
    %v305 = vadd.f32 %v282, %v298
    %v306 = vadd.f32 %v283, %v298
    %v307 = vadd.f32 %v284, %v298
    %v308 = vadd.f32 %v285, %v298
    %v309 = vadd.f32 %v286, %v298
    %v310 = vadd.f32 %v287, %v298
    %v311 = vadd.f32 %v288, %v298
    %v312 = vadd.f32 %v289, %v298
    %v313 = vadd.f32 %v290, %v298
    %v314 = vadd.f32 %v291, %v298
    %v315 = vadd.f32 %v292, %v298
    %vm316 = vcmp.gt.f32.partialorder %v300, 0.0
    %vm317 = vcmp.gt.f32.partialorder %v301, 0.0
    %vm318 = vcmp.gt.f32.partialorder %v302, 0.0
    %vm319 = vcmp.gt.f32.partialorder %v303, 0.0
    %vm320 = vcmp.gt.f32.partialorder %v304, 0.0
    %vm321 = vcmp.gt.f32.partialorder %v305, 0.0
    %vm322 = vcmp.gt.f32.partialorder %v306, 0.0
    %vm323 = vcmp.gt.f32.partialorder %v307, 0.0
    %vm324 = vcmp.gt.f32.partialorder %v308, 0.0
    %vm325 = vcmp.gt.f32.partialorder %v309, 0.0
    %vm326 = vcmp.gt.f32.partialorder %v310, 0.0
    %vm327 = vcmp.gt.f32.partialorder %v311, 0.0
    %vm328 = vcmp.gt.f32.partialorder %v312, 0.0
    %vm329 = vcmp.gt.f32.partialorder %v313, 0.0
    %vm330 = vcmp.gt.f32.partialorder %v314, 0.0
    %vm331 = vcmp.gt.f32.partialorder %v315, 0.0
    %v332 = vmul.f32 %v300, 0.01
    %v333 = vmul.f32 %v301, 0.01
    %v334 = vmul.f32 %v302, 0.01
    %v335 = vmul.f32 %v303, 0.01
    %v336 = vmul.f32 %v304, 0.01
    %v337 = vmul.f32 %v305, 0.01
    %v338 = vmul.f32 %v306, 0.01
    %v339 = vmul.f32 %v307, 0.01
    %v340 = vmul.f32 %v308, 0.01
    %v341 = vmul.f32 %v309, 0.01
    %v342 = vmul.f32 %v310, 0.01
    %v343 = vmul.f32 %v311, 0.01
    %v344 = vmul.f32 %v312, 0.01
    %v345 = vmul.f32 %v313, 0.01
    %v346 = vmul.f32 %v314, 0.01
    %v347 = vmul.f32 %v315, 0.01
    %v348 = vsel %vm316, %v300, %v332
    %v349 = vsel %vm317, %v301, %v333
    %v350 = vsel %vm318, %v302, %v334
    %v351 = vsel %vm319, %v303, %v335
    %v352 = vsel %vm320, %v304, %v336
    %v353 = vsel %vm321, %v305, %v337
    %v354 = vsel %vm322, %v306, %v338
    %v355 = vsel %vm323, %v307, %v339
    %v356 = vsel %vm324, %v308, %v340
    %v357 = vsel %vm325, %v309, %v341
    %v358 = vsel %vm326, %v310, %v342
    %v359 = vsel %vm327, %v311, %v343
    %v360 = vsel %vm328, %v312, %v344
    %v361 = vsel %vm329, %v313, %v345
    %v362 = vsel %vm330, %v314, %v346
    %v363 = vsel %vm331, %v315, %v347
    %v364 = vpack.c.bf16 %v349, %v348
    %v365 = vpack.c.bf16 %v351, %v350
    %v366 = vpack.c.bf16 %v353, %v352
    %v367 = vpack.c.bf16 %v355, %v354
    %v368 = vpack.c.bf16 %v357, %v356
    %v369 = vpack.c.bf16 %v359, %v358
    %v370 = vpack.c.bf16 %v361, %v360
    %v371 = vpack.c.bf16 %v363, %v362
    %v380 = vunpack.c.l.b16 %v364
    %v381 = vunpack.c.h.b16 %v364
    %v382 = vunpack.c.l.b16 %v365
    %v383 = vunpack.c.h.b16 %v365
    %v384 = vunpack.c.l.b16 %v366
    %v385 = vunpack.c.h.b16 %v366
    %v386 = vunpack.c.l.b16 %v367
    %v387 = vunpack.c.h.b16 %v367
    %v388 = vunpack.c.l.b16 %v368
    %v389 = vunpack.c.h.b16 %v368
    %v390 = vunpack.c.l.b16 %v369
    %v391 = vunpack.c.h.b16 %v369
    %v392 = vunpack.c.l.b16 %v370
    %v393 = vunpack.c.h.b16 %v370
    %v394 = vunpack.c.l.b16 %v371
    %v395 = vunpack.c.h.b16 %v371
    %v396 = vpack.c.b16 %v380, %v380
    %v397 = vpack.c.b16 %v381, %v381
    %v398 = vpack.c.b16 %v382, %v382
    %v399 = vpack.c.b16 %v383, %v383
    %v400 = vpack.c.b16 %v384, %v384
    %v401 = vpack.c.b16 %v385, %v385
    %v402 = vpack.c.b16 %v386, %v386
    %v403 = vpack.c.b16 %v387, %v387
    %v404 = vpack.c.b16 %v388, %v388
    %v405 = vpack.c.b16 %v389, %v389
    %v406 = vpack.c.b16 %v390, %v390
    %v407 = vpack.c.b16 %v391, %v391
    %v408 = vpack.c.b16 %v392, %v392
    %v409 = vpack.c.b16 %v393, %v393
    %v410 = vpack.c.b16 %v394, %v394
    %v411 = vpack.c.b16 %v395, %v395
    %vm428 = vcmask 60416
    %429 = vst.msk [vmem:[%s3] sm:$0xf] %vm428, %v396
    %430 = vst.msk [vmem:[%s3 + $0x4] sm:$0xf] %vm428, %v397
    %431 = vst.msk [vmem:[%s3 + $0x8] sm:$0xf] %vm428, %v398
    %432 = vst.msk [vmem:[%s3 + $0xc] sm:$0xf] %vm428, %v399
    %433 = vst.msk [vmem:[%s3 + $0x10] sm:$0xf] %vm428, %v400
    %434 = vst.msk [vmem:[%s3 + $0x14] sm:$0xf] %vm428, %v401
    %435 = vst.msk [vmem:[%s3 + $0x18] sm:$0xf] %vm428, %v402
    %436 = vst.msk [vmem:[%s3 + $0x1c] sm:$0xf] %vm428, %v403
    %437 = vst.msk [vmem:[%s3 + $0x20] sm:$0xf] %vm428, %v404
    %438 = vst.msk [vmem:[%s3 + $0x24] sm:$0xf] %vm428, %v405
    %439 = vst.msk [vmem:[%s3 + $0x28] sm:$0xf] %vm428, %v406
    %440 = vst.msk [vmem:[%s3 + $0x2c] sm:$0xf] %vm428, %v407
    %441 = vst.msk [vmem:[%s3 + $0x30] sm:$0xf] %vm428, %v408
    %442 = vst.msk [vmem:[%s3 + $0x34] sm:$0xf] %vm428, %v409
    %443 = vst.msk [vmem:[%s3 + $0x38] sm:$0xf] %vm428, %v410
    %444 = vst.msk [vmem:[%s3 + $0x3c] sm:$0xf] %vm428, %v411
  $region21: #{yolo_forward.28} parent=0 // pred_fallthru
    _
  // Predicated region
  $region22: #{yolo_forward.28} parent=0 // pred_check
    _
  $region23: #{yolo_forward.28} parent=0 // pred_check_branch
    %446 = sbr.rel (0) target = $region25
  $region24: #{yolo_forward.28} parent=0 // pred_region
    _
  $region25: #{yolo_forward.28} parent=0 // pred_fallthru
    _
  // Predicated region
  $region26: #{yolo_forward.28} parent=0 // pred_check
    _
  $region27: #{yolo_forward.28} parent=0 // pred_check_branch
    %448 = sbr.rel (0) target = $region29
  $region28: #{yolo_forward.28} parent=0 // pred_region
    _
  $region29: #{yolo_forward.28} parent=0 // pred_fallthru
    _

// kernel: yolo_forward.30
$region0: #{yolo_forward.30}
  #allocation0 [shape = 'u32[]', space=smem, size = 0x4, offset = 0x4, fixed_abs, tag = 'smem constant byte address 0x4 - core index']
  #allocation1 [shape = 'u32[144,128]{1,0:T(1,128)}', space=vmem, size = 0x12000, scoped, tag = 'internal scratch']
  #allocation2 [shape = 'f32[128,16]{1,0:T(8,128)}', space=vmem, size = 0x10000, scoped, tag = 'scratch operand']
  %s0 = inlined_call_operand.vmem [shape: bf16[128,16], index: 0, kind: input, shape index: {}]
  %s1 = inlined_call_operand.vmem [shape: bf16[16,16], index: 1, kind: input, shape index: {}]
  %s2 = inlined_call_operand.hbm [shape: f32[1,16], index: 2, kind: input, shape index: {}]
  %s3 = inlined_call_operand.vmem [shape: bf16[128,16], index: 3, kind: output, shape index: {}]
  %s4 = sld [smem:[#allocation0]]
  $region34: #{yolo_forward.30} parent=0
    _
  %s6 = ssub.s32 1, %s4
  %s7 = scalar_select 0, %s6, %s4
  $region1: #{yolo_forward.30} parent=0
    #allocation3 [shape = 'u8[512]{0}', space=vmem, size = 0x400, scoped, tag = 'input window, operand 2, single buffered']
    #allocation4 [shape = 's32[1]{0}', space=sflag, size = 0x4, scoped, tag = 'scoped memory for yolo_forward.30']
    %8 = vsyncpa [#allocation4], 0
    // Predicated region
    $region2: #{yolo_forward.30} parent=1 // pred_check
      _
    $region3: #{yolo_forward.30} parent=1 // pred_check_branch
      %10 = sbr.rel (0) target = $region5
    $region4: #{yolo_forward.30} parent=1 // pred_region
      _
    $region5: #{yolo_forward.30} parent=1 // pred_fallthru
      _
    // Predicated region
    $region6: #{yolo_forward.30} parent=1 // pred_check
      _
    $region7: #{yolo_forward.30} parent=1 // pred_check_branch
      %12 = sbr.rel (0) target = $region9
    $region8: #{yolo_forward.30} parent=1 // pred_region
      _
    $region9: #{yolo_forward.30} parent=1 // pred_fallthru
      _
    // Predicated region
    $region10: #{yolo_forward.30} parent=1 // pred_check
      _
    $region11: #{yolo_forward.30} parent=1 // pred_check_branch
      %14 = sbr.rel (0) target = $region13
    $region12: #{yolo_forward.30} parent=1 // pred_region
      %s16 = ssub.s32 16, 16
      %17 = vsyncadd [#allocation4], %s16
      %s19 = sshll.u32 [#allocation3], 4
      %s20 = int_to_ptr.vmem [resolvable:$true] %s19
      %22 = dma.hbm_to_vmem [thread:$0]  %s2, 16, %s20, [#allocation4]
    $region13: #{yolo_forward.30} parent=1 // pred_fallthru
      _
    // Predicated region
    $region14: #{yolo_forward.30} parent=1 // pred_check
      _
    $region15: #{yolo_forward.30} parent=1 // pred_check_branch
      %24 = sbr.rel (0) target = $region17
    $region16: #{yolo_forward.30} parent=1 // pred_region
      %25 = dma.done [#allocation4], 16
    $region17: #{yolo_forward.30} parent=1 // pred_fallthru
      _
    %p27 = scmp.eq.s32.totalorder 0, 0
    // Predicated region
    $region18: #{yolo_forward.30} parent=1 // pred_check
      %p28 = pneg %p27
    $region19: #{yolo_forward.30} parent=1 // pred_check_branch
      %30 = sbr.rel (%p28) target = $region21
    $region20: #{yolo_forward.30} parent=1 // pred_region
      %vm31 = vcmask 130048
      %32 = vst.msk [vmem:[#allocation2] sm:$0xff] %vm31, 0.0
      %33 = vst.msk [vmem:[#allocation2 + $0x8] sm:$0xff] %vm31, 0.0
      %34 = vst.msk [vmem:[#allocation2 + $0x10] sm:$0xff] %vm31, 0.0
      %35 = vst.msk [vmem:[#allocation2 + $0x18] sm:$0xff] %vm31, 0.0
      %36 = vst.msk [vmem:[#allocation2 + $0x20] sm:$0xff] %vm31, 0.0
      %37 = vst.msk [vmem:[#allocation2 + $0x28] sm:$0xff] %vm31, 0.0
      %38 = vst.msk [vmem:[#allocation2 + $0x30] sm:$0xff] %vm31, 0.0
      %39 = vst.msk [vmem:[#allocation2 + $0x38] sm:$0xff] %vm31, 0.0
      %40 = vst.msk [vmem:[#allocation2 + $0x40] sm:$0xff] %vm31, 0.0
      %41 = vst.msk [vmem:[#allocation2 + $0x48] sm:$0xff] %vm31, 0.0
      %42 = vst.msk [vmem:[#allocation2 + $0x50] sm:$0xff] %vm31, 0.0
      %43 = vst.msk [vmem:[#allocation2 + $0x58] sm:$0xff] %vm31, 0.0
      %44 = vst.msk [vmem:[#allocation2 + $0x60] sm:$0xff] %vm31, 0.0
      %45 = vst.msk [vmem:[#allocation2 + $0x68] sm:$0xff] %vm31, 0.0
      %46 = vst.msk [vmem:[#allocation2 + $0x70] sm:$0xff] %vm31, 0.0
      %47 = vst.msk [vmem:[#allocation2 + $0x78] sm:$0xff] %vm31, 0.0
    $region21: #{yolo_forward.30} parent=1 // pred_fallthru
      _
    %v48 = vld [vmem:[#allocation2] sm:$0xff]
    %v49 = vld [vmem:[#allocation2 + $0x8] sm:$0xff]
    %v50 = vld [vmem:[#allocation2 + $0x10] sm:$0xff]
    %v51 = vld [vmem:[#allocation2 + $0x18] sm:$0xff]
    %v52 = vld [vmem:[#allocation2 + $0x20] sm:$0xff]
    %v53 = vld [vmem:[#allocation2 + $0x28] sm:$0xff]
    %v54 = vld [vmem:[#allocation2 + $0x30] sm:$0xff]
    %v55 = vld [vmem:[#allocation2 + $0x38] sm:$0xff]
    %v56 = vld [vmem:[#allocation2 + $0x40] sm:$0xff]
    %v57 = vld [vmem:[#allocation2 + $0x48] sm:$0xff]
    %v58 = vld [vmem:[#allocation2 + $0x50] sm:$0xff]
    %v59 = vld [vmem:[#allocation2 + $0x58] sm:$0xff]
    %v60 = vld [vmem:[#allocation2 + $0x60] sm:$0xff]
    %v61 = vld [vmem:[#allocation2 + $0x68] sm:$0xff]
    %v62 = vld [vmem:[#allocation2 + $0x70] sm:$0xff]
    %v63 = vld [vmem:[#allocation2 + $0x78] sm:$0xff]
    %v64 = vld [vmem:[%s0] sm:$0xf]
    %v65 = vld [vmem:[%s0 + $0x4] sm:$0xf]
    %v66 = vld [vmem:[%s0 + $0x8] sm:$0xf]
    %v67 = vld [vmem:[%s0 + $0xc] sm:$0xf]
    %v68 = vld [vmem:[%s0 + $0x10] sm:$0xf]
    %v69 = vld [vmem:[%s0 + $0x14] sm:$0xf]
    %v70 = vld [vmem:[%s0 + $0x18] sm:$0xf]
    %v71 = vld [vmem:[%s0 + $0x1c] sm:$0xf]
    %v72 = vld [vmem:[%s0 + $0x20] sm:$0xf]
    %v73 = vld [vmem:[%s0 + $0x24] sm:$0xf]
    %v74 = vld [vmem:[%s0 + $0x28] sm:$0xf]
    %v75 = vld [vmem:[%s0 + $0x2c] sm:$0xf]
    %v76 = vld [vmem:[%s0 + $0x30] sm:$0xf]
    %v77 = vld [vmem:[%s0 + $0x34] sm:$0xf]
    %v78 = vld [vmem:[%s0 + $0x38] sm:$0xf]
    %v79 = vld [vmem:[%s0 + $0x3c] sm:$0xf]
    %v80 = vld [vmem:[%s1] sm:$0xf]
    %v81 = vld [vmem:[%s1 + $0x4] sm:$0xf]
    %v98 = vunpack.c.l.b16 %v64
    %v99 = vunpack.c.l.b16 %v65
    %v100 = vunpack.c.l.b16 %v66
    %v101 = vunpack.c.l.b16 %v67
    %v102 = vunpack.c.l.b16 %v68
    %v103 = vunpack.c.l.b16 %v69
    %v104 = vunpack.c.l.b16 %v70
    %v105 = vunpack.c.l.b16 %v71
    %v106 = vunpack.c.l.b16 %v72
    %v107 = vunpack.c.l.b16 %v73
    %v108 = vunpack.c.l.b16 %v74
    %v109 = vunpack.c.l.b16 %v75
    %v110 = vunpack.c.l.b16 %v76
    %v111 = vunpack.c.l.b16 %v77
    %v112 = vunpack.c.l.b16 %v78
    %v113 = vunpack.c.l.b16 %v79
    %v114 = vpack.c.b16 %v99, %v98
    %v115 = vpack.c.b16 %v101, %v100
    %v116 = vpack.c.b16 %v103, %v102
    %v117 = vpack.c.b16 %v105, %v104
    %v118 = vpack.c.b16 %v107, %v106
    %v119 = vpack.c.b16 %v109, %v108
    %v120 = vpack.c.b16 %v111, %v110
    %v121 = vpack.c.b16 %v113, %v112
    %v124 = vunpack.c.l.b16 %v80
    %v125 = vunpack.c.l.b16 %v81
    %v126 = vpack.c.b16 %v125, %v124
    %vm128 = vcmask 130048
    %v130 = vsel %vm128, %v114, 0
    %v133 = vsel %vm128, %v115, 0
    %v136 = vsel %vm128, %v116, 0
    %v139 = vsel %vm128, %v117, 0
    %v142 = vsel %vm128, %v118, 0
    %v145 = vsel %vm128, %v119, 0
    %v148 = vsel %vm128, %v120, 0
    %v151 = vsel %vm128, %v121, 0
    %153 = vmatprep.subr.bf16.mxu0 0
    %154 = vmatpush1.bf16.msra.mxu0 0
    %155 = vmatprep.subr.bf16.mxu0 0
    %156 = vmatpush1.bf16.msra.mxu0 0
    %157 = vmatprep.subr.bf16.mxu0 0
    %158 = vmatpush1.bf16.msra.mxu0 0
    %159 = vmatprep.subr.bf16.mxu0 0
    %160 = vmatpush1.bf16.msra.mxu0 0
    %161 = vmatprep.subr.bf16.mxu0 0
    %162 = vmatpush1.bf16.msra.mxu0 0
    %163 = vmatprep.subr.bf16.mxu0 0
    %164 = vmatpush1.bf16.msra.mxu0 0
    %165 = vmatprep.subr.bf16.mxu0 0
    %166 = vmatpush1.bf16.msra.mxu0 0
    %167 = vmatprep.subr.bf16.mxu0 0
    %168 = vmatpush1.bf16.msra.mxu0 %v126
    %169 = vmatprep.subr.bf16.mxu0 0
    %170 = vmatpush2.bf16.msra.mxu0 0
    %171 = vmatprep.subr.bf16.mxu0 0
    %172 = vmatpush2.bf16.msra.mxu0 0
    %173 = vmatprep.subr.bf16.mxu0 0
    %174 = vmatpush2.bf16.msra.mxu0 0
    %175 = vmatprep.subr.bf16.mxu0 0
    %176 = vmatpush2.bf16.msra.mxu0 0
    %177 = vmatprep.subr.bf16.mxu0 0
    %178 = vmatpush2.bf16.msra.mxu0 0
    %179 = vmatprep.subr.bf16.mxu0 0
    %180 = vmatpush2.bf16.msra.mxu0 0
    %181 = vmatprep.subr.bf16.mxu0 0
    %182 = vmatpush2.bf16.msra.mxu0 0
    %183 = vmatprep.subr.bf16.mxu0 0
    %184 = vmatpush2.bf16.msra.mxu0 0
    %185 = vmatprep.mubr.bf16.mxu0 0
    %186 = vmatmul.mubr.bf16.gmra.mxu0 %v130
    %v187 = vpop.f32.mrf.mxu0
    %v188 = vadd.f32 0.0, %v187
    %v189 = vpop.f32.mrf.mxu0
    %v190 = vpop.f32.mrf.mxu0
    %v191 = vadd.f32 0.0, %v190
    %v192 = vpop.f32.mrf.mxu0
    %193 = vmatprep.mubr.bf16.mxu0 0
    %194 = vmatmul.mubr.bf16.gmra.mxu0 %v133
    %v195 = vpop.f32.mrf.mxu0
    %v196 = vadd.f32 0.0, %v195
    %v197 = vpop.f32.mrf.mxu0
    %v198 = vpop.f32.mrf.mxu0
    %v199 = vadd.f32 0.0, %v198
    %v200 = vpop.f32.mrf.mxu0
    %201 = vmatprep.mubr.bf16.mxu0 0
    %202 = vmatmul.mubr.bf16.gmra.mxu0 %v136
    %v203 = vpop.f32.mrf.mxu0
    %v204 = vadd.f32 0.0, %v203
    %v205 = vpop.f32.mrf.mxu0
    %v206 = vpop.f32.mrf.mxu0
    %v207 = vadd.f32 0.0, %v206
    %v208 = vpop.f32.mrf.mxu0
    %209 = vmatprep.mubr.bf16.mxu0 0
    %210 = vmatmul.mubr.bf16.gmra.mxu0 %v139
    %v211 = vpop.f32.mrf.mxu0
    %v212 = vadd.f32 0.0, %v211
    %v213 = vpop.f32.mrf.mxu0
    %v214 = vpop.f32.mrf.mxu0
    %v215 = vadd.f32 0.0, %v214
    %v216 = vpop.f32.mrf.mxu0
    %217 = vmatprep.mubr.bf16.mxu0 0
    %218 = vmatmul.mubr.bf16.gmra.mxu0 %v142
    %v219 = vpop.f32.mrf.mxu0
    %v220 = vadd.f32 0.0, %v219
    %v221 = vpop.f32.mrf.mxu0
    %v222 = vpop.f32.mrf.mxu0
    %v223 = vadd.f32 0.0, %v222
    %v224 = vpop.f32.mrf.mxu0
    %225 = vmatprep.mubr.bf16.mxu0 0
    %226 = vmatmul.mubr.bf16.gmra.mxu0 %v145
    %v227 = vpop.f32.mrf.mxu0
    %v228 = vadd.f32 0.0, %v227
    %v229 = vpop.f32.mrf.mxu0
    %v230 = vpop.f32.mrf.mxu0
    %v231 = vadd.f32 0.0, %v230
    %v232 = vpop.f32.mrf.mxu0
    %233 = vmatprep.mubr.bf16.mxu0 0
    %234 = vmatmul.mubr.bf16.gmra.mxu0 %v148
    %v235 = vpop.f32.mrf.mxu0
    %v236 = vadd.f32 0.0, %v235
    %v237 = vpop.f32.mrf.mxu0
    %v238 = vpop.f32.mrf.mxu0
    %v239 = vadd.f32 0.0, %v238
    %v240 = vpop.f32.mrf.mxu0
    %241 = vmatprep.mubr.bf16.mxu0 0
    %242 = vmatmul.mubr.bf16.gmra.mxu0 %v151
    %v243 = vpop.f32.mrf.mxu0
    %v244 = vadd.f32 0.0, %v243
    %v245 = vpop.f32.mrf.mxu0
    %v246 = vpop.f32.mrf.mxu0
    %v247 = vadd.f32 0.0, %v246
    %v248 = vpop.f32.mrf.mxu0
    %249 = vdwg.mxu0
    %v250 = vadd.f32 %v48, %v188
    %v251 = vadd.f32 %v49, %v191
    %v252 = vadd.f32 %v50, %v196
    %v253 = vadd.f32 %v51, %v199
    %v254 = vadd.f32 %v52, %v204
    %v255 = vadd.f32 %v53, %v207
    %v256 = vadd.f32 %v54, %v212
    %v257 = vadd.f32 %v55, %v215
    %v258 = vadd.f32 %v56, %v220
    %v259 = vadd.f32 %v57, %v223
    %v260 = vadd.f32 %v58, %v228
    %v261 = vadd.f32 %v59, %v231
    %v262 = vadd.f32 %v60, %v236
    %v263 = vadd.f32 %v61, %v239
    %v264 = vadd.f32 %v62, %v244
    %v265 = vadd.f32 %v63, %v247
    %266 = vst.msk [vmem:[#allocation2] sm:$0xff] %vm128, %v250
    %267 = vst.msk [vmem:[#allocation2 + $0x8] sm:$0xff] %vm128, %v251
    %268 = vst.msk [vmem:[#allocation2 + $0x10] sm:$0xff] %vm128, %v252
    %269 = vst.msk [vmem:[#allocation2 + $0x18] sm:$0xff] %vm128, %v253
    %270 = vst.msk [vmem:[#allocation2 + $0x20] sm:$0xff] %vm128, %v254
    %271 = vst.msk [vmem:[#allocation2 + $0x28] sm:$0xff] %vm128, %v255
    %272 = vst.msk [vmem:[#allocation2 + $0x30] sm:$0xff] %vm128, %v256
    %273 = vst.msk [vmem:[#allocation2 + $0x38] sm:$0xff] %vm128, %v257
    %274 = vst.msk [vmem:[#allocation2 + $0x40] sm:$0xff] %vm128, %v258
    %275 = vst.msk [vmem:[#allocation2 + $0x48] sm:$0xff] %vm128, %v259
    %276 = vst.msk [vmem:[#allocation2 + $0x50] sm:$0xff] %vm128, %v260
    %277 = vst.msk [vmem:[#allocation2 + $0x58] sm:$0xff] %vm128, %v261
    %278 = vst.msk [vmem:[#allocation2 + $0x60] sm:$0xff] %vm128, %v262
    %279 = vst.msk [vmem:[#allocation2 + $0x68] sm:$0xff] %vm128, %v263
    %280 = vst.msk [vmem:[#allocation2 + $0x70] sm:$0xff] %vm128, %v264
    %281 = vst.msk [vmem:[#allocation2 + $0x78] sm:$0xff] %vm128, %v265
    // Predicated region
    $region22: #{yolo_forward.30} parent=1 // pred_check
      %p282 = pneg %p27
    $region23: #{yolo_forward.30} parent=1 // pred_check_branch
      %284 = sbr.rel (%p282) target = $region25
    $region24: #{yolo_forward.30} parent=1 // pred_region
      %v285 = vld [vmem:[#allocation2] sm:$0xff]
      %v286 = vld [vmem:[#allocation2 + $0x8] sm:$0xff]
      %v287 = vld [vmem:[#allocation2 + $0x10] sm:$0xff]
      %v288 = vld [vmem:[#allocation2 + $0x18] sm:$0xff]
      %v289 = vld [vmem:[#allocation2 + $0x20] sm:$0xff]
      %v290 = vld [vmem:[#allocation2 + $0x28] sm:$0xff]
      %v291 = vld [vmem:[#allocation2 + $0x30] sm:$0xff]
      %v292 = vld [vmem:[#allocation2 + $0x38] sm:$0xff]
      %v293 = vld [vmem:[#allocation2 + $0x40] sm:$0xff]
      %v294 = vld [vmem:[#allocation2 + $0x48] sm:$0xff]
      %v295 = vld [vmem:[#allocation2 + $0x50] sm:$0xff]
      %v296 = vld [vmem:[#allocation2 + $0x58] sm:$0xff]
      %v297 = vld [vmem:[#allocation2 + $0x60] sm:$0xff]
      %v298 = vld [vmem:[#allocation2 + $0x68] sm:$0xff]
      %v299 = vld [vmem:[#allocation2 + $0x70] sm:$0xff]
      %v300 = vld [vmem:[#allocation2 + $0x78] sm:$0xff]
      %v301 = vld [vmem:[#allocation3] sm:$0x1]
      %v303 = vlaneseq
      %v304 = vshrl.u32 %v303, 7
      %v305 = vsub.s32 0, %v304
      %v306 = vrot.slane %v301, %v305
      %v308 = vadd.f32 %v285, %v306
      %v309 = vadd.f32 %v286, %v306
      %v310 = vadd.f32 %v287, %v306
      %v311 = vadd.f32 %v288, %v306
      %v312 = vadd.f32 %v289, %v306
      %v313 = vadd.f32 %v290, %v306
      %v314 = vadd.f32 %v291, %v306
      %v315 = vadd.f32 %v292, %v306
      %v316 = vadd.f32 %v293, %v306
      %v317 = vadd.f32 %v294, %v306
      %v318 = vadd.f32 %v295, %v306
      %v319 = vadd.f32 %v296, %v306
      %v320 = vadd.f32 %v297, %v306
      %v321 = vadd.f32 %v298, %v306
      %v322 = vadd.f32 %v299, %v306
      %v323 = vadd.f32 %v300, %v306
      %vm324 = vcmp.gt.f32.partialorder %v308, 0.0
      %vm325 = vcmp.gt.f32.partialorder %v309, 0.0
      %vm326 = vcmp.gt.f32.partialorder %v310, 0.0
      %vm327 = vcmp.gt.f32.partialorder %v311, 0.0
      %vm328 = vcmp.gt.f32.partialorder %v312, 0.0
      %vm329 = vcmp.gt.f32.partialorder %v313, 0.0
      %vm330 = vcmp.gt.f32.partialorder %v314, 0.0
      %vm331 = vcmp.gt.f32.partialorder %v315, 0.0
      %vm332 = vcmp.gt.f32.partialorder %v316, 0.0
      %vm333 = vcmp.gt.f32.partialorder %v317, 0.0
      %vm334 = vcmp.gt.f32.partialorder %v318, 0.0
      %vm335 = vcmp.gt.f32.partialorder %v319, 0.0
      %vm336 = vcmp.gt.f32.partialorder %v320, 0.0
      %vm337 = vcmp.gt.f32.partialorder %v321, 0.0
      %vm338 = vcmp.gt.f32.partialorder %v322, 0.0
      %vm339 = vcmp.gt.f32.partialorder %v323, 0.0
      %v340 = vmul.f32 %v308, 0.01
      %v341 = vmul.f32 %v309, 0.01
      %v342 = vmul.f32 %v310, 0.01
      %v343 = vmul.f32 %v311, 0.01
      %v344 = vmul.f32 %v312, 0.01
      %v345 = vmul.f32 %v313, 0.01
      %v346 = vmul.f32 %v314, 0.01
      %v347 = vmul.f32 %v315, 0.01
      %v348 = vmul.f32 %v316, 0.01
      %v349 = vmul.f32 %v317, 0.01
      %v350 = vmul.f32 %v318, 0.01
      %v351 = vmul.f32 %v319, 0.01
      %v352 = vmul.f32 %v320, 0.01
      %v353 = vmul.f32 %v321, 0.01
      %v354 = vmul.f32 %v322, 0.01
      %v355 = vmul.f32 %v323, 0.01
      %v356 = vsel %vm324, %v308, %v340
      %v357 = vsel %vm325, %v309, %v341
      %v358 = vsel %vm326, %v310, %v342
      %v359 = vsel %vm327, %v311, %v343
      %v360 = vsel %vm328, %v312, %v344
      %v361 = vsel %vm329, %v313, %v345
      %v362 = vsel %vm330, %v314, %v346
      %v363 = vsel %vm331, %v315, %v347
      %v364 = vsel %vm332, %v316, %v348
      %v365 = vsel %vm333, %v317, %v349
      %v366 = vsel %vm334, %v318, %v350
      %v367 = vsel %vm335, %v319, %v351
      %v368 = vsel %vm336, %v320, %v352
      %v369 = vsel %vm337, %v321, %v353
      %v370 = vsel %vm338, %v322, %v354
      %v371 = vsel %vm339, %v323, %v355
      %v372 = vpack.c.bf16 %v357, %v356
      %v373 = vpack.c.bf16 %v359, %v358
      %v374 = vpack.c.bf16 %v361, %v360
      %v375 = vpack.c.bf16 %v363, %v362
      %v376 = vpack.c.bf16 %v365, %v364
      %v377 = vpack.c.bf16 %v367, %v366
      %v378 = vpack.c.bf16 %v369, %v368
      %v379 = vpack.c.bf16 %v371, %v370
      %v388 = vunpack.c.l.b16 %v372
      %v389 = vunpack.c.h.b16 %v372
      %v390 = vunpack.c.l.b16 %v373
      %v391 = vunpack.c.h.b16 %v373
      %v392 = vunpack.c.l.b16 %v374
      %v393 = vunpack.c.h.b16 %v374
      %v394 = vunpack.c.l.b16 %v375
      %v395 = vunpack.c.h.b16 %v375
      %v396 = vunpack.c.l.b16 %v376
      %v397 = vunpack.c.h.b16 %v376
      %v398 = vunpack.c.l.b16 %v377
      %v399 = vunpack.c.h.b16 %v377
      %v400 = vunpack.c.l.b16 %v378
      %v401 = vunpack.c.h.b16 %v378
      %v402 = vunpack.c.l.b16 %v379
      %v403 = vunpack.c.h.b16 %v379
      %v404 = vpack.c.b16 %v388, %v388
      %v405 = vpack.c.b16 %v389, %v389
      %v406 = vpack.c.b16 %v390, %v390
      %v407 = vpack.c.b16 %v391, %v391
      %v408 = vpack.c.b16 %v392, %v392
      %v409 = vpack.c.b16 %v393, %v393
      %v410 = vpack.c.b16 %v394, %v394
      %v411 = vpack.c.b16 %v395, %v395
      %v412 = vpack.c.b16 %v396, %v396
      %v413 = vpack.c.b16 %v397, %v397
      %v414 = vpack.c.b16 %v398, %v398
      %v415 = vpack.c.b16 %v399, %v399
      %v416 = vpack.c.b16 %v400, %v400
      %v417 = vpack.c.b16 %v401, %v401
      %v418 = vpack.c.b16 %v402, %v402
      %v419 = vpack.c.b16 %v403, %v403
      %vm436 = vcmask 125952
      %437 = vst.msk [vmem:[%s3] sm:$0xf] %vm436, %v404
      %438 = vst.msk [vmem:[%s3 + $0x4] sm:$0xf] %vm436, %v405
      %439 = vst.msk [vmem:[%s3 + $0x8] sm:$0xf] %vm436, %v406
      %440 = vst.msk [vmem:[%s3 + $0xc] sm:$0xf] %vm436, %v407
      %441 = vst.msk [vmem:[%s3 + $0x10] sm:$0xf] %vm436, %v408
      %442 = vst.msk [vmem:[%s3 + $0x14] sm:$0xf] %vm436, %v409
      %443 = vst.msk [vmem:[%s3 + $0x18] sm:$0xf] %vm436, %v410
      %444 = vst.msk [vmem:[%s3 + $0x1c] sm:$0xf] %vm436, %v411
      %445 = vst.msk [vmem:[%s3 + $0x20] sm:$0xf] %vm436, %v412
      %446 = vst.msk [vmem:[%s3 + $0x24] sm:$0xf] %vm436, %v413
      %447 = vst.msk [vmem:[%s3 + $0x28] sm:$0xf] %vm436, %v414
      %448 = vst.msk [vmem:[%s3 + $0x2c] sm:$0xf] %vm436, %v415
      %449 = vst.msk [vmem:[%s3 + $0x30] sm:$0xf] %vm436, %v416
      %450 = vst.msk [vmem:[%s3 + $0x34] sm:$0xf] %vm436, %v417
      %451 = vst.msk [vmem:[%s3 + $0x38] sm:$0xf] %vm436, %v418
      %452 = vst.msk [vmem:[%s3 + $0x3c] sm:$0xf] %vm436, %v419
    $region25: #{yolo_forward.30} parent=1 // pred_fallthru
      _
    // Predicated region
    $region26: #{yolo_forward.30} parent=1 // pred_check
      _
    $region27: #{yolo_forward.30} parent=1 // pred_check_branch
      %454 = sbr.rel (0) target = $region29
    $region28: #{yolo_forward.30} parent=1 // pred_region
      _
    $region29: #{yolo_forward.30} parent=1 // pred_fallthru
      _
    // Predicated region
    $region30: #{yolo_forward.30} parent=1 // pred_check
      _
    $region31: #{yolo_forward.30} parent=1 // pred_check_branch
      %456 = sbr.rel (0) target = $region33
    $region32: #{yolo_forward.30} parent=1 // pred_region
      _
    $region33: #{yolo_forward.30} parent=1 // pred_fallthru
      _
    %457 = vsyncpa [#allocation4], 1

// kernel: yolo_forward.29
$region0: #{yolo_forward.29}
  #allocation0 [shape = 'u32[]', space=smem, size = 0x4, offset = 0x4, fixed_abs, tag = 'smem constant byte address 0x4 - core index']
  #allocation1 [shape = 'u32[144,128]{1,0:T(1,128)}', space=vmem, size = 0x12000, scoped, tag = 'internal scratch']
  #allocation2 [shape = 'f32[128,16]{1,0:T(8,128)}', space=vmem, size = 0x10000, scoped, tag = 'scratch operand']
  %s0 = inlined_call_operand.vmem [shape: bf16[128,72], index: 0, kind: input, shape index: {}]
  %s1 = inlined_call_operand.vmem [shape: bf16[72,16], index: 1, kind: input, shape index: {}]
  %s2 = inlined_call_operand.vmem [shape: f32[1,16], index: 2, kind: input, shape index: {}]
  %s3 = inlined_call_operand.vmem [shape: bf16[128,16], index: 3, kind: output, shape index: {}]
  %s4 = sld [smem:[#allocation0]]
  $region30: #{yolo_forward.29} parent=0
    _
  %s6 = ssub.s32 1, %s4
  %s7 = scalar_select 0, %s6, %s4
  // Predicated region
  $region2: #{yolo_forward.29} parent=0 // pred_check
    _
  $region3: #{yolo_forward.29} parent=0 // pred_check_branch
    %9 = sbr.rel (0) target = $region5
  $region4: #{yolo_forward.29} parent=0 // pred_region
    _
  $region5: #{yolo_forward.29} parent=0 // pred_fallthru
    _
  // Predicated region
  $region6: #{yolo_forward.29} parent=0 // pred_check
    _
  $region7: #{yolo_forward.29} parent=0 // pred_check_branch
    %11 = sbr.rel (0) target = $region9
  $region8: #{yolo_forward.29} parent=0 // pred_region
    _
  $region9: #{yolo_forward.29} parent=0 // pred_fallthru
    _
  // Predicated region
  $region10: #{yolo_forward.29} parent=0 // pred_check
    _
  $region11: #{yolo_forward.29} parent=0 // pred_check_branch
    %13 = sbr.rel (0) target = $region13
  $region12: #{yolo_forward.29} parent=0 // pred_region
    _
  $region13: #{yolo_forward.29} parent=0 // pred_fallthru
    _
  %p15 = scmp.eq.s32.totalorder 0, 0
  // Predicated region
  $region14: #{yolo_forward.29} parent=0 // pred_check
    %p16 = pneg %p15
  $region15: #{yolo_forward.29} parent=0 // pred_check_branch
    %18 = sbr.rel (%p16) target = $region17
  $region16: #{yolo_forward.29} parent=0 // pred_region
    %vm19 = vcmask 130048
    %20 = vst.msk [vmem:[#allocation2] sm:$0xff] %vm19, 0.0
    %21 = vst.msk [vmem:[#allocation2 + $0x8] sm:$0xff] %vm19, 0.0
    %22 = vst.msk [vmem:[#allocation2 + $0x10] sm:$0xff] %vm19, 0.0
    %23 = vst.msk [vmem:[#allocation2 + $0x18] sm:$0xff] %vm19, 0.0
    %24 = vst.msk [vmem:[#allocation2 + $0x20] sm:$0xff] %vm19, 0.0
    %25 = vst.msk [vmem:[#allocation2 + $0x28] sm:$0xff] %vm19, 0.0
    %26 = vst.msk [vmem:[#allocation2 + $0x30] sm:$0xff] %vm19, 0.0
    %27 = vst.msk [vmem:[#allocation2 + $0x38] sm:$0xff] %vm19, 0.0
    %28 = vst.msk [vmem:[#allocation2 + $0x40] sm:$0xff] %vm19, 0.0
    %29 = vst.msk [vmem:[#allocation2 + $0x48] sm:$0xff] %vm19, 0.0
    %30 = vst.msk [vmem:[#allocation2 + $0x50] sm:$0xff] %vm19, 0.0
    %31 = vst.msk [vmem:[#allocation2 + $0x58] sm:$0xff] %vm19, 0.0
    %32 = vst.msk [vmem:[#allocation2 + $0x60] sm:$0xff] %vm19, 0.0
    %33 = vst.msk [vmem:[#allocation2 + $0x68] sm:$0xff] %vm19, 0.0
    %34 = vst.msk [vmem:[#allocation2 + $0x70] sm:$0xff] %vm19, 0.0
    %35 = vst.msk [vmem:[#allocation2 + $0x78] sm:$0xff] %vm19, 0.0
  $region17: #{yolo_forward.29} parent=0 // pred_fallthru
    _
  %v36 = vld [vmem:[#allocation2] sm:$0xff]
  %v37 = vld [vmem:[#allocation2 + $0x8] sm:$0xff]
  %v38 = vld [vmem:[#allocation2 + $0x10] sm:$0xff]
  %v39 = vld [vmem:[#allocation2 + $0x18] sm:$0xff]
  %v40 = vld [vmem:[#allocation2 + $0x20] sm:$0xff]
  %v41 = vld [vmem:[#allocation2 + $0x28] sm:$0xff]
  %v42 = vld [vmem:[#allocation2 + $0x30] sm:$0xff]
  %v43 = vld [vmem:[#allocation2 + $0x38] sm:$0xff]
  %v44 = vld [vmem:[#allocation2 + $0x40] sm:$0xff]
  %v45 = vld [vmem:[#allocation2 + $0x48] sm:$0xff]
  %v46 = vld [vmem:[#allocation2 + $0x50] sm:$0xff]
  %v47 = vld [vmem:[#allocation2 + $0x58] sm:$0xff]
  %v48 = vld [vmem:[#allocation2 + $0x60] sm:$0xff]
  %v49 = vld [vmem:[#allocation2 + $0x68] sm:$0xff]
  %v50 = vld [vmem:[#allocation2 + $0x70] sm:$0xff]
  %v51 = vld [vmem:[#allocation2 + $0x78] sm:$0xff]
  %v52 = vld [vmem:[%s0] sm:$0xf]
  %v53 = vld [vmem:[%s0 + $0x4] sm:$0xf]
  %v54 = vld [vmem:[%s0 + $0x8] sm:$0xf]
  %v55 = vld [vmem:[%s0 + $0xc] sm:$0xf]
  %v56 = vld [vmem:[%s0 + $0x10] sm:$0xf]
  %v57 = vld [vmem:[%s0 + $0x14] sm:$0xf]
  %v58 = vld [vmem:[%s0 + $0x18] sm:$0xf]
  %v59 = vld [vmem:[%s0 + $0x1c] sm:$0xf]
  %v60 = vld [vmem:[%s0 + $0x20] sm:$0xf]
  %v61 = vld [vmem:[%s0 + $0x24] sm:$0xf]
  %v62 = vld [vmem:[%s0 + $0x28] sm:$0xf]
  %v63 = vld [vmem:[%s0 + $0x2c] sm:$0xf]
  %v64 = vld [vmem:[%s0 + $0x30] sm:$0xf]
  %v65 = vld [vmem:[%s0 + $0x34] sm:$0xf]
  %v66 = vld [vmem:[%s0 + $0x38] sm:$0xf]
  %v67 = vld [vmem:[%s0 + $0x3c] sm:$0xf]
  %v68 = vld [vmem:[%s1] sm:$0xf]
  %v69 = vld [vmem:[%s1 + $0x4] sm:$0xf]
  %v70 = vld [vmem:[%s1 + $0x8] sm:$0xf]
  %v71 = vld [vmem:[%s1 + $0xc] sm:$0xf]
  %v72 = vld [vmem:[%s1 + $0x10] sm:$0xf]
  %v73 = vld [vmem:[%s1 + $0x14] sm:$0xf]
  %v74 = vld [vmem:[%s1 + $0x18] sm:$0xf]
  %v75 = vld [vmem:[%s1 + $0x1c] sm:$0xf]
  %v76 = vld [vmem:[%s1 + $0x20] sm:$0xf]
  %v93 = vunpack.c.l.b16 %v52
  %v94 = vunpack.c.l.b16 %v53
  %v95 = vunpack.c.l.b16 %v54
  %v96 = vunpack.c.l.b16 %v55
  %v97 = vunpack.c.l.b16 %v56
  %v98 = vunpack.c.l.b16 %v57
  %v99 = vunpack.c.l.b16 %v58
  %v100 = vunpack.c.l.b16 %v59
  %v101 = vunpack.c.l.b16 %v60
  %v102 = vunpack.c.l.b16 %v61
  %v103 = vunpack.c.l.b16 %v62
  %v104 = vunpack.c.l.b16 %v63
  %v105 = vunpack.c.l.b16 %v64
  %v106 = vunpack.c.l.b16 %v65
  %v107 = vunpack.c.l.b16 %v66
  %v108 = vunpack.c.l.b16 %v67
  %v109 = vpack.c.b16 %v94, %v93
  %v110 = vpack.c.b16 %v96, %v95
  %v111 = vpack.c.b16 %v98, %v97
  %v112 = vpack.c.b16 %v100, %v99
  %v113 = vpack.c.b16 %v102, %v101
  %v114 = vpack.c.b16 %v104, %v103
  %v115 = vpack.c.b16 %v106, %v105
  %v116 = vpack.c.b16 %v108, %v107
  %v126 = vunpack.c.l.b16 %v68
  %v127 = vunpack.c.l.b16 %v69
  %v128 = vunpack.c.l.b16 %v70
  %v129 = vunpack.c.l.b16 %v71
  %v130 = vunpack.c.l.b16 %v72
  %v131 = vunpack.c.l.b16 %v73
  %v132 = vunpack.c.l.b16 %v74
  %v133 = vunpack.c.l.b16 %v75
  %v134 = vunpack.c.l.b16 %v76
  %v135 = vpack.c.b16 %v127, %v126
  %v136 = vpack.c.b16 %v129, %v128
  %v137 = vpack.c.b16 %v131, %v130
  %v138 = vpack.c.b16 %v133, %v132
  %v139 = vpack.c.b16 %v134, %v134
  %vm144 = vcmask 588800
  %v146 = vsel %vm144, %v109, 0
  %v149 = vsel %vm144, %v110, 0
  %v152 = vsel %vm144, %v111, 0
  %v155 = vsel %vm144, %v112, 0
  %v158 = vsel %vm144, %v113, 0
  %v161 = vsel %vm144, %v114, 0
  %v164 = vsel %vm144, %v115, 0
  %v167 = vsel %vm144, %v116, 0
  %vm169 = vcmask 1043456
  %v171 = vsel %vm169, %v139, 0
  %173 = vmatprep.subr.bf16.mxu0 0
  %174 = vmatpush1.bf16.msra.mxu0 0
  %175 = vmatprep.subr.bf16.mxu0 0
  %176 = vmatpush1.bf16.msra.mxu0 0
  %177 = vmatprep.subr.bf16.mxu0 0
  %178 = vmatpush1.bf16.msra.mxu0 0
  %179 = vmatprep.subr.bf16.mxu0 0
  %180 = vmatpush1.bf16.msra.mxu0 %v171
  %181 = vmatprep.subr.bf16.mxu0 0
  %182 = vmatpush1.bf16.msra.mxu0 %v138
  %183 = vmatprep.subr.bf16.mxu0 0
  %184 = vmatpush1.bf16.msra.mxu0 %v137
  %185 = vmatprep.subr.bf16.mxu0 0
  %186 = vmatpush1.bf16.msra.mxu0 %v136
  %187 = vmatprep.subr.bf16.mxu0 0
  %188 = vmatpush1.bf16.msra.mxu0 %v135
  %189 = vmatprep.subr.bf16.mxu0 0
  %190 = vmatpush2.bf16.msra.mxu0 0
  %191 = vmatprep.subr.bf16.mxu0 0
  %192 = vmatpush2.bf16.msra.mxu0 0
  %193 = vmatprep.subr.bf16.mxu0 0
  %194 = vmatpush2.bf16.msra.mxu0 0
  %195 = vmatprep.subr.bf16.mxu0 0
  %196 = vmatpush2.bf16.msra.mxu0 0
  %197 = vmatprep.subr.bf16.mxu0 0
  %198 = vmatpush2.bf16.msra.mxu0 0
  %199 = vmatprep.subr.bf16.mxu0 0
  %200 = vmatpush2.bf16.msra.mxu0 0
  %201 = vmatprep.subr.bf16.mxu0 0
  %202 = vmatpush2.bf16.msra.mxu0 0
  %203 = vmatprep.subr.bf16.mxu0 0
  %204 = vmatpush2.bf16.msra.mxu0 0
  %205 = vmatprep.mubr.bf16.mxu0 0
  %206 = vmatmul.mubr.bf16.gmra.mxu0 %v146
  %v207 = vpop.f32.mrf.mxu0
  %v208 = vadd.f32 0.0, %v207
  %v209 = vpop.f32.mrf.mxu0
  %v210 = vpop.f32.mrf.mxu0
  %v211 = vadd.f32 0.0, %v210
  %v212 = vpop.f32.mrf.mxu0
  %213 = vmatprep.mubr.bf16.mxu0 0
  %214 = vmatmul.mubr.bf16.gmra.mxu0 %v149
  %v215 = vpop.f32.mrf.mxu0
  %v216 = vadd.f32 0.0, %v215
  %v217 = vpop.f32.mrf.mxu0
  %v218 = vpop.f32.mrf.mxu0
  %v219 = vadd.f32 0.0, %v218
  %v220 = vpop.f32.mrf.mxu0
  %221 = vmatprep.mubr.bf16.mxu0 0
  %222 = vmatmul.mubr.bf16.gmra.mxu0 %v152
  %v223 = vpop.f32.mrf.mxu0
  %v224 = vadd.f32 0.0, %v223
  %v225 = vpop.f32.mrf.mxu0
  %v226 = vpop.f32.mrf.mxu0
  %v227 = vadd.f32 0.0, %v226
  %v228 = vpop.f32.mrf.mxu0
  %229 = vmatprep.mubr.bf16.mxu0 0
  %230 = vmatmul.mubr.bf16.gmra.mxu0 %v155
  %v231 = vpop.f32.mrf.mxu0
  %v232 = vadd.f32 0.0, %v231
  %v233 = vpop.f32.mrf.mxu0
  %v234 = vpop.f32.mrf.mxu0
  %v235 = vadd.f32 0.0, %v234
  %v236 = vpop.f32.mrf.mxu0
  %237 = vmatprep.mubr.bf16.mxu0 0
  %238 = vmatmul.mubr.bf16.gmra.mxu0 %v158
  %v239 = vpop.f32.mrf.mxu0
  %v240 = vadd.f32 0.0, %v239
  %v241 = vpop.f32.mrf.mxu0
  %v242 = vpop.f32.mrf.mxu0
  %v243 = vadd.f32 0.0, %v242
  %v244 = vpop.f32.mrf.mxu0
  %245 = vmatprep.mubr.bf16.mxu0 0
  %246 = vmatmul.mubr.bf16.gmra.mxu0 %v161
  %v247 = vpop.f32.mrf.mxu0
  %v248 = vadd.f32 0.0, %v247
  %v249 = vpop.f32.mrf.mxu0
  %v250 = vpop.f32.mrf.mxu0
  %v251 = vadd.f32 0.0, %v250
  %v252 = vpop.f32.mrf.mxu0
  %253 = vmatprep.mubr.bf16.mxu0 0
  %254 = vmatmul.mubr.bf16.gmra.mxu0 %v164
  %v255 = vpop.f32.mrf.mxu0
  %v256 = vadd.f32 0.0, %v255
  %v257 = vpop.f32.mrf.mxu0
  %v258 = vpop.f32.mrf.mxu0
  %v259 = vadd.f32 0.0, %v258
  %v260 = vpop.f32.mrf.mxu0
  %261 = vmatprep.mubr.bf16.mxu0 0
  %262 = vmatmul.mubr.bf16.gmra.mxu0 %v167
  %v263 = vpop.f32.mrf.mxu0
  %v264 = vadd.f32 0.0, %v263
  %v265 = vpop.f32.mrf.mxu0
  %v266 = vpop.f32.mrf.mxu0
  %v267 = vadd.f32 0.0, %v266
  %v268 = vpop.f32.mrf.mxu0
  %269 = vdwg.mxu0
  %v270 = vadd.f32 %v36, %v208
  %v271 = vadd.f32 %v37, %v211
  %v272 = vadd.f32 %v38, %v216
  %v273 = vadd.f32 %v39, %v219
  %v274 = vadd.f32 %v40, %v224
  %v275 = vadd.f32 %v41, %v227
  %v276 = vadd.f32 %v42, %v232
  %v277 = vadd.f32 %v43, %v235
  %v278 = vadd.f32 %v44, %v240
  %v279 = vadd.f32 %v45, %v243
  %v280 = vadd.f32 %v46, %v248
  %v281 = vadd.f32 %v47, %v251
  %v282 = vadd.f32 %v48, %v256
  %v283 = vadd.f32 %v49, %v259
  %v284 = vadd.f32 %v50, %v264
  %v285 = vadd.f32 %v51, %v267
  %vm286 = vcmask 130048
  %287 = vst.msk [vmem:[#allocation2] sm:$0xff] %vm286, %v270
  %288 = vst.msk [vmem:[#allocation2 + $0x8] sm:$0xff] %vm286, %v271
  %289 = vst.msk [vmem:[#allocation2 + $0x10] sm:$0xff] %vm286, %v272
  %290 = vst.msk [vmem:[#allocation2 + $0x18] sm:$0xff] %vm286, %v273
  %291 = vst.msk [vmem:[#allocation2 + $0x20] sm:$0xff] %vm286, %v274
  %292 = vst.msk [vmem:[#allocation2 + $0x28] sm:$0xff] %vm286, %v275
  %293 = vst.msk [vmem:[#allocation2 + $0x30] sm:$0xff] %vm286, %v276
  %294 = vst.msk [vmem:[#allocation2 + $0x38] sm:$0xff] %vm286, %v277
  %295 = vst.msk [vmem:[#allocation2 + $0x40] sm:$0xff] %vm286, %v278
  %296 = vst.msk [vmem:[#allocation2 + $0x48] sm:$0xff] %vm286, %v279
  %297 = vst.msk [vmem:[#allocation2 + $0x50] sm:$0xff] %vm286, %v280
  %298 = vst.msk [vmem:[#allocation2 + $0x58] sm:$0xff] %vm286, %v281
  %299 = vst.msk [vmem:[#allocation2 + $0x60] sm:$0xff] %vm286, %v282
  %300 = vst.msk [vmem:[#allocation2 + $0x68] sm:$0xff] %vm286, %v283
  %301 = vst.msk [vmem:[#allocation2 + $0x70] sm:$0xff] %vm286, %v284
  %302 = vst.msk [vmem:[#allocation2 + $0x78] sm:$0xff] %vm286, %v285
  // Predicated region
  $region18: #{yolo_forward.29} parent=0 // pred_check
    %p303 = pneg %p15
  $region19: #{yolo_forward.29} parent=0 // pred_check_branch
    %305 = sbr.rel (%p303) target = $region21
  $region20: #{yolo_forward.29} parent=0 // pred_region
    %v306 = vld [vmem:[#allocation2] sm:$0xff]
    %v307 = vld [vmem:[#allocation2 + $0x8] sm:$0xff]
    %v308 = vld [vmem:[#allocation2 + $0x10] sm:$0xff]
    %v309 = vld [vmem:[#allocation2 + $0x18] sm:$0xff]
    %v310 = vld [vmem:[#allocation2 + $0x20] sm:$0xff]
    %v311 = vld [vmem:[#allocation2 + $0x28] sm:$0xff]
    %v312 = vld [vmem:[#allocation2 + $0x30] sm:$0xff]
    %v313 = vld [vmem:[#allocation2 + $0x38] sm:$0xff]
    %v314 = vld [vmem:[#allocation2 + $0x40] sm:$0xff]
    %v315 = vld [vmem:[#allocation2 + $0x48] sm:$0xff]
    %v316 = vld [vmem:[#allocation2 + $0x50] sm:$0xff]
    %v317 = vld [vmem:[#allocation2 + $0x58] sm:$0xff]
    %v318 = vld [vmem:[#allocation2 + $0x60] sm:$0xff]
    %v319 = vld [vmem:[#allocation2 + $0x68] sm:$0xff]
    %v320 = vld [vmem:[#allocation2 + $0x70] sm:$0xff]
    %v321 = vld [vmem:[#allocation2 + $0x78] sm:$0xff]
    %v322 = vld [vmem:[%s2] sm:$0x1]
    %v324 = vlaneseq
    %v325 = vshrl.u32 %v324, 7
    %v326 = vsub.s32 0, %v325
    %v327 = vrot.slane %v322, %v326
    %v329 = vadd.f32 %v306, %v327
    %v330 = vadd.f32 %v307, %v327
    %v331 = vadd.f32 %v308, %v327
    %v332 = vadd.f32 %v309, %v327
    %v333 = vadd.f32 %v310, %v327
    %v334 = vadd.f32 %v311, %v327
    %v335 = vadd.f32 %v312, %v327
    %v336 = vadd.f32 %v313, %v327
    %v337 = vadd.f32 %v314, %v327
    %v338 = vadd.f32 %v315, %v327
    %v339 = vadd.f32 %v316, %v327
    %v340 = vadd.f32 %v317, %v327
    %v341 = vadd.f32 %v318, %v327
    %v342 = vadd.f32 %v319, %v327
    %v343 = vadd.f32 %v320, %v327
    %v344 = vadd.f32 %v321, %v327
    %vm345 = vcmp.gt.f32.partialorder %v329, 0.0
    %vm346 = vcmp.gt.f32.partialorder %v330, 0.0
    %vm347 = vcmp.gt.f32.partialorder %v331, 0.0
    %vm348 = vcmp.gt.f32.partialorder %v332, 0.0
    %vm349 = vcmp.gt.f32.partialorder %v333, 0.0
    %vm350 = vcmp.gt.f32.partialorder %v334, 0.0
    %vm351 = vcmp.gt.f32.partialorder %v335, 0.0
    %vm352 = vcmp.gt.f32.partialorder %v336, 0.0
    %vm353 = vcmp.gt.f32.partialorder %v337, 0.0
    %vm354 = vcmp.gt.f32.partialorder %v338, 0.0
    %vm355 = vcmp.gt.f32.partialorder %v339, 0.0
    %vm356 = vcmp.gt.f32.partialorder %v340, 0.0
    %vm357 = vcmp.gt.f32.partialorder %v341, 0.0
    %vm358 = vcmp.gt.f32.partialorder %v342, 0.0
    %vm359 = vcmp.gt.f32.partialorder %v343, 0.0
    %vm360 = vcmp.gt.f32.partialorder %v344, 0.0
    %v361 = vmul.f32 %v329, 0.01
    %v362 = vmul.f32 %v330, 0.01
    %v363 = vmul.f32 %v331, 0.01
    %v364 = vmul.f32 %v332, 0.01
    %v365 = vmul.f32 %v333, 0.01
    %v366 = vmul.f32 %v334, 0.01
    %v367 = vmul.f32 %v335, 0.01
    %v368 = vmul.f32 %v336, 0.01
    %v369 = vmul.f32 %v337, 0.01
    %v370 = vmul.f32 %v338, 0.01
    %v371 = vmul.f32 %v339, 0.01
    %v372 = vmul.f32 %v340, 0.01
    %v373 = vmul.f32 %v341, 0.01
    %v374 = vmul.f32 %v342, 0.01
    %v375 = vmul.f32 %v343, 0.01
    %v376 = vmul.f32 %v344, 0.01
    %v377 = vsel %vm345, %v329, %v361
    %v378 = vsel %vm346, %v330, %v362
    %v379 = vsel %vm347, %v331, %v363
    %v380 = vsel %vm348, %v332, %v364
    %v381 = vsel %vm349, %v333, %v365
    %v382 = vsel %vm350, %v334, %v366
    %v383 = vsel %vm351, %v335, %v367
    %v384 = vsel %vm352, %v336, %v368
    %v385 = vsel %vm353, %v337, %v369
    %v386 = vsel %vm354, %v338, %v370
    %v387 = vsel %vm355, %v339, %v371
    %v388 = vsel %vm356, %v340, %v372
    %v389 = vsel %vm357, %v341, %v373
    %v390 = vsel %vm358, %v342, %v374
    %v391 = vsel %vm359, %v343, %v375
    %v392 = vsel %vm360, %v344, %v376
    %v393 = vpack.c.bf16 %v378, %v377
    %v394 = vpack.c.bf16 %v380, %v379
    %v395 = vpack.c.bf16 %v382, %v381
    %v396 = vpack.c.bf16 %v384, %v383
    %v397 = vpack.c.bf16 %v386, %v385
    %v398 = vpack.c.bf16 %v388, %v387
    %v399 = vpack.c.bf16 %v390, %v389
    %v400 = vpack.c.bf16 %v392, %v391
    %v409 = vunpack.c.l.b16 %v393
    %v410 = vunpack.c.h.b16 %v393
    %v411 = vunpack.c.l.b16 %v394
    %v412 = vunpack.c.h.b16 %v394
    %v413 = vunpack.c.l.b16 %v395
    %v414 = vunpack.c.h.b16 %v395
    %v415 = vunpack.c.l.b16 %v396
    %v416 = vunpack.c.h.b16 %v396
    %v417 = vunpack.c.l.b16 %v397
    %v418 = vunpack.c.h.b16 %v397
    %v419 = vunpack.c.l.b16 %v398
    %v420 = vunpack.c.h.b16 %v398
    %v421 = vunpack.c.l.b16 %v399
    %v422 = vunpack.c.h.b16 %v399
    %v423 = vunpack.c.l.b16 %v400
    %v424 = vunpack.c.h.b16 %v400
    %v425 = vpack.c.b16 %v409, %v409
    %v426 = vpack.c.b16 %v410, %v410
    %v427 = vpack.c.b16 %v411, %v411
    %v428 = vpack.c.b16 %v412, %v412
    %v429 = vpack.c.b16 %v413, %v413
    %v430 = vpack.c.b16 %v414, %v414
    %v431 = vpack.c.b16 %v415, %v415
    %v432 = vpack.c.b16 %v416, %v416
    %v433 = vpack.c.b16 %v417, %v417
    %v434 = vpack.c.b16 %v418, %v418
    %v435 = vpack.c.b16 %v419, %v419
    %v436 = vpack.c.b16 %v420, %v420
    %v437 = vpack.c.b16 %v421, %v421
    %v438 = vpack.c.b16 %v422, %v422
    %v439 = vpack.c.b16 %v423, %v423
    %v440 = vpack.c.b16 %v424, %v424
    %vm457 = vcmask 125952
    %458 = vst.msk [vmem:[%s3] sm:$0xf] %vm457, %v425
    %459 = vst.msk [vmem:[%s3 + $0x4] sm:$0xf] %vm457, %v426
    %460 = vst.msk [vmem:[%s3 + $0x8] sm:$0xf] %vm457, %v427
    %461 = vst.msk [vmem:[%s3 + $0xc] sm:$0xf] %vm457, %v428
    %462 = vst.msk [vmem:[%s3 + $0x10] sm:$0xf] %vm457, %v429
    %463 = vst.msk [vmem:[%s3 + $0x14] sm:$0xf] %vm457, %v430
    %464 = vst.msk [vmem:[%s3 + $0x18] sm:$0xf] %vm457, %v431
    %465 = vst.msk [vmem:[%s3 + $0x1c] sm:$0xf] %vm457, %v432
    %466 = vst.msk [vmem:[%s3 + $0x20] sm:$0xf] %vm457, %v433
    %467 = vst.msk [vmem:[%s3 + $0x24] sm:$0xf] %vm457, %v434
    %468 = vst.msk [vmem:[%s3 + $0x28] sm:$0xf] %vm457, %v435
    %469 = vst.msk [vmem:[%s3 + $0x2c] sm:$0xf] %vm457, %v436
    %470 = vst.msk [vmem:[%s3 + $0x30] sm:$0xf] %vm457, %v437
    %471 = vst.msk [vmem:[%s3 + $0x34] sm:$0xf] %vm457, %v438
    %472 = vst.msk [vmem:[%s3 + $0x38] sm:$0xf] %vm457, %v439
    %473 = vst.msk [vmem:[%s3 + $0x3c] sm:$0xf] %vm457, %v440
  $region21: #{yolo_forward.29} parent=0 // pred_fallthru
    _
  // Predicated region
  $region22: #{yolo_forward.29} parent=0 // pred_check
    _
  $region23: #{yolo_forward.29} parent=0 // pred_check_branch
    %475 = sbr.rel (0) target = $region25
  $region24: #{yolo_forward.29} parent=0 // pred_region
    _
  $region25: #{yolo_forward.29} parent=0 // pred_fallthru
    _
  // Predicated region
  $region26: #{yolo_forward.29} parent=0 // pred_check
    _
  $region27: #{yolo_forward.29} parent=0 // pred_check_branch
    %477 = sbr.rel (0) target = $region29
  $region28: #{yolo_forward.29} parent=0 // pred_region
    _
  $region29: #{yolo_forward.29} parent=0 // pred_fallthru
    _

// kernel: yolo_forward.31
$region0: #{yolo_forward.31}
  #allocation0 [shape = 'u32[]', space=smem, size = 0x4, offset = 0x4, fixed_abs, tag = 'smem constant byte address 0x4 - core index']
  #allocation1 [shape = 'u32[144,128]{1,0:T(1,128)}', space=vmem, size = 0x12000, scoped, tag = 'internal scratch']
  #allocation2 [shape = 'f32[128,32]{1,0:T(8,128)}', space=vmem, size = 0x10000, scoped, tag = 'scratch operand']
  %s0 = inlined_call_operand.vmem [shape: bf16[128,144], index: 0, kind: input, shape index: {}]
  %s1 = inlined_call_operand.vmem [shape: bf16[144,32], index: 1, kind: input, shape index: {}]
  %s2 = inlined_call_operand.hbm [shape: f32[1,32], index: 2, kind: input, shape index: {}]
  %s3 = inlined_call_operand.vmem [shape: bf16[128,32], index: 3, kind: output, shape index: {}]
  %s4 = sld [smem:[#allocation0]]
  $region34: #{yolo_forward.31} parent=0
    _
  %s6 = ssub.s32 1, %s4
  %s7 = scalar_select 0, %s6, %s4
  $region1: #{yolo_forward.31} parent=0
    #allocation3 [shape = 'u8[512]{0}', space=vmem, size = 0x400, scoped, tag = 'input window, operand 2, single buffered']
    #allocation4 [shape = 's32[1]{0}', space=sflag, size = 0x4, scoped, tag = 'scoped memory for yolo_forward.31']
    %8 = vsyncpa [#allocation4], 0
    // Predicated region
    $region2: #{yolo_forward.31} parent=1 // pred_check
      _
    $region3: #{yolo_forward.31} parent=1 // pred_check_branch
      %10 = sbr.rel (0) target = $region5
    $region4: #{yolo_forward.31} parent=1 // pred_region
      _
    $region5: #{yolo_forward.31} parent=1 // pred_fallthru
      _
    // Predicated region
    $region6: #{yolo_forward.31} parent=1 // pred_check
      _
    $region7: #{yolo_forward.31} parent=1 // pred_check_branch
      %12 = sbr.rel (0) target = $region9
    $region8: #{yolo_forward.31} parent=1 // pred_region
      _
    $region9: #{yolo_forward.31} parent=1 // pred_fallthru
      _
    // Predicated region
    $region10: #{yolo_forward.31} parent=1 // pred_check
      _
    $region11: #{yolo_forward.31} parent=1 // pred_check_branch
      %14 = sbr.rel (0) target = $region13
    $region12: #{yolo_forward.31} parent=1 // pred_region
      %s16 = ssub.s32 16, 16
      %17 = vsyncadd [#allocation4], %s16
      %s19 = sshll.u32 [#allocation3], 4
      %s20 = int_to_ptr.vmem [resolvable:$true] %s19
      %22 = dma.hbm_to_vmem [thread:$0]  %s2, 16, %s20, [#allocation4]
    $region13: #{yolo_forward.31} parent=1 // pred_fallthru
      _
    // Predicated region
    $region14: #{yolo_forward.31} parent=1 // pred_check
      _
    $region15: #{yolo_forward.31} parent=1 // pred_check_branch
      %24 = sbr.rel (0) target = $region17
    $region16: #{yolo_forward.31} parent=1 // pred_region
      %25 = dma.done [#allocation4], 16
    $region17: #{yolo_forward.31} parent=1 // pred_fallthru
      _
    %p27 = scmp.eq.s32.totalorder 0, 0
    // Predicated region
    $region18: #{yolo_forward.31} parent=1 // pred_check
      %p28 = pneg %p27
    $region19: #{yolo_forward.31} parent=1 // pred_check_branch
      %30 = sbr.rel (%p28) target = $region21
    $region20: #{yolo_forward.31} parent=1 // pred_region
      %vm31 = vcmask 261120
      %32 = vst.msk [vmem:[#allocation2] sm:$0xff] %vm31, 0.0
      %33 = vst.msk [vmem:[#allocation2 + $0x8] sm:$0xff] %vm31, 0.0
      %34 = vst.msk [vmem:[#allocation2 + $0x10] sm:$0xff] %vm31, 0.0
      %35 = vst.msk [vmem:[#allocation2 + $0x18] sm:$0xff] %vm31, 0.0
      %36 = vst.msk [vmem:[#allocation2 + $0x20] sm:$0xff] %vm31, 0.0
      %37 = vst.msk [vmem:[#allocation2 + $0x28] sm:$0xff] %vm31, 0.0
      %38 = vst.msk [vmem:[#allocation2 + $0x30] sm:$0xff] %vm31, 0.0
      %39 = vst.msk [vmem:[#allocation2 + $0x38] sm:$0xff] %vm31, 0.0
      %40 = vst.msk [vmem:[#allocation2 + $0x40] sm:$0xff] %vm31, 0.0
      %41 = vst.msk [vmem:[#allocation2 + $0x48] sm:$0xff] %vm31, 0.0
      %42 = vst.msk [vmem:[#allocation2 + $0x50] sm:$0xff] %vm31, 0.0
      %43 = vst.msk [vmem:[#allocation2 + $0x58] sm:$0xff] %vm31, 0.0
      %44 = vst.msk [vmem:[#allocation2 + $0x60] sm:$0xff] %vm31, 0.0
      %45 = vst.msk [vmem:[#allocation2 + $0x68] sm:$0xff] %vm31, 0.0
      %46 = vst.msk [vmem:[#allocation2 + $0x70] sm:$0xff] %vm31, 0.0
      %47 = vst.msk [vmem:[#allocation2 + $0x78] sm:$0xff] %vm31, 0.0
    $region21: #{yolo_forward.31} parent=1 // pred_fallthru
      _
    %v48 = vld [vmem:[#allocation2] sm:$0xff]
    %v49 = vld [vmem:[#allocation2 + $0x8] sm:$0xff]
    %v50 = vld [vmem:[#allocation2 + $0x10] sm:$0xff]
    %v51 = vld [vmem:[#allocation2 + $0x18] sm:$0xff]
    %v52 = vld [vmem:[#allocation2 + $0x20] sm:$0xff]
    %v53 = vld [vmem:[#allocation2 + $0x28] sm:$0xff]
    %v54 = vld [vmem:[#allocation2 + $0x30] sm:$0xff]
    %v55 = vld [vmem:[#allocation2 + $0x38] sm:$0xff]
    %v56 = vld [vmem:[#allocation2 + $0x40] sm:$0xff]
    %v57 = vld [vmem:[#allocation2 + $0x48] sm:$0xff]
    %v58 = vld [vmem:[#allocation2 + $0x50] sm:$0xff]
    %v59 = vld [vmem:[#allocation2 + $0x58] sm:$0xff]
    %v60 = vld [vmem:[#allocation2 + $0x60] sm:$0xff]
    %v61 = vld [vmem:[#allocation2 + $0x68] sm:$0xff]
    %v62 = vld [vmem:[#allocation2 + $0x70] sm:$0xff]
    %v63 = vld [vmem:[#allocation2 + $0x78] sm:$0xff]
    %v64 = vld [vmem:[%s0] sm:$0xff]
    %v65 = vld [vmem:[%s0 + $0x8] sm:$0xff]
    %v66 = vld [vmem:[%s0 + $0x10] sm:$0xff]
    %v67 = vld [vmem:[%s0 + $0x18] sm:$0xff]
    %v68 = vld [vmem:[%s0 + $0x20] sm:$0xff]
    %v69 = vld [vmem:[%s0 + $0x28] sm:$0xff]
    %v70 = vld [vmem:[%s0 + $0x30] sm:$0xff]
    %v71 = vld [vmem:[%s0 + $0x38] sm:$0xff]
    %v72 = vld [vmem:[%s0 + $0x40] sm:$0xff]
    %v73 = vld [vmem:[%s0 + $0x48] sm:$0xff]
    %v74 = vld [vmem:[%s0 + $0x50] sm:$0xff]
    %v75 = vld [vmem:[%s0 + $0x58] sm:$0xff]
    %v76 = vld [vmem:[%s0 + $0x60] sm:$0xff]
    %v77 = vld [vmem:[%s0 + $0x68] sm:$0xff]
    %v78 = vld [vmem:[%s0 + $0x70] sm:$0xff]
    %v79 = vld [vmem:[%s0 + $0x78] sm:$0xff]
    %v80 = vld [vmem:[%s1] sm:$0xf]
    %v81 = vld [vmem:[%s1 + $0x4] sm:$0xf]
    %v82 = vld [vmem:[%s1 + $0x8] sm:$0xf]
    %v83 = vld [vmem:[%s1 + $0xc] sm:$0xf]
    %v84 = vld [vmem:[%s1 + $0x10] sm:$0xf]
    %v85 = vld [vmem:[%s1 + $0x14] sm:$0xf]
    %v86 = vld [vmem:[%s1 + $0x18] sm:$0xf]
    %v87 = vld [vmem:[%s1 + $0x1c] sm:$0xf]
    %v88 = vld [vmem:[%s1 + $0x20] sm:$0xf]
    %v89 = vld [vmem:[%s1 + $0x24] sm:$0xf]
    %v90 = vld [vmem:[%s1 + $0x28] sm:$0xf]
    %v91 = vld [vmem:[%s1 + $0x2c] sm:$0xf]
    %v92 = vld [vmem:[%s1 + $0x30] sm:$0xf]
    %v93 = vld [vmem:[%s1 + $0x34] sm:$0xf]
    %v94 = vld [vmem:[%s1 + $0x38] sm:$0xf]
    %v95 = vld [vmem:[%s1 + $0x3c] sm:$0xf]
    %v96 = vld [vmem:[%s1 + $0x40] sm:$0xf]
    %v97 = vld [vmem:[%s1 + $0x44] sm:$0xf]
    %v114 = vunpack.c.l.b16 %v64
    %v115 = vunpack.c.h.b16 %v64
    %v116 = vunpack.c.l.b16 %v65
    %v117 = vunpack.c.h.b16 %v65
    %v118 = vunpack.c.l.b16 %v66
    %v119 = vunpack.c.h.b16 %v66
    %v120 = vunpack.c.l.b16 %v67
    %v121 = vunpack.c.h.b16 %v67
    %v122 = vunpack.c.l.b16 %v68
    %v123 = vunpack.c.h.b16 %v68
    %v124 = vunpack.c.l.b16 %v69
    %v125 = vunpack.c.h.b16 %v69
    %v126 = vunpack.c.l.b16 %v70
    %v127 = vunpack.c.h.b16 %v70
    %v128 = vunpack.c.l.b16 %v71
    %v129 = vunpack.c.h.b16 %v71
    %v130 = vunpack.c.l.b16 %v72
    %v131 = vunpack.c.h.b16 %v72
    %v132 = vunpack.c.l.b16 %v73
    %v133 = vunpack.c.h.b16 %v73
    %v134 = vunpack.c.l.b16 %v74
    %v135 = vunpack.c.h.b16 %v74
    %v136 = vunpack.c.l.b16 %v75
    %v137 = vunpack.c.h.b16 %v75
    %v138 = vunpack.c.l.b16 %v76
    %v139 = vunpack.c.h.b16 %v76
    %v140 = vunpack.c.l.b16 %v77
    %v141 = vunpack.c.h.b16 %v77
    %v142 = vunpack.c.l.b16 %v78
    %v143 = vunpack.c.h.b16 %v78
    %v144 = vunpack.c.l.b16 %v79
    %v145 = vunpack.c.h.b16 %v79
    %v146 = vpack.c.b16 %v116, %v114
    %v147 = vpack.c.b16 %v117, %v115
    %v148 = vpack.c.b16 %v120, %v118
    %v149 = vpack.c.b16 %v121, %v119
    %v150 = vpack.c.b16 %v124, %v122
    %v151 = vpack.c.b16 %v125, %v123
    %v152 = vpack.c.b16 %v128, %v126
    %v153 = vpack.c.b16 %v129, %v127
    %v154 = vpack.c.b16 %v132, %v130
    %v155 = vpack.c.b16 %v133, %v131
    %v156 = vpack.c.b16 %v136, %v134
    %v157 = vpack.c.b16 %v137, %v135
    %v158 = vpack.c.b16 %v140, %v138
    %v159 = vpack.c.b16 %v141, %v139
    %v160 = vpack.c.b16 %v144, %v142
    %v161 = vpack.c.b16 %v145, %v143
    %v188 = vunpack.c.l.b16 %v80
    %v189 = vunpack.c.l.b16 %v81
    %v190 = vunpack.c.l.b16 %v82
    %v191 = vunpack.c.l.b16 %v83
    %v192 = vunpack.c.l.b16 %v84
    %v193 = vunpack.c.l.b16 %v85
    %v194 = vunpack.c.l.b16 %v86
    %v195 = vunpack.c.l.b16 %v87
    %v196 = vunpack.c.l.b16 %v88
    %v197 = vunpack.c.l.b16 %v89
    %v198 = vunpack.c.l.b16 %v90
    %v199 = vunpack.c.l.b16 %v91
    %v200 = vunpack.c.l.b16 %v92
    %v201 = vunpack.c.l.b16 %v93
    %v202 = vunpack.c.l.b16 %v94
    %v203 = vunpack.c.l.b16 %v95
    %v204 = vunpack.c.l.b16 %v96
    %v205 = vunpack.c.l.b16 %v97
    %v206 = vpack.c.b16 %v189, %v188
    %v207 = vpack.c.b16 %v191, %v190
    %v208 = vpack.c.b16 %v193, %v192
    %v209 = vpack.c.b16 %v195, %v194
    %v210 = vpack.c.b16 %v197, %v196
    %v211 = vpack.c.b16 %v199, %v198
    %v212 = vpack.c.b16 %v201, %v200
    %v213 = vpack.c.b16 %v203, %v202
    %v214 = vpack.c.b16 %v205, %v204
    %vm224 = vcmask 130048
    %v226 = vsel %vm224, %v147, 0
    %v229 = vsel %vm224, %v149, 0
    %v232 = vsel %vm224, %v151, 0
    %v235 = vsel %vm224, %v153, 0
    %v238 = vsel %vm224, %v155, 0
    %v241 = vsel %vm224, %v157, 0
    %v244 = vsel %vm224, %v159, 0
    %v247 = vsel %vm224, %v161, 0
    %249 = vmatprep.subr.bf16.mxu0 0
    %250 = vmatpush1.bf16.msra.mxu0 %v213
    %251 = vmatprep.subr.bf16.mxu0 0
    %252 = vmatpush1.bf16.msra.mxu0 %v212
    %253 = vmatprep.subr.bf16.mxu0 0
    %254 = vmatpush1.bf16.msra.mxu0 %v211
    %255 = vmatprep.subr.bf16.mxu0 0
    %256 = vmatpush1.bf16.msra.mxu0 %v210
    %257 = vmatprep.subr.bf16.mxu0 0
    %258 = vmatpush1.bf16.msra.mxu0 %v209
    %259 = vmatprep.subr.bf16.mxu0 0
    %260 = vmatpush1.bf16.msra.mxu0 %v208
    %261 = vmatprep.subr.bf16.mxu0 0
    %262 = vmatpush1.bf16.msra.mxu0 %v207
    %263 = vmatprep.subr.bf16.mxu0 0
    %264 = vmatpush1.bf16.msra.mxu0 %v206
    %265 = vmatprep.subr.bf16.mxu0 0
    %266 = vmatpush2.bf16.msra.mxu0 0
    %267 = vmatprep.subr.bf16.mxu0 0
    %268 = vmatpush2.bf16.msra.mxu0 0
    %269 = vmatprep.subr.bf16.mxu0 0
    %270 = vmatpush2.bf16.msra.mxu0 0
    %271 = vmatprep.subr.bf16.mxu0 0
    %272 = vmatpush2.bf16.msra.mxu0 0
    %273 = vmatprep.subr.bf16.mxu0 0
    %274 = vmatpush2.bf16.msra.mxu0 0
    %275 = vmatprep.subr.bf16.mxu0 0
    %276 = vmatpush2.bf16.msra.mxu0 0
    %277 = vmatprep.subr.bf16.mxu0 0
    %278 = vmatpush2.bf16.msra.mxu0 0
    %279 = vmatprep.subr.bf16.mxu0 0
    %280 = vmatpush2.bf16.msra.mxu0 %v214
    %281 = vmatprep.mubr.bf16.mxu0 %v226
    %282 = vmatmul.mubr.bf16.gmra.mxu0 %v146
    %v283 = vpop.f32.mrf.mxu0
    %v284 = vadd.f32 0.0, %v283
    %v285 = vpop.f32.mrf.mxu0
    %v286 = vpop.f32.mrf.mxu0
    %v287 = vadd.f32 0.0, %v286
    %v288 = vpop.f32.mrf.mxu0
    %289 = vmatprep.mubr.bf16.mxu0 %v229
    %290 = vmatmul.mubr.bf16.gmra.mxu0 %v148
    %v291 = vpop.f32.mrf.mxu0
    %v292 = vadd.f32 0.0, %v291
    %v293 = vpop.f32.mrf.mxu0
    %v294 = vpop.f32.mrf.mxu0
    %v295 = vadd.f32 0.0, %v294
    %v296 = vpop.f32.mrf.mxu0
    %297 = vmatprep.mubr.bf16.mxu0 %v232
    %298 = vmatmul.mubr.bf16.gmra.mxu0 %v150
    %v299 = vpop.f32.mrf.mxu0
    %v300 = vadd.f32 0.0, %v299
    %v301 = vpop.f32.mrf.mxu0
    %v302 = vpop.f32.mrf.mxu0
    %v303 = vadd.f32 0.0, %v302
    %v304 = vpop.f32.mrf.mxu0
    %305 = vmatprep.mubr.bf16.mxu0 %v235
    %306 = vmatmul.mubr.bf16.gmra.mxu0 %v152
    %v307 = vpop.f32.mrf.mxu0
    %v308 = vadd.f32 0.0, %v307
    %v309 = vpop.f32.mrf.mxu0
    %v310 = vpop.f32.mrf.mxu0
    %v311 = vadd.f32 0.0, %v310
    %v312 = vpop.f32.mrf.mxu0
    %313 = vmatprep.mubr.bf16.mxu0 %v238
    %314 = vmatmul.mubr.bf16.gmra.mxu0 %v154
    %v315 = vpop.f32.mrf.mxu0
    %v316 = vadd.f32 0.0, %v315
    %v317 = vpop.f32.mrf.mxu0
    %v318 = vpop.f32.mrf.mxu0
    %v319 = vadd.f32 0.0, %v318
    %v320 = vpop.f32.mrf.mxu0
    %321 = vmatprep.mubr.bf16.mxu0 %v241
    %322 = vmatmul.mubr.bf16.gmra.mxu0 %v156
    %v323 = vpop.f32.mrf.mxu0
    %v324 = vadd.f32 0.0, %v323
    %v325 = vpop.f32.mrf.mxu0
    %v326 = vpop.f32.mrf.mxu0
    %v327 = vadd.f32 0.0, %v326
    %v328 = vpop.f32.mrf.mxu0
    %329 = vmatprep.mubr.bf16.mxu0 %v244
    %330 = vmatmul.mubr.bf16.gmra.mxu0 %v158
    %v331 = vpop.f32.mrf.mxu0
    %v332 = vadd.f32 0.0, %v331
    %v333 = vpop.f32.mrf.mxu0
    %v334 = vpop.f32.mrf.mxu0
    %v335 = vadd.f32 0.0, %v334
    %v336 = vpop.f32.mrf.mxu0
    %337 = vmatprep.mubr.bf16.mxu0 %v247
    %338 = vmatmul.mubr.bf16.gmra.mxu0 %v160
    %v339 = vpop.f32.mrf.mxu0
    %v340 = vadd.f32 0.0, %v339
    %v341 = vpop.f32.mrf.mxu0
    %v342 = vpop.f32.mrf.mxu0
    %v343 = vadd.f32 0.0, %v342
    %v344 = vpop.f32.mrf.mxu0
    %345 = vdwg.mxu0
    %v346 = vadd.f32 %v48, %v284
    %v347 = vadd.f32 %v49, %v287
    %v348 = vadd.f32 %v50, %v292
    %v349 = vadd.f32 %v51, %v295
    %v350 = vadd.f32 %v52, %v300
    %v351 = vadd.f32 %v53, %v303
    %v352 = vadd.f32 %v54, %v308
    %v353 = vadd.f32 %v55, %v311
    %v354 = vadd.f32 %v56, %v316
    %v355 = vadd.f32 %v57, %v319
    %v356 = vadd.f32 %v58, %v324
    %v357 = vadd.f32 %v59, %v327
    %v358 = vadd.f32 %v60, %v332
    %v359 = vadd.f32 %v61, %v335
    %v360 = vadd.f32 %v62, %v340
    %v361 = vadd.f32 %v63, %v343
    %vm362 = vcmask 261120
    %363 = vst.msk [vmem:[#allocation2] sm:$0xff] %vm362, %v346
    %364 = vst.msk [vmem:[#allocation2 + $0x8] sm:$0xff] %vm362, %v347
    %365 = vst.msk [vmem:[#allocation2 + $0x10] sm:$0xff] %vm362, %v348
    %366 = vst.msk [vmem:[#allocation2 + $0x18] sm:$0xff] %vm362, %v349
    %367 = vst.msk [vmem:[#allocation2 + $0x20] sm:$0xff] %vm362, %v350
    %368 = vst.msk [vmem:[#allocation2 + $0x28] sm:$0xff] %vm362, %v351
    %369 = vst.msk [vmem:[#allocation2 + $0x30] sm:$0xff] %vm362, %v352
    %370 = vst.msk [vmem:[#allocation2 + $0x38] sm:$0xff] %vm362, %v353
    %371 = vst.msk [vmem:[#allocation2 + $0x40] sm:$0xff] %vm362, %v354
    %372 = vst.msk [vmem:[#allocation2 + $0x48] sm:$0xff] %vm362, %v355
    %373 = vst.msk [vmem:[#allocation2 + $0x50] sm:$0xff] %vm362, %v356
    %374 = vst.msk [vmem:[#allocation2 + $0x58] sm:$0xff] %vm362, %v357
    %375 = vst.msk [vmem:[#allocation2 + $0x60] sm:$0xff] %vm362, %v358
    %376 = vst.msk [vmem:[#allocation2 + $0x68] sm:$0xff] %vm362, %v359
    %377 = vst.msk [vmem:[#allocation2 + $0x70] sm:$0xff] %vm362, %v360
    %378 = vst.msk [vmem:[#allocation2 + $0x78] sm:$0xff] %vm362, %v361
    // Predicated region
    $region22: #{yolo_forward.31} parent=1 // pred_check
      %p379 = pneg %p27
    $region23: #{yolo_forward.31} parent=1 // pred_check_branch
      %381 = sbr.rel (%p379) target = $region25
    $region24: #{yolo_forward.31} parent=1 // pred_region
      %v382 = vld [vmem:[#allocation2] sm:$0xff]
      %v383 = vld [vmem:[#allocation2 + $0x8] sm:$0xff]
      %v384 = vld [vmem:[#allocation2 + $0x10] sm:$0xff]
      %v385 = vld [vmem:[#allocation2 + $0x18] sm:$0xff]
      %v386 = vld [vmem:[#allocation2 + $0x20] sm:$0xff]
      %v387 = vld [vmem:[#allocation2 + $0x28] sm:$0xff]
      %v388 = vld [vmem:[#allocation2 + $0x30] sm:$0xff]
      %v389 = vld [vmem:[#allocation2 + $0x38] sm:$0xff]
      %v390 = vld [vmem:[#allocation2 + $0x40] sm:$0xff]
      %v391 = vld [vmem:[#allocation2 + $0x48] sm:$0xff]
      %v392 = vld [vmem:[#allocation2 + $0x50] sm:$0xff]
      %v393 = vld [vmem:[#allocation2 + $0x58] sm:$0xff]
      %v394 = vld [vmem:[#allocation2 + $0x60] sm:$0xff]
      %v395 = vld [vmem:[#allocation2 + $0x68] sm:$0xff]
      %v396 = vld [vmem:[#allocation2 + $0x70] sm:$0xff]
      %v397 = vld [vmem:[#allocation2 + $0x78] sm:$0xff]
      %v398 = vld [vmem:[#allocation3] sm:$0x1]
      %v400 = vlaneseq
      %v401 = vshrl.u32 %v400, 7
      %v402 = vsub.s32 0, %v401
      %v403 = vrot.slane %v398, %v402
      %v405 = vadd.f32 %v382, %v403
      %v406 = vadd.f32 %v383, %v403
      %v407 = vadd.f32 %v384, %v403
      %v408 = vadd.f32 %v385, %v403
      %v409 = vadd.f32 %v386, %v403
      %v410 = vadd.f32 %v387, %v403
      %v411 = vadd.f32 %v388, %v403
      %v412 = vadd.f32 %v389, %v403
      %v413 = vadd.f32 %v390, %v403
      %v414 = vadd.f32 %v391, %v403
      %v415 = vadd.f32 %v392, %v403
      %v416 = vadd.f32 %v393, %v403
      %v417 = vadd.f32 %v394, %v403
      %v418 = vadd.f32 %v395, %v403
      %v419 = vadd.f32 %v396, %v403
      %v420 = vadd.f32 %v397, %v403
      %vm421 = vcmp.gt.f32.partialorder %v405, 0.0
      %vm422 = vcmp.gt.f32.partialorder %v406, 0.0
      %vm423 = vcmp.gt.f32.partialorder %v407, 0.0
      %vm424 = vcmp.gt.f32.partialorder %v408, 0.0
      %vm425 = vcmp.gt.f32.partialorder %v409, 0.0
      %vm426 = vcmp.gt.f32.partialorder %v410, 0.0
      %vm427 = vcmp.gt.f32.partialorder %v411, 0.0
      %vm428 = vcmp.gt.f32.partialorder %v412, 0.0
      %vm429 = vcmp.gt.f32.partialorder %v413, 0.0
      %vm430 = vcmp.gt.f32.partialorder %v414, 0.0
      %vm431 = vcmp.gt.f32.partialorder %v415, 0.0
      %vm432 = vcmp.gt.f32.partialorder %v416, 0.0
      %vm433 = vcmp.gt.f32.partialorder %v417, 0.0
      %vm434 = vcmp.gt.f32.partialorder %v418, 0.0
      %vm435 = vcmp.gt.f32.partialorder %v419, 0.0
      %vm436 = vcmp.gt.f32.partialorder %v420, 0.0
      %v437 = vmul.f32 %v405, 0.01
      %v438 = vmul.f32 %v406, 0.01
      %v439 = vmul.f32 %v407, 0.01
      %v440 = vmul.f32 %v408, 0.01
      %v441 = vmul.f32 %v409, 0.01
      %v442 = vmul.f32 %v410, 0.01
      %v443 = vmul.f32 %v411, 0.01
      %v444 = vmul.f32 %v412, 0.01
      %v445 = vmul.f32 %v413, 0.01
      %v446 = vmul.f32 %v414, 0.01
      %v447 = vmul.f32 %v415, 0.01
      %v448 = vmul.f32 %v416, 0.01
      %v449 = vmul.f32 %v417, 0.01
      %v450 = vmul.f32 %v418, 0.01
      %v451 = vmul.f32 %v419, 0.01
      %v452 = vmul.f32 %v420, 0.01
      %v453 = vsel %vm421, %v405, %v437
      %v454 = vsel %vm422, %v406, %v438
      %v455 = vsel %vm423, %v407, %v439
      %v456 = vsel %vm424, %v408, %v440
      %v457 = vsel %vm425, %v409, %v441
      %v458 = vsel %vm426, %v410, %v442
      %v459 = vsel %vm427, %v411, %v443
      %v460 = vsel %vm428, %v412, %v444
      %v461 = vsel %vm429, %v413, %v445
      %v462 = vsel %vm430, %v414, %v446
      %v463 = vsel %vm431, %v415, %v447
      %v464 = vsel %vm432, %v416, %v448
      %v465 = vsel %vm433, %v417, %v449
      %v466 = vsel %vm434, %v418, %v450
      %v467 = vsel %vm435, %v419, %v451
      %v468 = vsel %vm436, %v420, %v452
      %v469 = vpack.c.bf16 %v454, %v453
      %v470 = vpack.c.bf16 %v456, %v455
      %v471 = vpack.c.bf16 %v458, %v457
      %v472 = vpack.c.bf16 %v460, %v459
      %v473 = vpack.c.bf16 %v462, %v461
      %v474 = vpack.c.bf16 %v464, %v463
      %v475 = vpack.c.bf16 %v466, %v465
      %v476 = vpack.c.bf16 %v468, %v467
      %v485 = vunpack.c.l.b16 %v469
      %v486 = vunpack.c.h.b16 %v469
      %v487 = vunpack.c.l.b16 %v470
      %v488 = vunpack.c.h.b16 %v470
      %v489 = vunpack.c.l.b16 %v471
      %v490 = vunpack.c.h.b16 %v471
      %v491 = vunpack.c.l.b16 %v472
      %v492 = vunpack.c.h.b16 %v472
      %v493 = vunpack.c.l.b16 %v473
      %v494 = vunpack.c.h.b16 %v473
      %v495 = vunpack.c.l.b16 %v474
      %v496 = vunpack.c.h.b16 %v474
      %v497 = vunpack.c.l.b16 %v475
      %v498 = vunpack.c.h.b16 %v475
      %v499 = vunpack.c.l.b16 %v476
      %v500 = vunpack.c.h.b16 %v476
      %v501 = vpack.c.b16 %v485, %v485
      %v502 = vpack.c.b16 %v486, %v486
      %v503 = vpack.c.b16 %v487, %v487
      %v504 = vpack.c.b16 %v488, %v488
      %v505 = vpack.c.b16 %v489, %v489
      %v506 = vpack.c.b16 %v490, %v490
      %v507 = vpack.c.b16 %v491, %v491
      %v508 = vpack.c.b16 %v492, %v492
      %v509 = vpack.c.b16 %v493, %v493
      %v510 = vpack.c.b16 %v494, %v494
      %v511 = vpack.c.b16 %v495, %v495
      %v512 = vpack.c.b16 %v496, %v496
      %v513 = vpack.c.b16 %v497, %v497
      %v514 = vpack.c.b16 %v498, %v498
      %v515 = vpack.c.b16 %v499, %v499
      %v516 = vpack.c.b16 %v500, %v500
      %vm533 = vcmask 257024
      %534 = vst.msk [vmem:[%s3] sm:$0xf] %vm533, %v501
      %535 = vst.msk [vmem:[%s3 + $0x4] sm:$0xf] %vm533, %v502
      %536 = vst.msk [vmem:[%s3 + $0x8] sm:$0xf] %vm533, %v503
      %537 = vst.msk [vmem:[%s3 + $0xc] sm:$0xf] %vm533, %v504
      %538 = vst.msk [vmem:[%s3 + $0x10] sm:$0xf] %vm533, %v505
      %539 = vst.msk [vmem:[%s3 + $0x14] sm:$0xf] %vm533, %v506
      %540 = vst.msk [vmem:[%s3 + $0x18] sm:$0xf] %vm533, %v507
      %541 = vst.msk [vmem:[%s3 + $0x1c] sm:$0xf] %vm533, %v508
      %542 = vst.msk [vmem:[%s3 + $0x20] sm:$0xf] %vm533, %v509
      %543 = vst.msk [vmem:[%s3 + $0x24] sm:$0xf] %vm533, %v510
      %544 = vst.msk [vmem:[%s3 + $0x28] sm:$0xf] %vm533, %v511
      %545 = vst.msk [vmem:[%s3 + $0x2c] sm:$0xf] %vm533, %v512
      %546 = vst.msk [vmem:[%s3 + $0x30] sm:$0xf] %vm533, %v513
      %547 = vst.msk [vmem:[%s3 + $0x34] sm:$0xf] %vm533, %v514
      %548 = vst.msk [vmem:[%s3 + $0x38] sm:$0xf] %vm533, %v515
      %549 = vst.msk [vmem:[%s3 + $0x3c] sm:$0xf] %vm533, %v516
    $region25: #{yolo_forward.31} parent=1 // pred_fallthru
      _
    // Predicated region
    $region26: #{yolo_forward.31} parent=1 // pred_check
      _
    $region27: #{yolo_forward.31} parent=1 // pred_check_branch
      %551 = sbr.rel (0) target = $region29
    $region28: #{yolo_forward.31} parent=1 // pred_region
      _
    $region29: #{yolo_forward.31} parent=1 // pred_fallthru
      _
    // Predicated region
    $region30: #{yolo_forward.31} parent=1 // pred_check
      _
    $region31: #{yolo_forward.31} parent=1 // pred_check_branch
      %553 = sbr.rel (0) target = $region33
    $region32: #{yolo_forward.31} parent=1 // pred_region
      _
    $region33: #{yolo_forward.31} parent=1 // pred_fallthru
      _
    %554 = vsyncpa [#allocation4], 1

// kernel: yolo_forward.32
$region0: #{yolo_forward.32}
  #allocation0 [shape = 'u32[]', space=smem, size = 0x4, offset = 0x4, fixed_abs, tag = 'smem constant byte address 0x4 - core index']
  #allocation1 [shape = 'u32[144,128]{1,0:T(1,128)}', space=vmem, size = 0x12000, scoped, tag = 'internal scratch']
  #allocation2 [shape = 'f32[32,16]{1,0:T(8,128)}', space=vmem, size = 0x4000, scoped, tag = 'scratch operand']
  %s0 = inlined_call_operand.vmem [shape: bf16[32,32], index: 0, kind: input, shape index: {}]
  %s1 = inlined_call_operand.vmem [shape: bf16[32,16], index: 1, kind: input, shape index: {}]
  %s2 = inlined_call_operand.vmem [shape: f32[1,16], index: 2, kind: input, shape index: {}]
  %s3 = inlined_call_operand.vmem [shape: bf16[32,16], index: 3, kind: output, shape index: {}]
  %s4 = sld [smem:[#allocation0]]
  $region30: #{yolo_forward.32} parent=0
    _
  %s6 = ssub.s32 1, %s4
  %s7 = scalar_select 0, %s6, %s4
  // Predicated region
  $region2: #{yolo_forward.32} parent=0 // pred_check
    _
  $region3: #{yolo_forward.32} parent=0 // pred_check_branch
    %9 = sbr.rel (0) target = $region5
  $region4: #{yolo_forward.32} parent=0 // pred_region
    _
  $region5: #{yolo_forward.32} parent=0 // pred_fallthru
    _
  // Predicated region
  $region6: #{yolo_forward.32} parent=0 // pred_check
    _
  $region7: #{yolo_forward.32} parent=0 // pred_check_branch
    %11 = sbr.rel (0) target = $region9
  $region8: #{yolo_forward.32} parent=0 // pred_region
    _
  $region9: #{yolo_forward.32} parent=0 // pred_fallthru
    _
  // Predicated region
  $region10: #{yolo_forward.32} parent=0 // pred_check
    _
  $region11: #{yolo_forward.32} parent=0 // pred_check_branch
    %13 = sbr.rel (0) target = $region13
  $region12: #{yolo_forward.32} parent=0 // pred_region
    _
  $region13: #{yolo_forward.32} parent=0 // pred_fallthru
    _
  %p15 = scmp.eq.s32.totalorder 0, 0
  // Predicated region
  $region14: #{yolo_forward.32} parent=0 // pred_check
    %p16 = pneg %p15
  $region15: #{yolo_forward.32} parent=0 // pred_check_branch
    %18 = sbr.rel (%p16) target = $region17
  $region16: #{yolo_forward.32} parent=0 // pred_region
    %vm19 = vcmask 130048
    %20 = vst.msk [vmem:[#allocation2] sm:$0xff] %vm19, 0.0
    %21 = vst.msk [vmem:[#allocation2 + $0x8] sm:$0xff] %vm19, 0.0
    %22 = vst.msk [vmem:[#allocation2 + $0x10] sm:$0xff] %vm19, 0.0
    %23 = vst.msk [vmem:[#allocation2 + $0x18] sm:$0xff] %vm19, 0.0
  $region17: #{yolo_forward.32} parent=0 // pred_fallthru
    _
  %v24 = vld [vmem:[#allocation2] sm:$0xff]
  %v25 = vld [vmem:[#allocation2 + $0x8] sm:$0xff]
  %v26 = vld [vmem:[#allocation2 + $0x10] sm:$0xff]
  %v27 = vld [vmem:[#allocation2 + $0x18] sm:$0xff]
  %v28 = vld [vmem:[%s0] sm:$0xf]
  %v29 = vld [vmem:[%s0 + $0x4] sm:$0xf]
  %v30 = vld [vmem:[%s0 + $0x8] sm:$0xf]
  %v31 = vld [vmem:[%s0 + $0xc] sm:$0xf]
  %v32 = vld [vmem:[%s1] sm:$0xf]
  %v33 = vld [vmem:[%s1 + $0x4] sm:$0xf]
  %v34 = vld [vmem:[%s1 + $0x8] sm:$0xf]
  %v35 = vld [vmem:[%s1 + $0xc] sm:$0xf]
  %v40 = vunpack.c.l.b16 %v28
  %v41 = vunpack.c.l.b16 %v29
  %v42 = vunpack.c.l.b16 %v30
  %v43 = vunpack.c.l.b16 %v31
  %v44 = vpack.c.b16 %v41, %v40
  %v45 = vpack.c.b16 %v43, %v42
  %v50 = vunpack.c.l.b16 %v32
  %v51 = vunpack.c.l.b16 %v33
  %v52 = vunpack.c.l.b16 %v34
  %v53 = vunpack.c.l.b16 %v35
  %v54 = vpack.c.b16 %v51, %v50
  %v55 = vpack.c.b16 %v53, %v52
  %vm58 = vcmask 261120
  %v60 = vsel %vm58, %v44, 0
  %v63 = vsel %vm58, %v45, 0
  %65 = vmatprep.subr.bf16.mxu0 0
  %66 = vmatpush1.bf16.msra.mxu0 0
  %67 = vmatprep.subr.bf16.mxu0 0
  %68 = vmatpush1.bf16.msra.mxu0 0
  %69 = vmatprep.subr.bf16.mxu0 0
  %70 = vmatpush1.bf16.msra.mxu0 0
  %71 = vmatprep.subr.bf16.mxu0 0
  %72 = vmatpush1.bf16.msra.mxu0 0
  %73 = vmatprep.subr.bf16.mxu0 0
  %74 = vmatpush1.bf16.msra.mxu0 0
  %75 = vmatprep.subr.bf16.mxu0 0
  %76 = vmatpush1.bf16.msra.mxu0 0
  %77 = vmatprep.subr.bf16.mxu0 0
  %78 = vmatpush1.bf16.msra.mxu0 %v55
  %79 = vmatprep.subr.bf16.mxu0 0
  %80 = vmatpush1.bf16.msra.mxu0 %v54
  %81 = vmatprep.subr.bf16.mxu0 0
  %82 = vmatpush2.bf16.msra.mxu0 0
  %83 = vmatprep.subr.bf16.mxu0 0
  %84 = vmatpush2.bf16.msra.mxu0 0
  %85 = vmatprep.subr.bf16.mxu0 0
  %86 = vmatpush2.bf16.msra.mxu0 0
  %87 = vmatprep.subr.bf16.mxu0 0
  %88 = vmatpush2.bf16.msra.mxu0 0
  %89 = vmatprep.subr.bf16.mxu0 0
  %90 = vmatpush2.bf16.msra.mxu0 0
  %91 = vmatprep.subr.bf16.mxu0 0
  %92 = vmatpush2.bf16.msra.mxu0 0
  %93 = vmatprep.subr.bf16.mxu0 0
  %94 = vmatpush2.bf16.msra.mxu0 0
  %95 = vmatprep.subr.bf16.mxu0 0
  %96 = vmatpush2.bf16.msra.mxu0 0
  %97 = vmatprep.mubr.bf16.mxu0 0
  %98 = vmatmul.mubr.bf16.gmra.mxu0 %v60
  %v99 = vpop.f32.mrf.mxu0
  %v100 = vadd.f32 0.0, %v99
  %v101 = vpop.f32.mrf.mxu0
  %v102 = vpop.f32.mrf.mxu0
  %v103 = vadd.f32 0.0, %v102
  %v104 = vpop.f32.mrf.mxu0
  %105 = vmatprep.mubr.bf16.mxu0 0
  %106 = vmatmul.mubr.bf16.gmra.mxu0 %v63
  %v107 = vpop.f32.mrf.mxu0
  %v108 = vadd.f32 0.0, %v107
  %v109 = vpop.f32.mrf.mxu0
  %v110 = vpop.f32.mrf.mxu0
  %v111 = vadd.f32 0.0, %v110
  %v112 = vpop.f32.mrf.mxu0
  %113 = vdwg.mxu0
  %v114 = vadd.f32 %v24, %v100
  %v115 = vadd.f32 %v25, %v103
  %v116 = vadd.f32 %v26, %v108
  %v117 = vadd.f32 %v27, %v111
  %vm118 = vcmask 130048
  %119 = vst.msk [vmem:[#allocation2] sm:$0xff] %vm118, %v114
  %120 = vst.msk [vmem:[#allocation2 + $0x8] sm:$0xff] %vm118, %v115
  %121 = vst.msk [vmem:[#allocation2 + $0x10] sm:$0xff] %vm118, %v116
  %122 = vst.msk [vmem:[#allocation2 + $0x18] sm:$0xff] %vm118, %v117
  // Predicated region
  $region18: #{yolo_forward.32} parent=0 // pred_check
    %p123 = pneg %p15
  $region19: #{yolo_forward.32} parent=0 // pred_check_branch
    %125 = sbr.rel (%p123) target = $region21
  $region20: #{yolo_forward.32} parent=0 // pred_region
    %v126 = vld [vmem:[#allocation2] sm:$0xff]
    %v127 = vld [vmem:[#allocation2 + $0x8] sm:$0xff]
    %v128 = vld [vmem:[#allocation2 + $0x10] sm:$0xff]
    %v129 = vld [vmem:[#allocation2 + $0x18] sm:$0xff]
    %v130 = vld [vmem:[%s2] sm:$0x1]
    %v132 = vlaneseq
    %v133 = vshrl.u32 %v132, 7
    %v134 = vsub.s32 0, %v133
    %v135 = vrot.slane %v130, %v134
    %v137 = vadd.f32 %v126, %v135
    %v138 = vadd.f32 %v127, %v135
    %v139 = vadd.f32 %v128, %v135
    %v140 = vadd.f32 %v129, %v135
    %vm141 = vcmp.gt.f32.partialorder %v137, 0.0
    %vm142 = vcmp.gt.f32.partialorder %v138, 0.0
    %vm143 = vcmp.gt.f32.partialorder %v139, 0.0
    %vm144 = vcmp.gt.f32.partialorder %v140, 0.0
    %v145 = vmul.f32 %v137, 0.01
    %v146 = vmul.f32 %v138, 0.01
    %v147 = vmul.f32 %v139, 0.01
    %v148 = vmul.f32 %v140, 0.01
    %v149 = vsel %vm141, %v137, %v145
    %v150 = vsel %vm142, %v138, %v146
    %v151 = vsel %vm143, %v139, %v147
    %v152 = vsel %vm144, %v140, %v148
    %v153 = vpack.c.bf16 %v150, %v149
    %v154 = vpack.c.bf16 %v152, %v151
    %v157 = vunpack.c.l.b16 %v153
    %v158 = vunpack.c.h.b16 %v153
    %v159 = vunpack.c.l.b16 %v154
    %v160 = vunpack.c.h.b16 %v154
    %v161 = vpack.c.b16 %v157, %v157
    %v162 = vpack.c.b16 %v158, %v158
    %v163 = vpack.c.b16 %v159, %v159
    %v164 = vpack.c.b16 %v160, %v160
    %vm169 = vcmask 125952
    %170 = vst.msk [vmem:[%s3] sm:$0xf] %vm169, %v161
    %171 = vst.msk [vmem:[%s3 + $0x4] sm:$0xf] %vm169, %v162
    %172 = vst.msk [vmem:[%s3 + $0x8] sm:$0xf] %vm169, %v163
    %173 = vst.msk [vmem:[%s3 + $0xc] sm:$0xf] %vm169, %v164
  $region21: #{yolo_forward.32} parent=0 // pred_fallthru
    _
  // Predicated region
  $region22: #{yolo_forward.32} parent=0 // pred_check
    _
  $region23: #{yolo_forward.32} parent=0 // pred_check_branch
    %175 = sbr.rel (0) target = $region25
  $region24: #{yolo_forward.32} parent=0 // pred_region
    _
  $region25: #{yolo_forward.32} parent=0 // pred_fallthru
    _
  // Predicated region
  $region26: #{yolo_forward.32} parent=0 // pred_check
    _
  $region27: #{yolo_forward.32} parent=0 // pred_check_branch
    %177 = sbr.rel (0) target = $region29
  $region28: #{yolo_forward.32} parent=0 // pred_region
    _
  $region29: #{yolo_forward.32} parent=0 // pred_fallthru
    _

// kernel: yolo_forward.33
$region0: #{yolo_forward.33}
  #allocation0 [shape = 'u32[]', space=smem, size = 0x4, offset = 0x4, fixed_abs, tag = 'smem constant byte address 0x4 - core index']
  #allocation1 [shape = 'u32[144,128]{1,0:T(1,128)}', space=vmem, size = 0x12000, scoped, tag = 'internal scratch']
  #allocation2 [shape = 'f32[32,32]{1,0:T(8,128)}', space=vmem, size = 0x4000, scoped, tag = 'scratch operand']
  %s0 = inlined_call_operand.vmem [shape: bf16[32,144], index: 0, kind: input, shape index: {}]
  %s1 = inlined_call_operand.vmem [shape: bf16[144,32], index: 1, kind: input, shape index: {}]
  %s2 = inlined_call_operand.vmem [shape: f32[1,32], index: 2, kind: input, shape index: {}]
  %s3 = inlined_call_operand.vmem [shape: bf16[32,32], index: 3, kind: output, shape index: {}]
  %s4 = sld [smem:[#allocation0]]
  $region30: #{yolo_forward.33} parent=0
    _
  %s6 = ssub.s32 1, %s4
  %s7 = scalar_select 0, %s6, %s4
  // Predicated region
  $region2: #{yolo_forward.33} parent=0 // pred_check
    _
  $region3: #{yolo_forward.33} parent=0 // pred_check_branch
    %9 = sbr.rel (0) target = $region5
  $region4: #{yolo_forward.33} parent=0 // pred_region
    _
  $region5: #{yolo_forward.33} parent=0 // pred_fallthru
    _
  // Predicated region
  $region6: #{yolo_forward.33} parent=0 // pred_check
    _
  $region7: #{yolo_forward.33} parent=0 // pred_check_branch
    %11 = sbr.rel (0) target = $region9
  $region8: #{yolo_forward.33} parent=0 // pred_region
    _
  $region9: #{yolo_forward.33} parent=0 // pred_fallthru
    _
  // Predicated region
  $region10: #{yolo_forward.33} parent=0 // pred_check
    _
  $region11: #{yolo_forward.33} parent=0 // pred_check_branch
    %13 = sbr.rel (0) target = $region13
  $region12: #{yolo_forward.33} parent=0 // pred_region
    _
  $region13: #{yolo_forward.33} parent=0 // pred_fallthru
    _
  %p15 = scmp.eq.s32.totalorder 0, 0
  // Predicated region
  $region14: #{yolo_forward.33} parent=0 // pred_check
    %p16 = pneg %p15
  $region15: #{yolo_forward.33} parent=0 // pred_check_branch
    %18 = sbr.rel (%p16) target = $region17
  $region16: #{yolo_forward.33} parent=0 // pred_region
    %vm19 = vcmask 261120
    %20 = vst.msk [vmem:[#allocation2] sm:$0xff] %vm19, 0.0
    %21 = vst.msk [vmem:[#allocation2 + $0x8] sm:$0xff] %vm19, 0.0
    %22 = vst.msk [vmem:[#allocation2 + $0x10] sm:$0xff] %vm19, 0.0
    %23 = vst.msk [vmem:[#allocation2 + $0x18] sm:$0xff] %vm19, 0.0
  $region17: #{yolo_forward.33} parent=0 // pred_fallthru
    _
  %v24 = vld [vmem:[#allocation2] sm:$0xff]
  %v25 = vld [vmem:[#allocation2 + $0x8] sm:$0xff]
  %v26 = vld [vmem:[#allocation2 + $0x10] sm:$0xff]
  %v27 = vld [vmem:[#allocation2 + $0x18] sm:$0xff]
  %v28 = vld [vmem:[%s0] sm:$0xff]
  %v29 = vld [vmem:[%s0 + $0x8] sm:$0xff]
  %v30 = vld [vmem:[%s0 + $0x10] sm:$0xff]
  %v31 = vld [vmem:[%s0 + $0x18] sm:$0xff]
  %v32 = vld [vmem:[%s1] sm:$0xf]
  %v33 = vld [vmem:[%s1 + $0x4] sm:$0xf]
  %v34 = vld [vmem:[%s1 + $0x8] sm:$0xf]
  %v35 = vld [vmem:[%s1 + $0xc] sm:$0xf]
  %v36 = vld [vmem:[%s1 + $0x10] sm:$0xf]
  %v37 = vld [vmem:[%s1 + $0x14] sm:$0xf]
  %v38 = vld [vmem:[%s1 + $0x18] sm:$0xf]
  %v39 = vld [vmem:[%s1 + $0x1c] sm:$0xf]
  %v40 = vld [vmem:[%s1 + $0x20] sm:$0xf]
  %v41 = vld [vmem:[%s1 + $0x24] sm:$0xf]
  %v42 = vld [vmem:[%s1 + $0x28] sm:$0xf]
  %v43 = vld [vmem:[%s1 + $0x2c] sm:$0xf]
  %v44 = vld [vmem:[%s1 + $0x30] sm:$0xf]
  %v45 = vld [vmem:[%s1 + $0x34] sm:$0xf]
  %v46 = vld [vmem:[%s1 + $0x38] sm:$0xf]
  %v47 = vld [vmem:[%s1 + $0x3c] sm:$0xf]
  %v48 = vld [vmem:[%s1 + $0x40] sm:$0xf]
  %v49 = vld [vmem:[%s1 + $0x44] sm:$0xf]
  %v54 = vunpack.c.l.b16 %v28
  %v55 = vunpack.c.h.b16 %v28
  %v56 = vunpack.c.l.b16 %v29
  %v57 = vunpack.c.h.b16 %v29
  %v58 = vunpack.c.l.b16 %v30
  %v59 = vunpack.c.h.b16 %v30
  %v60 = vunpack.c.l.b16 %v31
  %v61 = vunpack.c.h.b16 %v31
  %v62 = vpack.c.b16 %v56, %v54
  %v63 = vpack.c.b16 %v57, %v55
  %v64 = vpack.c.b16 %v60, %v58
  %v65 = vpack.c.b16 %v61, %v59
  %v86 = vunpack.c.l.b16 %v32
  %v87 = vunpack.c.l.b16 %v33
  %v88 = vunpack.c.l.b16 %v34
  %v89 = vunpack.c.l.b16 %v35
  %v90 = vunpack.c.l.b16 %v36
  %v91 = vunpack.c.l.b16 %v37
  %v92 = vunpack.c.l.b16 %v38
  %v93 = vunpack.c.l.b16 %v39
  %v94 = vunpack.c.l.b16 %v40
  %v95 = vunpack.c.l.b16 %v41
  %v96 = vunpack.c.l.b16 %v42
  %v97 = vunpack.c.l.b16 %v43
  %v98 = vunpack.c.l.b16 %v44
  %v99 = vunpack.c.l.b16 %v45
  %v100 = vunpack.c.l.b16 %v46
  %v101 = vunpack.c.l.b16 %v47
  %v102 = vunpack.c.l.b16 %v48
  %v103 = vunpack.c.l.b16 %v49
  %v104 = vpack.c.b16 %v87, %v86
  %v105 = vpack.c.b16 %v89, %v88
  %v106 = vpack.c.b16 %v91, %v90
  %v107 = vpack.c.b16 %v93, %v92
  %v108 = vpack.c.b16 %v95, %v94
  %v109 = vpack.c.b16 %v97, %v96
  %v110 = vpack.c.b16 %v99, %v98
  %v111 = vpack.c.b16 %v101, %v100
  %v112 = vpack.c.b16 %v103, %v102
  %vm122 = vcmask 130048
  %v124 = vsel %vm122, %v63, 0
  %v127 = vsel %vm122, %v65, 0
  %129 = vmatprep.subr.bf16.mxu0 0
  %130 = vmatpush1.bf16.msra.mxu0 %v111
  %131 = vmatprep.subr.bf16.mxu0 0
  %132 = vmatpush1.bf16.msra.mxu0 %v110
  %133 = vmatprep.subr.bf16.mxu0 0
  %134 = vmatpush1.bf16.msra.mxu0 %v109
  %135 = vmatprep.subr.bf16.mxu0 0
  %136 = vmatpush1.bf16.msra.mxu0 %v108
  %137 = vmatprep.subr.bf16.mxu0 0
  %138 = vmatpush1.bf16.msra.mxu0 %v107
  %139 = vmatprep.subr.bf16.mxu0 0
  %140 = vmatpush1.bf16.msra.mxu0 %v106
  %141 = vmatprep.subr.bf16.mxu0 0
  %142 = vmatpush1.bf16.msra.mxu0 %v105
  %143 = vmatprep.subr.bf16.mxu0 0
  %144 = vmatpush1.bf16.msra.mxu0 %v104
  %145 = vmatprep.subr.bf16.mxu0 0
  %146 = vmatpush2.bf16.msra.mxu0 0
  %147 = vmatprep.subr.bf16.mxu0 0
  %148 = vmatpush2.bf16.msra.mxu0 0
  %149 = vmatprep.subr.bf16.mxu0 0
  %150 = vmatpush2.bf16.msra.mxu0 0
  %151 = vmatprep.subr.bf16.mxu0 0
  %152 = vmatpush2.bf16.msra.mxu0 0
  %153 = vmatprep.subr.bf16.mxu0 0
  %154 = vmatpush2.bf16.msra.mxu0 0
  %155 = vmatprep.subr.bf16.mxu0 0
  %156 = vmatpush2.bf16.msra.mxu0 0
  %157 = vmatprep.subr.bf16.mxu0 0
  %158 = vmatpush2.bf16.msra.mxu0 0
  %159 = vmatprep.subr.bf16.mxu0 0
  %160 = vmatpush2.bf16.msra.mxu0 %v112
  %161 = vmatprep.mubr.bf16.mxu0 %v124
  %162 = vmatmul.mubr.bf16.gmra.mxu0 %v62
  %v163 = vpop.f32.mrf.mxu0
  %v164 = vadd.f32 0.0, %v163
  %v165 = vpop.f32.mrf.mxu0
  %v166 = vpop.f32.mrf.mxu0
  %v167 = vadd.f32 0.0, %v166
  %v168 = vpop.f32.mrf.mxu0
  %169 = vmatprep.mubr.bf16.mxu0 %v127
  %170 = vmatmul.mubr.bf16.gmra.mxu0 %v64
  %v171 = vpop.f32.mrf.mxu0
  %v172 = vadd.f32 0.0, %v171
  %v173 = vpop.f32.mrf.mxu0
  %v174 = vpop.f32.mrf.mxu0
  %v175 = vadd.f32 0.0, %v174
  %v176 = vpop.f32.mrf.mxu0
  %177 = vdwg.mxu0
  %v178 = vadd.f32 %v24, %v164
  %v179 = vadd.f32 %v25, %v167
  %v180 = vadd.f32 %v26, %v172
  %v181 = vadd.f32 %v27, %v175
  %vm182 = vcmask 261120
  %183 = vst.msk [vmem:[#allocation2] sm:$0xff] %vm182, %v178
  %184 = vst.msk [vmem:[#allocation2 + $0x8] sm:$0xff] %vm182, %v179
  %185 = vst.msk [vmem:[#allocation2 + $0x10] sm:$0xff] %vm182, %v180
  %186 = vst.msk [vmem:[#allocation2 + $0x18] sm:$0xff] %vm182, %v181
  // Predicated region
  $region18: #{yolo_forward.33} parent=0 // pred_check
    %p187 = pneg %p15
  $region19: #{yolo_forward.33} parent=0 // pred_check_branch
    %189 = sbr.rel (%p187) target = $region21
  $region20: #{yolo_forward.33} parent=0 // pred_region
    %v190 = vld [vmem:[#allocation2] sm:$0xff]
    %v191 = vld [vmem:[#allocation2 + $0x8] sm:$0xff]
    %v192 = vld [vmem:[#allocation2 + $0x10] sm:$0xff]
    %v193 = vld [vmem:[#allocation2 + $0x18] sm:$0xff]
    %v194 = vld [vmem:[%s2] sm:$0x1]
    %v196 = vlaneseq
    %v197 = vshrl.u32 %v196, 7
    %v198 = vsub.s32 0, %v197
    %v199 = vrot.slane %v194, %v198
    %v201 = vadd.f32 %v190, %v199
    %v202 = vadd.f32 %v191, %v199
    %v203 = vadd.f32 %v192, %v199
    %v204 = vadd.f32 %v193, %v199
    %vm205 = vcmp.gt.f32.partialorder %v201, 0.0
    %vm206 = vcmp.gt.f32.partialorder %v202, 0.0
    %vm207 = vcmp.gt.f32.partialorder %v203, 0.0
    %vm208 = vcmp.gt.f32.partialorder %v204, 0.0
    %v209 = vmul.f32 %v201, 0.01
    %v210 = vmul.f32 %v202, 0.01
    %v211 = vmul.f32 %v203, 0.01
    %v212 = vmul.f32 %v204, 0.01
    %v213 = vsel %vm205, %v201, %v209
    %v214 = vsel %vm206, %v202, %v210
    %v215 = vsel %vm207, %v203, %v211
    %v216 = vsel %vm208, %v204, %v212
    %v217 = vpack.c.bf16 %v214, %v213
    %v218 = vpack.c.bf16 %v216, %v215
    %v221 = vunpack.c.l.b16 %v217
    %v222 = vunpack.c.h.b16 %v217
    %v223 = vunpack.c.l.b16 %v218
    %v224 = vunpack.c.h.b16 %v218
    %v225 = vpack.c.b16 %v221, %v221
    %v226 = vpack.c.b16 %v222, %v222
    %v227 = vpack.c.b16 %v223, %v223
    %v228 = vpack.c.b16 %v224, %v224
    %vm233 = vcmask 257024
    %234 = vst.msk [vmem:[%s3] sm:$0xf] %vm233, %v225
    %235 = vst.msk [vmem:[%s3 + $0x4] sm:$0xf] %vm233, %v226
    %236 = vst.msk [vmem:[%s3 + $0x8] sm:$0xf] %vm233, %v227
    %237 = vst.msk [vmem:[%s3 + $0xc] sm:$0xf] %vm233, %v228
  $region21: #{yolo_forward.33} parent=0 // pred_fallthru
    _
  // Predicated region
  $region22: #{yolo_forward.33} parent=0 // pred_check
    _
  $region23: #{yolo_forward.33} parent=0 // pred_check_branch
    %239 = sbr.rel (0) target = $region25
  $region24: #{yolo_forward.33} parent=0 // pred_region
    _
  $region25: #{yolo_forward.33} parent=0 // pred_fallthru
    _
  // Predicated region
  $region26: #{yolo_forward.33} parent=0 // pred_check
    _
  $region27: #{yolo_forward.33} parent=0 // pred_check_branch
    %241 = sbr.rel (0) target = $region29
  $region28: #{yolo_forward.33} parent=0 // pred_region
    _
  $region29: #{yolo_forward.33} parent=0 // pred_fallthru
    _

// kernel: yolo_forward.40
$region0: #{yolo_forward.40}
  #allocation0 [shape = 'u32[]', space=smem, size = 0x4, offset = 0x4, fixed_abs, tag = 'smem constant byte address 0x4 - core index']
  #allocation1 [shape = 'u32[144,128]{1,0:T(1,128)}', space=vmem, size = 0x12000, scoped, tag = 'internal scratch']
  #allocation2 [shape = 'f32[32,32]{1,0:T(8,128)}', space=vmem, size = 0x4000, scoped, tag = 'scratch operand']
  %s0 = inlined_call_operand.vmem [shape: bf16[32,32], index: 0, kind: input, shape index: {}]
  %s1 = inlined_call_operand.vmem [shape: bf16[32,32], index: 1, kind: input, shape index: {}]
  %s2 = inlined_call_operand.vmem [shape: f32[1,32], index: 2, kind: input, shape index: {}]
  %s3 = inlined_call_operand.vmem [shape: bf16[32,32], index: 3, kind: output, shape index: {}]
  %s4 = sld [smem:[#allocation0]]
  $region30: #{yolo_forward.40} parent=0
    _
  %s6 = ssub.s32 1, %s4
  %s7 = scalar_select 0, %s6, %s4
  // Predicated region
  $region2: #{yolo_forward.40} parent=0 // pred_check
    _
  $region3: #{yolo_forward.40} parent=0 // pred_check_branch
    %9 = sbr.rel (0) target = $region5
  $region4: #{yolo_forward.40} parent=0 // pred_region
    _
  $region5: #{yolo_forward.40} parent=0 // pred_fallthru
    _
  // Predicated region
  $region6: #{yolo_forward.40} parent=0 // pred_check
    _
  $region7: #{yolo_forward.40} parent=0 // pred_check_branch
    %11 = sbr.rel (0) target = $region9
  $region8: #{yolo_forward.40} parent=0 // pred_region
    _
  $region9: #{yolo_forward.40} parent=0 // pred_fallthru
    _
  // Predicated region
  $region10: #{yolo_forward.40} parent=0 // pred_check
    _
  $region11: #{yolo_forward.40} parent=0 // pred_check_branch
    %13 = sbr.rel (0) target = $region13
  $region12: #{yolo_forward.40} parent=0 // pred_region
    _
  $region13: #{yolo_forward.40} parent=0 // pred_fallthru
    _
  %p15 = scmp.eq.s32.totalorder 0, 0
  // Predicated region
  $region14: #{yolo_forward.40} parent=0 // pred_check
    %p16 = pneg %p15
  $region15: #{yolo_forward.40} parent=0 // pred_check_branch
    %18 = sbr.rel (%p16) target = $region17
  $region16: #{yolo_forward.40} parent=0 // pred_region
    %vm19 = vcmask 261120
    %20 = vst.msk [vmem:[#allocation2] sm:$0xff] %vm19, 0.0
    %21 = vst.msk [vmem:[#allocation2 + $0x8] sm:$0xff] %vm19, 0.0
    %22 = vst.msk [vmem:[#allocation2 + $0x10] sm:$0xff] %vm19, 0.0
    %23 = vst.msk [vmem:[#allocation2 + $0x18] sm:$0xff] %vm19, 0.0
  $region17: #{yolo_forward.40} parent=0 // pred_fallthru
    _
  %v24 = vld [vmem:[#allocation2] sm:$0xff]
  %v25 = vld [vmem:[#allocation2 + $0x8] sm:$0xff]
  %v26 = vld [vmem:[#allocation2 + $0x10] sm:$0xff]
  %v27 = vld [vmem:[#allocation2 + $0x18] sm:$0xff]
  %v28 = vld [vmem:[%s0] sm:$0xf]
  %v29 = vld [vmem:[%s0 + $0x4] sm:$0xf]
  %v30 = vld [vmem:[%s0 + $0x8] sm:$0xf]
  %v31 = vld [vmem:[%s0 + $0xc] sm:$0xf]
  %v32 = vld [vmem:[%s1] sm:$0xf]
  %v33 = vld [vmem:[%s1 + $0x4] sm:$0xf]
  %v34 = vld [vmem:[%s1 + $0x8] sm:$0xf]
  %v35 = vld [vmem:[%s1 + $0xc] sm:$0xf]
  %v40 = vunpack.c.l.b16 %v28
  %v41 = vunpack.c.l.b16 %v29
  %v42 = vunpack.c.l.b16 %v30
  %v43 = vunpack.c.l.b16 %v31
  %v44 = vpack.c.b16 %v41, %v40
  %v45 = vpack.c.b16 %v43, %v42
  %v50 = vunpack.c.l.b16 %v32
  %v51 = vunpack.c.l.b16 %v33
  %v52 = vunpack.c.l.b16 %v34
  %v53 = vunpack.c.l.b16 %v35
  %v54 = vpack.c.b16 %v51, %v50
  %v55 = vpack.c.b16 %v53, %v52
  %vm58 = vcmask 261120
  %v60 = vsel %vm58, %v44, 0
  %v63 = vsel %vm58, %v45, 0
  %65 = vmatprep.subr.bf16.mxu0 0
  %66 = vmatpush1.bf16.msra.mxu0 0
  %67 = vmatprep.subr.bf16.mxu0 0
  %68 = vmatpush1.bf16.msra.mxu0 0
  %69 = vmatprep.subr.bf16.mxu0 0
  %70 = vmatpush1.bf16.msra.mxu0 0
  %71 = vmatprep.subr.bf16.mxu0 0
  %72 = vmatpush1.bf16.msra.mxu0 0
  %73 = vmatprep.subr.bf16.mxu0 0
  %74 = vmatpush1.bf16.msra.mxu0 0
  %75 = vmatprep.subr.bf16.mxu0 0
  %76 = vmatpush1.bf16.msra.mxu0 0
  %77 = vmatprep.subr.bf16.mxu0 0
  %78 = vmatpush1.bf16.msra.mxu0 %v55
  %79 = vmatprep.subr.bf16.mxu0 0
  %80 = vmatpush1.bf16.msra.mxu0 %v54
  %81 = vmatprep.subr.bf16.mxu0 0
  %82 = vmatpush2.bf16.msra.mxu0 0
  %83 = vmatprep.subr.bf16.mxu0 0
  %84 = vmatpush2.bf16.msra.mxu0 0
  %85 = vmatprep.subr.bf16.mxu0 0
  %86 = vmatpush2.bf16.msra.mxu0 0
  %87 = vmatprep.subr.bf16.mxu0 0
  %88 = vmatpush2.bf16.msra.mxu0 0
  %89 = vmatprep.subr.bf16.mxu0 0
  %90 = vmatpush2.bf16.msra.mxu0 0
  %91 = vmatprep.subr.bf16.mxu0 0
  %92 = vmatpush2.bf16.msra.mxu0 0
  %93 = vmatprep.subr.bf16.mxu0 0
  %94 = vmatpush2.bf16.msra.mxu0 0
  %95 = vmatprep.subr.bf16.mxu0 0
  %96 = vmatpush2.bf16.msra.mxu0 0
  %97 = vmatprep.mubr.bf16.mxu0 0
  %98 = vmatmul.mubr.bf16.gmra.mxu0 %v60
  %v99 = vpop.f32.mrf.mxu0
  %v100 = vadd.f32 0.0, %v99
  %v101 = vpop.f32.mrf.mxu0
  %v102 = vpop.f32.mrf.mxu0
  %v103 = vadd.f32 0.0, %v102
  %v104 = vpop.f32.mrf.mxu0
  %105 = vmatprep.mubr.bf16.mxu0 0
  %106 = vmatmul.mubr.bf16.gmra.mxu0 %v63
  %v107 = vpop.f32.mrf.mxu0
  %v108 = vadd.f32 0.0, %v107
  %v109 = vpop.f32.mrf.mxu0
  %v110 = vpop.f32.mrf.mxu0
  %v111 = vadd.f32 0.0, %v110
  %v112 = vpop.f32.mrf.mxu0
  %113 = vdwg.mxu0
  %v114 = vadd.f32 %v24, %v100
  %v115 = vadd.f32 %v25, %v103
  %v116 = vadd.f32 %v26, %v108
  %v117 = vadd.f32 %v27, %v111
  %118 = vst.msk [vmem:[#allocation2] sm:$0xff] %vm58, %v114
  %119 = vst.msk [vmem:[#allocation2 + $0x8] sm:$0xff] %vm58, %v115
  %120 = vst.msk [vmem:[#allocation2 + $0x10] sm:$0xff] %vm58, %v116
  %121 = vst.msk [vmem:[#allocation2 + $0x18] sm:$0xff] %vm58, %v117
  // Predicated region
  $region18: #{yolo_forward.40} parent=0 // pred_check
    %p122 = pneg %p15
  $region19: #{yolo_forward.40} parent=0 // pred_check_branch
    %124 = sbr.rel (%p122) target = $region21
  $region20: #{yolo_forward.40} parent=0 // pred_region
    %v125 = vld [vmem:[#allocation2] sm:$0xff]
    %v126 = vld [vmem:[#allocation2 + $0x8] sm:$0xff]
    %v127 = vld [vmem:[#allocation2 + $0x10] sm:$0xff]
    %v128 = vld [vmem:[#allocation2 + $0x18] sm:$0xff]
    %v129 = vld [vmem:[%s2] sm:$0x1]
    %v131 = vlaneseq
    %v132 = vshrl.u32 %v131, 7
    %v133 = vsub.s32 0, %v132
    %v134 = vrot.slane %v129, %v133
    %v136 = vadd.f32 %v125, %v134
    %v137 = vadd.f32 %v126, %v134
    %v138 = vadd.f32 %v127, %v134
    %v139 = vadd.f32 %v128, %v134
    %vm140 = vcmp.gt.f32.partialorder %v136, 0.0
    %vm141 = vcmp.gt.f32.partialorder %v137, 0.0
    %vm142 = vcmp.gt.f32.partialorder %v138, 0.0
    %vm143 = vcmp.gt.f32.partialorder %v139, 0.0
    %v144 = vmul.f32 %v136, 0.01
    %v145 = vmul.f32 %v137, 0.01
    %v146 = vmul.f32 %v138, 0.01
    %v147 = vmul.f32 %v139, 0.01
    %v148 = vsel %vm140, %v136, %v144
    %v149 = vsel %vm141, %v137, %v145
    %v150 = vsel %vm142, %v138, %v146
    %v151 = vsel %vm143, %v139, %v147
    %v152 = vpack.c.bf16 %v149, %v148
    %v153 = vpack.c.bf16 %v151, %v150
    %v156 = vunpack.c.l.b16 %v152
    %v157 = vunpack.c.h.b16 %v152
    %v158 = vunpack.c.l.b16 %v153
    %v159 = vunpack.c.h.b16 %v153
    %v160 = vpack.c.b16 %v156, %v156
    %v161 = vpack.c.b16 %v157, %v157
    %v162 = vpack.c.b16 %v158, %v158
    %v163 = vpack.c.b16 %v159, %v159
    %vm168 = vcmask 257024
    %169 = vst.msk [vmem:[%s3] sm:$0xf] %vm168, %v160
    %170 = vst.msk [vmem:[%s3 + $0x4] sm:$0xf] %vm168, %v161
    %171 = vst.msk [vmem:[%s3 + $0x8] sm:$0xf] %vm168, %v162
    %172 = vst.msk [vmem:[%s3 + $0xc] sm:$0xf] %vm168, %v163
  $region21: #{yolo_forward.40} parent=0 // pred_fallthru
    _
  // Predicated region
  $region22: #{yolo_forward.40} parent=0 // pred_check
    _
  $region23: #{yolo_forward.40} parent=0 // pred_check_branch
    %174 = sbr.rel (0) target = $region25
  $region24: #{yolo_forward.40} parent=0 // pred_region
    _
  $region25: #{yolo_forward.40} parent=0 // pred_fallthru
    _
  // Predicated region
  $region26: #{yolo_forward.40} parent=0 // pred_check
    _
  $region27: #{yolo_forward.40} parent=0 // pred_check_branch
    %176 = sbr.rel (0) target = $region29
  $region28: #{yolo_forward.40} parent=0 // pred_region
    _
  $region29: #{yolo_forward.40} parent=0 // pred_fallthru
    _

// kernel: yolo_forward.42
$region0: #{yolo_forward.42}
  #allocation0 [shape = 'u32[]', space=smem, size = 0x4, offset = 0x4, fixed_abs, tag = 'smem constant byte address 0x4 - core index']
  #allocation1 [shape = 'u32[144,128]{1,0:T(1,128)}', space=vmem, size = 0x12000, scoped, tag = 'internal scratch']
  #allocation2 [shape = 'f32[8,32]{1,0:T(8,128)}', space=vmem, size = 0x1000, scoped, tag = 'scratch operand']
  %s0 = inlined_call_operand.vmem [shape: bf16[8,64], index: 0, kind: input, shape index: {}]
  %s1 = inlined_call_operand.vmem [shape: bf16[64,32], index: 1, kind: input, shape index: {}]
  %s2 = inlined_call_operand.vmem [shape: f32[1,32], index: 2, kind: input, shape index: {}]
  %s3 = inlined_call_operand.vmem [shape: bf16[8,32], index: 3, kind: output, shape index: {}]
  %s4 = sld [smem:[#allocation0]]
  $region30: #{yolo_forward.42} parent=0
    _
  %s6 = ssub.s32 1, %s4
  %s7 = scalar_select 0, %s6, %s4
  // Predicated region
  $region2: #{yolo_forward.42} parent=0 // pred_check
    _
  $region3: #{yolo_forward.42} parent=0 // pred_check_branch
    %9 = sbr.rel (0) target = $region5
  $region4: #{yolo_forward.42} parent=0 // pred_region
    _
  $region5: #{yolo_forward.42} parent=0 // pred_fallthru
    _
  // Predicated region
  $region6: #{yolo_forward.42} parent=0 // pred_check
    _
  $region7: #{yolo_forward.42} parent=0 // pred_check_branch
    %11 = sbr.rel (0) target = $region9
  $region8: #{yolo_forward.42} parent=0 // pred_region
    _
  $region9: #{yolo_forward.42} parent=0 // pred_fallthru
    _
  // Predicated region
  $region10: #{yolo_forward.42} parent=0 // pred_check
    _
  $region11: #{yolo_forward.42} parent=0 // pred_check_branch
    %13 = sbr.rel (0) target = $region13
  $region12: #{yolo_forward.42} parent=0 // pred_region
    _
  $region13: #{yolo_forward.42} parent=0 // pred_fallthru
    _
  %p15 = scmp.eq.s32.totalorder 0, 0
  // Predicated region
  $region14: #{yolo_forward.42} parent=0 // pred_check
    %p16 = pneg %p15
  $region15: #{yolo_forward.42} parent=0 // pred_check_branch
    %18 = sbr.rel (%p16) target = $region17
  $region16: #{yolo_forward.42} parent=0 // pred_region
    %vm19 = vcmask 261120
    %20 = vst.msk [vmem:[#allocation2] sm:$0xff] %vm19, 0.0
  $region17: #{yolo_forward.42} parent=0 // pred_fallthru
    _
  %v21 = vld [vmem:[#allocation2] sm:$0xff]
  %v22 = vld [vmem:[%s0] sm:$0xf]
  %v23 = vld [vmem:[%s1] sm:$0xf]
  %v24 = vld [vmem:[%s1 + $0x4] sm:$0xf]
  %v25 = vld [vmem:[%s1 + $0x8] sm:$0xf]
  %v26 = vld [vmem:[%s1 + $0xc] sm:$0xf]
  %v27 = vld [vmem:[%s1 + $0x10] sm:$0xf]
  %v28 = vld [vmem:[%s1 + $0x14] sm:$0xf]
  %v29 = vld [vmem:[%s1 + $0x18] sm:$0xf]
  %v30 = vld [vmem:[%s1 + $0x1c] sm:$0xf]
  %v39 = vunpack.c.l.b16 %v23
  %v40 = vunpack.c.l.b16 %v24
  %v41 = vunpack.c.l.b16 %v25
  %v42 = vunpack.c.l.b16 %v26
  %v43 = vunpack.c.l.b16 %v27
  %v44 = vunpack.c.l.b16 %v28
  %v45 = vunpack.c.l.b16 %v29
  %v46 = vunpack.c.l.b16 %v30
  %v47 = vpack.c.b16 %v40, %v39
  %v48 = vpack.c.b16 %v42, %v41
  %v49 = vpack.c.b16 %v44, %v43
  %v50 = vpack.c.b16 %v46, %v45
  %vm55 = vcmask 523264
  %v57 = vsel %vm55, %v22, 0
  %59 = vmatprep.subr.bf16.mxu0 0
  %60 = vmatpush1.bf16.msra.mxu0 0
  %61 = vmatprep.subr.bf16.mxu0 0
  %62 = vmatpush1.bf16.msra.mxu0 0
  %63 = vmatprep.subr.bf16.mxu0 0
  %64 = vmatpush1.bf16.msra.mxu0 0
  %65 = vmatprep.subr.bf16.mxu0 0
  %66 = vmatpush1.bf16.msra.mxu0 0
  %67 = vmatprep.subr.bf16.mxu0 0
  %68 = vmatpush1.bf16.msra.mxu0 %v50
  %69 = vmatprep.subr.bf16.mxu0 0
  %70 = vmatpush1.bf16.msra.mxu0 %v49
  %71 = vmatprep.subr.bf16.mxu0 0
  %72 = vmatpush1.bf16.msra.mxu0 %v48
  %73 = vmatprep.subr.bf16.mxu0 0
  %74 = vmatpush1.bf16.msra.mxu0 %v47
  %75 = vmatprep.subr.bf16.mxu0 0
  %76 = vmatpush2.bf16.msra.mxu0 0
  %77 = vmatprep.subr.bf16.mxu0 0
  %78 = vmatpush2.bf16.msra.mxu0 0
  %79 = vmatprep.subr.bf16.mxu0 0
  %80 = vmatpush2.bf16.msra.mxu0 0
  %81 = vmatprep.subr.bf16.mxu0 0
  %82 = vmatpush2.bf16.msra.mxu0 0
  %83 = vmatprep.subr.bf16.mxu0 0
  %84 = vmatpush2.bf16.msra.mxu0 0
  %85 = vmatprep.subr.bf16.mxu0 0
  %86 = vmatpush2.bf16.msra.mxu0 0
  %87 = vmatprep.subr.bf16.mxu0 0
  %88 = vmatpush2.bf16.msra.mxu0 0
  %89 = vmatprep.subr.bf16.mxu0 0
  %90 = vmatpush2.bf16.msra.mxu0 0
  %91 = vmatprep.mubr.bf16.mxu0 0
  %92 = vmatmul.mubr.bf16.gmra.mxu0 %v57
  %v93 = vpop.f32.mrf.mxu0
  %v94 = vadd.f32 0.0, %v93
  %v95 = vpop.f32.mrf.mxu0
  %v96 = vpop.f32.mrf.mxu0
  %v97 = vpop.f32.mrf.mxu0
  %98 = vdwg.mxu0
  %v99 = vadd.f32 %v21, %v94
  %vm100 = vcmask 261120
  %101 = vst.msk [vmem:[#allocation2] sm:$0xff] %vm100, %v99
  // Predicated region
  $region18: #{yolo_forward.42} parent=0 // pred_check
    %p102 = pneg %p15
  $region19: #{yolo_forward.42} parent=0 // pred_check_branch
    %104 = sbr.rel (%p102) target = $region21
  $region20: #{yolo_forward.42} parent=0 // pred_region
    %v105 = vld [vmem:[#allocation2] sm:$0xff]
    %v106 = vld [vmem:[%s2] sm:$0x1]
    %v108 = vlaneseq
    %v109 = vshrl.u32 %v108, 7
    %v110 = vsub.s32 0, %v109
    %v111 = vrot.slane %v106, %v110
    %v113 = vadd.f32 %v105, %v111
    %vm114 = vcmp.gt.f32.partialorder %v113, 0.0
    %v115 = vmul.f32 %v113, 0.01
    %v116 = vsel %vm114, %v113, %v115
    %v117 = vpack.c.bf16 %v116, %v116
    %vm118 = vcmask 257024
    %119 = vst.msk [vmem:[%s3] sm:$0xf] %vm118, %v117
  $region21: #{yolo_forward.42} parent=0 // pred_fallthru
    _
  // Predicated region
  $region22: #{yolo_forward.42} parent=0 // pred_check
    _
  $region23: #{yolo_forward.42} parent=0 // pred_check_branch
    %121 = sbr.rel (0) target = $region25
  $region24: #{yolo_forward.42} parent=0 // pred_region
    _
  $region25: #{yolo_forward.42} parent=0 // pred_fallthru
    _
  // Predicated region
  $region26: #{yolo_forward.42} parent=0 // pred_check
    _
  $region27: #{yolo_forward.42} parent=0 // pred_check_branch
    %123 = sbr.rel (0) target = $region29
  $region28: #{yolo_forward.42} parent=0 // pred_region
    _
  $region29: #{yolo_forward.42} parent=0 // pred_fallthru
    _

// kernel: yolo_forward.41
$region0: #{yolo_forward.41}
  #allocation0 [shape = 'u32[]', space=smem, size = 0x4, offset = 0x4, fixed_abs, tag = 'smem constant byte address 0x4 - core index']
  #allocation1 [shape = 'u32[144,128]{1,0:T(1,128)}', space=vmem, size = 0x12000, scoped, tag = 'internal scratch']
  #allocation2 [shape = 'f32[32,64]{1,0:T(8,128)}', space=vmem, size = 0x4000, scoped, tag = 'scratch operand']
  %s0 = inlined_call_operand.vmem [shape: bf16[32,288], index: 0, kind: input, shape index: {}]
  %s1 = inlined_call_operand.vmem [shape: bf16[288,64], index: 1, kind: input, shape index: {}]
  %s2 = inlined_call_operand.vmem [shape: f32[1,64], index: 2, kind: input, shape index: {}]
  %s3 = inlined_call_operand.vmem [shape: bf16[32,64], index: 3, kind: output, shape index: {}]
  %s4 = sld [smem:[#allocation0]]
  $region30: #{yolo_forward.41} parent=0
    _
  %s6 = ssub.s32 1, %s4
  %s7 = scalar_select 0, %s6, %s4
  // Predicated region
  $region2: #{yolo_forward.41} parent=0 // pred_check
    _
  $region3: #{yolo_forward.41} parent=0 // pred_check_branch
    %9 = sbr.rel (0) target = $region5
  $region4: #{yolo_forward.41} parent=0 // pred_region
    _
  $region5: #{yolo_forward.41} parent=0 // pred_fallthru
    _
  // Predicated region
  $region6: #{yolo_forward.41} parent=0 // pred_check
    _
  $region7: #{yolo_forward.41} parent=0 // pred_check_branch
    %11 = sbr.rel (0) target = $region9
  $region8: #{yolo_forward.41} parent=0 // pred_region
    _
  $region9: #{yolo_forward.41} parent=0 // pred_fallthru
    _
  // Predicated region
  $region10: #{yolo_forward.41} parent=0 // pred_check
    _
  $region11: #{yolo_forward.41} parent=0 // pred_check_branch
    %13 = sbr.rel (0) target = $region13
  $region12: #{yolo_forward.41} parent=0 // pred_region
    _
  $region13: #{yolo_forward.41} parent=0 // pred_fallthru
    _
  %p15 = scmp.eq.s32.totalorder 0, 0
  // Predicated region
  $region14: #{yolo_forward.41} parent=0 // pred_check
    %p16 = pneg %p15
  $region15: #{yolo_forward.41} parent=0 // pred_check_branch
    %18 = sbr.rel (%p16) target = $region17
  $region16: #{yolo_forward.41} parent=0 // pred_region
    %vm19 = vcmask 523264
    %20 = vst.msk [vmem:[#allocation2] sm:$0xff] %vm19, 0.0
    %21 = vst.msk [vmem:[#allocation2 + $0x8] sm:$0xff] %vm19, 0.0
    %22 = vst.msk [vmem:[#allocation2 + $0x10] sm:$0xff] %vm19, 0.0
    %23 = vst.msk [vmem:[#allocation2 + $0x18] sm:$0xff] %vm19, 0.0
  $region17: #{yolo_forward.41} parent=0 // pred_fallthru
    _
  %v24 = vld [vmem:[#allocation2] sm:$0xff]
  %v25 = vld [vmem:[#allocation2 + $0x8] sm:$0xff]
  %v26 = vld [vmem:[#allocation2 + $0x10] sm:$0xff]
  %v27 = vld [vmem:[#allocation2 + $0x18] sm:$0xff]
  %v28 = vld [vmem:[%s0] sm:$0xff]
  %v29 = vld [vmem:[%s0 + $0x8] sm:$0xf]
  %v30 = vld [vmem:[%s0 + $0xc] sm:$0xff]
  %v31 = vld [vmem:[%s0 + $0x14] sm:$0xf]
  %v32 = vld [vmem:[%s0 + $0x18] sm:$0xff]
  %v33 = vld [vmem:[%s0 + $0x20] sm:$0xf]
  %v34 = vld [vmem:[%s0 + $0x24] sm:$0xff]
  %v35 = vld [vmem:[%s0 + $0x2c] sm:$0xf]
  %v36 = vld [vmem:[%s1] sm:$0xf]
  %v37 = vld [vmem:[%s1 + $0x4] sm:$0xf]
  %v38 = vld [vmem:[%s1 + $0x8] sm:$0xf]
  %v39 = vld [vmem:[%s1 + $0xc] sm:$0xf]
  %v40 = vld [vmem:[%s1 + $0x10] sm:$0xf]
  %v41 = vld [vmem:[%s1 + $0x14] sm:$0xf]
  %v42 = vld [vmem:[%s1 + $0x18] sm:$0xf]
  %v43 = vld [vmem:[%s1 + $0x1c] sm:$0xf]
  %v44 = vld [vmem:[%s1 + $0x20] sm:$0xf]
  %v45 = vld [vmem:[%s1 + $0x24] sm:$0xf]
  %v46 = vld [vmem:[%s1 + $0x28] sm:$0xf]
  %v47 = vld [vmem:[%s1 + $0x2c] sm:$0xf]
  %v48 = vld [vmem:[%s1 + $0x30] sm:$0xf]
  %v49 = vld [vmem:[%s1 + $0x34] sm:$0xf]
  %v50 = vld [vmem:[%s1 + $0x38] sm:$0xf]
  %v51 = vld [vmem:[%s1 + $0x3c] sm:$0xf]
  %v52 = vld [vmem:[%s1 + $0x40] sm:$0xf]
  %v53 = vld [vmem:[%s1 + $0x44] sm:$0xf]
  %v54 = vld [vmem:[%s1 + $0x48] sm:$0xf]
  %v55 = vld [vmem:[%s1 + $0x4c] sm:$0xf]
  %v56 = vld [vmem:[%s1 + $0x50] sm:$0xf]
  %v57 = vld [vmem:[%s1 + $0x54] sm:$0xf]
  %v58 = vld [vmem:[%s1 + $0x58] sm:$0xf]
  %v59 = vld [vmem:[%s1 + $0x5c] sm:$0xf]
  %v60 = vld [vmem:[%s1 + $0x60] sm:$0xf]
  %v61 = vld [vmem:[%s1 + $0x64] sm:$0xf]
  %v62 = vld [vmem:[%s1 + $0x68] sm:$0xf]
  %v63 = vld [vmem:[%s1 + $0x6c] sm:$0xf]
  %v64 = vld [vmem:[%s1 + $0x70] sm:$0xf]
  %v65 = vld [vmem:[%s1 + $0x74] sm:$0xf]
  %v66 = vld [vmem:[%s1 + $0x78] sm:$0xf]
  %v67 = vld [vmem:[%s1 + $0x7c] sm:$0xf]
  %v68 = vld [vmem:[%s1 + $0x80] sm:$0xf]
  %v69 = vld [vmem:[%s1 + $0x84] sm:$0xf]
  %v70 = vld [vmem:[%s1 + $0x88] sm:$0xf]
  %v71 = vld [vmem:[%s1 + $0x8c] sm:$0xf]
  %v80 = vunpack.c.l.b16 %v28
  %v81 = vunpack.c.h.b16 %v28
  %v82 = vunpack.c.l.b16 %v29
  %v83 = vunpack.c.l.b16 %v30
  %v84 = vunpack.c.h.b16 %v30
  %v85 = vunpack.c.l.b16 %v31
  %v86 = vunpack.c.l.b16 %v32
  %v87 = vunpack.c.h.b16 %v32
  %v88 = vunpack.c.l.b16 %v33
  %v89 = vunpack.c.l.b16 %v34
  %v90 = vunpack.c.h.b16 %v34
  %v91 = vunpack.c.l.b16 %v35
  %v92 = vpack.c.b16 %v83, %v80
  %v93 = vpack.c.b16 %v84, %v81
  %v94 = vpack.c.b16 %v85, %v82
  %v95 = vpack.c.b16 %v89, %v86
  %v96 = vpack.c.b16 %v90, %v87
  %v97 = vpack.c.b16 %v91, %v88
  %v138 = vunpack.c.l.b16 %v36
  %v139 = vunpack.c.l.b16 %v37
  %v140 = vunpack.c.l.b16 %v38
  %v141 = vunpack.c.l.b16 %v39
  %v142 = vunpack.c.l.b16 %v40
  %v143 = vunpack.c.l.b16 %v41
  %v144 = vunpack.c.l.b16 %v42
  %v145 = vunpack.c.l.b16 %v43
  %v146 = vunpack.c.l.b16 %v44
  %v147 = vunpack.c.l.b16 %v45
  %v148 = vunpack.c.l.b16 %v46
  %v149 = vunpack.c.l.b16 %v47
  %v150 = vunpack.c.l.b16 %v48
  %v151 = vunpack.c.l.b16 %v49
  %v152 = vunpack.c.l.b16 %v50
  %v153 = vunpack.c.l.b16 %v51
  %v154 = vunpack.c.l.b16 %v52
  %v155 = vunpack.c.l.b16 %v53
  %v156 = vunpack.c.l.b16 %v54
  %v157 = vunpack.c.l.b16 %v55
  %v158 = vunpack.c.l.b16 %v56
  %v159 = vunpack.c.l.b16 %v57
  %v160 = vunpack.c.l.b16 %v58
  %v161 = vunpack.c.l.b16 %v59
  %v162 = vunpack.c.l.b16 %v60
  %v163 = vunpack.c.l.b16 %v61
  %v164 = vunpack.c.l.b16 %v62
  %v165 = vunpack.c.l.b16 %v63
  %v166 = vunpack.c.l.b16 %v64
  %v167 = vunpack.c.l.b16 %v65
  %v168 = vunpack.c.l.b16 %v66
  %v169 = vunpack.c.l.b16 %v67
  %v170 = vunpack.c.l.b16 %v68
  %v171 = vunpack.c.l.b16 %v69
  %v172 = vunpack.c.l.b16 %v70
  %v173 = vunpack.c.l.b16 %v71
  %v174 = vpack.c.b16 %v139, %v138
  %v175 = vpack.c.b16 %v141, %v140
  %v176 = vpack.c.b16 %v143, %v142
  %v177 = vpack.c.b16 %v145, %v144
  %v178 = vpack.c.b16 %v147, %v146
  %v179 = vpack.c.b16 %v149, %v148
  %v180 = vpack.c.b16 %v151, %v150
  %v181 = vpack.c.b16 %v153, %v152
  %v182 = vpack.c.b16 %v155, %v154
  %v183 = vpack.c.b16 %v157, %v156
  %v184 = vpack.c.b16 %v159, %v158
  %v185 = vpack.c.b16 %v161, %v160
  %v186 = vpack.c.b16 %v163, %v162
  %v187 = vpack.c.b16 %v165, %v164
  %v188 = vpack.c.b16 %v167, %v166
  %v189 = vpack.c.b16 %v169, %v168
  %v190 = vpack.c.b16 %v171, %v170
  %v191 = vpack.c.b16 %v173, %v172
  %vm210 = vcmask 261120
  %v212 = vsel %vm210, %v94, 0
  %v215 = vsel %vm210, %v97, 0
  %217 = vmatprep.subr.bf16.mxu0 0
  %218 = vmatpush1.bf16.msra.mxu0 %v181
  %219 = vmatprep.subr.bf16.mxu0 0
  %220 = vmatpush1.bf16.msra.mxu0 %v180
  %221 = vmatprep.subr.bf16.mxu0 0
  %222 = vmatpush1.bf16.msra.mxu0 %v179
  %223 = vmatprep.subr.bf16.mxu0 0
  %224 = vmatpush1.bf16.msra.mxu0 %v178
  %225 = vmatprep.subr.bf16.mxu0 0
  %226 = vmatpush1.bf16.msra.mxu0 %v177
  %227 = vmatprep.subr.bf16.mxu0 0
  %228 = vmatpush1.bf16.msra.mxu0 %v176
  %229 = vmatprep.subr.bf16.mxu0 0
  %230 = vmatpush1.bf16.msra.mxu0 %v175
  %231 = vmatprep.subr.bf16.mxu0 0
  %232 = vmatpush1.bf16.msra.mxu0 %v174
  %233 = vmatprep.subr.bf16.mxu0 0
  %234 = vmatpush2.bf16.msra.mxu0 %v189
  %235 = vmatprep.subr.bf16.mxu0 0
  %236 = vmatpush2.bf16.msra.mxu0 %v188
  %237 = vmatprep.subr.bf16.mxu0 0
  %238 = vmatpush2.bf16.msra.mxu0 %v187
  %239 = vmatprep.subr.bf16.mxu0 0
  %240 = vmatpush2.bf16.msra.mxu0 %v186
  %241 = vmatprep.subr.bf16.mxu0 0
  %242 = vmatpush2.bf16.msra.mxu0 %v185
  %243 = vmatprep.subr.bf16.mxu0 0
  %244 = vmatpush2.bf16.msra.mxu0 %v184
  %245 = vmatprep.subr.bf16.mxu0 0
  %246 = vmatpush2.bf16.msra.mxu0 %v183
  %247 = vmatprep.subr.bf16.mxu0 0
  %248 = vmatpush2.bf16.msra.mxu0 %v182
  %249 = vmatprep.mubr.bf16.mxu0 %v93
  %250 = vmatmul.mubr.bf16.gmra.mxu0 %v92
  %v251 = vpop.f32.mrf.mxu0
  %v252 = vadd.f32 0.0, %v251
  %v253 = vpop.f32.mrf.mxu0
  %v254 = vpop.f32.mrf.mxu0
  %v255 = vadd.f32 0.0, %v254
  %v256 = vpop.f32.mrf.mxu0
  %257 = vmatprep.mubr.bf16.mxu0 %v96
  %258 = vmatmul.mubr.bf16.gmra.mxu0 %v95
  %v259 = vpop.f32.mrf.mxu0
  %v260 = vadd.f32 0.0, %v259
  %v261 = vpop.f32.mrf.mxu0
  %v262 = vpop.f32.mrf.mxu0
  %v263 = vadd.f32 0.0, %v262
  %v264 = vpop.f32.mrf.mxu0
  %265 = vdwg.mxu0
  %266 = vmatprep.subr.bf16.mxu0 0
  %267 = vmatpush1.bf16.msra.mxu0 0
  %268 = vmatprep.subr.bf16.mxu0 0
  %269 = vmatpush1.bf16.msra.mxu0 0
  %270 = vmatprep.subr.bf16.mxu0 0
  %271 = vmatpush1.bf16.msra.mxu0 0
  %272 = vmatprep.subr.bf16.mxu0 0
  %273 = vmatpush1.bf16.msra.mxu0 0
  %274 = vmatprep.subr.bf16.mxu0 0
  %275 = vmatpush1.bf16.msra.mxu0 0
  %276 = vmatprep.subr.bf16.mxu0 0
  %277 = vmatpush1.bf16.msra.mxu0 0
  %278 = vmatprep.subr.bf16.mxu0 0
  %279 = vmatpush1.bf16.msra.mxu0 %v191
  %280 = vmatprep.subr.bf16.mxu0 0
  %281 = vmatpush1.bf16.msra.mxu0 %v190
  %282 = vmatprep.subr.bf16.mxu0 0
  %283 = vmatpush2.bf16.msra.mxu0 0
  %284 = vmatprep.subr.bf16.mxu0 0
  %285 = vmatpush2.bf16.msra.mxu0 0
  %286 = vmatprep.subr.bf16.mxu0 0
  %287 = vmatpush2.bf16.msra.mxu0 0
  %288 = vmatprep.subr.bf16.mxu0 0
  %289 = vmatpush2.bf16.msra.mxu0 0
  %290 = vmatprep.subr.bf16.mxu0 0
  %291 = vmatpush2.bf16.msra.mxu0 0
  %292 = vmatprep.subr.bf16.mxu0 0
  %293 = vmatpush2.bf16.msra.mxu0 0
  %294 = vmatprep.subr.bf16.mxu0 0
  %295 = vmatpush2.bf16.msra.mxu0 0
  %296 = vmatprep.subr.bf16.mxu0 0
  %297 = vmatpush2.bf16.msra.mxu0 0
  %298 = vmatprep.mubr.bf16.mxu0 0
  %299 = vmatmul.mubr.bf16.gmra.mxu0 %v212
  %v300 = vpop.f32.mrf.mxu0
  %v301 = vadd.f32 %v252, %v300
  %v302 = vpop.f32.mrf.mxu0
  %v303 = vpop.f32.mrf.mxu0
  %v304 = vadd.f32 %v255, %v303
  %v305 = vpop.f32.mrf.mxu0
  %306 = vmatprep.mubr.bf16.mxu0 0
  %307 = vmatmul.mubr.bf16.gmra.mxu0 %v215
  %v308 = vpop.f32.mrf.mxu0
  %v309 = vadd.f32 %v260, %v308
  %v310 = vpop.f32.mrf.mxu0
  %v311 = vpop.f32.mrf.mxu0
  %v312 = vadd.f32 %v263, %v311
  %v313 = vpop.f32.mrf.mxu0
  %314 = vdwg.mxu0
  %v315 = vadd.f32 %v24, %v301
  %v316 = vadd.f32 %v25, %v304
  %v317 = vadd.f32 %v26, %v309
  %v318 = vadd.f32 %v27, %v312
  %vm319 = vcmask 523264
  %320 = vst.msk [vmem:[#allocation2] sm:$0xff] %vm319, %v315
  %321 = vst.msk [vmem:[#allocation2 + $0x8] sm:$0xff] %vm319, %v316
  %322 = vst.msk [vmem:[#allocation2 + $0x10] sm:$0xff] %vm319, %v317
  %323 = vst.msk [vmem:[#allocation2 + $0x18] sm:$0xff] %vm319, %v318
  // Predicated region
  $region18: #{yolo_forward.41} parent=0 // pred_check
    %p324 = pneg %p15
  $region19: #{yolo_forward.41} parent=0 // pred_check_branch
    %326 = sbr.rel (%p324) target = $region21
  $region20: #{yolo_forward.41} parent=0 // pred_region
    %v327 = vld [vmem:[#allocation2] sm:$0xff]
    %v328 = vld [vmem:[#allocation2 + $0x8] sm:$0xff]
    %v329 = vld [vmem:[#allocation2 + $0x10] sm:$0xff]
    %v330 = vld [vmem:[#allocation2 + $0x18] sm:$0xff]
    %v331 = vld [vmem:[%s2] sm:$0x1]
    %v333 = vlaneseq
    %v334 = vshrl.u32 %v333, 7
    %v335 = vsub.s32 0, %v334
    %v336 = vrot.slane %v331, %v335
    %v338 = vadd.f32 %v327, %v336
    %v339 = vadd.f32 %v328, %v336
    %v340 = vadd.f32 %v329, %v336
    %v341 = vadd.f32 %v330, %v336
    %vm342 = vcmp.gt.f32.partialorder %v338, 0.0
    %vm343 = vcmp.gt.f32.partialorder %v339, 0.0
    %vm344 = vcmp.gt.f32.partialorder %v340, 0.0
    %vm345 = vcmp.gt.f32.partialorder %v341, 0.0
    %v346 = vmul.f32 %v338, 0.01
    %v347 = vmul.f32 %v339, 0.01
    %v348 = vmul.f32 %v340, 0.01
    %v349 = vmul.f32 %v341, 0.01
    %v350 = vsel %vm342, %v338, %v346
    %v351 = vsel %vm343, %v339, %v347
    %v352 = vsel %vm344, %v340, %v348
    %v353 = vsel %vm345, %v341, %v349
    %v354 = vpack.c.bf16 %v351, %v350
    %v355 = vpack.c.bf16 %v353, %v352
    %v358 = vunpack.c.l.b16 %v354
    %v359 = vunpack.c.h.b16 %v354
    %v360 = vunpack.c.l.b16 %v355
    %v361 = vunpack.c.h.b16 %v355
    %v362 = vpack.c.b16 %v358, %v358
    %v363 = vpack.c.b16 %v359, %v359
    %v364 = vpack.c.b16 %v360, %v360
    %v365 = vpack.c.b16 %v361, %v361
    %vm370 = vcmask 519168
    %371 = vst.msk [vmem:[%s3] sm:$0xf] %vm370, %v362
    %372 = vst.msk [vmem:[%s3 + $0x4] sm:$0xf] %vm370, %v363
    %373 = vst.msk [vmem:[%s3 + $0x8] sm:$0xf] %vm370, %v364
    %374 = vst.msk [vmem:[%s3 + $0xc] sm:$0xf] %vm370, %v365
  $region21: #{yolo_forward.41} parent=0 // pred_fallthru
    _
  // Predicated region
  $region22: #{yolo_forward.41} parent=0 // pred_check
    _
  $region23: #{yolo_forward.41} parent=0 // pred_check_branch
    %376 = sbr.rel (0) target = $region25
  $region24: #{yolo_forward.41} parent=0 // pred_region
    _
  $region25: #{yolo_forward.41} parent=0 // pred_fallthru
    _
  // Predicated region
  $region26: #{yolo_forward.41} parent=0 // pred_check
    _
  $region27: #{yolo_forward.41} parent=0 // pred_check_branch
    %378 = sbr.rel (0) target = $region29
  $region28: #{yolo_forward.41} parent=0 // pred_region
    _
  $region29: #{yolo_forward.41} parent=0 // pred_fallthru
    _

// kernel: yolo_forward.45
$region0: #{yolo_forward.45}
  #allocation0 [shape = 'u32[]', space=smem, size = 0x4, offset = 0x4, fixed_abs, tag = 'smem constant byte address 0x4 - core index']
  #allocation1 [shape = 'u32[144,128]{1,0:T(1,128)}', space=vmem, size = 0x12000, scoped, tag = 'internal scratch']
  #allocation2 [shape = 'f32[8,64]{1,0:T(8,128)}', space=vmem, size = 0x1000, scoped, tag = 'scratch operand']
  %s0 = inlined_call_operand.vmem [shape: bf16[8,288], index: 0, kind: input, shape index: {}]
  %s1 = inlined_call_operand.vmem [shape: bf16[288,64], index: 1, kind: input, shape index: {}]
  %s2 = inlined_call_operand.hbm [shape: f32[1,64], index: 2, kind: input, shape index: {}]
  %s3 = inlined_call_operand.vmem [shape: bf16[8,64], index: 3, kind: output, shape index: {}]
  %s4 = sld [smem:[#allocation0]]
  $region34: #{yolo_forward.45} parent=0
    _
  %s6 = ssub.s32 1, %s4
  %s7 = scalar_select 0, %s6, %s4
  $region1: #{yolo_forward.45} parent=0
    #allocation3 [shape = 'u8[512]{0}', space=vmem, size = 0x400, scoped, tag = 'input window, operand 2, single buffered']
    #allocation4 [shape = 's32[1]{0}', space=sflag, size = 0x4, scoped, tag = 'scoped memory for yolo_forward.45']
    %8 = vsyncpa [#allocation4], 0
    // Predicated region
    $region2: #{yolo_forward.45} parent=1 // pred_check
      _
    $region3: #{yolo_forward.45} parent=1 // pred_check_branch
      %10 = sbr.rel (0) target = $region5
    $region4: #{yolo_forward.45} parent=1 // pred_region
      _
    $region5: #{yolo_forward.45} parent=1 // pred_fallthru
      _
    // Predicated region
    $region6: #{yolo_forward.45} parent=1 // pred_check
      _
    $region7: #{yolo_forward.45} parent=1 // pred_check_branch
      %12 = sbr.rel (0) target = $region9
    $region8: #{yolo_forward.45} parent=1 // pred_region
      _
    $region9: #{yolo_forward.45} parent=1 // pred_fallthru
      _
    // Predicated region
    $region10: #{yolo_forward.45} parent=1 // pred_check
      _
    $region11: #{yolo_forward.45} parent=1 // pred_check_branch
      %14 = sbr.rel (0) target = $region13
    $region12: #{yolo_forward.45} parent=1 // pred_region
      %s16 = ssub.s32 16, 16
      %17 = vsyncadd [#allocation4], %s16
      %s19 = sshll.u32 [#allocation3], 4
      %s20 = int_to_ptr.vmem [resolvable:$true] %s19
      %22 = dma.hbm_to_vmem [thread:$0]  %s2, 16, %s20, [#allocation4]
    $region13: #{yolo_forward.45} parent=1 // pred_fallthru
      _
    // Predicated region
    $region14: #{yolo_forward.45} parent=1 // pred_check
      _
    $region15: #{yolo_forward.45} parent=1 // pred_check_branch
      %24 = sbr.rel (0) target = $region17
    $region16: #{yolo_forward.45} parent=1 // pred_region
      %25 = dma.done [#allocation4], 16
    $region17: #{yolo_forward.45} parent=1 // pred_fallthru
      _
    %p27 = scmp.eq.s32.totalorder 0, 0
    // Predicated region
    $region18: #{yolo_forward.45} parent=1 // pred_check
      %p28 = pneg %p27
    $region19: #{yolo_forward.45} parent=1 // pred_check_branch
      %30 = sbr.rel (%p28) target = $region21
    $region20: #{yolo_forward.45} parent=1 // pred_region
      %vm31 = vcmask 523264
      %32 = vst.msk [vmem:[#allocation2] sm:$0xff] %vm31, 0.0
    $region21: #{yolo_forward.45} parent=1 // pred_fallthru
      _
    %v33 = vld [vmem:[#allocation2] sm:$0xff]
    %v34 = vld [vmem:[%s0] sm:$0xff]
    %v35 = vld [vmem:[%s0 + $0x8] sm:$0xf]
    %v36 = vld [vmem:[%s1] sm:$0xf]
    %v37 = vld [vmem:[%s1 + $0x4] sm:$0xf]
    %v38 = vld [vmem:[%s1 + $0x8] sm:$0xf]
    %v39 = vld [vmem:[%s1 + $0xc] sm:$0xf]
    %v40 = vld [vmem:[%s1 + $0x10] sm:$0xf]
    %v41 = vld [vmem:[%s1 + $0x14] sm:$0xf]
    %v42 = vld [vmem:[%s1 + $0x18] sm:$0xf]
    %v43 = vld [vmem:[%s1 + $0x1c] sm:$0xf]
    %v44 = vld [vmem:[%s1 + $0x20] sm:$0xf]
    %v45 = vld [vmem:[%s1 + $0x24] sm:$0xf]
    %v46 = vld [vmem:[%s1 + $0x28] sm:$0xf]
    %v47 = vld [vmem:[%s1 + $0x2c] sm:$0xf]
    %v48 = vld [vmem:[%s1 + $0x30] sm:$0xf]
    %v49 = vld [vmem:[%s1 + $0x34] sm:$0xf]
    %v50 = vld [vmem:[%s1 + $0x38] sm:$0xf]
    %v51 = vld [vmem:[%s1 + $0x3c] sm:$0xf]
    %v52 = vld [vmem:[%s1 + $0x40] sm:$0xf]
    %v53 = vld [vmem:[%s1 + $0x44] sm:$0xf]
    %v54 = vld [vmem:[%s1 + $0x48] sm:$0xf]
    %v55 = vld [vmem:[%s1 + $0x4c] sm:$0xf]
    %v56 = vld [vmem:[%s1 + $0x50] sm:$0xf]
    %v57 = vld [vmem:[%s1 + $0x54] sm:$0xf]
    %v58 = vld [vmem:[%s1 + $0x58] sm:$0xf]
    %v59 = vld [vmem:[%s1 + $0x5c] sm:$0xf]
    %v60 = vld [vmem:[%s1 + $0x60] sm:$0xf]
    %v61 = vld [vmem:[%s1 + $0x64] sm:$0xf]
    %v62 = vld [vmem:[%s1 + $0x68] sm:$0xf]
    %v63 = vld [vmem:[%s1 + $0x6c] sm:$0xf]
    %v64 = vld [vmem:[%s1 + $0x70] sm:$0xf]
    %v65 = vld [vmem:[%s1 + $0x74] sm:$0xf]
    %v66 = vld [vmem:[%s1 + $0x78] sm:$0xf]
    %v67 = vld [vmem:[%s1 + $0x7c] sm:$0xf]
    %v68 = vld [vmem:[%s1 + $0x80] sm:$0xf]
    %v69 = vld [vmem:[%s1 + $0x84] sm:$0xf]
    %v70 = vld [vmem:[%s1 + $0x88] sm:$0xf]
    %v71 = vld [vmem:[%s1 + $0x8c] sm:$0xf]
    %v74 = vunpack.c.l.b16 %v34
    %v75 = vunpack.c.h.b16 %v34
    %v76 = vunpack.c.l.b16 %v35
    %v77 = vpack.c.b16 %v74, %v74
    %v78 = vpack.c.b16 %v75, %v75
    %v79 = vpack.c.b16 %v76, %v76
    %v118 = vunpack.c.l.b16 %v36
    %v119 = vunpack.c.l.b16 %v37
    %v120 = vunpack.c.l.b16 %v38
    %v121 = vunpack.c.l.b16 %v39
    %v122 = vunpack.c.l.b16 %v40
    %v123 = vunpack.c.l.b16 %v41
    %v124 = vunpack.c.l.b16 %v42
    %v125 = vunpack.c.l.b16 %v43
    %v126 = vunpack.c.l.b16 %v44
    %v127 = vunpack.c.l.b16 %v45
    %v128 = vunpack.c.l.b16 %v46
    %v129 = vunpack.c.l.b16 %v47
    %v130 = vunpack.c.l.b16 %v48
    %v131 = vunpack.c.l.b16 %v49
    %v132 = vunpack.c.l.b16 %v50
    %v133 = vunpack.c.l.b16 %v51
    %v134 = vunpack.c.l.b16 %v52
    %v135 = vunpack.c.l.b16 %v53
    %v136 = vunpack.c.l.b16 %v54
    %v137 = vunpack.c.l.b16 %v55
    %v138 = vunpack.c.l.b16 %v56
    %v139 = vunpack.c.l.b16 %v57
    %v140 = vunpack.c.l.b16 %v58
    %v141 = vunpack.c.l.b16 %v59
    %v142 = vunpack.c.l.b16 %v60
    %v143 = vunpack.c.l.b16 %v61
    %v144 = vunpack.c.l.b16 %v62
    %v145 = vunpack.c.l.b16 %v63
    %v146 = vunpack.c.l.b16 %v64
    %v147 = vunpack.c.l.b16 %v65
    %v148 = vunpack.c.l.b16 %v66
    %v149 = vunpack.c.l.b16 %v67
    %v150 = vunpack.c.l.b16 %v68
    %v151 = vunpack.c.l.b16 %v69
    %v152 = vunpack.c.l.b16 %v70
    %v153 = vunpack.c.l.b16 %v71
    %v154 = vpack.c.b16 %v119, %v118
    %v155 = vpack.c.b16 %v121, %v120
    %v156 = vpack.c.b16 %v123, %v122
    %v157 = vpack.c.b16 %v125, %v124
    %v158 = vpack.c.b16 %v127, %v126
    %v159 = vpack.c.b16 %v129, %v128
    %v160 = vpack.c.b16 %v131, %v130
    %v161 = vpack.c.b16 %v133, %v132
    %v162 = vpack.c.b16 %v135, %v134
    %v163 = vpack.c.b16 %v137, %v136
    %v164 = vpack.c.b16 %v139, %v138
    %v165 = vpack.c.b16 %v141, %v140
    %v166 = vpack.c.b16 %v143, %v142
    %v167 = vpack.c.b16 %v145, %v144
    %v168 = vpack.c.b16 %v147, %v146
    %v169 = vpack.c.b16 %v149, %v148
    %v170 = vpack.c.b16 %v151, %v150
    %v171 = vpack.c.b16 %v153, %v152
    %vm190 = vcmask 261120
    %v192 = vsel %vm190, %v79, 0
    %194 = vmatprep.subr.bf16.mxu0 0
    %195 = vmatpush1.bf16.msra.mxu0 %v161
    %196 = vmatprep.subr.bf16.mxu0 0
    %197 = vmatpush1.bf16.msra.mxu0 %v160
    %198 = vmatprep.subr.bf16.mxu0 0
    %199 = vmatpush1.bf16.msra.mxu0 %v159
    %200 = vmatprep.subr.bf16.mxu0 0
    %201 = vmatpush1.bf16.msra.mxu0 %v158
    %202 = vmatprep.subr.bf16.mxu0 0
    %203 = vmatpush1.bf16.msra.mxu0 %v157
    %204 = vmatprep.subr.bf16.mxu0 0
    %205 = vmatpush1.bf16.msra.mxu0 %v156
    %206 = vmatprep.subr.bf16.mxu0 0
    %207 = vmatpush1.bf16.msra.mxu0 %v155
    %208 = vmatprep.subr.bf16.mxu0 0
    %209 = vmatpush1.bf16.msra.mxu0 %v154
    %210 = vmatprep.subr.bf16.mxu0 0
    %211 = vmatpush2.bf16.msra.mxu0 %v169
    %212 = vmatprep.subr.bf16.mxu0 0
    %213 = vmatpush2.bf16.msra.mxu0 %v168
    %214 = vmatprep.subr.bf16.mxu0 0
    %215 = vmatpush2.bf16.msra.mxu0 %v167
    %216 = vmatprep.subr.bf16.mxu0 0
    %217 = vmatpush2.bf16.msra.mxu0 %v166
    %218 = vmatprep.subr.bf16.mxu0 0
    %219 = vmatpush2.bf16.msra.mxu0 %v165
    %220 = vmatprep.subr.bf16.mxu0 0
    %221 = vmatpush2.bf16.msra.mxu0 %v164
    %222 = vmatprep.subr.bf16.mxu0 0
    %223 = vmatpush2.bf16.msra.mxu0 %v163
    %224 = vmatprep.subr.bf16.mxu0 0
    %225 = vmatpush2.bf16.msra.mxu0 %v162
    %226 = vmatprep.mubr.bf16.mxu0 %v78
    %227 = vmatmul.mubr.bf16.gmra.mxu0 %v77
    %v228 = vpop.f32.mrf.mxu0
    %v229 = vadd.f32 0.0, %v228
    %v230 = vpop.f32.mrf.mxu0
    %v231 = vpop.f32.mrf.mxu0
    %v232 = vpop.f32.mrf.mxu0
    %233 = vdwg.mxu0
    %234 = vmatprep.subr.bf16.mxu0 0
    %235 = vmatpush1.bf16.msra.mxu0 0
    %236 = vmatprep.subr.bf16.mxu0 0
    %237 = vmatpush1.bf16.msra.mxu0 0
    %238 = vmatprep.subr.bf16.mxu0 0
    %239 = vmatpush1.bf16.msra.mxu0 0
    %240 = vmatprep.subr.bf16.mxu0 0
    %241 = vmatpush1.bf16.msra.mxu0 0
    %242 = vmatprep.subr.bf16.mxu0 0
    %243 = vmatpush1.bf16.msra.mxu0 0
    %244 = vmatprep.subr.bf16.mxu0 0
    %245 = vmatpush1.bf16.msra.mxu0 0
    %246 = vmatprep.subr.bf16.mxu0 0
    %247 = vmatpush1.bf16.msra.mxu0 %v171
    %248 = vmatprep.subr.bf16.mxu0 0
    %249 = vmatpush1.bf16.msra.mxu0 %v170
    %250 = vmatprep.subr.bf16.mxu0 0
    %251 = vmatpush2.bf16.msra.mxu0 0
    %252 = vmatprep.subr.bf16.mxu0 0
    %253 = vmatpush2.bf16.msra.mxu0 0
    %254 = vmatprep.subr.bf16.mxu0 0
    %255 = vmatpush2.bf16.msra.mxu0 0
    %256 = vmatprep.subr.bf16.mxu0 0
    %257 = vmatpush2.bf16.msra.mxu0 0
    %258 = vmatprep.subr.bf16.mxu0 0
    %259 = vmatpush2.bf16.msra.mxu0 0
    %260 = vmatprep.subr.bf16.mxu0 0
    %261 = vmatpush2.bf16.msra.mxu0 0
    %262 = vmatprep.subr.bf16.mxu0 0
    %263 = vmatpush2.bf16.msra.mxu0 0
    %264 = vmatprep.subr.bf16.mxu0 0
    %265 = vmatpush2.bf16.msra.mxu0 0
    %266 = vmatprep.mubr.bf16.mxu0 0
    %267 = vmatmul.mubr.bf16.gmra.mxu0 %v192
    %v268 = vpop.f32.mrf.mxu0
    %v269 = vadd.f32 %v229, %v268
    %v270 = vpop.f32.mrf.mxu0
    %v271 = vpop.f32.mrf.mxu0
    %v272 = vpop.f32.mrf.mxu0
    %273 = vdwg.mxu0
    %v274 = vadd.f32 %v33, %v269
    %vm275 = vcmask 523264
    %276 = vst.msk [vmem:[#allocation2] sm:$0xff] %vm275, %v274
    // Predicated region
    $region22: #{yolo_forward.45} parent=1 // pred_check
      %p277 = pneg %p27
    $region23: #{yolo_forward.45} parent=1 // pred_check_branch
      %279 = sbr.rel (%p277) target = $region25
    $region24: #{yolo_forward.45} parent=1 // pred_region
      %v280 = vld [vmem:[#allocation2] sm:$0xff]
      %v281 = vld [vmem:[#allocation3] sm:$0x1]
      %v283 = vlaneseq
      %v284 = vshrl.u32 %v283, 7
      %v285 = vsub.s32 0, %v284
      %v286 = vrot.slane %v281, %v285
      %v288 = vadd.f32 %v280, %v286
      %vm289 = vcmp.gt.f32.partialorder %v288, 0.0
      %v290 = vmul.f32 %v288, 0.01
      %v291 = vsel %vm289, %v288, %v290
      %v292 = vpack.c.bf16 %v291, %v291
      %vm293 = vcmask 519168
      %294 = vst.msk [vmem:[%s3] sm:$0xf] %vm293, %v292
    $region25: #{yolo_forward.45} parent=1 // pred_fallthru
      _
    // Predicated region
    $region26: #{yolo_forward.45} parent=1 // pred_check
      _
    $region27: #{yolo_forward.45} parent=1 // pred_check_branch
      %296 = sbr.rel (0) target = $region29
    $region28: #{yolo_forward.45} parent=1 // pred_region
      _
    $region29: #{yolo_forward.45} parent=1 // pred_fallthru
      _
    // Predicated region
    $region30: #{yolo_forward.45} parent=1 // pred_check
      _
    $region31: #{yolo_forward.45} parent=1 // pred_check_branch
      %298 = sbr.rel (0) target = $region33
    $region32: #{yolo_forward.45} parent=1 // pred_region
      _
    $region33: #{yolo_forward.45} parent=1 // pred_fallthru
      _
    %299 = vsyncpa [#allocation4], 1

// kernel: yolo_forward.43
$region0: #{yolo_forward.43}
  #allocation0 [shape = 'u32[]', space=smem, size = 0x4, offset = 0x4, fixed_abs, tag = 'smem constant byte address 0x4 - core index']
  #allocation1 [shape = 'u32[144,128]{1,0:T(1,128)}', space=vmem, size = 0x12000, scoped, tag = 'internal scratch']
  #allocation2 [shape = 'f32[8,64]{1,0:T(8,128)}', space=vmem, size = 0x1000, scoped, tag = 'scratch operand']
  %s0 = inlined_call_operand.vmem [shape: bf16[8,288], index: 0, kind: input, shape index: {}]
  %s1 = inlined_call_operand.vmem [shape: bf16[288,64], index: 1, kind: input, shape index: {}]
  %s2 = inlined_call_operand.vmem [shape: f32[1,64], index: 2, kind: input, shape index: {}]
  %s3 = inlined_call_operand.vmem [shape: bf16[8,64], index: 3, kind: output, shape index: {}]
  %s4 = sld [smem:[#allocation0]]
  $region30: #{yolo_forward.43} parent=0
    _
  %s6 = ssub.s32 1, %s4
  %s7 = scalar_select 0, %s6, %s4
  // Predicated region
  $region2: #{yolo_forward.43} parent=0 // pred_check
    _
  $region3: #{yolo_forward.43} parent=0 // pred_check_branch
    %9 = sbr.rel (0) target = $region5
  $region4: #{yolo_forward.43} parent=0 // pred_region
    _
  $region5: #{yolo_forward.43} parent=0 // pred_fallthru
    _
  // Predicated region
  $region6: #{yolo_forward.43} parent=0 // pred_check
    _
  $region7: #{yolo_forward.43} parent=0 // pred_check_branch
    %11 = sbr.rel (0) target = $region9
  $region8: #{yolo_forward.43} parent=0 // pred_region
    _
  $region9: #{yolo_forward.43} parent=0 // pred_fallthru
    _
  // Predicated region
  $region10: #{yolo_forward.43} parent=0 // pred_check
    _
  $region11: #{yolo_forward.43} parent=0 // pred_check_branch
    %13 = sbr.rel (0) target = $region13
  $region12: #{yolo_forward.43} parent=0 // pred_region
    _
  $region13: #{yolo_forward.43} parent=0 // pred_fallthru
    _
  %p15 = scmp.eq.s32.totalorder 0, 0
  // Predicated region
  $region14: #{yolo_forward.43} parent=0 // pred_check
    %p16 = pneg %p15
  $region15: #{yolo_forward.43} parent=0 // pred_check_branch
    %18 = sbr.rel (%p16) target = $region17
  $region16: #{yolo_forward.43} parent=0 // pred_region
    %vm19 = vcmask 523264
    %20 = vst.msk [vmem:[#allocation2] sm:$0xff] %vm19, 0.0
  $region17: #{yolo_forward.43} parent=0 // pred_fallthru
    _
  %v21 = vld [vmem:[#allocation2] sm:$0xff]
  %v22 = vld [vmem:[%s0] sm:$0xff]
  %v23 = vld [vmem:[%s0 + $0x8] sm:$0xf]
  %v24 = vld [vmem:[%s1] sm:$0xf]
  %v25 = vld [vmem:[%s1 + $0x4] sm:$0xf]
  %v26 = vld [vmem:[%s1 + $0x8] sm:$0xf]
  %v27 = vld [vmem:[%s1 + $0xc] sm:$0xf]
  %v28 = vld [vmem:[%s1 + $0x10] sm:$0xf]
  %v29 = vld [vmem:[%s1 + $0x14] sm:$0xf]
  %v30 = vld [vmem:[%s1 + $0x18] sm:$0xf]
  %v31 = vld [vmem:[%s1 + $0x1c] sm:$0xf]
  %v32 = vld [vmem:[%s1 + $0x20] sm:$0xf]
  %v33 = vld [vmem:[%s1 + $0x24] sm:$0xf]
  %v34 = vld [vmem:[%s1 + $0x28] sm:$0xf]
  %v35 = vld [vmem:[%s1 + $0x2c] sm:$0xf]
  %v36 = vld [vmem:[%s1 + $0x30] sm:$0xf]
  %v37 = vld [vmem:[%s1 + $0x34] sm:$0xf]
  %v38 = vld [vmem:[%s1 + $0x38] sm:$0xf]
  %v39 = vld [vmem:[%s1 + $0x3c] sm:$0xf]
  %v40 = vld [vmem:[%s1 + $0x40] sm:$0xf]
  %v41 = vld [vmem:[%s1 + $0x44] sm:$0xf]
  %v42 = vld [vmem:[%s1 + $0x48] sm:$0xf]
  %v43 = vld [vmem:[%s1 + $0x4c] sm:$0xf]
  %v44 = vld [vmem:[%s1 + $0x50] sm:$0xf]
  %v45 = vld [vmem:[%s1 + $0x54] sm:$0xf]
  %v46 = vld [vmem:[%s1 + $0x58] sm:$0xf]
  %v47 = vld [vmem:[%s1 + $0x5c] sm:$0xf]
  %v48 = vld [vmem:[%s1 + $0x60] sm:$0xf]
  %v49 = vld [vmem:[%s1 + $0x64] sm:$0xf]
  %v50 = vld [vmem:[%s1 + $0x68] sm:$0xf]
  %v51 = vld [vmem:[%s1 + $0x6c] sm:$0xf]
  %v52 = vld [vmem:[%s1 + $0x70] sm:$0xf]
  %v53 = vld [vmem:[%s1 + $0x74] sm:$0xf]
  %v54 = vld [vmem:[%s1 + $0x78] sm:$0xf]
  %v55 = vld [vmem:[%s1 + $0x7c] sm:$0xf]
  %v56 = vld [vmem:[%s1 + $0x80] sm:$0xf]
  %v57 = vld [vmem:[%s1 + $0x84] sm:$0xf]
  %v58 = vld [vmem:[%s1 + $0x88] sm:$0xf]
  %v59 = vld [vmem:[%s1 + $0x8c] sm:$0xf]
  %v62 = vunpack.c.l.b16 %v22
  %v63 = vunpack.c.h.b16 %v22
  %v64 = vunpack.c.l.b16 %v23
  %v65 = vpack.c.b16 %v62, %v62
  %v66 = vpack.c.b16 %v63, %v63
  %v67 = vpack.c.b16 %v64, %v64
  %v106 = vunpack.c.l.b16 %v24
  %v107 = vunpack.c.l.b16 %v25
  %v108 = vunpack.c.l.b16 %v26
  %v109 = vunpack.c.l.b16 %v27
  %v110 = vunpack.c.l.b16 %v28
  %v111 = vunpack.c.l.b16 %v29
  %v112 = vunpack.c.l.b16 %v30
  %v113 = vunpack.c.l.b16 %v31
  %v114 = vunpack.c.l.b16 %v32
  %v115 = vunpack.c.l.b16 %v33
  %v116 = vunpack.c.l.b16 %v34
  %v117 = vunpack.c.l.b16 %v35
  %v118 = vunpack.c.l.b16 %v36
  %v119 = vunpack.c.l.b16 %v37
  %v120 = vunpack.c.l.b16 %v38
  %v121 = vunpack.c.l.b16 %v39
  %v122 = vunpack.c.l.b16 %v40
  %v123 = vunpack.c.l.b16 %v41
  %v124 = vunpack.c.l.b16 %v42
  %v125 = vunpack.c.l.b16 %v43
  %v126 = vunpack.c.l.b16 %v44
  %v127 = vunpack.c.l.b16 %v45
  %v128 = vunpack.c.l.b16 %v46
  %v129 = vunpack.c.l.b16 %v47
  %v130 = vunpack.c.l.b16 %v48
  %v131 = vunpack.c.l.b16 %v49
  %v132 = vunpack.c.l.b16 %v50
  %v133 = vunpack.c.l.b16 %v51
  %v134 = vunpack.c.l.b16 %v52
  %v135 = vunpack.c.l.b16 %v53
  %v136 = vunpack.c.l.b16 %v54
  %v137 = vunpack.c.l.b16 %v55
  %v138 = vunpack.c.l.b16 %v56
  %v139 = vunpack.c.l.b16 %v57
  %v140 = vunpack.c.l.b16 %v58
  %v141 = vunpack.c.l.b16 %v59
  %v142 = vpack.c.b16 %v107, %v106
  %v143 = vpack.c.b16 %v109, %v108
  %v144 = vpack.c.b16 %v111, %v110
  %v145 = vpack.c.b16 %v113, %v112
  %v146 = vpack.c.b16 %v115, %v114
  %v147 = vpack.c.b16 %v117, %v116
  %v148 = vpack.c.b16 %v119, %v118
  %v149 = vpack.c.b16 %v121, %v120
  %v150 = vpack.c.b16 %v123, %v122
  %v151 = vpack.c.b16 %v125, %v124
  %v152 = vpack.c.b16 %v127, %v126
  %v153 = vpack.c.b16 %v129, %v128
  %v154 = vpack.c.b16 %v131, %v130
  %v155 = vpack.c.b16 %v133, %v132
  %v156 = vpack.c.b16 %v135, %v134
  %v157 = vpack.c.b16 %v137, %v136
  %v158 = vpack.c.b16 %v139, %v138
  %v159 = vpack.c.b16 %v141, %v140
  %vm178 = vcmask 261120
  %v180 = vsel %vm178, %v67, 0
  %182 = vmatprep.subr.bf16.mxu0 0
  %183 = vmatpush1.bf16.msra.mxu0 %v149
  %184 = vmatprep.subr.bf16.mxu0 0
  %185 = vmatpush1.bf16.msra.mxu0 %v148
  %186 = vmatprep.subr.bf16.mxu0 0
  %187 = vmatpush1.bf16.msra.mxu0 %v147
  %188 = vmatprep.subr.bf16.mxu0 0
  %189 = vmatpush1.bf16.msra.mxu0 %v146
  %190 = vmatprep.subr.bf16.mxu0 0
  %191 = vmatpush1.bf16.msra.mxu0 %v145
  %192 = vmatprep.subr.bf16.mxu0 0
  %193 = vmatpush1.bf16.msra.mxu0 %v144
  %194 = vmatprep.subr.bf16.mxu0 0
  %195 = vmatpush1.bf16.msra.mxu0 %v143
  %196 = vmatprep.subr.bf16.mxu0 0
  %197 = vmatpush1.bf16.msra.mxu0 %v142
  %198 = vmatprep.subr.bf16.mxu0 0
  %199 = vmatpush2.bf16.msra.mxu0 %v157
  %200 = vmatprep.subr.bf16.mxu0 0
  %201 = vmatpush2.bf16.msra.mxu0 %v156
  %202 = vmatprep.subr.bf16.mxu0 0
  %203 = vmatpush2.bf16.msra.mxu0 %v155
  %204 = vmatprep.subr.bf16.mxu0 0
  %205 = vmatpush2.bf16.msra.mxu0 %v154
  %206 = vmatprep.subr.bf16.mxu0 0
  %207 = vmatpush2.bf16.msra.mxu0 %v153
  %208 = vmatprep.subr.bf16.mxu0 0
  %209 = vmatpush2.bf16.msra.mxu0 %v152
  %210 = vmatprep.subr.bf16.mxu0 0
  %211 = vmatpush2.bf16.msra.mxu0 %v151
  %212 = vmatprep.subr.bf16.mxu0 0
  %213 = vmatpush2.bf16.msra.mxu0 %v150
  %214 = vmatprep.mubr.bf16.mxu0 %v66
  %215 = vmatmul.mubr.bf16.gmra.mxu0 %v65
  %v216 = vpop.f32.mrf.mxu0
  %v217 = vadd.f32 0.0, %v216
  %v218 = vpop.f32.mrf.mxu0
  %v219 = vpop.f32.mrf.mxu0
  %v220 = vpop.f32.mrf.mxu0
  %221 = vdwg.mxu0
  %222 = vmatprep.subr.bf16.mxu0 0
  %223 = vmatpush1.bf16.msra.mxu0 0
  %224 = vmatprep.subr.bf16.mxu0 0
  %225 = vmatpush1.bf16.msra.mxu0 0
  %226 = vmatprep.subr.bf16.mxu0 0
  %227 = vmatpush1.bf16.msra.mxu0 0
  %228 = vmatprep.subr.bf16.mxu0 0
  %229 = vmatpush1.bf16.msra.mxu0 0
  %230 = vmatprep.subr.bf16.mxu0 0
  %231 = vmatpush1.bf16.msra.mxu0 0
  %232 = vmatprep.subr.bf16.mxu0 0
  %233 = vmatpush1.bf16.msra.mxu0 0
  %234 = vmatprep.subr.bf16.mxu0 0
  %235 = vmatpush1.bf16.msra.mxu0 %v159
  %236 = vmatprep.subr.bf16.mxu0 0
  %237 = vmatpush1.bf16.msra.mxu0 %v158
  %238 = vmatprep.subr.bf16.mxu0 0
  %239 = vmatpush2.bf16.msra.mxu0 0
  %240 = vmatprep.subr.bf16.mxu0 0
  %241 = vmatpush2.bf16.msra.mxu0 0
  %242 = vmatprep.subr.bf16.mxu0 0
  %243 = vmatpush2.bf16.msra.mxu0 0
  %244 = vmatprep.subr.bf16.mxu0 0
  %245 = vmatpush2.bf16.msra.mxu0 0
  %246 = vmatprep.subr.bf16.mxu0 0
  %247 = vmatpush2.bf16.msra.mxu0 0
  %248 = vmatprep.subr.bf16.mxu0 0
  %249 = vmatpush2.bf16.msra.mxu0 0
  %250 = vmatprep.subr.bf16.mxu0 0
  %251 = vmatpush2.bf16.msra.mxu0 0
  %252 = vmatprep.subr.bf16.mxu0 0
  %253 = vmatpush2.bf16.msra.mxu0 0
  %254 = vmatprep.mubr.bf16.mxu0 0
  %255 = vmatmul.mubr.bf16.gmra.mxu0 %v180
  %v256 = vpop.f32.mrf.mxu0
  %v257 = vadd.f32 %v217, %v256
  %v258 = vpop.f32.mrf.mxu0
  %v259 = vpop.f32.mrf.mxu0
  %v260 = vpop.f32.mrf.mxu0
  %261 = vdwg.mxu0
  %v262 = vadd.f32 %v21, %v257
  %vm263 = vcmask 523264
  %264 = vst.msk [vmem:[#allocation2] sm:$0xff] %vm263, %v262
  // Predicated region
  $region18: #{yolo_forward.43} parent=0 // pred_check
    %p265 = pneg %p15
  $region19: #{yolo_forward.43} parent=0 // pred_check_branch
    %267 = sbr.rel (%p265) target = $region21
  $region20: #{yolo_forward.43} parent=0 // pred_region
    %v268 = vld [vmem:[#allocation2] sm:$0xff]
    %v269 = vld [vmem:[%s2] sm:$0x1]
    %v271 = vlaneseq
    %v272 = vshrl.u32 %v271, 7
    %v273 = vsub.s32 0, %v272
    %v274 = vrot.slane %v269, %v273
    %v276 = vadd.f32 %v268, %v274
    %vm277 = vcmp.gt.f32.partialorder %v276, 0.0
    %v278 = vmul.f32 %v276, 0.01
    %v279 = vsel %vm277, %v276, %v278
    %v280 = vpack.c.bf16 %v279, %v279
    %vm281 = vcmask 519168
    %282 = vst.msk [vmem:[%s3] sm:$0xf] %vm281, %v280
  $region21: #{yolo_forward.43} parent=0 // pred_fallthru
    _
  // Predicated region
  $region22: #{yolo_forward.43} parent=0 // pred_check
    _
  $region23: #{yolo_forward.43} parent=0 // pred_check_branch
    %284 = sbr.rel (0) target = $region25
  $region24: #{yolo_forward.43} parent=0 // pred_region
    _
  $region25: #{yolo_forward.43} parent=0 // pred_fallthru
    _
  // Predicated region
  $region26: #{yolo_forward.43} parent=0 // pred_check
    _
  $region27: #{yolo_forward.43} parent=0 // pred_check_branch
    %286 = sbr.rel (0) target = $region29
  $region28: #{yolo_forward.43} parent=0 // pred_region
    _
  $region29: #{yolo_forward.43} parent=0 // pred_fallthru
    _

// kernel: yolo_forward.46
$region0: #{yolo_forward.46}
  #allocation0 [shape = 'u32[]', space=smem, size = 0x4, offset = 0x4, fixed_abs, tag = 'smem constant byte address 0x4 - core index']
  #allocation1 [shape = 'u32[144,128]{1,0:T(1,128)}', space=vmem, size = 0x12000, scoped, tag = 'internal scratch']
  #allocation2 [shape = 'f32[2,64]{1,0:T(2,128)}', space=vmem, size = 0x400, scoped, tag = 'scratch operand']
  %s0 = inlined_call_operand.vmem [shape: bf16[2,576], index: 0, kind: input, shape index: {}]
  %s1 = inlined_call_operand.vmem [shape: bf16[576,64], index: 1, kind: input, shape index: {}]
  %s2 = inlined_call_operand.vmem [shape: f32[1,64], index: 2, kind: input, shape index: {}]
  %s3 = inlined_call_operand.vmem [shape: bf16[2,64], index: 3, kind: output, shape index: {}]
  %s4 = sld [smem:[#allocation0]]
  $region30: #{yolo_forward.46} parent=0
    _
  %s6 = ssub.s32 1, %s4
  %s7 = scalar_select 0, %s6, %s4
  // Predicated region
  $region2: #{yolo_forward.46} parent=0 // pred_check
    _
  $region3: #{yolo_forward.46} parent=0 // pred_check_branch
    %9 = sbr.rel (0) target = $region5
  $region4: #{yolo_forward.46} parent=0 // pred_region
    _
  $region5: #{yolo_forward.46} parent=0 // pred_fallthru
    _
  // Predicated region
  $region6: #{yolo_forward.46} parent=0 // pred_check
    _
  $region7: #{yolo_forward.46} parent=0 // pred_check_branch
    %11 = sbr.rel (0) target = $region9
  $region8: #{yolo_forward.46} parent=0 // pred_region
    _
  $region9: #{yolo_forward.46} parent=0 // pred_fallthru
    _
  // Predicated region
  $region10: #{yolo_forward.46} parent=0 // pred_check
    _
  $region11: #{yolo_forward.46} parent=0 // pred_check_branch
    %13 = sbr.rel (0) target = $region13
  $region12: #{yolo_forward.46} parent=0 // pred_region
    _
  $region13: #{yolo_forward.46} parent=0 // pred_fallthru
    _
  %p15 = scmp.eq.s32.totalorder 0, 0
  // Predicated region
  $region14: #{yolo_forward.46} parent=0 // pred_check
    %p16 = pneg %p15
  $region15: #{yolo_forward.46} parent=0 // pred_check_branch
    %18 = sbr.rel (%p16) target = $region17
  $region16: #{yolo_forward.46} parent=0 // pred_region
    %vm19 = vcmask 517120
    %20 = vst.msk [vmem:[#allocation2] sm:$0x3] %vm19, 0.0
  $region17: #{yolo_forward.46} parent=0 // pred_fallthru
    _
  %v21 = vld [vmem:[#allocation2] sm:$0x3]
  %v22 = vld [vmem:[%s0] sm:$0x1f]
  %v23 = vld [vmem:[%s1] sm:$0xf]
  %v24 = vld [vmem:[%s1 + $0x4] sm:$0xf]
  %v25 = vld [vmem:[%s1 + $0x8] sm:$0xf]
  %v26 = vld [vmem:[%s1 + $0xc] sm:$0xf]
  %v27 = vld [vmem:[%s1 + $0x10] sm:$0xf]
  %v28 = vld [vmem:[%s1 + $0x14] sm:$0xf]
  %v29 = vld [vmem:[%s1 + $0x18] sm:$0xf]
  %v30 = vld [vmem:[%s1 + $0x1c] sm:$0xf]
  %v31 = vld [vmem:[%s1 + $0x20] sm:$0xf]
  %v32 = vld [vmem:[%s1 + $0x24] sm:$0xf]
  %v33 = vld [vmem:[%s1 + $0x28] sm:$0xf]
  %v34 = vld [vmem:[%s1 + $0x2c] sm:$0xf]
  %v35 = vld [vmem:[%s1 + $0x30] sm:$0xf]
  %v36 = vld [vmem:[%s1 + $0x34] sm:$0xf]
  %v37 = vld [vmem:[%s1 + $0x38] sm:$0xf]
  %v38 = vld [vmem:[%s1 + $0x3c] sm:$0xf]
  %v39 = vld [vmem:[%s1 + $0x40] sm:$0xf]
  %v40 = vld [vmem:[%s1 + $0x44] sm:$0xf]
  %v41 = vld [vmem:[%s1 + $0x48] sm:$0xf]
  %v42 = vld [vmem:[%s1 + $0x4c] sm:$0xf]
  %v43 = vld [vmem:[%s1 + $0x50] sm:$0xf]
  %v44 = vld [vmem:[%s1 + $0x54] sm:$0xf]
  %v45 = vld [vmem:[%s1 + $0x58] sm:$0xf]
  %v46 = vld [vmem:[%s1 + $0x5c] sm:$0xf]
  %v47 = vld [vmem:[%s1 + $0x60] sm:$0xf]
  %v48 = vld [vmem:[%s1 + $0x64] sm:$0xf]
  %v49 = vld [vmem:[%s1 + $0x68] sm:$0xf]
  %v50 = vld [vmem:[%s1 + $0x6c] sm:$0xf]
  %v51 = vld [vmem:[%s1 + $0x70] sm:$0xf]
  %v52 = vld [vmem:[%s1 + $0x74] sm:$0xf]
  %v53 = vld [vmem:[%s1 + $0x78] sm:$0xf]
  %v54 = vld [vmem:[%s1 + $0x7c] sm:$0xf]
  %v55 = vld [vmem:[%s1 + $0x80] sm:$0xf]
  %v56 = vld [vmem:[%s1 + $0x84] sm:$0xf]
  %v57 = vld [vmem:[%s1 + $0x88] sm:$0xf]
  %v58 = vld [vmem:[%s1 + $0x8c] sm:$0xf]
  %v59 = vld [vmem:[%s1 + $0x90] sm:$0xf]
  %v60 = vld [vmem:[%s1 + $0x94] sm:$0xf]
  %v61 = vld [vmem:[%s1 + $0x98] sm:$0xf]
  %v62 = vld [vmem:[%s1 + $0x9c] sm:$0xf]
  %v63 = vld [vmem:[%s1 + $0xa0] sm:$0xf]
  %v64 = vld [vmem:[%s1 + $0xa4] sm:$0xf]
  %v65 = vld [vmem:[%s1 + $0xa8] sm:$0xf]
  %v66 = vld [vmem:[%s1 + $0xac] sm:$0xf]
  %v67 = vld [vmem:[%s1 + $0xb0] sm:$0xf]
  %v68 = vld [vmem:[%s1 + $0xb4] sm:$0xf]
  %v69 = vld [vmem:[%s1 + $0xb8] sm:$0xf]
  %v70 = vld [vmem:[%s1 + $0xbc] sm:$0xf]
  %v71 = vld [vmem:[%s1 + $0xc0] sm:$0xf]
  %v72 = vld [vmem:[%s1 + $0xc4] sm:$0xf]
  %v73 = vld [vmem:[%s1 + $0xc8] sm:$0xf]
  %v74 = vld [vmem:[%s1 + $0xcc] sm:$0xf]
  %v75 = vld [vmem:[%s1 + $0xd0] sm:$0xf]
  %v76 = vld [vmem:[%s1 + $0xd4] sm:$0xf]
  %v77 = vld [vmem:[%s1 + $0xd8] sm:$0xf]
  %v78 = vld [vmem:[%s1 + $0xdc] sm:$0xf]
  %v79 = vld [vmem:[%s1 + $0xe0] sm:$0xf]
  %v80 = vld [vmem:[%s1 + $0xe4] sm:$0xf]
  %v81 = vld [vmem:[%s1 + $0xe8] sm:$0xf]
  %v82 = vld [vmem:[%s1 + $0xec] sm:$0xf]
  %v83 = vld [vmem:[%s1 + $0xf0] sm:$0xf]
  %v84 = vld [vmem:[%s1 + $0xf4] sm:$0xf]
  %v85 = vld [vmem:[%s1 + $0xf8] sm:$0xf]
  %v86 = vld [vmem:[%s1 + $0xfc] sm:$0xf]
  %v87 = vld [vmem:[%s1 + $0x100] sm:$0xf]
  %v88 = vld [vmem:[%s1 + $0x104] sm:$0xf]
  %v89 = vld [vmem:[%s1 + $0x108] sm:$0xf]
  %v90 = vld [vmem:[%s1 + $0x10c] sm:$0xf]
  %v91 = vld [vmem:[%s1 + $0x110] sm:$0xf]
  %v92 = vld [vmem:[%s1 + $0x114] sm:$0xf]
  %v93 = vld [vmem:[%s1 + $0x118] sm:$0xf]
  %v94 = vld [vmem:[%s1 + $0x11c] sm:$0xf]
  %v96 = vcombine.high %v22, %v22
  %v98 = vunpack.c.l.s4 1966171168
  %v99 = vunpack.c.0.s8 %v98
  %v100 = vlaneseq
  %v101 = vshrl.u32 %v100, 7
  %v102 = vsub.s32 %v99, %v101
  %v103 = vrot.slane %v22, %v102
  %v105 = vunpack.c.l.s4 1966171168
  %v106 = vunpack.c.0.s8 %v105
  %v107 = vlaneseq
  %v108 = vshrl.u32 %v107, 7
  %v109 = vsub.s32 %v106, %v108
  %v110 = vrot.slane %v96, %v109
  %v111 = vcombine.high %v103, %v103
  %v113 = vunpack.c.l.s4 1966171168
  %v114 = vunpack.c.0.s8 %v113
  %v115 = vlaneseq
  %v116 = vshrl.u32 %v115, 7
  %v117 = vsub.s32 %v114, %v116
  %v118 = vrot.slane %v103, %v117
  %v120 = vunpack.c.l.s4 1966171168
  %v121 = vunpack.c.0.s8 %v120
  %v122 = vlaneseq
  %v123 = vshrl.u32 %v122, 7
  %v124 = vsub.s32 %v121, %v123
  %v125 = vrot.slane %v110, %v124
  %v127 = vunpack.c.l.s4 1966171168
  %v128 = vunpack.c.0.s8 %v127
  %v129 = vlaneseq
  %v130 = vshrl.u32 %v129, 7
  %v131 = vsub.s32 %v128, %v130
  %v132 = vrot.slane %v111, %v131
  %v133 = vcombine.high %v118, %v118
  %v134 = vcombine.high %v132, %v132
  %v211 = vunpack.c.l.b16 %v23
  %v212 = vunpack.c.l.b16 %v24
  %v213 = vunpack.c.l.b16 %v25
  %v214 = vunpack.c.l.b16 %v26
  %v215 = vunpack.c.l.b16 %v27
  %v216 = vunpack.c.l.b16 %v28
  %v217 = vunpack.c.l.b16 %v29
  %v218 = vunpack.c.l.b16 %v30
  %v219 = vunpack.c.l.b16 %v31
  %v220 = vunpack.c.l.b16 %v32
  %v221 = vunpack.c.l.b16 %v33
  %v222 = vunpack.c.l.b16 %v34
  %v223 = vunpack.c.l.b16 %v35
  %v224 = vunpack.c.l.b16 %v36
  %v225 = vunpack.c.l.b16 %v37
  %v226 = vunpack.c.l.b16 %v38
  %v227 = vunpack.c.l.b16 %v39
  %v228 = vunpack.c.l.b16 %v40
  %v229 = vunpack.c.l.b16 %v41
  %v230 = vunpack.c.l.b16 %v42
  %v231 = vunpack.c.l.b16 %v43
  %v232 = vunpack.c.l.b16 %v44
  %v233 = vunpack.c.l.b16 %v45
  %v234 = vunpack.c.l.b16 %v46
  %v235 = vunpack.c.l.b16 %v47
  %v236 = vunpack.c.l.b16 %v48
  %v237 = vunpack.c.l.b16 %v49
  %v238 = vunpack.c.l.b16 %v50
  %v239 = vunpack.c.l.b16 %v51
  %v240 = vunpack.c.l.b16 %v52
  %v241 = vunpack.c.l.b16 %v53
  %v242 = vunpack.c.l.b16 %v54
  %v243 = vunpack.c.l.b16 %v55
  %v244 = vunpack.c.l.b16 %v56
  %v245 = vunpack.c.l.b16 %v57
  %v246 = vunpack.c.l.b16 %v58
  %v247 = vunpack.c.l.b16 %v59
  %v248 = vunpack.c.l.b16 %v60
  %v249 = vunpack.c.l.b16 %v61
  %v250 = vunpack.c.l.b16 %v62
  %v251 = vunpack.c.l.b16 %v63
  %v252 = vunpack.c.l.b16 %v64
  %v253 = vunpack.c.l.b16 %v65
  %v254 = vunpack.c.l.b16 %v66
  %v255 = vunpack.c.l.b16 %v67
  %v256 = vunpack.c.l.b16 %v68
  %v257 = vunpack.c.l.b16 %v69
  %v258 = vunpack.c.l.b16 %v70
  %v259 = vunpack.c.l.b16 %v71
  %v260 = vunpack.c.l.b16 %v72
  %v261 = vunpack.c.l.b16 %v73
  %v262 = vunpack.c.l.b16 %v74
  %v263 = vunpack.c.l.b16 %v75
  %v264 = vunpack.c.l.b16 %v76
  %v265 = vunpack.c.l.b16 %v77
  %v266 = vunpack.c.l.b16 %v78
  %v267 = vunpack.c.l.b16 %v79
  %v268 = vunpack.c.l.b16 %v80
  %v269 = vunpack.c.l.b16 %v81
  %v270 = vunpack.c.l.b16 %v82
  %v271 = vunpack.c.l.b16 %v83
  %v272 = vunpack.c.l.b16 %v84
  %v273 = vunpack.c.l.b16 %v85
  %v274 = vunpack.c.l.b16 %v86
  %v275 = vunpack.c.l.b16 %v87
  %v276 = vunpack.c.l.b16 %v88
  %v277 = vunpack.c.l.b16 %v89
  %v278 = vunpack.c.l.b16 %v90
  %v279 = vunpack.c.l.b16 %v91
  %v280 = vunpack.c.l.b16 %v92
  %v281 = vunpack.c.l.b16 %v93
  %v282 = vunpack.c.l.b16 %v94
  %v283 = vpack.c.b16 %v212, %v211
  %v284 = vpack.c.b16 %v214, %v213
  %v285 = vpack.c.b16 %v216, %v215
  %v286 = vpack.c.b16 %v218, %v217
  %v287 = vpack.c.b16 %v220, %v219
  %v288 = vpack.c.b16 %v222, %v221
  %v289 = vpack.c.b16 %v224, %v223
  %v290 = vpack.c.b16 %v226, %v225
  %v291 = vpack.c.b16 %v228, %v227
  %v292 = vpack.c.b16 %v230, %v229
  %v293 = vpack.c.b16 %v232, %v231
  %v294 = vpack.c.b16 %v234, %v233
  %v295 = vpack.c.b16 %v236, %v235
  %v296 = vpack.c.b16 %v238, %v237
  %v297 = vpack.c.b16 %v240, %v239
  %v298 = vpack.c.b16 %v242, %v241
  %v299 = vpack.c.b16 %v244, %v243
  %v300 = vpack.c.b16 %v246, %v245
  %v301 = vpack.c.b16 %v248, %v247
  %v302 = vpack.c.b16 %v250, %v249
  %v303 = vpack.c.b16 %v252, %v251
  %v304 = vpack.c.b16 %v254, %v253
  %v305 = vpack.c.b16 %v256, %v255
  %v306 = vpack.c.b16 %v258, %v257
  %v307 = vpack.c.b16 %v260, %v259
  %v308 = vpack.c.b16 %v262, %v261
  %v309 = vpack.c.b16 %v264, %v263
  %v310 = vpack.c.b16 %v266, %v265
  %v311 = vpack.c.b16 %v268, %v267
  %v312 = vpack.c.b16 %v270, %v269
  %v313 = vpack.c.b16 %v272, %v271
  %v314 = vpack.c.b16 %v274, %v273
  %v315 = vpack.c.b16 %v276, %v275
  %v316 = vpack.c.b16 %v278, %v277
  %v317 = vpack.c.b16 %v280, %v279
  %v318 = vpack.c.b16 %v282, %v281
  %vm355 = vcmask 523264
  %v357 = vsel %vm355, %v125, 0
  %359 = vmatprep.subr.bf16.mxu0 0
  %360 = vmatpush1.bf16.msra.mxu0 %v290
  %361 = vmatprep.subr.bf16.mxu0 0
  %362 = vmatpush1.bf16.msra.mxu0 %v289
  %363 = vmatprep.subr.bf16.mxu0 0
  %364 = vmatpush1.bf16.msra.mxu0 %v288
  %365 = vmatprep.subr.bf16.mxu0 0
  %366 = vmatpush1.bf16.msra.mxu0 %v287
  %367 = vmatprep.subr.bf16.mxu0 0
  %368 = vmatpush1.bf16.msra.mxu0 %v286
  %369 = vmatprep.subr.bf16.mxu0 0
  %370 = vmatpush1.bf16.msra.mxu0 %v285
  %371 = vmatprep.subr.bf16.mxu0 0
  %372 = vmatpush1.bf16.msra.mxu0 %v284
  %373 = vmatprep.subr.bf16.mxu0 0
  %374 = vmatpush1.bf16.msra.mxu0 %v283
  %375 = vmatprep.subr.bf16.mxu0 0
  %376 = vmatpush2.bf16.msra.mxu0 %v298
  %377 = vmatprep.subr.bf16.mxu0 0
  %378 = vmatpush2.bf16.msra.mxu0 %v297
  %379 = vmatprep.subr.bf16.mxu0 0
  %380 = vmatpush2.bf16.msra.mxu0 %v296
  %381 = vmatprep.subr.bf16.mxu0 0
  %382 = vmatpush2.bf16.msra.mxu0 %v295
  %383 = vmatprep.subr.bf16.mxu0 0
  %384 = vmatpush2.bf16.msra.mxu0 %v294
  %385 = vmatprep.subr.bf16.mxu0 0
  %386 = vmatpush2.bf16.msra.mxu0 %v293
  %387 = vmatprep.subr.bf16.mxu0 0
  %388 = vmatpush2.bf16.msra.mxu0 %v292
  %389 = vmatprep.subr.bf16.mxu0 0
  %390 = vmatpush2.bf16.msra.mxu0 %v291
  %391 = vmatprep.mubr.bf16.mxu0 %v132
  %392 = vmatmul.mubr.bf16.gmra.mxu0 %v118
  %v393 = vpop.f32.mrf.mxu0
  %v394 = vadd.f32 0.0, %v393
  %v395 = vpop.f32.mrf.mxu0
  %v396 = vpop.f32.mrf.mxu0
  %v397 = vpop.f32.mrf.mxu0
  %398 = vdwg.mxu0
  %399 = vmatprep.subr.bf16.mxu0 0
  %400 = vmatpush1.bf16.msra.mxu0 %v306
  %401 = vmatprep.subr.bf16.mxu0 0
  %402 = vmatpush1.bf16.msra.mxu0 %v305
  %403 = vmatprep.subr.bf16.mxu0 0
  %404 = vmatpush1.bf16.msra.mxu0 %v304
  %405 = vmatprep.subr.bf16.mxu0 0
  %406 = vmatpush1.bf16.msra.mxu0 %v303
  %407 = vmatprep.subr.bf16.mxu0 0
  %408 = vmatpush1.bf16.msra.mxu0 %v302
  %409 = vmatprep.subr.bf16.mxu0 0
  %410 = vmatpush1.bf16.msra.mxu0 %v301
  %411 = vmatprep.subr.bf16.mxu0 0
  %412 = vmatpush1.bf16.msra.mxu0 %v300
  %413 = vmatprep.subr.bf16.mxu0 0
  %414 = vmatpush1.bf16.msra.mxu0 %v299
  %415 = vmatprep.subr.bf16.mxu0 0
  %416 = vmatpush2.bf16.msra.mxu0 %v314
  %417 = vmatprep.subr.bf16.mxu0 0
  %418 = vmatpush2.bf16.msra.mxu0 %v313
  %419 = vmatprep.subr.bf16.mxu0 0
  %420 = vmatpush2.bf16.msra.mxu0 %v312
  %421 = vmatprep.subr.bf16.mxu0 0
  %422 = vmatpush2.bf16.msra.mxu0 %v311
  %423 = vmatprep.subr.bf16.mxu0 0
  %424 = vmatpush2.bf16.msra.mxu0 %v310
  %425 = vmatprep.subr.bf16.mxu0 0
  %426 = vmatpush2.bf16.msra.mxu0 %v309
  %427 = vmatprep.subr.bf16.mxu0 0
  %428 = vmatpush2.bf16.msra.mxu0 %v308
  %429 = vmatprep.subr.bf16.mxu0 0
  %430 = vmatpush2.bf16.msra.mxu0 %v307
  %431 = vmatprep.mubr.bf16.mxu0 %v134
  %432 = vmatmul.mubr.bf16.gmra.mxu0 %v133
  %v433 = vpop.f32.mrf.mxu0
  %v434 = vadd.f32 %v394, %v433
  %v435 = vpop.f32.mrf.mxu0
  %v436 = vpop.f32.mrf.mxu0
  %v437 = vpop.f32.mrf.mxu0
  %438 = vdwg.mxu0
  %439 = vmatprep.subr.bf16.mxu0 0
  %440 = vmatpush1.bf16.msra.mxu0 0
  %441 = vmatprep.subr.bf16.mxu0 0
  %442 = vmatpush1.bf16.msra.mxu0 0
  %443 = vmatprep.subr.bf16.mxu0 0
  %444 = vmatpush1.bf16.msra.mxu0 0
  %445 = vmatprep.subr.bf16.mxu0 0
  %446 = vmatpush1.bf16.msra.mxu0 0
  %447 = vmatprep.subr.bf16.mxu0 0
  %448 = vmatpush1.bf16.msra.mxu0 %v318
  %449 = vmatprep.subr.bf16.mxu0 0
  %450 = vmatpush1.bf16.msra.mxu0 %v317
  %451 = vmatprep.subr.bf16.mxu0 0
  %452 = vmatpush1.bf16.msra.mxu0 %v316
  %453 = vmatprep.subr.bf16.mxu0 0
  %454 = vmatpush1.bf16.msra.mxu0 %v315
  %455 = vmatprep.subr.bf16.mxu0 0
  %456 = vmatpush2.bf16.msra.mxu0 0
  %457 = vmatprep.subr.bf16.mxu0 0
  %458 = vmatpush2.bf16.msra.mxu0 0
  %459 = vmatprep.subr.bf16.mxu0 0
  %460 = vmatpush2.bf16.msra.mxu0 0
  %461 = vmatprep.subr.bf16.mxu0 0
  %462 = vmatpush2.bf16.msra.mxu0 0
  %463 = vmatprep.subr.bf16.mxu0 0
  %464 = vmatpush2.bf16.msra.mxu0 0
  %465 = vmatprep.subr.bf16.mxu0 0
  %466 = vmatpush2.bf16.msra.mxu0 0
  %467 = vmatprep.subr.bf16.mxu0 0
  %468 = vmatpush2.bf16.msra.mxu0 0
  %469 = vmatprep.subr.bf16.mxu0 0
  %470 = vmatpush2.bf16.msra.mxu0 0
  %471 = vmatprep.mubr.bf16.mxu0 0
  %472 = vmatmul.mubr.bf16.gmra.mxu0 %v357
  %v473 = vpop.f32.mrf.mxu0
  %v474 = vadd.f32 %v434, %v473
  %v475 = vpop.f32.mrf.mxu0
  %v476 = vpop.f32.mrf.mxu0
  %v477 = vpop.f32.mrf.mxu0
  %478 = vdwg.mxu0
  %v479 = vadd.f32 %v21, %v474
  %vm480 = vcmask 517120
  %481 = vst.msk [vmem:[#allocation2] sm:$0x3] %vm480, %v479
  // Predicated region
  $region18: #{yolo_forward.46} parent=0 // pred_check
    %p482 = pneg %p15
  $region19: #{yolo_forward.46} parent=0 // pred_check_branch
    %484 = sbr.rel (%p482) target = $region21
  $region20: #{yolo_forward.46} parent=0 // pred_region
    %v485 = vld [vmem:[#allocation2] sm:$0x3]
    %v486 = vld [vmem:[%s2] sm:$0x1]
    %v488 = vlaneseq
    %v489 = vshrl.u32 %v488, 7
    %v490 = vsub.s32 0, %v489
    %v491 = vrot.slane %v486, %v490
    %v493 = vadd.f32 %v485, %v491
    %vm494 = vcmp.gt.f32.partialorder %v493, 0.0
    %v495 = vmul.f32 %v493, 0.01
    %v496 = vsel %vm494, %v493, %v495
    %v497 = vpack.c.bf16 %v496, %v496
    %vm498 = vcmask 516096
    %499 = vst.msk [vmem:[%s3] sm:$0x1] %vm498, %v497
  $region21: #{yolo_forward.46} parent=0 // pred_fallthru
    _
  // Predicated region
  $region22: #{yolo_forward.46} parent=0 // pred_check
    _
  $region23: #{yolo_forward.46} parent=0 // pred_check_branch
    %501 = sbr.rel (0) target = $region25
  $region24: #{yolo_forward.46} parent=0 // pred_region
    _
  $region25: #{yolo_forward.46} parent=0 // pred_fallthru
    _
  // Predicated region
  $region26: #{yolo_forward.46} parent=0 // pred_check
    _
  $region27: #{yolo_forward.46} parent=0 // pred_check_branch
    %503 = sbr.rel (0) target = $region29
  $region28: #{yolo_forward.46} parent=0 // pred_region
    _
  $region29: #{yolo_forward.46} parent=0 // pred_fallthru
    _

// kernel: yolo_forward.50
$region0: #{yolo_forward.50}
  #allocation0 [shape = 'u32[]', space=smem, size = 0x4, offset = 0x4, fixed_abs, tag = 'smem constant byte address 0x4 - core index']
  #allocation1 [shape = 'u32[144,128]{1,0:T(1,128)}', space=vmem, size = 0x12000, scoped, tag = 'internal scratch']
  #allocation2 [shape = 'f32[2,256]{1,0:T(2,128)}', space=vmem, size = 0x800, scoped, tag = 'scratch operand']
  %s0 = inlined_call_operand.vmem [shape: bf16[2,64], index: 0, kind: input, shape index: {}]
  %s1 = inlined_call_operand.vmem [shape: bf16[64,256], index: 1, kind: input, shape index: {}]
  %s2 = inlined_call_operand.vmem [shape: f32[1,256], index: 2, kind: input, shape index: {}]
  %s3 = inlined_call_operand.vmem [shape: bf16[2,256], index: 3, kind: output, shape index: {}]
  %s4 = sld [smem:[#allocation0]]
  $region30: #{yolo_forward.50} parent=0
    _
  %s6 = ssub.s32 1, %s4
  %s7 = scalar_select 0, %s6, %s4
  // Predicated region
  $region2: #{yolo_forward.50} parent=0 // pred_check
    _
  $region3: #{yolo_forward.50} parent=0 // pred_check_branch
    %9 = sbr.rel (0) target = $region5
  $region4: #{yolo_forward.50} parent=0 // pred_region
    _
  $region5: #{yolo_forward.50} parent=0 // pred_fallthru
    _
  // Predicated region
  $region6: #{yolo_forward.50} parent=0 // pred_check
    _
  $region7: #{yolo_forward.50} parent=0 // pred_check_branch
    %11 = sbr.rel (0) target = $region9
  $region8: #{yolo_forward.50} parent=0 // pred_region
    _
  $region9: #{yolo_forward.50} parent=0 // pred_fallthru
    _
  // Predicated region
  $region10: #{yolo_forward.50} parent=0 // pred_check
    _
  $region11: #{yolo_forward.50} parent=0 // pred_check_branch
    %13 = sbr.rel (0) target = $region13
  $region12: #{yolo_forward.50} parent=0 // pred_region
    _
  $region13: #{yolo_forward.50} parent=0 // pred_fallthru
    _
  %p15 = scmp.eq.s32.totalorder 0, 0
  // Predicated region
  $region14: #{yolo_forward.50} parent=0 // pred_check
    %p16 = pneg %p15
  $region15: #{yolo_forward.50} parent=0 // pred_check_branch
    %18 = sbr.rel (%p16) target = $region17
  $region16: #{yolo_forward.50} parent=0 // pred_region
    %19 = vst [vmem:[#allocation2] sm:$0xf] 0.0
  $region17: #{yolo_forward.50} parent=0 // pred_fallthru
    _
  %v20 = vld [vmem:[#allocation2] sm:$0xf]
  %v21 = vld [vmem:[%s0] sm:$0x1]
  %v22 = vld [vmem:[%s1] sm:$0xff]
  %v23 = vld [vmem:[%s1 + $0x8] sm:$0xff]
  %v24 = vld [vmem:[%s1 + $0x10] sm:$0xff]
  %v25 = vld [vmem:[%s1 + $0x18] sm:$0xff]
  %v26 = vld [vmem:[%s1 + $0x20] sm:$0xff]
  %v27 = vld [vmem:[%s1 + $0x28] sm:$0xff]
  %v28 = vld [vmem:[%s1 + $0x30] sm:$0xff]
  %v29 = vld [vmem:[%s1 + $0x38] sm:$0xff]
  %v38 = vunpack.c.l.b16 %v22
  %v39 = vunpack.c.h.b16 %v22
  %v40 = vunpack.c.l.b16 %v23
  %v41 = vunpack.c.h.b16 %v23
  %v42 = vunpack.c.l.b16 %v24
  %v43 = vunpack.c.h.b16 %v24
  %v44 = vunpack.c.l.b16 %v25
  %v45 = vunpack.c.h.b16 %v25
  %v46 = vunpack.c.l.b16 %v26
  %v47 = vunpack.c.h.b16 %v26
  %v48 = vunpack.c.l.b16 %v27
  %v49 = vunpack.c.h.b16 %v27
  %v50 = vunpack.c.l.b16 %v28
  %v51 = vunpack.c.h.b16 %v28
  %v52 = vunpack.c.l.b16 %v29
  %v53 = vunpack.c.h.b16 %v29
  %v54 = vpack.c.b16 %v40, %v38
  %v55 = vpack.c.b16 %v41, %v39
  %v56 = vpack.c.b16 %v44, %v42
  %v57 = vpack.c.b16 %v45, %v43
  %v58 = vpack.c.b16 %v48, %v46
  %v59 = vpack.c.b16 %v49, %v47
  %v60 = vpack.c.b16 %v52, %v50
  %v61 = vpack.c.b16 %v53, %v51
  %vm70 = vcmask 523264
  %v72 = vsel %vm70, %v21, 0
  %74 = vmatprep.subr.bf16.mxu0 0
  %75 = vmatpush1.bf16.msra.mxu0 0
  %76 = vmatprep.subr.bf16.mxu0 0
  %77 = vmatpush1.bf16.msra.mxu0 0
  %78 = vmatprep.subr.bf16.mxu0 0
  %79 = vmatpush1.bf16.msra.mxu0 0
  %80 = vmatprep.subr.bf16.mxu0 0
  %81 = vmatpush1.bf16.msra.mxu0 0
  %82 = vmatprep.subr.bf16.mxu0 %v61
  %83 = vmatpush1.bf16.msra.mxu0 %v60
  %84 = vmatprep.subr.bf16.mxu0 %v59
  %85 = vmatpush1.bf16.msra.mxu0 %v58
  %86 = vmatprep.subr.bf16.mxu0 %v57
  %87 = vmatpush1.bf16.msra.mxu0 %v56
  %88 = vmatprep.subr.bf16.mxu0 %v55
  %89 = vmatpush1.bf16.msra.mxu0 %v54
  %90 = vmatprep.subr.bf16.mxu0 0
  %91 = vmatpush2.bf16.msra.mxu0 0
  %92 = vmatprep.subr.bf16.mxu0 0
  %93 = vmatpush2.bf16.msra.mxu0 0
  %94 = vmatprep.subr.bf16.mxu0 0
  %95 = vmatpush2.bf16.msra.mxu0 0
  %96 = vmatprep.subr.bf16.mxu0 0
  %97 = vmatpush2.bf16.msra.mxu0 0
  %98 = vmatprep.subr.bf16.mxu0 0
  %99 = vmatpush2.bf16.msra.mxu0 0
  %100 = vmatprep.subr.bf16.mxu0 0
  %101 = vmatpush2.bf16.msra.mxu0 0
  %102 = vmatprep.subr.bf16.mxu0 0
  %103 = vmatpush2.bf16.msra.mxu0 0
  %104 = vmatprep.subr.bf16.mxu0 0
  %105 = vmatpush2.bf16.msra.mxu0 0
  %106 = vmatprep.mubr.bf16.mxu0 0
  %107 = vmatmul.mubr.bf16.gmra.mxu0 %v72
  %v108 = vpop.f32.mrf.mxu0
  %v109 = vadd.f32 0.0, %v108
  %v110 = vpop.f32.mrf.mxu0
  %v111 = vadd.f32 0.0, %v110
  %v112 = vpop.f32.mrf.mxu0
  %v113 = vpop.f32.mrf.mxu0
  %114 = vdwg.mxu0
  %v117 = vcombine.low %v109, %v111
  %v119 = vunpack.c.l.s4 1983009808
  %v120 = vunpack.c.0.s8 %v119
  %v121 = vlaneseq
  %v122 = vshrl.u32 %v121, 7
  %v123 = vsub.s32 %v120, %v122
  %v124 = vrot.slane %v117, %v123
  %v126 = vadd.f32 %v20, %v124
  %127 = vst [vmem:[#allocation2] sm:$0xf] %v126
  // Predicated region
  $region18: #{yolo_forward.50} parent=0 // pred_check
    %p128 = pneg %p15
  $region19: #{yolo_forward.50} parent=0 // pred_check_branch
    %130 = sbr.rel (%p128) target = $region21
  $region20: #{yolo_forward.50} parent=0 // pred_region
    %v131 = vld [vmem:[#allocation2] sm:$0xf]
    %v132 = vld [vmem:[%s2] sm:$0x3]
    %v134 = vlaneseq
    %v135 = vshrl.u32 %v134, 7
    %v136 = vsub.s32 0, %v135
    %v137 = vrot.slane %v132, %v136
    %v138 = vlaneseq
    %v139 = vshrl.u32 %v138, 7
    %v140 = vsub.s32 1, %v139
    %v141 = vrot.slane %v132, %v140
    %v142 = vcombine.low %v137, %v141
    %v144 = vunpack.c.l.s4 1983009808
    %v145 = vunpack.c.0.s8 %v144
    %v146 = vlaneseq
    %v147 = vshrl.u32 %v146, 7
    %v148 = vsub.s32 %v145, %v147
    %v149 = vrot.slane %v142, %v148
    %v151 = vadd.f32 %v131, %v149
    %vm152 = vcmp.gt.f32.partialorder %v151, 0.0
    %v153 = vmul.f32 %v151, 0.01
    %v154 = vsel %vm152, %v151, %v153
    %v157 = vunpack.c.l.s4 1983009808
    %v158 = vunpack.c.0.s8 %v157
    %v159 = vlaneseq
    %v160 = vshrl.u32 %v159, 7
    %v161 = vsub.s32 %v158, %v160
    %v162 = vrot.slane %v154, %v161
    %v163 = vcombine.high %v162, %v162
    %v166 = vpack.c.bf16 %v162, %v162
    %v167 = vpack.c.bf16 %v163, %v163
    %v170 = vcombine.low %v166, %v167
    %v172 = vunpack.c.l.s4 1966171168
    %v173 = vunpack.c.0.s8 %v172
    %v174 = vlaneseq
    %v175 = vshrl.u32 %v174, 7
    %v176 = vsub.s32 %v173, %v175
    %v177 = vrot.slane %v170, %v176
    %v179 = vunpack.c.l.s4 1966171168
    %v180 = vunpack.c.0.s8 %v179
    %v181 = vlaneseq
    %v182 = vshrl.u32 %v181, 7
    %v183 = vsub.s32 %v180, %v182
    %v184 = vrot.slane %v177, %v183
    %186 = vst [vmem:[%s3] sm:$0x3] %v184
  $region21: #{yolo_forward.50} parent=0 // pred_fallthru
    _
  // Predicated region
  $region22: #{yolo_forward.50} parent=0 // pred_check
    _
  $region23: #{yolo_forward.50} parent=0 // pred_check_branch
    %188 = sbr.rel (0) target = $region25
  $region24: #{yolo_forward.50} parent=0 // pred_region
    _
  $region25: #{yolo_forward.50} parent=0 // pred_fallthru
    _
  // Predicated region
  $region26: #{yolo_forward.50} parent=0 // pred_check
    _
  $region27: #{yolo_forward.50} parent=0 // pred_check_branch
    %190 = sbr.rel (0) target = $region29
  $region28: #{yolo_forward.50} parent=0 // pred_region
    _
  $region29: #{yolo_forward.50} parent=0 // pred_fallthru
    _

// kernel: yolo_forward.51
$region0: #{yolo_forward.51}
  #allocation0 [shape = 'u32[]', space=smem, size = 0x4, offset = 0x4, fixed_abs, tag = 'smem constant byte address 0x4 - core index']
  #allocation1 [shape = 'u32[144,128]{1,0:T(1,128)}', space=vmem, size = 0x12000, scoped, tag = 'internal scratch']
  #allocation2 [shape = 'f32[2,686]{1,0:T(2,128)}', space=vmem, size = 0x1800, scoped, tag = 'scratch operand']
  %s0 = inlined_call_operand.vmem [shape: bf16[2,256], index: 0, kind: input, shape index: {}]
  %s1 = inlined_call_operand.vmem [shape: bf16[256,686], index: 1, kind: input, shape index: {}]
  %s2 = inlined_call_operand.vmem [shape: f32[1,686], index: 2, kind: input, shape index: {}]
  %s3 = inlined_call_operand.vmem [shape: bf16[2,686], index: 3, kind: output, shape index: {}]
  %s4 = sld [smem:[#allocation0]]
  $region30: #{yolo_forward.51} parent=0
    _
  %s6 = ssub.s32 1, %s4
  %s7 = scalar_select 0, %s6, %s4
  // Predicated region
  $region2: #{yolo_forward.51} parent=0 // pred_check
    _
  $region3: #{yolo_forward.51} parent=0 // pred_check_branch
    %9 = sbr.rel (0) target = $region5
  $region4: #{yolo_forward.51} parent=0 // pred_region
    _
  $region5: #{yolo_forward.51} parent=0 // pred_fallthru
    _
  // Predicated region
  $region6: #{yolo_forward.51} parent=0 // pred_check
    _
  $region7: #{yolo_forward.51} parent=0 // pred_check_branch
    %11 = sbr.rel (0) target = $region9
  $region8: #{yolo_forward.51} parent=0 // pred_region
    _
  $region9: #{yolo_forward.51} parent=0 // pred_fallthru
    _
  // Predicated region
  $region10: #{yolo_forward.51} parent=0 // pred_check
    _
  $region11: #{yolo_forward.51} parent=0 // pred_check_branch
    %13 = sbr.rel (0) target = $region13
  $region12: #{yolo_forward.51} parent=0 // pred_region
    _
  $region13: #{yolo_forward.51} parent=0 // pred_fallthru
    _
  %p14 = scmp.eq.s32.totalorder 0, 0
  // Predicated region
  $region14: #{yolo_forward.51} parent=0 // pred_check
    %p15 = pneg %p14
  $region15: #{yolo_forward.51} parent=0 // pred_check_branch
    %17 = sbr.rel (%p15) target = $region17
  $region16: #{yolo_forward.51} parent=0 // pred_region
    %18 = vst [vmem:[#allocation2] sm:$0xff] 0.0
    %vm19 = vcmask 1041408
    %vm20 = vcmask 371714
    %vm21 = vmor %vm20, %vm19
    %22 = vst.msk [vmem:[#allocation2 + $0x8] sm:$0xf] %vm21, 0.0
  $region17: #{yolo_forward.51} parent=0 // pred_fallthru
    _
  %v23 = vld [vmem:[#allocation2] sm:$0xff]
  %v24 = vld [vmem:[#allocation2 + $0x8] sm:$0xf]
  %v25 = vld [vmem:[%s0] sm:$0x3]
  %v26 = vld [vmem:[%s1] sm:$0xff]
  %v27 = vld [vmem:[%s1 + $0x8] sm:$0xff]
  %v28 = vld [vmem:[%s1 + $0x10] sm:$0xff]
  %v29 = vld [vmem:[%s1 + $0x18] sm:$0xff]
  %v30 = vld [vmem:[%s1 + $0x20] sm:$0xff]
  %v31 = vld [vmem:[%s1 + $0x28] sm:$0xff]
  %v32 = vld [vmem:[%s1 + $0x30] sm:$0xff]
  %v33 = vld [vmem:[%s1 + $0x38] sm:$0xff]
  %v34 = vld [vmem:[%s1 + $0x40] sm:$0xff]
  %v35 = vld [vmem:[%s1 + $0x48] sm:$0xff]
  %v36 = vld [vmem:[%s1 + $0x50] sm:$0xff]
  %v37 = vld [vmem:[%s1 + $0x58] sm:$0xff]
  %v38 = vld [vmem:[%s1 + $0x60] sm:$0xff]
  %v39 = vld [vmem:[%s1 + $0x68] sm:$0xff]
  %v40 = vld [vmem:[%s1 + $0x70] sm:$0xff]
  %v41 = vld [vmem:[%s1 + $0x78] sm:$0xff]
  %v42 = vld [vmem:[%s1 + $0x80] sm:$0xff]
  %v43 = vld [vmem:[%s1 + $0x88] sm:$0xff]
  %v44 = vld [vmem:[%s1 + $0x90] sm:$0xff]
  %v45 = vld [vmem:[%s1 + $0x98] sm:$0xff]
  %v46 = vld [vmem:[%s1 + $0xa0] sm:$0xff]
  %v47 = vld [vmem:[%s1 + $0xa8] sm:$0xff]
  %v48 = vld [vmem:[%s1 + $0xb0] sm:$0xff]
  %v49 = vld [vmem:[%s1 + $0xb8] sm:$0xff]
  %v50 = vld [vmem:[%s1 + $0xc0] sm:$0xff]
  %v51 = vld [vmem:[%s1 + $0xc8] sm:$0xff]
  %v52 = vld [vmem:[%s1 + $0xd0] sm:$0xff]
  %v53 = vld [vmem:[%s1 + $0xd8] sm:$0xff]
  %v54 = vld [vmem:[%s1 + $0xe0] sm:$0xff]
  %v55 = vld [vmem:[%s1 + $0xe8] sm:$0xff]
  %v56 = vld [vmem:[%s1 + $0xf0] sm:$0xff]
  %v57 = vld [vmem:[%s1 + $0xf8] sm:$0xff]
  %v58 = vld [vmem:[%s1 + $0x100] sm:$0xff]
  %v59 = vld [vmem:[%s1 + $0x108] sm:$0xff]
  %v60 = vld [vmem:[%s1 + $0x110] sm:$0xff]
  %v61 = vld [vmem:[%s1 + $0x118] sm:$0xff]
  %v62 = vld [vmem:[%s1 + $0x120] sm:$0xff]
  %v63 = vld [vmem:[%s1 + $0x128] sm:$0xff]
  %v64 = vld [vmem:[%s1 + $0x130] sm:$0xff]
  %v65 = vld [vmem:[%s1 + $0x138] sm:$0xff]
  %v66 = vld [vmem:[%s1 + $0x140] sm:$0xff]
  %v67 = vld [vmem:[%s1 + $0x148] sm:$0xff]
  %v68 = vld [vmem:[%s1 + $0x150] sm:$0xff]
  %v69 = vld [vmem:[%s1 + $0x158] sm:$0xff]
  %v70 = vld [vmem:[%s1 + $0x160] sm:$0xff]
  %v71 = vld [vmem:[%s1 + $0x168] sm:$0xff]
  %v72 = vld [vmem:[%s1 + $0x170] sm:$0xff]
  %v73 = vld [vmem:[%s1 + $0x178] sm:$0xff]
  %v74 = vld [vmem:[%s1 + $0x180] sm:$0xff]
  %v75 = vld [vmem:[%s1 + $0x188] sm:$0xff]
  %v76 = vld [vmem:[%s1 + $0x190] sm:$0xff]
  %v77 = vld [vmem:[%s1 + $0x198] sm:$0xff]
  %v78 = vld [vmem:[%s1 + $0x1a0] sm:$0xff]
  %v79 = vld [vmem:[%s1 + $0x1a8] sm:$0xff]
  %v80 = vld [vmem:[%s1 + $0x1b0] sm:$0xff]
  %v81 = vld [vmem:[%s1 + $0x1b8] sm:$0xff]
  %v82 = vld [vmem:[%s1 + $0x1c0] sm:$0xff]
  %v83 = vld [vmem:[%s1 + $0x1c8] sm:$0xff]
  %v84 = vld [vmem:[%s1 + $0x1d0] sm:$0xff]
  %v85 = vld [vmem:[%s1 + $0x1d8] sm:$0xff]
  %v86 = vld [vmem:[%s1 + $0x1e0] sm:$0xff]
  %v87 = vld [vmem:[%s1 + $0x1e8] sm:$0xff]
  %v88 = vld [vmem:[%s1 + $0x1f0] sm:$0xff]
  %v89 = vld [vmem:[%s1 + $0x1f8] sm:$0xff]
  %v90 = vld [vmem:[%s1 + $0x200] sm:$0xff]
  %v91 = vld [vmem:[%s1 + $0x208] sm:$0xff]
  %v92 = vld [vmem:[%s1 + $0x210] sm:$0xff]
  %v93 = vld [vmem:[%s1 + $0x218] sm:$0xff]
  %v94 = vld [vmem:[%s1 + $0x220] sm:$0xff]
  %v95 = vld [vmem:[%s1 + $0x228] sm:$0xff]
  %v96 = vld [vmem:[%s1 + $0x230] sm:$0xff]
  %v97 = vld [vmem:[%s1 + $0x238] sm:$0xff]
  %v98 = vld [vmem:[%s1 + $0x240] sm:$0xff]
  %v99 = vld [vmem:[%s1 + $0x248] sm:$0xff]
  %v100 = vld [vmem:[%s1 + $0x250] sm:$0xff]
  %v101 = vld [vmem:[%s1 + $0x258] sm:$0xff]
  %v102 = vld [vmem:[%s1 + $0x260] sm:$0xff]
  %v103 = vld [vmem:[%s1 + $0x268] sm:$0xff]
  %v104 = vld [vmem:[%s1 + $0x270] sm:$0xff]
  %v105 = vld [vmem:[%s1 + $0x278] sm:$0xff]
  %v106 = vld [vmem:[%s1 + $0x280] sm:$0xff]
  %v107 = vld [vmem:[%s1 + $0x288] sm:$0xff]
  %v108 = vld [vmem:[%s1 + $0x290] sm:$0xff]
  %v109 = vld [vmem:[%s1 + $0x298] sm:$0xff]
  %v110 = vld [vmem:[%s1 + $0x2a0] sm:$0xff]
  %v111 = vld [vmem:[%s1 + $0x2a8] sm:$0xff]
  %v112 = vld [vmem:[%s1 + $0x2b0] sm:$0xff]
  %v113 = vld [vmem:[%s1 + $0x2b8] sm:$0xff]
  %v114 = vld [vmem:[%s1 + $0x2c0] sm:$0xff]
  %v115 = vld [vmem:[%s1 + $0x2c8] sm:$0xff]
  %v116 = vld [vmem:[%s1 + $0x2d0] sm:$0xff]
  %v117 = vld [vmem:[%s1 + $0x2d8] sm:$0xff]
  %v118 = vld [vmem:[%s1 + $0x2e0] sm:$0xff]
  %v119 = vld [vmem:[%s1 + $0x2e8] sm:$0xff]
  %v120 = vld [vmem:[%s1 + $0x2f0] sm:$0xff]
  %v121 = vld [vmem:[%s1 + $0x2f8] sm:$0xff]
  %v124 = vunpack.c.l.s4 1966171168
  %v125 = vunpack.c.0.s8 %v124
  %v126 = vlaneseq
  %v127 = vshrl.u32 %v126, 7
  %v128 = vsub.s32 %v125, %v127
  %v129 = vrot.slane %v25, %v128
  %v130 = vcombine.high %v129, %v129
  %v132 = vunpack.c.l.s4 1966171168
  %v133 = vunpack.c.0.s8 %v132
  %v134 = vlaneseq
  %v135 = vshrl.u32 %v134, 7
  %v136 = vsub.s32 %v133, %v135
  %v137 = vrot.slane %v129, %v136
  %v139 = vunpack.c.l.s4 1966171168
  %v140 = vunpack.c.0.s8 %v139
  %v141 = vlaneseq
  %v142 = vshrl.u32 %v141, 7
  %v143 = vsub.s32 %v140, %v142
  %v144 = vrot.slane %v130, %v143
  %v243 = vunpack.c.l.b16 %v26
  %v244 = vunpack.c.h.b16 %v26
  %v245 = vunpack.c.l.b16 %v27
  %v246 = vunpack.c.h.b16 %v27
  %v247 = vunpack.c.l.b16 %v28
  %v248 = vunpack.c.h.b16 %v28
  %v249 = vunpack.c.l.b16 %v29
  %v250 = vunpack.c.h.b16 %v29
  %v251 = vunpack.c.l.b16 %v30
  %v252 = vunpack.c.h.b16 %v30
  %v253 = vunpack.c.l.b16 %v31
  %v254 = vunpack.c.h.b16 %v31
  %v255 = vunpack.c.l.b16 %v32
  %v256 = vunpack.c.h.b16 %v32
  %v257 = vunpack.c.l.b16 %v33
  %v258 = vunpack.c.h.b16 %v33
  %v259 = vunpack.c.l.b16 %v34
  %v260 = vunpack.c.h.b16 %v34
  %v261 = vunpack.c.l.b16 %v35
  %v262 = vunpack.c.h.b16 %v35
  %v263 = vunpack.c.l.b16 %v36
  %v264 = vunpack.c.h.b16 %v36
  %v265 = vunpack.c.l.b16 %v37
  %v266 = vunpack.c.h.b16 %v37
  %v267 = vunpack.c.l.b16 %v38
  %v268 = vunpack.c.h.b16 %v38
  %v269 = vunpack.c.l.b16 %v39
  %v270 = vunpack.c.h.b16 %v39
  %v271 = vunpack.c.l.b16 %v40
  %v272 = vunpack.c.h.b16 %v40
  %v273 = vunpack.c.l.b16 %v41
  %v274 = vunpack.c.h.b16 %v41
  %v275 = vunpack.c.l.b16 %v42
  %v276 = vunpack.c.h.b16 %v42
  %v277 = vunpack.c.l.b16 %v43
  %v278 = vunpack.c.h.b16 %v43
  %v279 = vunpack.c.l.b16 %v44
  %v280 = vunpack.c.h.b16 %v44
  %v281 = vunpack.c.l.b16 %v45
  %v282 = vunpack.c.h.b16 %v45
  %v283 = vunpack.c.l.b16 %v46
  %v284 = vunpack.c.h.b16 %v46
  %v285 = vunpack.c.l.b16 %v47
  %v286 = vunpack.c.h.b16 %v47
  %v287 = vunpack.c.l.b16 %v48
  %v288 = vunpack.c.h.b16 %v48
  %v289 = vunpack.c.l.b16 %v49
  %v290 = vunpack.c.h.b16 %v49
  %v291 = vunpack.c.l.b16 %v50
  %v292 = vunpack.c.h.b16 %v50
  %v293 = vunpack.c.l.b16 %v51
  %v294 = vunpack.c.h.b16 %v51
  %v295 = vunpack.c.l.b16 %v52
  %v296 = vunpack.c.h.b16 %v52
  %v297 = vunpack.c.l.b16 %v53
  %v298 = vunpack.c.h.b16 %v53
  %v299 = vunpack.c.l.b16 %v54
  %v300 = vunpack.c.h.b16 %v54
  %v301 = vunpack.c.l.b16 %v55
  %v302 = vunpack.c.h.b16 %v55
  %v303 = vunpack.c.l.b16 %v56
  %v304 = vunpack.c.h.b16 %v56
  %v305 = vunpack.c.l.b16 %v57
  %v306 = vunpack.c.h.b16 %v57
  %v307 = vunpack.c.l.b16 %v58
  %v308 = vunpack.c.h.b16 %v58
  %v309 = vunpack.c.l.b16 %v59
  %v310 = vunpack.c.h.b16 %v59
  %v311 = vunpack.c.l.b16 %v60
  %v312 = vunpack.c.h.b16 %v60
  %v313 = vunpack.c.l.b16 %v61
  %v314 = vunpack.c.h.b16 %v61
  %v315 = vunpack.c.l.b16 %v62
  %v316 = vunpack.c.h.b16 %v62
  %v317 = vunpack.c.l.b16 %v63
  %v318 = vunpack.c.h.b16 %v63
  %v319 = vunpack.c.l.b16 %v64
  %v320 = vunpack.c.h.b16 %v64
  %v321 = vunpack.c.l.b16 %v65
  %v322 = vunpack.c.h.b16 %v65
  %v323 = vunpack.c.l.b16 %v66
  %v324 = vunpack.c.h.b16 %v66
  %v325 = vunpack.c.l.b16 %v67
  %v326 = vunpack.c.h.b16 %v67
  %v327 = vunpack.c.l.b16 %v68
  %v328 = vunpack.c.h.b16 %v68
  %v329 = vunpack.c.l.b16 %v69
  %v330 = vunpack.c.h.b16 %v69
  %v331 = vunpack.c.l.b16 %v70
  %v332 = vunpack.c.h.b16 %v70
  %v333 = vunpack.c.l.b16 %v71
  %v334 = vunpack.c.h.b16 %v71
  %v335 = vunpack.c.l.b16 %v72
  %v336 = vunpack.c.h.b16 %v72
  %v337 = vunpack.c.l.b16 %v73
  %v338 = vunpack.c.h.b16 %v73
  %v339 = vunpack.c.l.b16 %v74
  %v340 = vunpack.c.h.b16 %v74
  %v341 = vunpack.c.l.b16 %v75
  %v342 = vunpack.c.h.b16 %v75
  %v343 = vunpack.c.l.b16 %v76
  %v344 = vunpack.c.h.b16 %v76
  %v345 = vunpack.c.l.b16 %v77
  %v346 = vunpack.c.h.b16 %v77
  %v347 = vunpack.c.l.b16 %v78
  %v348 = vunpack.c.h.b16 %v78
  %v349 = vunpack.c.l.b16 %v79
  %v350 = vunpack.c.h.b16 %v79
  %v351 = vunpack.c.l.b16 %v80
  %v352 = vunpack.c.h.b16 %v80
  %v353 = vunpack.c.l.b16 %v81
  %v354 = vunpack.c.h.b16 %v81
  %v355 = vunpack.c.l.b16 %v82
  %v356 = vunpack.c.h.b16 %v82
  %v357 = vunpack.c.l.b16 %v83
  %v358 = vunpack.c.h.b16 %v83
  %v359 = vunpack.c.l.b16 %v84
  %v360 = vunpack.c.h.b16 %v84
  %v361 = vunpack.c.l.b16 %v85
  %v362 = vunpack.c.h.b16 %v85
  %v363 = vunpack.c.l.b16 %v86
  %v364 = vunpack.c.h.b16 %v86
  %v365 = vunpack.c.l.b16 %v87
  %v366 = vunpack.c.h.b16 %v87
  %v367 = vunpack.c.l.b16 %v88
  %v368 = vunpack.c.h.b16 %v88
  %v369 = vunpack.c.l.b16 %v89
  %v370 = vunpack.c.h.b16 %v89
  %v371 = vunpack.c.l.b16 %v90
  %v372 = vunpack.c.h.b16 %v90
  %v373 = vunpack.c.l.b16 %v91
  %v374 = vunpack.c.h.b16 %v91
  %v375 = vunpack.c.l.b16 %v92
  %v376 = vunpack.c.h.b16 %v92
  %v377 = vunpack.c.l.b16 %v93
  %v378 = vunpack.c.h.b16 %v93
  %v379 = vunpack.c.l.b16 %v94
  %v380 = vunpack.c.h.b16 %v94
  %v381 = vunpack.c.l.b16 %v95
  %v382 = vunpack.c.h.b16 %v95
  %v383 = vunpack.c.l.b16 %v96
  %v384 = vunpack.c.h.b16 %v96
  %v385 = vunpack.c.l.b16 %v97
  %v386 = vunpack.c.h.b16 %v97
  %v387 = vunpack.c.l.b16 %v98
  %v388 = vunpack.c.h.b16 %v98
  %v389 = vunpack.c.l.b16 %v99
  %v390 = vunpack.c.h.b16 %v99
  %v391 = vunpack.c.l.b16 %v100
  %v392 = vunpack.c.h.b16 %v100
  %v393 = vunpack.c.l.b16 %v101
  %v394 = vunpack.c.h.b16 %v101
  %v395 = vunpack.c.l.b16 %v102
  %v396 = vunpack.c.h.b16 %v102
  %v397 = vunpack.c.l.b16 %v103
  %v398 = vunpack.c.h.b16 %v103
  %v399 = vunpack.c.l.b16 %v104
  %v400 = vunpack.c.h.b16 %v104
  %v401 = vunpack.c.l.b16 %v105
  %v402 = vunpack.c.h.b16 %v105
  %v403 = vunpack.c.l.b16 %v106
  %v404 = vunpack.c.h.b16 %v106
  %v405 = vunpack.c.l.b16 %v107
  %v406 = vunpack.c.h.b16 %v107
  %v407 = vunpack.c.l.b16 %v108
  %v408 = vunpack.c.h.b16 %v108
  %v409 = vunpack.c.l.b16 %v109
  %v410 = vunpack.c.h.b16 %v109
  %v411 = vunpack.c.l.b16 %v110
  %v412 = vunpack.c.h.b16 %v110
  %v413 = vunpack.c.l.b16 %v111
  %v414 = vunpack.c.h.b16 %v111
  %v415 = vunpack.c.l.b16 %v112
  %v416 = vunpack.c.h.b16 %v112
  %v417 = vunpack.c.l.b16 %v113
  %v418 = vunpack.c.h.b16 %v113
  %v419 = vunpack.c.l.b16 %v114
  %v420 = vunpack.c.h.b16 %v114
  %v421 = vunpack.c.l.b16 %v115
  %v422 = vunpack.c.h.b16 %v115
  %v423 = vunpack.c.l.b16 %v116
  %v424 = vunpack.c.h.b16 %v116
  %v425 = vunpack.c.l.b16 %v117
  %v426 = vunpack.c.h.b16 %v117
  %v427 = vunpack.c.l.b16 %v118
  %v428 = vunpack.c.h.b16 %v118
  %v429 = vunpack.c.l.b16 %v119
  %v430 = vunpack.c.h.b16 %v119
  %v431 = vunpack.c.l.b16 %v120
  %v432 = vunpack.c.h.b16 %v120
  %v433 = vunpack.c.l.b16 %v121
  %v434 = vunpack.c.h.b16 %v121
  %v435 = vpack.c.b16 %v249, %v243
  %v436 = vpack.c.b16 %v250, %v244
  %v437 = vpack.c.b16 %v251, %v245
  %v438 = vpack.c.b16 %v252, %v246
  %v439 = vpack.c.b16 %v253, %v247
  %v440 = vpack.c.b16 %v254, %v248
  %v441 = vpack.c.b16 %v261, %v255
  %v442 = vpack.c.b16 %v262, %v256
  %v443 = vpack.c.b16 %v263, %v257
  %v444 = vpack.c.b16 %v264, %v258
  %v445 = vpack.c.b16 %v265, %v259
  %v446 = vpack.c.b16 %v266, %v260
  %v447 = vpack.c.b16 %v273, %v267
  %v448 = vpack.c.b16 %v274, %v268
  %v449 = vpack.c.b16 %v275, %v269
  %v450 = vpack.c.b16 %v276, %v270
  %v451 = vpack.c.b16 %v277, %v271
  %v452 = vpack.c.b16 %v278, %v272
  %v453 = vpack.c.b16 %v285, %v279
  %v454 = vpack.c.b16 %v286, %v280
  %v455 = vpack.c.b16 %v287, %v281
  %v456 = vpack.c.b16 %v288, %v282
  %v457 = vpack.c.b16 %v289, %v283
  %v458 = vpack.c.b16 %v290, %v284
  %v459 = vpack.c.b16 %v297, %v291
  %v460 = vpack.c.b16 %v298, %v292
  %v461 = vpack.c.b16 %v299, %v293
  %v462 = vpack.c.b16 %v300, %v294
  %v463 = vpack.c.b16 %v301, %v295
  %v464 = vpack.c.b16 %v302, %v296
  %v465 = vpack.c.b16 %v309, %v303
  %v466 = vpack.c.b16 %v310, %v304
  %v467 = vpack.c.b16 %v311, %v305
  %v468 = vpack.c.b16 %v312, %v306
  %v469 = vpack.c.b16 %v313, %v307
  %v470 = vpack.c.b16 %v314, %v308
  %v471 = vpack.c.b16 %v321, %v315
  %v472 = vpack.c.b16 %v322, %v316
  %v473 = vpack.c.b16 %v323, %v317
  %v474 = vpack.c.b16 %v324, %v318
  %v475 = vpack.c.b16 %v325, %v319
  %v476 = vpack.c.b16 %v326, %v320
  %v477 = vpack.c.b16 %v333, %v327
  %v478 = vpack.c.b16 %v334, %v328
  %v479 = vpack.c.b16 %v335, %v329
  %v480 = vpack.c.b16 %v336, %v330
  %v481 = vpack.c.b16 %v337, %v331
  %v482 = vpack.c.b16 %v338, %v332
  %v483 = vpack.c.b16 %v345, %v339
  %v484 = vpack.c.b16 %v346, %v340
  %v485 = vpack.c.b16 %v347, %v341
  %v486 = vpack.c.b16 %v348, %v342
  %v487 = vpack.c.b16 %v349, %v343
  %v488 = vpack.c.b16 %v350, %v344
  %v489 = vpack.c.b16 %v357, %v351
  %v490 = vpack.c.b16 %v358, %v352
  %v491 = vpack.c.b16 %v359, %v353
  %v492 = vpack.c.b16 %v360, %v354
  %v493 = vpack.c.b16 %v361, %v355
  %v494 = vpack.c.b16 %v362, %v356
  %v495 = vpack.c.b16 %v369, %v363
  %v496 = vpack.c.b16 %v370, %v364
  %v497 = vpack.c.b16 %v371, %v365
  %v498 = vpack.c.b16 %v372, %v366
  %v499 = vpack.c.b16 %v373, %v367
  %v500 = vpack.c.b16 %v374, %v368
  %v501 = vpack.c.b16 %v381, %v375
  %v502 = vpack.c.b16 %v382, %v376
  %v503 = vpack.c.b16 %v383, %v377
  %v504 = vpack.c.b16 %v384, %v378
  %v505 = vpack.c.b16 %v385, %v379
  %v506 = vpack.c.b16 %v386, %v380
  %v507 = vpack.c.b16 %v393, %v387
  %v508 = vpack.c.b16 %v394, %v388
  %v509 = vpack.c.b16 %v395, %v389
  %v510 = vpack.c.b16 %v396, %v390
  %v511 = vpack.c.b16 %v397, %v391
  %v512 = vpack.c.b16 %v398, %v392
  %v513 = vpack.c.b16 %v405, %v399
  %v514 = vpack.c.b16 %v406, %v400
  %v515 = vpack.c.b16 %v407, %v401
  %v516 = vpack.c.b16 %v408, %v402
  %v517 = vpack.c.b16 %v409, %v403
  %v518 = vpack.c.b16 %v410, %v404
  %v519 = vpack.c.b16 %v417, %v411
  %v520 = vpack.c.b16 %v418, %v412
  %v521 = vpack.c.b16 %v419, %v413
  %v522 = vpack.c.b16 %v420, %v414
  %v523 = vpack.c.b16 %v421, %v415
  %v524 = vpack.c.b16 %v422, %v416
  %v525 = vpack.c.b16 %v429, %v423
  %v526 = vpack.c.b16 %v430, %v424
  %v527 = vpack.c.b16 %v431, %v425
  %v528 = vpack.c.b16 %v432, %v426
  %v529 = vpack.c.b16 %v433, %v427
  %v530 = vpack.c.b16 %v434, %v428
  %627 = vmatprep.subr.bf16.mxu0 %v478
  %628 = vmatpush1.bf16.msra.mxu0 %v477
  %629 = vmatprep.subr.bf16.mxu0 %v472
  %630 = vmatpush1.bf16.msra.mxu0 %v471
  %631 = vmatprep.subr.bf16.mxu0 %v466
  %632 = vmatpush1.bf16.msra.mxu0 %v465
  %633 = vmatprep.subr.bf16.mxu0 %v460
  %634 = vmatpush1.bf16.msra.mxu0 %v459
  %635 = vmatprep.subr.bf16.mxu0 %v454
  %636 = vmatpush1.bf16.msra.mxu0 %v453
  %637 = vmatprep.subr.bf16.mxu0 %v448
  %638 = vmatpush1.bf16.msra.mxu0 %v447
  %639 = vmatprep.subr.bf16.mxu0 %v442
  %640 = vmatpush1.bf16.msra.mxu0 %v441
  %641 = vmatprep.subr.bf16.mxu0 %v436
  %642 = vmatpush1.bf16.msra.mxu0 %v435
  %643 = vmatprep.subr.bf16.mxu0 %v526
  %644 = vmatpush2.bf16.msra.mxu0 %v525
  %645 = vmatprep.subr.bf16.mxu0 %v520
  %646 = vmatpush2.bf16.msra.mxu0 %v519
  %647 = vmatprep.subr.bf16.mxu0 %v514
  %648 = vmatpush2.bf16.msra.mxu0 %v513
  %649 = vmatprep.subr.bf16.mxu0 %v508
  %650 = vmatpush2.bf16.msra.mxu0 %v507
  %651 = vmatprep.subr.bf16.mxu0 %v502
  %652 = vmatpush2.bf16.msra.mxu0 %v501
  %653 = vmatprep.subr.bf16.mxu0 %v496
  %654 = vmatpush2.bf16.msra.mxu0 %v495
  %655 = vmatprep.subr.bf16.mxu0 %v490
  %656 = vmatpush2.bf16.msra.mxu0 %v489
  %657 = vmatprep.subr.bf16.mxu0 %v484
  %658 = vmatpush2.bf16.msra.mxu0 %v483
  %659 = vmatprep.mubr.bf16.mxu0 %v144
  %660 = vmatmul.mubr.bf16.gmra.mxu0 %v137
  %v661 = vpop.f32.mrf.mxu0
  %v662 = vadd.f32 0.0, %v661
  %v663 = vpop.f32.mrf.mxu0
  %v664 = vadd.f32 0.0, %v663
  %v665 = vpop.f32.mrf.mxu0
  %v666 = vpop.f32.mrf.mxu0
  %667 = vdwg.mxu0
  %668 = vmatprep.subr.bf16.mxu0 %v480
  %669 = vmatpush1.bf16.msra.mxu0 %v479
  %670 = vmatprep.subr.bf16.mxu0 %v474
  %671 = vmatpush1.bf16.msra.mxu0 %v473
  %672 = vmatprep.subr.bf16.mxu0 %v468
  %673 = vmatpush1.bf16.msra.mxu0 %v467
  %674 = vmatprep.subr.bf16.mxu0 %v462
  %675 = vmatpush1.bf16.msra.mxu0 %v461
  %676 = vmatprep.subr.bf16.mxu0 %v456
  %677 = vmatpush1.bf16.msra.mxu0 %v455
  %678 = vmatprep.subr.bf16.mxu0 %v450
  %679 = vmatpush1.bf16.msra.mxu0 %v449
  %680 = vmatprep.subr.bf16.mxu0 %v444
  %681 = vmatpush1.bf16.msra.mxu0 %v443
  %682 = vmatprep.subr.bf16.mxu0 %v438
  %683 = vmatpush1.bf16.msra.mxu0 %v437
  %684 = vmatprep.subr.bf16.mxu0 %v528
  %685 = vmatpush2.bf16.msra.mxu0 %v527
  %686 = vmatprep.subr.bf16.mxu0 %v522
  %687 = vmatpush2.bf16.msra.mxu0 %v521
  %688 = vmatprep.subr.bf16.mxu0 %v516
  %689 = vmatpush2.bf16.msra.mxu0 %v515
  %690 = vmatprep.subr.bf16.mxu0 %v510
  %691 = vmatpush2.bf16.msra.mxu0 %v509
  %692 = vmatprep.subr.bf16.mxu0 %v504
  %693 = vmatpush2.bf16.msra.mxu0 %v503
  %694 = vmatprep.subr.bf16.mxu0 %v498
  %695 = vmatpush2.bf16.msra.mxu0 %v497
  %696 = vmatprep.subr.bf16.mxu0 %v492
  %697 = vmatpush2.bf16.msra.mxu0 %v491
  %698 = vmatprep.subr.bf16.mxu0 %v486
  %699 = vmatpush2.bf16.msra.mxu0 %v485
  %700 = vmatprep.mubr.bf16.mxu0 %v144
  %701 = vmatmul.mubr.bf16.gmra.mxu0 %v137
  %v702 = vpop.f32.mrf.mxu0
  %v703 = vadd.f32 0.0, %v702
  %v704 = vpop.f32.mrf.mxu0
  %v705 = vadd.f32 0.0, %v704
  %v706 = vpop.f32.mrf.mxu0
  %v707 = vpop.f32.mrf.mxu0
  %708 = vdwg.mxu0
  %709 = vmatprep.subr.bf16.mxu0 %v482
  %710 = vmatpush1.bf16.msra.mxu0 %v481
  %711 = vmatprep.subr.bf16.mxu0 %v476
  %712 = vmatpush1.bf16.msra.mxu0 %v475
  %713 = vmatprep.subr.bf16.mxu0 %v470
  %714 = vmatpush1.bf16.msra.mxu0 %v469
  %715 = vmatprep.subr.bf16.mxu0 %v464
  %716 = vmatpush1.bf16.msra.mxu0 %v463
  %717 = vmatprep.subr.bf16.mxu0 %v458
  %718 = vmatpush1.bf16.msra.mxu0 %v457
  %719 = vmatprep.subr.bf16.mxu0 %v452
  %720 = vmatpush1.bf16.msra.mxu0 %v451
  %721 = vmatprep.subr.bf16.mxu0 %v446
  %722 = vmatpush1.bf16.msra.mxu0 %v445
  %723 = vmatprep.subr.bf16.mxu0 %v440
  %724 = vmatpush1.bf16.msra.mxu0 %v439
  %725 = vmatprep.subr.bf16.mxu0 %v530
  %726 = vmatpush2.bf16.msra.mxu0 %v529
  %727 = vmatprep.subr.bf16.mxu0 %v524
  %728 = vmatpush2.bf16.msra.mxu0 %v523
  %729 = vmatprep.subr.bf16.mxu0 %v518
  %730 = vmatpush2.bf16.msra.mxu0 %v517
  %731 = vmatprep.subr.bf16.mxu0 %v512
  %732 = vmatpush2.bf16.msra.mxu0 %v511
  %733 = vmatprep.subr.bf16.mxu0 %v506
  %734 = vmatpush2.bf16.msra.mxu0 %v505
  %735 = vmatprep.subr.bf16.mxu0 %v500
  %736 = vmatpush2.bf16.msra.mxu0 %v499
  %737 = vmatprep.subr.bf16.mxu0 %v494
  %738 = vmatpush2.bf16.msra.mxu0 %v493
  %739 = vmatprep.subr.bf16.mxu0 %v488
  %740 = vmatpush2.bf16.msra.mxu0 %v487
  %741 = vmatprep.mubr.bf16.mxu0 %v144
  %742 = vmatmul.mubr.bf16.gmra.mxu0 %v137
  %v743 = vpop.f32.mrf.mxu0
  %v744 = vadd.f32 0.0, %v743
  %v745 = vpop.f32.mrf.mxu0
  %v746 = vadd.f32 0.0, %v745
  %v747 = vpop.f32.mrf.mxu0
  %v748 = vpop.f32.mrf.mxu0
  %749 = vdwg.mxu0
  %v756 = vcombine.low %v662, %v664
  %v757 = vcombine.low %v703, %v705
  %v759 = vunpack.c.l.s4 1983009808
  %v760 = vunpack.c.0.s8 %v759
  %v761 = vlaneseq
  %v762 = vshrl.u32 %v761, 7
  %v763 = vsub.s32 %v760, %v762
  %v764 = vrot.slane %v756, %v763
  %v766 = vunpack.c.l.s4 1983009808
  %v767 = vunpack.c.0.s8 %v766
  %v768 = vlaneseq
  %v769 = vshrl.u32 %v768, 7
  %v770 = vsub.s32 %v767, %v769
  %v771 = vrot.slane %v757, %v770
  %v772 = vcombine.low %v764, %v771
  %v773 = vcombine.low %v744, %v746
  %v775 = vunpack.c.l.s4 1983009808
  %v776 = vunpack.c.0.s8 %v775
  %v777 = vlaneseq
  %v778 = vshrl.u32 %v777, 7
  %v779 = vsub.s32 %v776, %v778
  %v780 = vrot.slane %v773, %v779
  %v783 = vadd.f32 %v23, %v772
  %v784 = vadd.f32 %v24, %v780
  %785 = vst [vmem:[#allocation2] sm:$0xff] %v783
  %vm786 = vcmask 1041408
  %vm787 = vcmask 371714
  %vm788 = vmor %vm787, %vm786
  %789 = vst.msk [vmem:[#allocation2 + $0x8] sm:$0xf] %vm788, %v784
  // Predicated region
  $region18: #{yolo_forward.51} parent=0 // pred_check
    %p790 = pneg %p14
  $region19: #{yolo_forward.51} parent=0 // pred_check_branch
    %792 = sbr.rel (%p790) target = $region21
  $region20: #{yolo_forward.51} parent=0 // pred_region
    %v793 = vld [vmem:[#allocation2] sm:$0xff]
    %v794 = vld [vmem:[#allocation2 + $0x8] sm:$0xf]
    %v795 = vld [vmem:[%s2] sm:$0x3f]
    %v797 = vlaneseq
    %v798 = vshrl.u32 %v797, 7
    %v799 = vsub.s32 0, %v798
    %v800 = vrot.slane %v795, %v799
    %v801 = vlaneseq
    %v802 = vshrl.u32 %v801, 7
    %v803 = vsub.s32 1, %v802
    %v804 = vrot.slane %v795, %v803
    %v805 = vlaneseq
    %v806 = vshrl.u32 %v805, 7
    %v807 = vsub.s32 2, %v806
    %v808 = vrot.slane %v795, %v807
    %v809 = vlaneseq
    %v810 = vshrl.u32 %v809, 7
    %v811 = vsub.s32 3, %v810
    %v812 = vrot.slane %v795, %v811
    %v813 = vlaneseq
    %v814 = vshrl.u32 %v813, 7
    %v815 = vsub.s32 4, %v814
    %v816 = vrot.slane %v795, %v815
    %v817 = vlaneseq
    %v818 = vshrl.u32 %v817, 7
    %v819 = vsub.s32 5, %v818
    %v820 = vrot.slane %v795, %v819
    %v821 = vcombine.low %v800, %v804
    %v822 = vcombine.low %v808, %v812
    %v824 = vunpack.c.l.s4 1983009808
    %v825 = vunpack.c.0.s8 %v824
    %v826 = vlaneseq
    %v827 = vshrl.u32 %v826, 7
    %v828 = vsub.s32 %v825, %v827
    %v829 = vrot.slane %v821, %v828
    %v831 = vunpack.c.l.s4 1983009808
    %v832 = vunpack.c.0.s8 %v831
    %v833 = vlaneseq
    %v834 = vshrl.u32 %v833, 7
    %v835 = vsub.s32 %v832, %v834
    %v836 = vrot.slane %v822, %v835
    %v837 = vcombine.low %v829, %v836
    %v838 = vcombine.low %v816, %v820
    %v840 = vunpack.c.l.s4 1983009808
    %v841 = vunpack.c.0.s8 %v840
    %v842 = vlaneseq
    %v843 = vshrl.u32 %v842, 7
    %v844 = vsub.s32 %v841, %v843
    %v845 = vrot.slane %v838, %v844
    %v848 = vadd.f32 %v793, %v837
    %v849 = vadd.f32 %v794, %v845
    %v852 = vcombine.high %v848, %v848
    %v854 = vunpack.c.l.s4 1983009808
    %v855 = vunpack.c.0.s8 %v854
    %v856 = vlaneseq
    %v857 = vshrl.u32 %v856, 7
    %v858 = vsub.s32 %v855, %v857
    %v859 = vrot.slane %v848, %v858
    %v861 = vunpack.c.l.s4 1983009808
    %v862 = vunpack.c.0.s8 %v861
    %v863 = vlaneseq
    %v864 = vshrl.u32 %v863, 7
    %v865 = vsub.s32 %v862, %v864
    %v866 = vrot.slane %v852, %v865
    %v867 = vcombine.high %v859, %v859
    %v868 = vcombine.high %v866, %v866
    %v870 = vunpack.c.l.s4 1983009808
    %v871 = vunpack.c.0.s8 %v870
    %v872 = vlaneseq
    %v873 = vshrl.u32 %v872, 7
    %v874 = vsub.s32 %v871, %v873
    %v875 = vrot.slane %v849, %v874
    %v876 = vcombine.high %v875, %v875
    %v883 = vpack.c.bf16 %v859, %v859
    %v884 = vpack.c.bf16 %v867, %v867
    %v885 = vpack.c.bf16 %v866, %v866
    %v886 = vpack.c.bf16 %v868, %v868
    %v887 = vpack.c.bf16 %v875, %v875
    %v888 = vpack.c.bf16 %v876, %v876
    %v895 = vcombine.low %v883, %v884
    %v896 = vcombine.low %v885, %v886
    %v897 = vcombine.low %v887, %v888
    %v899 = vunpack.c.l.s4 1966171168
    %v900 = vunpack.c.0.s8 %v899
    %v901 = vlaneseq
    %v902 = vshrl.u32 %v901, 7
    %v903 = vsub.s32 %v900, %v902
    %v904 = vrot.slane %v895, %v903
    %v906 = vunpack.c.l.s4 1966171168
    %v907 = vunpack.c.0.s8 %v906
    %v908 = vlaneseq
    %v909 = vshrl.u32 %v908, 7
    %v910 = vsub.s32 %v907, %v909
    %v911 = vrot.slane %v896, %v910
    %v913 = vunpack.c.l.s4 1966171168
    %v914 = vunpack.c.0.s8 %v913
    %v915 = vlaneseq
    %v916 = vshrl.u32 %v915, 7
    %v917 = vsub.s32 %v914, %v916
    %v918 = vrot.slane %v897, %v917
    %v919 = vcombine.low %v904, %v911
    %v921 = vunpack.c.l.s4 1966171168
    %v922 = vunpack.c.0.s8 %v921
    %v923 = vlaneseq
    %v924 = vshrl.u32 %v923, 7
    %v925 = vsub.s32 %v922, %v924
    %v926 = vrot.slane %v919, %v925
    %v928 = vunpack.c.l.s4 1966171168
    %v929 = vunpack.c.0.s8 %v928
    %v930 = vlaneseq
    %v931 = vshrl.u32 %v930, 7
    %v932 = vsub.s32 %v929, %v931
    %v933 = vrot.slane %v918, %v932
    %v934 = vcombine.low %v926, %v933
    %vm936 = vcmask 1040384
    %vm937 = vcmask 1041409
    %vm938 = vmor %vm937, %vm936
    %vm939 = vcmask 1042434
    %vm940 = vmor %vm939, %vm938
    %vm941 = vcmask 1043459
    %vm942 = vmor %vm941, %vm940
    %vm943 = vcmask 1044484
    %vm944 = vmor %vm943, %vm942
    %vm945 = vcmask 373765
    %vm946 = vmor %vm945, %vm944
    %947 = vst.msk [vmem:[%s3] sm:$0x3f] %vm946, %v934
  $region21: #{yolo_forward.51} parent=0 // pred_fallthru
    _
  // Predicated region
  $region22: #{yolo_forward.51} parent=0 // pred_check
    _
  $region23: #{yolo_forward.51} parent=0 // pred_check_branch
    %949 = sbr.rel (0) target = $region25
  $region24: #{yolo_forward.51} parent=0 // pred_region
    _
  $region25: #{yolo_forward.51} parent=0 // pred_fallthru
    _
  // Predicated region
  $region26: #{yolo_forward.51} parent=0 // pred_check
    _
  $region27: #{yolo_forward.51} parent=0 // pred_check_branch
    %951 = sbr.rel (0) target = $region29
  $region28: #{yolo_forward.51} parent=0 // pred_region
    _
  $region29: #{yolo_forward.51} parent=0 // pred_fallthru
    _

</llo_original>
